<compile_context>
chip_gen: v7x
topology: tpu7x:2x2x1
jax: 0.10.0
libtpu: 0.0.40
codegen_flags: <defaults>
</compile_context>

<pallas_src>
import functools
import numpy as np
import jax
import jax.numpy as jnp
from jax import lax
from jax.experimental import pallas as pl
from jax.experimental.pallas import tpu as pltpu

_NEG_SLOPE = 0.2
_BN_EPS = 1e-5
_VMEM_LIMIT = 48 * 1024 * 1024  # explicit, safe on v5e/v6e (128 MiB) and v7x


# ---------------------------------------------------------------------------
# Pallas kernel: implicit-GEMM conv with fused (input-BN + LeakyReLU) prologue
# and fused (bias / LeakyReLU / BN-stats) epilogue.
# ---------------------------------------------------------------------------
def _conv_kernel(*refs, k_eff, hh, ww, ow, l_rows, c_base, has_bias,
                 has_in_bn, in_s2d, emit_stats, apply_act, neg_slope):
    """One image (one grid step).

    refs = (x_ref, w_ref, [scale_ref, shift_ref], [bias_ref], out_ref,
            [stats_ref])
      x_ref:    (1, hh*ww, CC)  zero-padded (and s2d'd for stride 2) image,
                                spatial flattened row-major, channels in
                                lanes.  When has_in_bn, this holds the *raw*
                                previous conv output; its BatchNorm affine +
                                LeakyReLU are fused here on load.
      w_ref:    (k_eff, k_eff, CC, OC) tap weights
      scale/shift: (1, CC)  fused input-BN affine          (only has_in_bn)
      bias_ref: (1, OC)                                     (only has_bias)
      out_ref:  (1, L, OC)  L = (OH-1)*ww + OW (includes wrap-around rows)
      stats_ref:(1, 2, OC)  per-image [sum; sum of squares] over valid rows
    """
    it = iter(refs)
    x_ref = next(it)
    w_ref = next(it)
    scale_ref = next(it) if has_in_bn else None
    shift_ref = next(it) if has_in_bn else None
    bias_ref = next(it) if has_bias else None
    out_ref = next(it)
    stats_ref = next(it) if emit_stats else None

    hw, cc = x_ref.shape[1], x_ref.shape[2]
    oc = w_ref.shape[-1]

    if has_in_bn:
        # Fused previous-layer BatchNorm (scale/shift) + LeakyReLU on load.
        # The 1-pixel zero padding must stay zero *after* the affine +
        # activation, so non-interior entries are masked back to 0 with an
        # in-kernel iota mask (no mask DMA, no lane-sparse blocks).
        xv = x_ref[0].astype(jnp.float32)
        xv = xv * scale_ref[...] + shift_ref[...]
        xv = jnp.where(xv > 0, xv, neg_slope * xv)

        r = lax.broadcasted_iota(jnp.int32, (hw, 1), 0)   # flat spatial idx
        col = r % ww
        row_ge1 = r >= ww                                  # spatial row >= 1
        row_leN = r < (hh - 1) * ww                        # spatial row <= hh-2
        col_ge1 = col >= 1
        col_leN = col <= ww - 2
        if in_s2d:
            # Channels are grouped by 2x2 sub-position g = 2*si + sj, each
            # group c_base wide; interior-ness depends on (row, si, sj).
            ch = lax.broadcasted_iota(jnp.int32, (1, cc), 1)
            si1 = ch >= 2 * c_base
            si0 = ch < 2 * c_base
            sj1 = ((ch >= c_base) & (ch < 2 * c_base)) | (ch >= 3 * c_base)
            sj0 = (ch < c_base) | ((ch >= 2 * c_base) & (ch < 3 * c_base))
            interior = ((row_ge1 | si1) & (row_leN | si0)
                        & (col_ge1 | sj1) & (col_leN | sj0))
        else:
            interior = row_ge1 & row_leN & col_ge1 & col_leN
        xv = jnp.where(interior, xv, 0.0)

        def tap(start):
            return lax.slice(xv, (start, 0), (start + l_rows, cc))
    else:
        def tap(start):
            return x_ref[0, start:start + l_rows, :].astype(jnp.float32)

    # k_eff^2 taps; each tap is a contiguous 2-D row window of the flattened
    # spatial axis -> one MXU matmul, accumulated in f32 ("over-read" trick:
    # the few wrap-around rows are excluded from the stats and cropped by the
    # wrapper).
    acc = jnp.zeros((l_rows, oc), jnp.float32)
    for ka in range(k_eff):
        for kb in range(k_eff):
            start = ka * ww + kb                           # static python int
            acc = acc + jnp.dot(tap(start), w_ref[ka, kb],
                                preferred_element_type=jnp.float32)

    if has_bias:
        acc = acc + bias_ref[...]                          # (1, OC) broadcast
    if apply_act:
        acc = jnp.where(acc > 0, acc, neg_slope * acc)

    out_ref[0] = acc.astype(out_ref.dtype)

    if emit_stats:
        # BatchNorm statistics over valid output rows via two MXU matmuls.
        cidx = lax.broadcasted_iota(jnp.int32, (1, l_rows), 1)
        valid = (cidx % ww < ow).astype(jnp.float32)       # (1, L) row mask
        stats_ref[0, 0:1, :] = jnp.dot(valid, acc,
                                       preferred_element_type=jnp.float32)
        stats_ref[0, 1:2, :] = jnp.dot(valid, acc * acc,
                                       preferred_element_type=jnp.float32)


# ---------------------------------------------------------------------------
# pallas_call wrapper
# ---------------------------------------------------------------------------
def _conv_pallas(xf, w_taps, bias, scale, shift, *, k_eff, hh, ww, ow, l_rows,
                 c_base, in_s2d, apply_act, emit_stats, out_dtype):
    n, hw, cc = xf.shape
    oc = w_taps.shape[-1]
    has_bias = bias is not None
    has_in_bn = scale is not None

    kern = functools.partial(
        _conv_kernel, k_eff=k_eff, hh=hh, ww=ww, ow=ow, l_rows=l_rows,
        c_base=c_base, has_bias=has_bias, has_in_bn=has_in_bn, in_s2d=in_s2d,
        emit_stats=emit_stats, apply_act=apply_act, neg_slope=_NEG_SLOPE)

    in_specs = [
        pl.BlockSpec((1, hw, cc), lambda b: (b, 0, 0)),
        pl.BlockSpec((k_eff, k_eff, cc, oc), lambda b: (0, 0, 0, 0)),
    ]
    inputs = [xf, w_taps]
    if has_in_bn:
        in_specs.append(pl.BlockSpec((1, cc), lambda b: (0, 0)))
        in_specs.append(pl.BlockSpec((1, cc), lambda b: (0, 0)))
        inputs.append(scale)
        inputs.append(shift)
    if has_bias:
        in_specs.append(pl.BlockSpec((1, oc), lambda b: (0, 0)))
        inputs.append(bias.reshape(1, oc).astype(jnp.float32))

    out_shape = [jax.ShapeDtypeStruct((n, l_rows, oc), out_dtype)]
    out_specs = [pl.BlockSpec((1, l_rows, oc), lambda b: (b, 0, 0))]
    if emit_stats:
        out_shape.append(jax.ShapeDtypeStruct((n, 2, oc), jnp.float32))
        out_specs.append(pl.BlockSpec((1, 2, oc), lambda b: (b, 0, 0)))

    res = pl.pallas_call(
        kern,
        grid=(n,),
        in_specs=in_specs,
        out_specs=tuple(out_specs) if emit_stats else out_specs[0],
        out_shape=tuple(out_shape) if emit_stats else out_shape[0],
        compiler_params=pltpu.CompilerParams(
            dimension_semantics=("parallel",),     # megacore / double-buffer
            vmem_limit_bytes=_VMEM_LIMIT),
    )(*inputs)
    if emit_stats:
        return res[0], res[1]
    return res, None


# ---------------------------------------------------------------------------
# Layer composition (pad / space-to-depth / crop = XLA glue, see TODO above)
# ---------------------------------------------------------------------------
def conv_layer(x_nhwc, w, b, *, stride, act, emit_stats, in_bn=None,
               out_dtype=jnp.float32):
    """One Conv2d(k=4, stride, pad=1) layer.

    When in_bn=(scale, shift) is given, x_nhwc holds the previous layer's
    *raw* conv output; that layer's BatchNorm affine + LeakyReLU are applied
    inside this layer's Pallas kernel (fused on load).
    """
    n, h, wd, c = x_nhwc.shape
    oc = w.shape[0]

    xp = jnp.pad(x_nhwc, ((0, 0), (1, 1), (1, 1), (0, 0)))    # p=1 (zeros)
    w_r = jnp.transpose(w, (2, 3, 1, 0)).astype(jnp.float32)  # (kh, kw, C, OC)

    if stride == 2:
        # space-to-depth: k=4 s=2 conv  ->  k=2 s=1 conv over 4x channels
        assert h % 2 == 0 and wd % 2 == 0
        hh, ww, cc = (h + 2) // 2, (wd + 2) // 2, 4 * c
        xs = xp.reshape(n, hh, 2, ww, 2, c)
        xs = jnp.transpose(xs, (0, 1, 3, 2, 4, 5)).reshape(n, hh, ww, cc)
        # W2[a, b, (2i+j)*C + c, oc] = w[oc, c, 2a+i, 2b+j]
        w_taps = jnp.transpose(w_r.reshape(2, 2, 2, 2, c, oc),
                               (0, 2, 1, 3, 4, 5)).reshape(2, 2, cc, oc)
        k_eff, oh, ow = 2, h // 2, wd // 2
        in_s2d = True
    else:
        hh, ww, cc = h + 2, wd + 2, c
        xs, w_taps = xp, w_r                                   # (4, 4, C, OC)
        k_eff, oh, ow = 4, h - 1, wd - 1
        in_s2d = False

    l_rows = (oh - 1) * ww + ow                # valid span incl. wrap rows
    xf = xs.reshape(n, hh * ww, cc)            # flatten spatial, C in lanes

    scale_r = shift_r = None
    if in_bn is not None:
        scale, shift = in_bn
        if in_s2d:                             # channel groups are tiled 4x
            scale, shift = jnp.tile(scale, 4), jnp.tile(shift, 4)
        scale_r = scale.reshape(1, cc).astype(jnp.float32)
        shift_r = shift.reshape(1, cc).astype(jnp.float32)

    y_full, stats = _conv_pallas(
        xf, w_taps, b, scale_r, shift_r,
        k_eff=k_eff, hh=hh, ww=ww, ow=ow, l_rows=l_rows, c_base=c,
        in_s2d=in_s2d, apply_act=act, emit_stats=emit_stats,
        out_dtype=out_dtype)

    # Drop the over-read wrap-around rows -> NHWC for the next layer.
    pad_rows = oh * ww - l_rows                                # == ww - ow
    y = jnp.pad(y_full, ((0, 0), (0, pad_rows), (0, 0)))
    y = y.reshape(n, oh, ww, oc)[:, :, :ow, :]
    return y, stats, (oh, ow)


def _bn_scale_shift(stats, gamma, beta, count):
    """Tiny (N, 2, OC) reduction -> per-channel BN scale/shift (f32)."""
    tot = jnp.sum(stats, axis=0)                               # (2, OC)
    mean = tot[0] / count
    var = tot[1] / count - mean * mean                         # biased var
    scale = gamma * lax.rsqrt(var + _BN_EPS)
    shift = beta - mean * scale
    return scale, shift


def patch_discriminator_forward(x_nchw, params, act_dtype=jnp.float32):
    n = x_nchw.shape[0]
    x = jnp.transpose(x_nchw, (0, 2, 3, 1))                    # NCHW -> NHWC

    # layer 0: conv(bias) + LeakyReLU (no norm), fused in the conv epilogue
    y, _, _ = conv_layer(x, params["w0"], params["b0"], stride=2, act=True,
                         emit_stats=False, out_dtype=act_dtype)

    # layers 1..3: conv (no bias) -> BatchNorm -> LeakyReLU.  The conv kernel
    # emits batch statistics for free; the BN affine + LeakyReLU are fused
    # into the *next* conv kernel's load path.
    in_bn = None
    strides = (2, 2, 1)
    for i in range(3):
        y, stats, (oh, ow) = conv_layer(
            y, params[f"w{i + 1}"], None, stride=strides[i], act=False,
            emit_stats=True, in_bn=in_bn, out_dtype=act_dtype)
        in_bn = _bn_scale_shift(stats, params[f"g{i + 1}"],
                                params[f"be{i + 1}"],
                                jnp.float32(n * oh * ow))

    # layer 4: conv(bias), no norm / act (BN3 + LeakyReLU fused here on load)
    y, _, _ = conv_layer(y, params["w4"], params["b4"], stride=1, act=False,
                         emit_stats=False, in_bn=in_bn, out_dtype=jnp.float32)
    return jnp.transpose(y, (0, 3, 1, 2))                      # NHWC -> NCHW


# ---------------------------------------------------------------------------
# Pure-JAX reference (for correctness check)
# ---------------------------------------------------------------------------
def ref_forward(x, params):
    def conv(x, w, b, s):
        y = lax.conv_general_dilated(x, w, (s, s), ((1, 1), (1, 1)),
                                     dimension_numbers=("NCHW", "OIHW", "NCHW"))
        if b is not None:
            y = y + b.reshape(1, -1, 1, 1)
        return y

    def bn(x, g, be):
        m = jnp.mean(x, axis=(0, 2, 3), keepdims=True)
        v = jnp.mean((x - m) ** 2, axis=(0, 2, 3), keepdims=True)
        return (x - m) * lax.rsqrt(v + _BN_EPS) * g.reshape(1, -1, 1, 1) \
            + be.reshape(1, -1, 1, 1)

    def lrelu(x):
        return jnp.where(x > 0, x, _NEG_SLOPE * x)

    x = lrelu(conv(x, params["w0"], params["b0"], 2))
    strides = (2, 2, 1)
    for i in range(3):
        x = lrelu(bn(conv(x, params[f"w{i + 1}"], None, strides[i]),
                     params[f"g{i + 1}"], params[f"be{i + 1}"]))
    return conv(x, params["w4"], params["b4"], 1)


# ---------------------------------------------------------------------------
# Deterministic parameter init + driver
# ---------------------------------------------------------------------------
def make_params(key, input_c=3, nf=8, n_down=3):
    ks = jax.random.split(key, 16)
    p = {}
    p["w0"] = 0.02 * jax.random.normal(ks[0], (nf, input_c, 4, 4), jnp.float32)
    p["b0"] = 0.01 * jax.random.normal(ks[1], (nf,), jnp.float32)
    for i in range(n_down):
        ci, co = nf * 2 ** i, nf * 2 ** (i + 1)
        p[f"w{i + 1}"] = 0.02 * jax.random.normal(ks[2 + i], (co, ci, 4, 4),
                                                  jnp.float32)
        p[f"g{i + 1}"] = jnp.ones((co,), jnp.float32)
        p[f"be{i + 1}"] = jnp.zeros((co,), jnp.float32)
    p["w4"] = 0.02 * jax.random.normal(ks[10], (1, nf * 2 ** n_down, 4, 4),
                                       jnp.float32)
    p["b4"] = 0.01 * jax.random.normal(ks[11], (1,), jnp.float32)
    return p


if __name__ == "__main__":
    key = jax.random.PRNGKey(0)
    kx, kp = jax.random.split(key)

    # 32x32 spatial survives all five k=4 convs -> output (2, 1, 2, 2)
    x = jax.random.normal(kx, (2, 3, 32, 32), jnp.float32)
    params = make_params(kp, input_c=3, nf=8, n_down=3)

    fwd = jax.jit(functools.partial(patch_discriminator_forward,
                                    act_dtype=jnp.float32))
    out = jax.block_until_ready(fwd(x, params))
    ref = jax.block_until_ready(jax.jit(ref_forward)(x, params))

    assert out.shape == (2, 1, 2, 2), out.shape
    np.testing.assert_allclose(np.asarray(out), np.asarray(ref),
                               rtol=2e-3, atol=2e-3)

    # bf16 activation storage (recommended on v6e/v7x): same kernels, halves
    # HBM traffic; BN stats / scale/shift stay f32.  Loose check vs f32 ref.
    fwd_bf16 = jax.jit(functools.partial(patch_discriminator_forward,
                                         act_dtype=jnp.bfloat16))
    out_bf16 = jax.block_until_ready(fwd_bf16(x, params))
    np.testing.assert_allclose(np.asarray(out_bf16), np.asarray(ref),
                               rtol=1e-1, atol=1e-1)

    print("KERNEL_OK")
</pallas_src>

<mosaic_0001>
module attributes {stable_mosaic.version = 11 : i64} {
  func.func @_conv_kernel(%arg0: i32, %arg1: memref<1x289x12xf32, #tpu.memory_space<vmem>>, %arg2: memref<2x2x12x8xf32, #tpu.memory_space<vmem>>, %arg3: memref<1x8xf32, #tpu.memory_space<vmem>>, %arg4: memref<1x271x8xf32, #tpu.memory_space<vmem>>) attributes {dimension_semantics = [#tpu.dimension_semantics<parallel>], iteration_bounds = array<i64: 2>, scalar_prefetch = 0 : i64, scratch_operands = 0 : i64, tpu.core_type = #tpu.core_type<tc>, window_params = [{transform_indices = @transform_0, window_bounds = array<i64: 1, 289, 12>}, {pipeline_mode = #tpu.pipeline_mode<synchronous>, transform_indices = @transform_1, window_bounds = array<i64: 2, 2, 12, 8>}, {pipeline_mode = #tpu.pipeline_mode<synchronous>, transform_indices = @transform_2, window_bounds = array<i64: 1, 8>}, {transform_indices = @transform_3, window_bounds = array<i64: 1, 271, 8>}]} {
    %cst = arith.constant 0.000000e+00 : f32
    %0 = vector.broadcast %cst : f32 to vector<271x8xf32>
    %c0 = arith.constant 0 : index
    %c0_0 = arith.constant 0 : index
    %c0_1 = arith.constant 0 : index
    %1 = vector.load %arg1[%c0, %c0_0, %c0_1] : memref<1x289x12xf32, #tpu.memory_space<vmem>>, vector<1x271x12xf32>
    %2 = vector.shape_cast %1 : vector<1x271x12xf32> to vector<271x12xf32>
    %c0_2 = arith.constant 0 : index
    %c0_3 = arith.constant 0 : index
    %c0_4 = arith.constant 0 : index
    %c0_5 = arith.constant 0 : index
    %3 = vector.load %arg2[%c0_2, %c0_3, %c0_4, %c0_5] : memref<2x2x12x8xf32, #tpu.memory_space<vmem>>, vector<1x1x12x8xf32>
    %4 = vector.shape_cast %3 : vector<1x1x12x8xf32> to vector<12x8xf32>
    %cst_6 = arith.constant dense<0.000000e+00> : vector<271x8xf32>
    %5 = tpu.matmul %2, %4, %cst_6 {dimension_numbers = #tpu.dot_dimension_numbers<[1], [0], [0], [1], [0, 0, 1, 1], [], []>} : vector<271x12xf32>, vector<12x8xf32>, vector<271x8xf32> -> vector<271x8xf32>
    %6 = arith.addf %0, %5 : vector<271x8xf32>
    %c0_7 = arith.constant 0 : index
    %c1 = arith.constant 1 : index
    %c0_8 = arith.constant 0 : index
    %7 = vector.load %arg1[%c0_7, %c1, %c0_8] : memref<1x289x12xf32, #tpu.memory_space<vmem>>, vector<1x271x12xf32>
    %8 = vector.shape_cast %7 : vector<1x271x12xf32> to vector<271x12xf32>
    %c0_9 = arith.constant 0 : index
    %c1_10 = arith.constant 1 : index
    %c0_11 = arith.constant 0 : index
    %c0_12 = arith.constant 0 : index
    %9 = vector.load %arg2[%c0_9, %c1_10, %c0_11, %c0_12] : memref<2x2x12x8xf32, #tpu.memory_space<vmem>>, vector<1x1x12x8xf32>
    %10 = vector.shape_cast %9 : vector<1x1x12x8xf32> to vector<12x8xf32>
    %cst_13 = arith.constant dense<0.000000e+00> : vector<271x8xf32>
    %11 = tpu.matmul %8, %10, %cst_13 {dimension_numbers = #tpu.dot_dimension_numbers<[1], [0], [0], [1], [0, 0, 1, 1], [], []>} : vector<271x12xf32>, vector<12x8xf32>, vector<271x8xf32> -> vector<271x8xf32>
    %12 = arith.addf %6, %11 : vector<271x8xf32>
    %c0_14 = arith.constant 0 : index
    %c17 = arith.constant 17 : index
    %c0_15 = arith.constant 0 : index
    %13 = vector.load %arg1[%c0_14, %c17, %c0_15] : memref<1x289x12xf32, #tpu.memory_space<vmem>>, vector<1x271x12xf32>
    %14 = vector.shape_cast %13 : vector<1x271x12xf32> to vector<271x12xf32>
    %c1_16 = arith.constant 1 : index
    %c0_17 = arith.constant 0 : index
    %c0_18 = arith.constant 0 : index
    %c0_19 = arith.constant 0 : index
    %15 = vector.load %arg2[%c1_16, %c0_17, %c0_18, %c0_19] : memref<2x2x12x8xf32, #tpu.memory_space<vmem>>, vector<1x1x12x8xf32>
    %16 = vector.shape_cast %15 : vector<1x1x12x8xf32> to vector<12x8xf32>
    %cst_20 = arith.constant dense<0.000000e+00> : vector<271x8xf32>
    %17 = tpu.matmul %14, %16, %cst_20 {dimension_numbers = #tpu.dot_dimension_numbers<[1], [0], [0], [1], [0, 0, 1, 1], [], []>} : vector<271x12xf32>, vector<12x8xf32>, vector<271x8xf32> -> vector<271x8xf32>
    %18 = arith.addf %12, %17 : vector<271x8xf32>
    %c0_21 = arith.constant 0 : index
    %c18 = arith.constant 18 : index
    %c0_22 = arith.constant 0 : index
    %19 = vector.load %arg1[%c0_21, %c18, %c0_22] : memref<1x289x12xf32, #tpu.memory_space<vmem>>, vector<1x271x12xf32>
    %20 = vector.shape_cast %19 : vector<1x271x12xf32> to vector<271x12xf32>
    %c1_23 = arith.constant 1 : index
    %c1_24 = arith.constant 1 : index
    %c0_25 = arith.constant 0 : index
    %c0_26 = arith.constant 0 : index
    %21 = vector.load %arg2[%c1_23, %c1_24, %c0_25, %c0_26] : memref<2x2x12x8xf32, #tpu.memory_space<vmem>>, vector<1x1x12x8xf32>
    %22 = vector.shape_cast %21 : vector<1x1x12x8xf32> to vector<12x8xf32>
    %cst_27 = arith.constant dense<0.000000e+00> : vector<271x8xf32>
    %23 = tpu.matmul %20, %22, %cst_27 {dimension_numbers = #tpu.dot_dimension_numbers<[1], [0], [0], [1], [0, 0, 1, 1], [], []>} : vector<271x12xf32>, vector<12x8xf32>, vector<271x8xf32> -> vector<271x8xf32>
    %24 = arith.addf %18, %23 : vector<271x8xf32>
    %c0_28 = arith.constant 0 : index
    %c0_29 = arith.constant 0 : index
    %25 = vector.load %arg3[%c0_28, %c0_29] : memref<1x8xf32, #tpu.memory_space<vmem>>, vector<1x8xf32>
    %26 = vector.broadcast %25 : vector<1x8xf32> to vector<271x8xf32>
    %27 = arith.addf %24, %26 : vector<271x8xf32>
    %cst_30 = arith.constant 0.000000e+00 : f32
    %28 = vector.broadcast %cst_30 : f32 to vector<271x8xf32>
    %29 = arith.cmpf ogt, %27, %28 : vector<271x8xf32>
    %cst_31 = arith.constant 2.000000e-01 : f32
    %30 = vector.broadcast %cst_31 : f32 to vector<271x8xf32>
    %31 = arith.mulf %30, %27 : vector<271x8xf32>
    %32 = arith.select %29, %27, %31 : vector<271x8xi1>, vector<271x8xf32>
    %c0_32 = arith.constant 0 : index
    %c0_33 = arith.constant 0 : index
    %c0_34 = arith.constant 0 : index
    %33 = vector.load %arg4[%c0_32, %c0_33, %c0_34] : memref<1x271x8xf32, #tpu.memory_space<vmem>>, vector<1x271x8xf32>
    %34 = vector.shape_cast %33 : vector<1x271x8xf32> to vector<271x8xf32>
    %35 = vector.shape_cast %32 : vector<271x8xf32> to vector<1x271x8xf32>
    tpu.vector_store %arg4[%c0_32, %c0_33, %c0_34], %35 {strides = array<i32>} : memref<1x271x8xf32, #tpu.memory_space<vmem>>, vector<1x271x8xf32>,
    return
  }
  func.func @transform_0(%arg0: i32) -> (i32, i32, i32) {
    %c0_i32 = arith.constant 0 : i32
    %c0_i32_0 = arith.constant 0 : i32
    %c0_i32_1 = arith.constant 0 : i32
    return %arg0, %c0_i32, %c0_i32_0 : i32, i32, i32
  }
  func.func @transform_1(%arg0: i32) -> (i32, i32, i32, i32) {
    %c0_i32 = arith.constant 0 : i32
    %c0_i32_0 = arith.constant 0 : i32
    %c0_i32_1 = arith.constant 0 : i32
    %c0_i32_2 = arith.constant 0 : i32
    %c0_i32_3 = arith.constant 0 : i32
    return %c0_i32, %c0_i32_0, %c0_i32_1, %c0_i32_2 : i32, i32, i32, i32
  }
  func.func @transform_2(%arg0: i32) -> (i32, i32) {
    %c0_i32 = arith.constant 0 : i32
    %c0_i32_0 = arith.constant 0 : i32
    %c0_i32_1 = arith.constant 0 : i32
    return %c0_i32, %c0_i32_0 : i32, i32
  }
  func.func @transform_3(%arg0: i32) -> (i32, i32, i32) {
    %c0_i32 = arith.constant 0 : i32
    %c0_i32_0 = arith.constant 0 : i32
    %c0_i32_1 = arith.constant 0 : i32
    return %arg0, %c0_i32, %c0_i32_0 : i32, i32, i32
  }
}

module attributes {stable_mosaic.version = 11 : i64} {
  func.func @_conv_kernel(%arg0: i32, %arg1: memref<1x81x32xf32, #tpu.memory_space<vmem>>, %arg2: memref<2x2x32x16xf32, #tpu.memory_space<vmem>>, %arg3: memref<1x71x16xf32, #tpu.memory_space<vmem>>, %arg4: memref<1x2x16xf32, #tpu.memory_space<vmem>>) attributes {dimension_semantics = [#tpu.dimension_semantics<parallel>], iteration_bounds = array<i64: 2>, scalar_prefetch = 0 : i64, scratch_operands = 0 : i64, tpu.core_type = #tpu.core_type<tc>, window_params = [{transform_indices = @transform_0, window_bounds = array<i64: 1, 81, 32>}, {pipeline_mode = #tpu.pipeline_mode<synchronous>, transform_indices = @transform_1, window_bounds = array<i64: 2, 2, 32, 16>}, {transform_indices = @transform_2, window_bounds = array<i64: 1, 71, 16>}, {transform_indices = @transform_3, window_bounds = array<i64: 1, 2, 16>}]} {
    %cst = arith.constant 0.000000e+00 : f32
    %0 = vector.broadcast %cst : f32 to vector<71x16xf32>
    %c0 = arith.constant 0 : index
    %c0_0 = arith.constant 0 : index
    %c0_1 = arith.constant 0 : index
    %1 = vector.load %arg1[%c0, %c0_0, %c0_1] : memref<1x81x32xf32, #tpu.memory_space<vmem>>, vector<1x71x32xf32>
    %2 = vector.shape_cast %1 : vector<1x71x32xf32> to vector<71x32xf32>
    %c0_2 = arith.constant 0 : index
    %c0_3 = arith.constant 0 : index
    %c0_4 = arith.constant 0 : index
    %c0_5 = arith.constant 0 : index
    %3 = vector.load %arg2[%c0_2, %c0_3, %c0_4, %c0_5] : memref<2x2x32x16xf32, #tpu.memory_space<vmem>>, vector<1x1x32x16xf32>
    %4 = vector.shape_cast %3 : vector<1x1x32x16xf32> to vector<32x16xf32>
    %cst_6 = arith.constant dense<0.000000e+00> : vector<71x16xf32>
    %5 = tpu.matmul %2, %4, %cst_6 {dimension_numbers = #tpu.dot_dimension_numbers<[1], [0], [0], [1], [0, 0, 1, 1], [], []>} : vector<71x32xf32>, vector<32x16xf32>, vector<71x16xf32> -> vector<71x16xf32>
    %6 = arith.addf %0, %5 : vector<71x16xf32>
    %c0_7 = arith.constant 0 : index
    %c1 = arith.constant 1 : index
    %c0_8 = arith.constant 0 : index
    %7 = vector.load %arg1[%c0_7, %c1, %c0_8] : memref<1x81x32xf32, #tpu.memory_space<vmem>>, vector<1x71x32xf32>
    %8 = vector.shape_cast %7 : vector<1x71x32xf32> to vector<71x32xf32>
    %c0_9 = arith.constant 0 : index
    %c1_10 = arith.constant 1 : index
    %c0_11 = arith.constant 0 : index
    %c0_12 = arith.constant 0 : index
    %9 = vector.load %arg2[%c0_9, %c1_10, %c0_11, %c0_12] : memref<2x2x32x16xf32, #tpu.memory_space<vmem>>, vector<1x1x32x16xf32>
    %10 = vector.shape_cast %9 : vector<1x1x32x16xf32> to vector<32x16xf32>
    %cst_13 = arith.constant dense<0.000000e+00> : vector<71x16xf32>
    %11 = tpu.matmul %8, %10, %cst_13 {dimension_numbers = #tpu.dot_dimension_numbers<[1], [0], [0], [1], [0, 0, 1, 1], [], []>} : vector<71x32xf32>, vector<32x16xf32>, vector<71x16xf32> -> vector<71x16xf32>
    %12 = arith.addf %6, %11 : vector<71x16xf32>
    %c0_14 = arith.constant 0 : index
    %c9 = arith.constant 9 : index
    %c0_15 = arith.constant 0 : index
    %13 = vector.load %arg1[%c0_14, %c9, %c0_15] : memref<1x81x32xf32, #tpu.memory_space<vmem>>, vector<1x71x32xf32>
    %14 = vector.shape_cast %13 : vector<1x71x32xf32> to vector<71x32xf32>
    %c1_16 = arith.constant 1 : index
    %c0_17 = arith.constant 0 : index
    %c0_18 = arith.constant 0 : index
    %c0_19 = arith.constant 0 : index
    %15 = vector.load %arg2[%c1_16, %c0_17, %c0_18, %c0_19] : memref<2x2x32x16xf32, #tpu.memory_space<vmem>>, vector<1x1x32x16xf32>
    %16 = vector.shape_cast %15 : vector<1x1x32x16xf32> to vector<32x16xf32>
    %cst_20 = arith.constant dense<0.000000e+00> : vector<71x16xf32>
    %17 = tpu.matmul %14, %16, %cst_20 {dimension_numbers = #tpu.dot_dimension_numbers<[1], [0], [0], [1], [0, 0, 1, 1], [], []>} : vector<71x32xf32>, vector<32x16xf32>, vector<71x16xf32> -> vector<71x16xf32>
    %18 = arith.addf %12, %17 : vector<71x16xf32>
    %c0_21 = arith.constant 0 : index
    %c10 = arith.constant 10 : index
    %c0_22 = arith.constant 0 : index
    %19 = vector.load %arg1[%c0_21, %c10, %c0_22] : memref<1x81x32xf32, #tpu.memory_space<vmem>>, vector<1x71x32xf32>
    %20 = vector.shape_cast %19 : vector<1x71x32xf32> to vector<71x32xf32>
    %c1_23 = arith.constant 1 : index
    %c1_24 = arith.constant 1 : index
    %c0_25 = arith.constant 0 : index
    %c0_26 = arith.constant 0 : index
    %21 = vector.load %arg2[%c1_23, %c1_24, %c0_25, %c0_26] : memref<2x2x32x16xf32, #tpu.memory_space<vmem>>, vector<1x1x32x16xf32>
    %22 = vector.shape_cast %21 : vector<1x1x32x16xf32> to vector<32x16xf32>
    %cst_27 = arith.constant dense<0.000000e+00> : vector<71x16xf32>
    %23 = tpu.matmul %20, %22, %cst_27 {dimension_numbers = #tpu.dot_dimension_numbers<[1], [0], [0], [1], [0, 0, 1, 1], [], []>} : vector<71x32xf32>, vector<32x16xf32>, vector<71x16xf32> -> vector<71x16xf32>
    %24 = arith.addf %18, %23 : vector<71x16xf32>
    %c0_28 = arith.constant 0 : index
    %c0_29 = arith.constant 0 : index
    %c0_30 = arith.constant 0 : index
    %25 = vector.load %arg3[%c0_28, %c0_29, %c0_30] : memref<1x71x16xf32, #tpu.memory_space<vmem>>, vector<1x71x16xf32>
    %26 = vector.shape_cast %25 : vector<1x71x16xf32> to vector<71x16xf32>
    %27 = vector.shape_cast %24 : vector<71x16xf32> to vector<1x71x16xf32>
    tpu.vector_store %arg3[%c0_28, %c0_29, %c0_30], %27 {strides = array<i32>} : memref<1x71x16xf32, #tpu.memory_space<vmem>>, vector<1x71x16xf32>,
    %28 = tpu.iota {dimensions = array<i32: 1>} : vector<1x71xi32>
    %c9_i32 = arith.constant 9 : i32
    %c0_i32 = arith.constant 0 : i32
    %29 = arith.cmpi eq, %c9_i32, %c0_i32 : i32
    %c1_i32 = arith.constant 1 : i32
    %30 = arith.select %29, %c1_i32, %c9_i32 : i32
    %31 = vector.broadcast %30 : i32 to vector<1x71xi32>
    %32 = arith.remsi %28, %31 : vector<1x71xi32>
    %c0_i32_31 = arith.constant 0 : i32
    %33 = vector.broadcast %c0_i32_31 : i32 to vector<1x71xi32>
    %34 = arith.cmpi ne, %32, %33 : vector<1x71xi32>
    %c0_i32_32 = arith.constant 0 : i32
    %35 = vector.broadcast %c0_i32_32 : i32 to vector<1x71xi32>
    %36 = arith.cmpi slt, %32, %35 : vector<1x71xi32>
    %c0_i32_33 = arith.constant 0 : i32
    %37 = arith.cmpi slt, %30, %c0_i32_33 : i32
    %38 = vector.broadcast %37 : i1 to vector<1x71xi1>
    %39 = vector.broadcast %38 : vector<1x71xi1> to vector<1x71xi1>
    %40 = arith.xori %36, %39 : vector<1x71xi1>
    %41 = arith.andi %40, %34 : vector<1x71xi1>
    %42 = vector.broadcast %30 : i32 to vector<1x71xi32>
    %43 = arith.addi %32, %42 : vector<1x71xi32>
    %44 = arith.select %41, %43, %32 : vector<1x71xi1>, vector<1x71xi32>
    %c8_i32 = arith.constant 8 : i32
    %45 = vector.broadcast %c8_i32 : i32 to vector<1x71xi32>
    %46 = arith.cmpi slt, %44, %45 : vector<1x71xi32>
    %47 = arith.extui %46 : vector<1x71xi1> to vector<1x71xi32>
    %48 = arith.sitofp %47 : vector<1x71xi32> to vector<1x71xf32>
    %cst_34 = arith.constant dense<0.000000e+00> : vector<1x16xf32>
    %49 = tpu.matmul %48, %24, %cst_34 {dimension_numbers = #tpu.dot_dimension_numbers<[1], [0], [0], [1], [0, 0, 1, 1], [], []>} : vector<1x71xf32>, vector<71x16xf32>, vector<1x16xf32> -> vector<1x16xf32>
    %c0_35 = arith.constant 0 : index
    %c0_36 = arith.constant 0 : index
    %c0_37 = arith.constant 0 : index
    %50 = vector.load %arg4[%c0_35, %c0_36, %c0_37] : memref<1x2x16xf32, #tpu.memory_space<vmem>>, vector<1x1x16xf32>
    %51 = vector.shape_cast %50 : vector<1x1x16xf32> to vector<1x16xf32>
    %52 = vector.shape_cast %49 : vector<1x16xf32> to vector<1x1x16xf32>
    tpu.vector_store %arg4[%c0_35, %c0_36, %c0_37], %52 {strides = array<i32>} : memref<1x2x16xf32, #tpu.memory_space<vmem>>, vector<1x1x16xf32>,
    %53 = arith.mulf %24, %24 : vector<71x16xf32>
    %cst_38 = arith.constant dense<0.000000e+00> : vector<1x16xf32>
    %54 = tpu.matmul %48, %53, %cst_38 {dimension_numbers = #tpu.dot_dimension_numbers<[1], [0], [0], [1], [0, 0, 1, 1], [], []>} : vector<1x71xf32>, vector<71x16xf32>, vector<1x16xf32> -> vector<1x16xf32>
    %c0_39 = arith.constant 0 : index
    %c1_40 = arith.constant 1 : index
    %c0_41 = arith.constant 0 : index
    %55 = vector.load %arg4[%c0_39, %c1_40, %c0_41] : memref<1x2x16xf32, #tpu.memory_space<vmem>>, vector<1x1x16xf32>
    %56 = vector.shape_cast %55 : vector<1x1x16xf32> to vector<1x16xf32>
    %57 = vector.shape_cast %54 : vector<1x16xf32> to vector<1x1x16xf32>
    tpu.vector_store %arg4[%c0_39, %c1_40, %c0_41], %57 {strides = array<i32>} : memref<1x2x16xf32, #tpu.memory_space<vmem>>, vector<1x1x16xf32>,
    return
  }
  func.func @transform_0(%arg0: i32) -> (i32, i32, i32) {
    %c0_i32 = arith.constant 0 : i32
    %c0_i32_0 = arith.constant 0 : i32
    %c0_i32_1 = arith.constant 0 : i32
    return %arg0, %c0_i32, %c0_i32_0 : i32, i32, i32
  }
  func.func @transform_1(%arg0: i32) -> (i32, i32, i32, i32) {
    %c0_i32 = arith.constant 0 : i32
    %c0_i32_0 = arith.constant 0 : i32
    %c0_i32_1 = arith.constant 0 : i32
    %c0_i32_2 = arith.constant 0 : i32
    %c0_i32_3 = arith.constant 0 : i32
    return %c0_i32, %c0_i32_0, %c0_i32_1, %c0_i32_2 : i32, i32, i32, i32
  }
  func.func @transform_2(%arg0: i32) -> (i32, i32, i32) {
    %c0_i32 = arith.constant 0 : i32
    %c0_i32_0 = arith.constant 0 : i32
    %c0_i32_1 = arith.constant 0 : i32
    return %arg0, %c0_i32, %c0_i32_0 : i32, i32, i32
  }
  func.func @transform_3(%arg0: i32) -> (i32, i32, i32) {
    %c0_i32 = arith.constant 0 : i32
    %c0_i32_0 = arith.constant 0 : i32
    %c0_i32_1 = arith.constant 0 : i32
    return %arg0, %c0_i32, %c0_i32_0 : i32, i32, i32
  }
}

module attributes {stable_mosaic.version = 11 : i64} {
  func.func @_conv_kernel(%arg0: i32, %arg1: memref<1x25x64xf32, #tpu.memory_space<vmem>>, %arg2: memref<2x2x64x32xf32, #tpu.memory_space<vmem>>, %arg3: memref<1x64xf32, #tpu.memory_space<vmem>>, %arg4: memref<1x64xf32, #tpu.memory_space<vmem>>, %arg5: memref<1x19x32xf32, #tpu.memory_space<vmem>>, %arg6: memref<1x2x32xf32, #tpu.memory_space<vmem>>) attributes {dimension_semantics = [#tpu.dimension_semantics<parallel>], iteration_bounds = array<i64: 2>, scalar_prefetch = 0 : i64, scratch_operands = 0 : i64, tpu.core_type = #tpu.core_type<tc>, window_params = [{transform_indices = @transform_0, window_bounds = array<i64: 1, 25, 64>}, {pipeline_mode = #tpu.pipeline_mode<synchronous>, transform_indices = @transform_1, window_bounds = array<i64: 2, 2, 64, 32>}, {pipeline_mode = #tpu.pipeline_mode<synchronous>, transform_indices = @transform_2, window_bounds = array<i64: 1, 64>}, {pipeline_mode = #tpu.pipeline_mode<synchronous>, transform_indices = @transform_3, window_bounds = array<i64: 1, 64>}, {transform_indices = @transform_4, window_bounds = array<i64: 1, 19, 32>}, {transform_indices = @transform_5, window_bounds = array<i64: 1, 2, 32>}]} {
    %c0 = arith.constant 0 : index
    %c0_0 = arith.constant 0 : index
    %c0_1 = arith.constant 0 : index
    %0 = vector.load %arg1[%c0, %c0_0, %c0_1] : memref<1x25x64xf32, #tpu.memory_space<vmem>>, vector<1x25x64xf32>
    %1 = vector.shape_cast %0 : vector<1x25x64xf32> to vector<25x64xf32>
    %c0_2 = arith.constant 0 : index
    %c0_3 = arith.constant 0 : index
    %2 = vector.load %arg3[%c0_2, %c0_3] : memref<1x64xf32, #tpu.memory_space<vmem>>, vector<1x64xf32>
    %3 = vector.broadcast %2 : vector<1x64xf32> to vector<25x64xf32>
    %4 = arith.mulf %1, %3 : vector<25x64xf32>
    %c0_4 = arith.constant 0 : index
    %c0_5 = arith.constant 0 : index
    %5 = vector.load %arg4[%c0_4, %c0_5] : memref<1x64xf32, #tpu.memory_space<vmem>>, vector<1x64xf32>
    %6 = vector.broadcast %5 : vector<1x64xf32> to vector<25x64xf32>
    %7 = arith.addf %4, %6 : vector<25x64xf32>
    %cst = arith.constant 0.000000e+00 : f32
    %8 = vector.broadcast %cst : f32 to vector<25x64xf32>
    %9 = arith.cmpf ogt, %7, %8 : vector<25x64xf32>
    %cst_6 = arith.constant 2.000000e-01 : f32
    %10 = vector.broadcast %cst_6 : f32 to vector<25x64xf32>
    %11 = arith.mulf %10, %7 : vector<25x64xf32>
    %12 = arith.select %9, %7, %11 : vector<25x64xi1>, vector<25x64xf32>
    %13 = tpu.iota {dimensions = array<i32: 0>} : vector<25x1xi32>
    %c5_i32 = arith.constant 5 : i32
    %c0_i32 = arith.constant 0 : i32
    %14 = arith.cmpi eq, %c5_i32, %c0_i32 : i32
    %c1_i32 = arith.constant 1 : i32
    %15 = arith.select %14, %c1_i32, %c5_i32 : i32
    %16 = vector.broadcast %15 : i32 to vector<25x1xi32>
    %17 = arith.remsi %13, %16 : vector<25x1xi32>
    %c0_i32_7 = arith.constant 0 : i32
    %18 = vector.broadcast %c0_i32_7 : i32 to vector<25x1xi32>
    %19 = arith.cmpi ne, %17, %18 : vector<25x1xi32>
    %c0_i32_8 = arith.constant 0 : i32
    %20 = vector.broadcast %c0_i32_8 : i32 to vector<25x1xi32>
    %21 = arith.cmpi slt, %17, %20 : vector<25x1xi32>
    %c0_i32_9 = arith.constant 0 : i32
    %22 = arith.cmpi slt, %15, %c0_i32_9 : i32
    %23 = vector.broadcast %22 : i1 to vector<25x1xi1>
    %24 = vector.broadcast %23 : vector<25x1xi1> to vector<25x1xi1>
    %25 = arith.xori %21, %24 : vector<25x1xi1>
    %26 = arith.andi %25, %19 : vector<25x1xi1>
    %27 = vector.broadcast %15 : i32 to vector<25x1xi32>
    %28 = arith.addi %17, %27 : vector<25x1xi32>
    %29 = arith.select %26, %28, %17 : vector<25x1xi1>, vector<25x1xi32>
    %c5_i32_10 = arith.constant 5 : i32
    %30 = vector.broadcast %c5_i32_10 : i32 to vector<25x1xi32>
    %31 = arith.cmpi sge, %13, %30 : vector<25x1xi32>
    %c20_i32 = arith.constant 20 : i32
    %32 = vector.broadcast %c20_i32 : i32 to vector<25x1xi32>
    %33 = arith.cmpi slt, %13, %32 : vector<25x1xi32>
    %c1_i32_11 = arith.constant 1 : i32
    %34 = vector.broadcast %c1_i32_11 : i32 to vector<25x1xi32>
    %35 = arith.cmpi sge, %29, %34 : vector<25x1xi32>
    %c3_i32 = arith.constant 3 : i32
    %36 = vector.broadcast %c3_i32 : i32 to vector<25x1xi32>
    %37 = arith.cmpi sle, %29, %36 : vector<25x1xi32>
    %38 = tpu.iota {dimensions = array<i32: 1>} : vector<1x64xi32>
    %c32_i32 = arith.constant 32 : i32
    %39 = vector.broadcast %c32_i32 : i32 to vector<1x64xi32>
    %40 = arith.cmpi sge, %38, %39 : vector<1x64xi32>
    %c32_i32_12 = arith.constant 32 : i32
    %41 = vector.broadcast %c32_i32_12 : i32 to vector<1x64xi32>
    %42 = arith.cmpi slt, %38, %41 : vector<1x64xi32>
    %c16_i32 = arith.constant 16 : i32
    %43 = vector.broadcast %c16_i32 : i32 to vector<1x64xi32>
    %44 = arith.cmpi sge, %38, %43 : vector<1x64xi32>
    %c32_i32_13 = arith.constant 32 : i32
    %45 = vector.broadcast %c32_i32_13 : i32 to vector<1x64xi32>
    %46 = arith.cmpi slt, %38, %45 : vector<1x64xi32>
    %47 = arith.andi %44, %46 : vector<1x64xi1>
    %c48_i32 = arith.constant 48 : i32
    %48 = vector.broadcast %c48_i32 : i32 to vector<1x64xi32>
    %49 = arith.cmpi sge, %38, %48 : vector<1x64xi32>
    %50 = arith.ori %47, %49 : vector<1x64xi1>
    %c16_i32_14 = arith.constant 16 : i32
    %51 = vector.broadcast %c16_i32_14 : i32 to vector<1x64xi32>
    %52 = arith.cmpi slt, %38, %51 : vector<1x64xi32>
    %c32_i32_15 = arith.constant 32 : i32
    %53 = vector.broadcast %c32_i32_15 : i32 to vector<1x64xi32>
    %54 = arith.cmpi sge, %38, %53 : vector<1x64xi32>
    %c48_i32_16 = arith.constant 48 : i32
    %55 = vector.broadcast %c48_i32_16 : i32 to vector<1x64xi32>
    %56 = arith.cmpi slt, %38, %55 : vector<1x64xi32>
    %57 = arith.andi %54, %56 : vector<1x64xi1>
    %58 = arith.ori %52, %57 : vector<1x64xi1>
    %59 = vector.broadcast %31 : vector<25x1xi1> to vector<25x64xi1>
    %60 = vector.broadcast %40 : vector<1x64xi1> to vector<25x64xi1>
    %61 = arith.ori %59, %60 : vector<25x64xi1>
    %62 = vector.broadcast %33 : vector<25x1xi1> to vector<25x64xi1>
    %63 = vector.broadcast %42 : vector<1x64xi1> to vector<25x64xi1>
    %64 = arith.ori %62, %63 : vector<25x64xi1>
    %65 = arith.andi %61, %64 : vector<25x64xi1>
    %66 = vector.broadcast %35 : vector<25x1xi1> to vector<25x64xi1>
    %67 = vector.broadcast %50 : vector<1x64xi1> to vector<25x64xi1>
    %68 = arith.ori %66, %67 : vector<25x64xi1>
    %69 = arith.andi %65, %68 : vector<25x64xi1>
    %70 = vector.broadcast %37 : vector<25x1xi1> to vector<25x64xi1>
    %71 = vector.broadcast %58 : vector<1x64xi1> to vector<25x64xi1>
    %72 = arith.ori %70, %71 : vector<25x64xi1>
    %73 = arith.andi %69, %72 : vector<25x64xi1>
    %cst_17 = arith.constant 0.000000e+00 : f32
    %74 = vector.broadcast %cst_17 : f32 to vector<25x64xf32>
    %75 = arith.select %73, %12, %74 : vector<25x64xi1>, vector<25x64xf32>
    %cst_18 = arith.constant 0.000000e+00 : f32
    %76 = vector.broadcast %cst_18 : f32 to vector<19x32xf32>
    %77 = vector.extract_strided_slice %75 {offsets = [0, 0], sizes = [19, 64], strides = [1, 1]} : vector<25x64xf32> to vector<19x64xf32>
    %c0_19 = arith.constant 0 : index
    %c0_20 = arith.constant 0 : index
    %c0_21 = arith.constant 0 : index
    %c0_22 = arith.constant 0 : index
    %78 = vector.load %arg2[%c0_19, %c0_20, %c0_21, %c0_22] : memref<2x2x64x32xf32, #tpu.memory_space<vmem>>, vector<1x1x64x32xf32>
    %79 = vector.shape_cast %78 : vector<1x1x64x32xf32> to vector<64x32xf32>
    %cst_23 = arith.constant dense<0.000000e+00> : vector<19x32xf32>
    %80 = tpu.matmul %77, %79, %cst_23 {dimension_numbers = #tpu.dot_dimension_numbers<[1], [0], [0], [1], [0, 0, 1, 1], [], []>} : vector<19x64xf32>, vector<64x32xf32>, vector<19x32xf32> -> vector<19x32xf32>
    %81 = arith.addf %76, %80 : vector<19x32xf32>
    %82 = vector.extract_strided_slice %75 {offsets = [1, 0], sizes = [19, 64], strides = [1, 1]} : vector<25x64xf32> to vector<19x64xf32>
    %c0_24 = arith.constant 0 : index
    %c1 = arith.constant 1 : index
    %c0_25 = arith.constant 0 : index
    %c0_26 = arith.constant 0 : index
    %83 = vector.load %arg2[%c0_24, %c1, %c0_25, %c0_26] : memref<2x2x64x32xf32, #tpu.memory_space<vmem>>, vector<1x1x64x32xf32>
    %84 = vector.shape_cast %83 : vector<1x1x64x32xf32> to vector<64x32xf32>
    %cst_27 = arith.constant dense<0.000000e+00> : vector<19x32xf32>
    %85 = tpu.matmul %82, %84, %cst_27 {dimension_numbers = #tpu.dot_dimension_numbers<[1], [0], [0], [1], [0, 0, 1, 1], [], []>} : vector<19x64xf32>, vector<64x32xf32>, vector<19x32xf32> -> vector<19x32xf32>
    %86 = arith.addf %81, %85 : vector<19x32xf32>
    %87 = vector.extract_strided_slice %75 {offsets = [5, 0], sizes = [19, 64], strides = [1, 1]} : vector<25x64xf32> to vector<19x64xf32>
    %c1_28 = arith.constant 1 : index
    %c0_29 = arith.constant 0 : index
    %c0_30 = arith.constant 0 : index
    %c0_31 = arith.constant 0 : index
    %88 = vector.load %arg2[%c1_28, %c0_29, %c0_30, %c0_31] : memref<2x2x64x32xf32, #tpu.memory_space<vmem>>, vector<1x1x64x32xf32>
    %89 = vector.shape_cast %88 : vector<1x1x64x32xf32> to vector<64x32xf32>
    %cst_32 = arith.constant dense<0.000000e+00> : vector<19x32xf32>
    %90 = tpu.matmul %87, %89, %cst_32 {dimension_numbers = #tpu.dot_dimension_numbers<[1], [0], [0], [1], [0, 0, 1, 1], [], []>} : vector<19x64xf32>, vector<64x32xf32>, vector<19x32xf32> -> vector<19x32xf32>
    %91 = arith.addf %86, %90 : vector<19x32xf32>
    %92 = vector.extract_strided_slice %75 {offsets = [6, 0], sizes = [19, 64], strides = [1, 1]} : vector<25x64xf32> to vector<19x64xf32>
    %c1_33 = arith.constant 1 : index
    %c1_34 = arith.constant 1 : index
    %c0_35 = arith.constant 0 : index
    %c0_36 = arith.constant 0 : index
    %93 = vector.load %arg2[%c1_33, %c1_34, %c0_35, %c0_36] : memref<2x2x64x32xf32, #tpu.memory_space<vmem>>, vector<1x1x64x32xf32>
    %94 = vector.shape_cast %93 : vector<1x1x64x32xf32> to vector<64x32xf32>
    %cst_37 = arith.constant dense<0.000000e+00> : vector<19x32xf32>
    %95 = tpu.matmul %92, %94, %cst_37 {dimension_numbers = #tpu.dot_dimension_numbers<[1], [0], [0], [1], [0, 0, 1, 1], [], []>} : vector<19x64xf32>, vector<64x32xf32>, vector<19x32xf32> -> vector<19x32xf32>
    %96 = arith.addf %91, %95 : vector<19x32xf32>
    %c0_38 = arith.constant 0 : index
    %c0_39 = arith.constant 0 : index
    %c0_40 = arith.constant 0 : index
    %97 = vector.load %arg5[%c0_38, %c0_39, %c0_40] : memref<1x19x32xf32, #tpu.memory_space<vmem>>, vector<1x19x32xf32>
    %98 = vector.shape_cast %97 : vector<1x19x32xf32> to vector<19x32xf32>
    %99 = vector.shape_cast %96 : vector<19x32xf32> to vector<1x19x32xf32>
    tpu.vector_store %arg5[%c0_38, %c0_39, %c0_40], %99 {strides = array<i32>} : memref<1x19x32xf32, #tpu.memory_space<vmem>>, vector<1x19x32xf32>,
    %100 = tpu.iota {dimensions = array<i32: 1>} : vector<1x19xi32>
    %c5_i32_41 = arith.constant 5 : i32
    %c0_i32_42 = arith.constant 0 : i32
    %101 = arith.cmpi eq, %c5_i32_41, %c0_i32_42 : i32
    %c1_i32_43 = arith.constant 1 : i32
    %102 = arith.select %101, %c1_i32_43, %c5_i32_41 : i32
    %103 = vector.broadcast %102 : i32 to vector<1x19xi32>
    %104 = arith.remsi %100, %103 : vector<1x19xi32>
    %c0_i32_44 = arith.constant 0 : i32
    %105 = vector.broadcast %c0_i32_44 : i32 to vector<1x19xi32>
    %106 = arith.cmpi ne, %104, %105 : vector<1x19xi32>
    %c0_i32_45 = arith.constant 0 : i32
    %107 = vector.broadcast %c0_i32_45 : i32 to vector<1x19xi32>
    %108 = arith.cmpi slt, %104, %107 : vector<1x19xi32>
    %c0_i32_46 = arith.constant 0 : i32
    %109 = arith.cmpi slt, %102, %c0_i32_46 : i32
    %110 = vector.broadcast %109 : i1 to vector<1x19xi1>
    %111 = vector.broadcast %110 : vector<1x19xi1> to vector<1x19xi1>
    %112 = arith.xori %108, %111 : vector<1x19xi1>
    %113 = arith.andi %112, %106 : vector<1x19xi1>
    %114 = vector.broadcast %102 : i32 to vector<1x19xi32>
    %115 = arith.addi %104, %114 : vector<1x19xi32>
    %116 = arith.select %113, %115, %104 : vector<1x19xi1>, vector<1x19xi32>
    %c4_i32 = arith.constant 4 : i32
    %117 = vector.broadcast %c4_i32 : i32 to vector<1x19xi32>
    %118 = arith.cmpi slt, %116, %117 : vector<1x19xi32>
    %119 = arith.extui %118 : vector<1x19xi1> to vector<1x19xi32>
    %120 = arith.sitofp %119 : vector<1x19xi32> to vector<1x19xf32>
    %cst_47 = arith.constant dense<0.000000e+00> : vector<1x32xf32>
    %121 = tpu.matmul %120, %96, %cst_47 {dimension_numbers = #tpu.dot_dimension_numbers<[1], [0], [0], [1], [0, 0, 1, 1], [], []>} : vector<1x19xf32>, vector<19x32xf32>, vector<1x32xf32> -> vector<1x32xf32>
    %c0_48 = arith.constant 0 : index
    %c0_49 = arith.constant 0 : index
    %c0_50 = arith.constant 0 : index
    %122 = vector.load %arg6[%c0_48, %c0_49, %c0_50] : memref<1x2x32xf32, #tpu.memory_space<vmem>>, vector<1x1x32xf32>
    %123 = vector.shape_cast %122 : vector<1x1x32xf32> to vector<1x32xf32>
    %124 = vector.shape_cast %121 : vector<1x32xf32> to vector<1x1x32xf32>
    tpu.vector_store %arg6[%c0_48, %c0_49, %c0_50], %124 {strides = array<i32>} : memref<1x2x32xf32, #tpu.memory_space<vmem>>, vector<1x1x32xf32>,
    %125 = arith.mulf %96, %96 : vector<19x32xf32>
    %cst_51 = arith.constant dense<0.000000e+00> : vector<1x32xf32>
    %126 = tpu.matmul %120, %125, %cst_51 {dimension_numbers = #tpu.dot_dimension_numbers<[1], [0], [0], [1], [0, 0, 1, 1], [], []>} : vector<1x19xf32>, vector<19x32xf32>, vector<1x32xf32> -> vector<1x32xf32>
    %c0_52 = arith.constant 0 : index
    %c1_53 = arith.constant 1 : index
    %c0_54 = arith.constant 0 : index
    %127 = vector.load %arg6[%c0_52, %c1_53, %c0_54] : memref<1x2x32xf32, #tpu.memory_space<vmem>>, vector<1x1x32xf32>
    %128 = vector.shape_cast %127 : vector<1x1x32xf32> to vector<1x32xf32>
    %129 = vector.shape_cast %126 : vector<1x32xf32> to vector<1x1x32xf32>
    tpu.vector_store %arg6[%c0_52, %c1_53, %c0_54], %129 {strides = array<i32>} : memref<1x2x32xf32, #tpu.memory_space<vmem>>, vector<1x1x32xf32>,
    return
  }
  func.func @transform_0(%arg0: i32) -> (i32, i32, i32) {
    %c0_i32 = arith.constant 0 : i32
    %c0_i32_0 = arith.constant 0 : i32
    %c0_i32_1 = arith.constant 0 : i32
    return %arg0, %c0_i32, %c0_i32_0 : i32, i32, i32
  }
  func.func @transform_1(%arg0: i32) -> (i32, i32, i32, i32) {
    %c0_i32 = arith.constant 0 : i32
    %c0_i32_0 = arith.constant 0 : i32
    %c0_i32_1 = arith.constant 0 : i32
    %c0_i32_2 = arith.constant 0 : i32
    %c0_i32_3 = arith.constant 0 : i32
    return %c0_i32, %c0_i32_0, %c0_i32_1, %c0_i32_2 : i32, i32, i32, i32
  }
  func.func @transform_2(%arg0: i32) -> (i32, i32) {
    %c0_i32 = arith.constant 0 : i32
    %c0_i32_0 = arith.constant 0 : i32
    %c0_i32_1 = arith.constant 0 : i32
    return %c0_i32, %c0_i32_0 : i32, i32
  }
  func.func @transform_3(%arg0: i32) -> (i32, i32) {
    %c0_i32 = arith.constant 0 : i32
    %c0_i32_0 = arith.constant 0 : i32
    %c0_i32_1 = arith.constant 0 : i32
    return %c0_i32, %c0_i32_0 : i32, i32
  }
  func.func @transform_4(%arg0: i32) -> (i32, i32, i32) {
    %c0_i32 = arith.constant 0 : i32
    %c0_i32_0 = arith.constant 0 : i32
    %c0_i32_1 = arith.constant 0 : i32
    return %arg0, %c0_i32, %c0_i32_0 : i32, i32, i32
  }
  func.func @transform_5(%arg0: i32) -> (i32, i32, i32) {
    %c0_i32 = arith.constant 0 : i32
    %c0_i32_0 = arith.constant 0 : i32
    %c0_i32_1 = arith.constant 0 : i32
    return %arg0, %c0_i32, %c0_i32_0 : i32, i32, i32
  }
}

module attributes {stable_mosaic.version = 11 : i64} {
  func.func @_conv_kernel(%arg0: i32, %arg1: memref<1x36x32xf32, #tpu.memory_space<vmem>>, %arg2: memref<4x4x32x64xf32, #tpu.memory_space<vmem>>, %arg3: memref<1x32xf32, #tpu.memory_space<vmem>>, %arg4: memref<1x32xf32, #tpu.memory_space<vmem>>, %arg5: memref<1x15x64xf32, #tpu.memory_space<vmem>>, %arg6: memref<1x2x64xf32, #tpu.memory_space<vmem>>) attributes {dimension_semantics = [#tpu.dimension_semantics<parallel>], iteration_bounds = array<i64: 2>, scalar_prefetch = 0 : i64, scratch_operands = 0 : i64, tpu.core_type = #tpu.core_type<tc>, window_params = [{transform_indices = @transform_0, window_bounds = array<i64: 1, 36, 32>}, {pipeline_mode = #tpu.pipeline_mode<synchronous>, transform_indices = @transform_1, window_bounds = array<i64: 4, 4, 32, 64>}, {pipeline_mode = #tpu.pipeline_mode<synchronous>, transform_indices = @transform_2, window_bounds = array<i64: 1, 32>}, {pipeline_mode = #tpu.pipeline_mode<synchronous>, transform_indices = @transform_3, window_bounds = array<i64: 1, 32>}, {transform_indices = @transform_4, window_bounds = array<i64: 1, 15, 64>}, {transform_indices = @transform_5, window_bounds = array<i64: 1, 2, 64>}]} {
    %c0 = arith.constant 0 : index
    %c0_0 = arith.constant 0 : index
    %c0_1 = arith.constant 0 : index
    %0 = vector.load %arg1[%c0, %c0_0, %c0_1] : memref<1x36x32xf32, #tpu.memory_space<vmem>>, vector<1x36x32xf32>
    %1 = vector.shape_cast %0 : vector<1x36x32xf32> to vector<36x32xf32>
    %c0_2 = arith.constant 0 : index
    %c0_3 = arith.constant 0 : index
    %2 = vector.load %arg3[%c0_2, %c0_3] : memref<1x32xf32, #tpu.memory_space<vmem>>, vector<1x32xf32>
    %3 = vector.broadcast %2 : vector<1x32xf32> to vector<36x32xf32>
    %4 = arith.mulf %1, %3 : vector<36x32xf32>
    %c0_4 = arith.constant 0 : index
    %c0_5 = arith.constant 0 : index
    %5 = vector.load %arg4[%c0_4, %c0_5] : memref<1x32xf32, #tpu.memory_space<vmem>>, vector<1x32xf32>
    %6 = vector.broadcast %5 : vector<1x32xf32> to vector<36x32xf32>
    %7 = arith.addf %4, %6 : vector<36x32xf32>
    %cst = arith.constant 0.000000e+00 : f32
    %8 = vector.broadcast %cst : f32 to vector<36x32xf32>
    %9 = arith.cmpf ogt, %7, %8 : vector<36x32xf32>
    %cst_6 = arith.constant 2.000000e-01 : f32
    %10 = vector.broadcast %cst_6 : f32 to vector<36x32xf32>
    %11 = arith.mulf %10, %7 : vector<36x32xf32>
    %12 = arith.select %9, %7, %11 : vector<36x32xi1>, vector<36x32xf32>
    %13 = tpu.iota {dimensions = array<i32: 0>} : vector<36x1xi32>
    %c6_i32 = arith.constant 6 : i32
    %c0_i32 = arith.constant 0 : i32
    %14 = arith.cmpi eq, %c6_i32, %c0_i32 : i32
    %c1_i32 = arith.constant 1 : i32
    %15 = arith.select %14, %c1_i32, %c6_i32 : i32
    %16 = vector.broadcast %15 : i32 to vector<36x1xi32>
    %17 = arith.remsi %13, %16 : vector<36x1xi32>
    %c0_i32_7 = arith.constant 0 : i32
    %18 = vector.broadcast %c0_i32_7 : i32 to vector<36x1xi32>
    %19 = arith.cmpi ne, %17, %18 : vector<36x1xi32>
    %c0_i32_8 = arith.constant 0 : i32
    %20 = vector.broadcast %c0_i32_8 : i32 to vector<36x1xi32>
    %21 = arith.cmpi slt, %17, %20 : vector<36x1xi32>
    %c0_i32_9 = arith.constant 0 : i32
    %22 = arith.cmpi slt, %15, %c0_i32_9 : i32
    %23 = vector.broadcast %22 : i1 to vector<36x1xi1>
    %24 = vector.broadcast %23 : vector<36x1xi1> to vector<36x1xi1>
    %25 = arith.xori %21, %24 : vector<36x1xi1>
    %26 = arith.andi %25, %19 : vector<36x1xi1>
    %27 = vector.broadcast %15 : i32 to vector<36x1xi32>
    %28 = arith.addi %17, %27 : vector<36x1xi32>
    %29 = arith.select %26, %28, %17 : vector<36x1xi1>, vector<36x1xi32>
    %c6_i32_10 = arith.constant 6 : i32
    %30 = vector.broadcast %c6_i32_10 : i32 to vector<36x1xi32>
    %31 = arith.cmpi sge, %13, %30 : vector<36x1xi32>
    %c30_i32 = arith.constant 30 : i32
    %32 = vector.broadcast %c30_i32 : i32 to vector<36x1xi32>
    %33 = arith.cmpi slt, %13, %32 : vector<36x1xi32>
    %c1_i32_11 = arith.constant 1 : i32
    %34 = vector.broadcast %c1_i32_11 : i32 to vector<36x1xi32>
    %35 = arith.cmpi sge, %29, %34 : vector<36x1xi32>
    %c4_i32 = arith.constant 4 : i32
    %36 = vector.broadcast %c4_i32 : i32 to vector<36x1xi32>
    %37 = arith.cmpi sle, %29, %36 : vector<36x1xi32>
    %38 = arith.andi %31, %33 : vector<36x1xi1>
    %39 = arith.andi %38, %35 : vector<36x1xi1>
    %40 = arith.andi %39, %37 : vector<36x1xi1>
    %cst_12 = arith.constant 0.000000e+00 : f32
    %41 = vector.shape_cast %40 : vector<36x1xi1> to vector<36x1xi1>
    %42 = vector.broadcast %41 : vector<36x1xi1> to vector<36x32xi1>
    %43 = vector.broadcast %cst_12 : f32 to vector<36x32xf32>
    %44 = arith.select %42, %12, %43 : vector<36x32xi1>, vector<36x32xf32>
    %cst_13 = arith.constant 0.000000e+00 : f32
    %45 = vector.broadcast %cst_13 : f32 to vector<15x64xf32>
    %46 = vector.extract_strided_slice %44 {offsets = [0, 0], sizes = [15, 32], strides = [1, 1]} : vector<36x32xf32> to vector<15x32xf32>
    %c0_14 = arith.constant 0 : index
    %c0_15 = arith.constant 0 : index
    %c0_16 = arith.constant 0 : index
    %c0_17 = arith.constant 0 : index
    %47 = vector.load %arg2[%c0_14, %c0_15, %c0_16, %c0_17] : memref<4x4x32x64xf32, #tpu.memory_space<vmem>>, vector<1x1x32x64xf32>
    %48 = vector.shape_cast %47 : vector<1x1x32x64xf32> to vector<32x64xf32>
    %cst_18 = arith.constant dense<0.000000e+00> : vector<15x64xf32>
    %49 = tpu.matmul %46, %48, %cst_18 {dimension_numbers = #tpu.dot_dimension_numbers<[1], [0], [0], [1], [0, 0, 1, 1], [], []>} : vector<15x32xf32>, vector<32x64xf32>, vector<15x64xf32> -> vector<15x64xf32>
    %50 = arith.addf %45, %49 : vector<15x64xf32>
    %51 = vector.extract_strided_slice %44 {offsets = [1, 0], sizes = [15, 32], strides = [1, 1]} : vector<36x32xf32> to vector<15x32xf32>
    %c0_19 = arith.constant 0 : index
    %c1 = arith.constant 1 : index
    %c0_20 = arith.constant 0 : index
    %c0_21 = arith.constant 0 : index
    %52 = vector.load %arg2[%c0_19, %c1, %c0_20, %c0_21] : memref<4x4x32x64xf32, #tpu.memory_space<vmem>>, vector<1x1x32x64xf32>
    %53 = vector.shape_cast %52 : vector<1x1x32x64xf32> to vector<32x64xf32>
    %cst_22 = arith.constant dense<0.000000e+00> : vector<15x64xf32>
    %54 = tpu.matmul %51, %53, %cst_22 {dimension_numbers = #tpu.dot_dimension_numbers<[1], [0], [0], [1], [0, 0, 1, 1], [], []>} : vector<15x32xf32>, vector<32x64xf32>, vector<15x64xf32> -> vector<15x64xf32>
    %55 = arith.addf %50, %54 : vector<15x64xf32>
    %56 = vector.extract_strided_slice %44 {offsets = [2, 0], sizes = [15, 32], strides = [1, 1]} : vector<36x32xf32> to vector<15x32xf32>
    %c0_23 = arith.constant 0 : index
    %c2 = arith.constant 2 : index
    %c0_24 = arith.constant 0 : index
    %c0_25 = arith.constant 0 : index
    %57 = vector.load %arg2[%c0_23, %c2, %c0_24, %c0_25] : memref<4x4x32x64xf32, #tpu.memory_space<vmem>>, vector<1x1x32x64xf32>
    %58 = vector.shape_cast %57 : vector<1x1x32x64xf32> to vector<32x64xf32>
    %cst_26 = arith.constant dense<0.000000e+00> : vector<15x64xf32>
    %59 = tpu.matmul %56, %58, %cst_26 {dimension_numbers = #tpu.dot_dimension_numbers<[1], [0], [0], [1], [0, 0, 1, 1], [], []>} : vector<15x32xf32>, vector<32x64xf32>, vector<15x64xf32> -> vector<15x64xf32>
    %60 = arith.addf %55, %59 : vector<15x64xf32>
    %61 = vector.extract_strided_slice %44 {offsets = [3, 0], sizes = [15, 32], strides = [1, 1]} : vector<36x32xf32> to vector<15x32xf32>
    %c0_27 = arith.constant 0 : index
    %c3 = arith.constant 3 : index
    %c0_28 = arith.constant 0 : index
    %c0_29 = arith.constant 0 : index
    %62 = vector.load %arg2[%c0_27, %c3, %c0_28, %c0_29] : memref<4x4x32x64xf32, #tpu.memory_space<vmem>>, vector<1x1x32x64xf32>
    %63 = vector.shape_cast %62 : vector<1x1x32x64xf32> to vector<32x64xf32>
    %cst_30 = arith.constant dense<0.000000e+00> : vector<15x64xf32>
    %64 = tpu.matmul %61, %63, %cst_30 {dimension_numbers = #tpu.dot_dimension_numbers<[1], [0], [0], [1], [0, 0, 1, 1], [], []>} : vector<15x32xf32>, vector<32x64xf32>, vector<15x64xf32> -> vector<15x64xf32>
    %65 = arith.addf %60, %64 : vector<15x64xf32>
    %66 = vector.extract_strided_slice %44 {offsets = [6, 0], sizes = [15, 32], strides = [1, 1]} : vector<36x32xf32> to vector<15x32xf32>
    %c1_31 = arith.constant 1 : index
    %c0_32 = arith.constant 0 : index
    %c0_33 = arith.constant 0 : index
    %c0_34 = arith.constant 0 : index
    %67 = vector.load %arg2[%c1_31, %c0_32, %c0_33, %c0_34] : memref<4x4x32x64xf32, #tpu.memory_space<vmem>>, vector<1x1x32x64xf32>
    %68 = vector.shape_cast %67 : vector<1x1x32x64xf32> to vector<32x64xf32>
    %cst_35 = arith.constant dense<0.000000e+00> : vector<15x64xf32>
    %69 = tpu.matmul %66, %68, %cst_35 {dimension_numbers = #tpu.dot_dimension_numbers<[1], [0], [0], [1], [0, 0, 1, 1], [], []>} : vector<15x32xf32>, vector<32x64xf32>, vector<15x64xf32> -> vector<15x64xf32>
    %70 = arith.addf %65, %69 : vector<15x64xf32>
    %71 = vector.extract_strided_slice %44 {offsets = [7, 0], sizes = [15, 32], strides = [1, 1]} : vector<36x32xf32> to vector<15x32xf32>
    %c1_36 = arith.constant 1 : index
    %c1_37 = arith.constant 1 : index
    %c0_38 = arith.constant 0 : index
    %c0_39 = arith.constant 0 : index
    %72 = vector.load %arg2[%c1_36, %c1_37, %c0_38, %c0_39] : memref<4x4x32x64xf32, #tpu.memory_space<vmem>>, vector<1x1x32x64xf32>
    %73 = vector.shape_cast %72 : vector<1x1x32x64xf32> to vector<32x64xf32>
    %cst_40 = arith.constant dense<0.000000e+00> : vector<15x64xf32>
    %74 = tpu.matmul %71, %73, %cst_40 {dimension_numbers = #tpu.dot_dimension_numbers<[1], [0], [0], [1], [0, 0, 1, 1], [], []>} : vector<15x32xf32>, vector<32x64xf32>, vector<15x64xf32> -> vector<15x64xf32>
    %75 = arith.addf %70, %74 : vector<15x64xf32>
    %76 = vector.extract_strided_slice %44 {offsets = [8, 0], sizes = [15, 32], strides = [1, 1]} : vector<36x32xf32> to vector<15x32xf32>
    %c1_41 = arith.constant 1 : index
    %c2_42 = arith.constant 2 : index
    %c0_43 = arith.constant 0 : index
    %c0_44 = arith.constant 0 : index
    %77 = vector.load %arg2[%c1_41, %c2_42, %c0_43, %c0_44] : memref<4x4x32x64xf32, #tpu.memory_space<vmem>>, vector<1x1x32x64xf32>
    %78 = vector.shape_cast %77 : vector<1x1x32x64xf32> to vector<32x64xf32>
    %cst_45 = arith.constant dense<0.000000e+00> : vector<15x64xf32>
    %79 = tpu.matmul %76, %78, %cst_45 {dimension_numbers = #tpu.dot_dimension_numbers<[1], [0], [0], [1], [0, 0, 1, 1], [], []>} : vector<15x32xf32>, vector<32x64xf32>, vector<15x64xf32> -> vector<15x64xf32>
    %80 = arith.addf %75, %79 : vector<15x64xf32>
    %81 = vector.extract_strided_slice %44 {offsets = [9, 0], sizes = [15, 32], strides = [1, 1]} : vector<36x32xf32> to vector<15x32xf32>
    %c1_46 = arith.constant 1 : index
    %c3_47 = arith.constant 3 : index
    %c0_48 = arith.constant 0 : index
    %c0_49 = arith.constant 0 : index
    %82 = vector.load %arg2[%c1_46, %c3_47, %c0_48, %c0_49] : memref<4x4x32x64xf32, #tpu.memory_space<vmem>>, vector<1x1x32x64xf32>
    %83 = vector.shape_cast %82 : vector<1x1x32x64xf32> to vector<32x64xf32>
    %cst_50 = arith.constant dense<0.000000e+00> : vector<15x64xf32>
    %84 = tpu.matmul %81, %83, %cst_50 {dimension_numbers = #tpu.dot_dimension_numbers<[1], [0], [0], [1], [0, 0, 1, 1], [], []>} : vector<15x32xf32>, vector<32x64xf32>, vector<15x64xf32> -> vector<15x64xf32>
    %85 = arith.addf %80, %84 : vector<15x64xf32>
    %86 = vector.extract_strided_slice %44 {offsets = [12, 0], sizes = [15, 32], strides = [1, 1]} : vector<36x32xf32> to vector<15x32xf32>
    %c2_51 = arith.constant 2 : index
    %c0_52 = arith.constant 0 : index
    %c0_53 = arith.constant 0 : index
    %c0_54 = arith.constant 0 : index
    %87 = vector.load %arg2[%c2_51, %c0_52, %c0_53, %c0_54] : memref<4x4x32x64xf32, #tpu.memory_space<vmem>>, vector<1x1x32x64xf32>
    %88 = vector.shape_cast %87 : vector<1x1x32x64xf32> to vector<32x64xf32>
    %cst_55 = arith.constant dense<0.000000e+00> : vector<15x64xf32>
    %89 = tpu.matmul %86, %88, %cst_55 {dimension_numbers = #tpu.dot_dimension_numbers<[1], [0], [0], [1], [0, 0, 1, 1], [], []>} : vector<15x32xf32>, vector<32x64xf32>, vector<15x64xf32> -> vector<15x64xf32>
    %90 = arith.addf %85, %89 : vector<15x64xf32>
    %91 = vector.extract_strided_slice %44 {offsets = [13, 0], sizes = [15, 32], strides = [1, 1]} : vector<36x32xf32> to vector<15x32xf32>
    %c2_56 = arith.constant 2 : index
    %c1_57 = arith.constant 1 : index
    %c0_58 = arith.constant 0 : index
    %c0_59 = arith.constant 0 : index
    %92 = vector.load %arg2[%c2_56, %c1_57, %c0_58, %c0_59] : memref<4x4x32x64xf32, #tpu.memory_space<vmem>>, vector<1x1x32x64xf32>
    %93 = vector.shape_cast %92 : vector<1x1x32x64xf32> to vector<32x64xf32>
    %cst_60 = arith.constant dense<0.000000e+00> : vector<15x64xf32>
    %94 = tpu.matmul %91, %93, %cst_60 {dimension_numbers = #tpu.dot_dimension_numbers<[1], [0], [0], [1], [0, 0, 1, 1], [], []>} : vector<15x32xf32>, vector<32x64xf32>, vector<15x64xf32> -> vector<15x64xf32>
    %95 = arith.addf %90, %94 : vector<15x64xf32>
    %96 = vector.extract_strided_slice %44 {offsets = [14, 0], sizes = [15, 32], strides = [1, 1]} : vector<36x32xf32> to vector<15x32xf32>
    %c2_61 = arith.constant 2 : index
    %c2_62 = arith.constant 2 : index
    %c0_63 = arith.constant 0 : index
    %c0_64 = arith.constant 0 : index
    %97 = vector.load %arg2[%c2_61, %c2_62, %c0_63, %c0_64] : memref<4x4x32x64xf32, #tpu.memory_space<vmem>>, vector<1x1x32x64xf32>
    %98 = vector.shape_cast %97 : vector<1x1x32x64xf32> to vector<32x64xf32>
    %cst_65 = arith.constant dense<0.000000e+00> : vector<15x64xf32>
    %99 = tpu.matmul %96, %98, %cst_65 {dimension_numbers = #tpu.dot_dimension_numbers<[1], [0], [0], [1], [0, 0, 1, 1], [], []>} : vector<15x32xf32>, vector<32x64xf32>, vector<15x64xf32> -> vector<15x64xf32>
    %100 = arith.addf %95, %99 : vector<15x64xf32>
    %101 = vector.extract_strided_slice %44 {offsets = [15, 0], sizes = [15, 32], strides = [1, 1]} : vector<36x32xf32> to vector<15x32xf32>
    %c2_66 = arith.constant 2 : index
    %c3_67 = arith.constant 3 : index
    %c0_68 = arith.constant 0 : index
    %c0_69 = arith.constant 0 : index
    %102 = vector.load %arg2[%c2_66, %c3_67, %c0_68, %c0_69] : memref<4x4x32x64xf32, #tpu.memory_space<vmem>>, vector<1x1x32x64xf32>
    %103 = vector.shape_cast %102 : vector<1x1x32x64xf32> to vector<32x64xf32>
    %cst_70 = arith.constant dense<0.000000e+00> : vector<15x64xf32>
    %104 = tpu.matmul %101, %103, %cst_70 {dimension_numbers = #tpu.dot_dimension_numbers<[1], [0], [0], [1], [0, 0, 1, 1], [], []>} : vector<15x32xf32>, vector<32x64xf32>, vector<15x64xf32> -> vector<15x64xf32>
    %105 = arith.addf %100, %104 : vector<15x64xf32>
    %106 = vector.extract_strided_slice %44 {offsets = [18, 0], sizes = [15, 32], strides = [1, 1]} : vector<36x32xf32> to vector<15x32xf32>
    %c3_71 = arith.constant 3 : index
    %c0_72 = arith.constant 0 : index
    %c0_73 = arith.constant 0 : index
    %c0_74 = arith.constant 0 : index
    %107 = vector.load %arg2[%c3_71, %c0_72, %c0_73, %c0_74] : memref<4x4x32x64xf32, #tpu.memory_space<vmem>>, vector<1x1x32x64xf32>
    %108 = vector.shape_cast %107 : vector<1x1x32x64xf32> to vector<32x64xf32>
    %cst_75 = arith.constant dense<0.000000e+00> : vector<15x64xf32>
    %109 = tpu.matmul %106, %108, %cst_75 {dimension_numbers = #tpu.dot_dimension_numbers<[1], [0], [0], [1], [0, 0, 1, 1], [], []>} : vector<15x32xf32>, vector<32x64xf32>, vector<15x64xf32> -> vector<15x64xf32>
    %110 = arith.addf %105, %109 : vector<15x64xf32>
    %111 = vector.extract_strided_slice %44 {offsets = [19, 0], sizes = [15, 32], strides = [1, 1]} : vector<36x32xf32> to vector<15x32xf32>
    %c3_76 = arith.constant 3 : index
    %c1_77 = arith.constant 1 : index
    %c0_78 = arith.constant 0 : index
    %c0_79 = arith.constant 0 : index
    %112 = vector.load %arg2[%c3_76, %c1_77, %c0_78, %c0_79] : memref<4x4x32x64xf32, #tpu.memory_space<vmem>>, vector<1x1x32x64xf32>
    %113 = vector.shape_cast %112 : vector<1x1x32x64xf32> to vector<32x64xf32>
    %cst_80 = arith.constant dense<0.000000e+00> : vector<15x64xf32>
    %114 = tpu.matmul %111, %113, %cst_80 {dimension_numbers = #tpu.dot_dimension_numbers<[1], [0], [0], [1], [0, 0, 1, 1], [], []>} : vector<15x32xf32>, vector<32x64xf32>, vector<15x64xf32> -> vector<15x64xf32>
    %115 = arith.addf %110, %114 : vector<15x64xf32>
    %116 = vector.extract_strided_slice %44 {offsets = [20, 0], sizes = [15, 32], strides = [1, 1]} : vector<36x32xf32> to vector<15x32xf32>
    %c3_81 = arith.constant 3 : index
    %c2_82 = arith.constant 2 : index
    %c0_83 = arith.constant 0 : index
    %c0_84 = arith.constant 0 : index
    %117 = vector.load %arg2[%c3_81, %c2_82, %c0_83, %c0_84] : memref<4x4x32x64xf32, #tpu.memory_space<vmem>>, vector<1x1x32x64xf32>
    %118 = vector.shape_cast %117 : vector<1x1x32x64xf32> to vector<32x64xf32>
    %cst_85 = arith.constant dense<0.000000e+00> : vector<15x64xf32>
    %119 = tpu.matmul %116, %118, %cst_85 {dimension_numbers = #tpu.dot_dimension_numbers<[1], [0], [0], [1], [0, 0, 1, 1], [], []>} : vector<15x32xf32>, vector<32x64xf32>, vector<15x64xf32> -> vector<15x64xf32>
    %120 = arith.addf %115, %119 : vector<15x64xf32>
    %121 = vector.extract_strided_slice %44 {offsets = [21, 0], sizes = [15, 32], strides = [1, 1]} : vector<36x32xf32> to vector<15x32xf32>
    %c3_86 = arith.constant 3 : index
    %c3_87 = arith.constant 3 : index
    %c0_88 = arith.constant 0 : index
    %c0_89 = arith.constant 0 : index
    %122 = vector.load %arg2[%c3_86, %c3_87, %c0_88, %c0_89] : memref<4x4x32x64xf32, #tpu.memory_space<vmem>>, vector<1x1x32x64xf32>
    %123 = vector.shape_cast %122 : vector<1x1x32x64xf32> to vector<32x64xf32>
    %cst_90 = arith.constant dense<0.000000e+00> : vector<15x64xf32>
    %124 = tpu.matmul %121, %123, %cst_90 {dimension_numbers = #tpu.dot_dimension_numbers<[1], [0], [0], [1], [0, 0, 1, 1], [], []>} : vector<15x32xf32>, vector<32x64xf32>, vector<15x64xf32> -> vector<15x64xf32>
    %125 = arith.addf %120, %124 : vector<15x64xf32>
    %c0_91 = arith.constant 0 : index
    %c0_92 = arith.constant 0 : index
    %c0_93 = arith.constant 0 : index
    %126 = vector.load %arg5[%c0_91, %c0_92, %c0_93] : memref<1x15x64xf32, #tpu.memory_space<vmem>>, vector<1x15x64xf32>
    %127 = vector.shape_cast %126 : vector<1x15x64xf32> to vector<15x64xf32>
    %128 = vector.shape_cast %125 : vector<15x64xf32> to vector<1x15x64xf32>
    tpu.vector_store %arg5[%c0_91, %c0_92, %c0_93], %128 {strides = array<i32>} : memref<1x15x64xf32, #tpu.memory_space<vmem>>, vector<1x15x64xf32>,
    %129 = tpu.iota {dimensions = array<i32: 1>} : vector<1x15xi32>
    %c6_i32_94 = arith.constant 6 : i32
    %c0_i32_95 = arith.constant 0 : i32
    %130 = arith.cmpi eq, %c6_i32_94, %c0_i32_95 : i32
    %c1_i32_96 = arith.constant 1 : i32
    %131 = arith.select %130, %c1_i32_96, %c6_i32_94 : i32
    %132 = vector.broadcast %131 : i32 to vector<1x15xi32>
    %133 = arith.remsi %129, %132 : vector<1x15xi32>
    %c0_i32_97 = arith.constant 0 : i32
    %134 = vector.broadcast %c0_i32_97 : i32 to vector<1x15xi32>
    %135 = arith.cmpi ne, %133, %134 : vector<1x15xi32>
    %c0_i32_98 = arith.constant 0 : i32
    %136 = vector.broadcast %c0_i32_98 : i32 to vector<1x15xi32>
    %137 = arith.cmpi slt, %133, %136 : vector<1x15xi32>
    %c0_i32_99 = arith.constant 0 : i32
    %138 = arith.cmpi slt, %131, %c0_i32_99 : i32
    %139 = vector.broadcast %138 : i1 to vector<1x15xi1>
    %140 = vector.broadcast %139 : vector<1x15xi1> to vector<1x15xi1>
    %141 = arith.xori %137, %140 : vector<1x15xi1>
    %142 = arith.andi %141, %135 : vector<1x15xi1>
    %143 = vector.broadcast %131 : i32 to vector<1x15xi32>
    %144 = arith.addi %133, %143 : vector<1x15xi32>
    %145 = arith.select %142, %144, %133 : vector<1x15xi1>, vector<1x15xi32>
    %c3_i32 = arith.constant 3 : i32
    %146 = vector.broadcast %c3_i32 : i32 to vector<1x15xi32>
    %147 = arith.cmpi slt, %145, %146 : vector<1x15xi32>
    %148 = arith.extui %147 : vector<1x15xi1> to vector<1x15xi32>
    %149 = arith.sitofp %148 : vector<1x15xi32> to vector<1x15xf32>
    %cst_100 = arith.constant dense<0.000000e+00> : vector<1x64xf32>
    %150 = tpu.matmul %149, %125, %cst_100 {dimension_numbers = #tpu.dot_dimension_numbers<[1], [0], [0], [1], [0, 0, 1, 1], [], []>} : vector<1x15xf32>, vector<15x64xf32>, vector<1x64xf32> -> vector<1x64xf32>
    %c0_101 = arith.constant 0 : index
    %c0_102 = arith.constant 0 : index
    %c0_103 = arith.constant 0 : index
    %151 = vector.load %arg6[%c0_101, %c0_102, %c0_103] : memref<1x2x64xf32, #tpu.memory_space<vmem>>, vector<1x1x64xf32>
    %152 = vector.shape_cast %151 : vector<1x1x64xf32> to vector<1x64xf32>
    %153 = vector.shape_cast %150 : vector<1x64xf32> to vector<1x1x64xf32>
    tpu.vector_store %arg6[%c0_101, %c0_102, %c0_103], %153 {strides = array<i32>} : memref<1x2x64xf32, #tpu.memory_space<vmem>>, vector<1x1x64xf32>,
    %154 = arith.mulf %125, %125 : vector<15x64xf32>
    %cst_104 = arith.constant dense<0.000000e+00> : vector<1x64xf32>
    %155 = tpu.matmul %149, %154, %cst_104 {dimension_numbers = #tpu.dot_dimension_numbers<[1], [0], [0], [1], [0, 0, 1, 1], [], []>} : vector<1x15xf32>, vector<15x64xf32>, vector<1x64xf32> -> vector<1x64xf32>
    %c0_105 = arith.constant 0 : index
    %c1_106 = arith.constant 1 : index
    %c0_107 = arith.constant 0 : index
    %156 = vector.load %arg6[%c0_105, %c1_106, %c0_107] : memref<1x2x64xf32, #tpu.memory_space<vmem>>, vector<1x1x64xf32>
    %157 = vector.shape_cast %156 : vector<1x1x64xf32> to vector<1x64xf32>
    %158 = vector.shape_cast %155 : vector<1x64xf32> to vector<1x1x64xf32>
    tpu.vector_store %arg6[%c0_105, %c1_106, %c0_107], %158 {strides = array<i32>} : memref<1x2x64xf32, #tpu.memory_space<vmem>>, vector<1x1x64xf32>,
    return
  }
  func.func @transform_0(%arg0: i32) -> (i32, i32, i32) {
    %c0_i32 = arith.constant 0 : i32
    %c0_i32_0 = arith.constant 0 : i32
    %c0_i32_1 = arith.constant 0 : i32
    return %arg0, %c0_i32, %c0_i32_0 : i32, i32, i32
  }
  func.func @transform_1(%arg0: i32) -> (i32, i32, i32, i32) {
    %c0_i32 = arith.constant 0 : i32
    %c0_i32_0 = arith.constant 0 : i32
    %c0_i32_1 = arith.constant 0 : i32
    %c0_i32_2 = arith.constant 0 : i32
    %c0_i32_3 = arith.constant 0 : i32
    return %c0_i32, %c0_i32_0, %c0_i32_1, %c0_i32_2 : i32, i32, i32, i32
  }
  func.func @transform_2(%arg0: i32) -> (i32, i32) {
    %c0_i32 = arith.constant 0 : i32
    %c0_i32_0 = arith.constant 0 : i32
    %c0_i32_1 = arith.constant 0 : i32
    return %c0_i32, %c0_i32_0 : i32, i32
  }
  func.func @transform_3(%arg0: i32) -> (i32, i32) {
    %c0_i32 = arith.constant 0 : i32
    %c0_i32_0 = arith.constant 0 : i32
    %c0_i32_1 = arith.constant 0 : i32
    return %c0_i32, %c0_i32_0 : i32, i32
  }
  func.func @transform_4(%arg0: i32) -> (i32, i32, i32) {
    %c0_i32 = arith.constant 0 : i32
    %c0_i32_0 = arith.constant 0 : i32
    %c0_i32_1 = arith.constant 0 : i32
    return %arg0, %c0_i32, %c0_i32_0 : i32, i32, i32
  }
  func.func @transform_5(%arg0: i32) -> (i32, i32, i32) {
    %c0_i32 = arith.constant 0 : i32
    %c0_i32_0 = arith.constant 0 : i32
    %c0_i32_1 = arith.constant 0 : i32
    return %arg0, %c0_i32, %c0_i32_0 : i32, i32, i32
  }
}

module attributes {stable_mosaic.version = 11 : i64} {
  func.func @_conv_kernel(%arg0: i32, %arg1: memref<1x25x64xf32, #tpu.memory_space<vmem>>, %arg2: memref<4x4x64x1xf32, #tpu.memory_space<vmem>>, %arg3: memref<1x64xf32, #tpu.memory_space<vmem>>, %arg4: memref<1x64xf32, #tpu.memory_space<vmem>>, %arg5: memref<1x1xf32, #tpu.memory_space<vmem>>, %arg6: memref<1x7x1xf32, #tpu.memory_space<vmem>>) attributes {dimension_semantics = [#tpu.dimension_semantics<parallel>], iteration_bounds = array<i64: 2>, scalar_prefetch = 0 : i64, scratch_operands = 0 : i64, tpu.core_type = #tpu.core_type<tc>, window_params = [{transform_indices = @transform_0, window_bounds = array<i64: 1, 25, 64>}, {pipeline_mode = #tpu.pipeline_mode<synchronous>, transform_indices = @transform_1, window_bounds = array<i64: 4, 4, 64, 1>}, {pipeline_mode = #tpu.pipeline_mode<synchronous>, transform_indices = @transform_2, window_bounds = array<i64: 1, 64>}, {pipeline_mode = #tpu.pipeline_mode<synchronous>, transform_indices = @transform_3, window_bounds = array<i64: 1, 64>}, {pipeline_mode = #tpu.pipeline_mode<synchronous>, transform_indices = @transform_4, window_bounds = array<i64: 1, 1>}, {transform_indices = @transform_5, window_bounds = array<i64: 1, 7, 1>}]} {
    %c0 = arith.constant 0 : index
    %c0_0 = arith.constant 0 : index
    %c0_1 = arith.constant 0 : index
    %0 = vector.load %arg1[%c0, %c0_0, %c0_1] : memref<1x25x64xf32, #tpu.memory_space<vmem>>, vector<1x25x64xf32>
    %1 = vector.shape_cast %0 : vector<1x25x64xf32> to vector<25x64xf32>
    %c0_2 = arith.constant 0 : index
    %c0_3 = arith.constant 0 : index
    %2 = vector.load %arg3[%c0_2, %c0_3] : memref<1x64xf32, #tpu.memory_space<vmem>>, vector<1x64xf32>
    %3 = vector.broadcast %2 : vector<1x64xf32> to vector<25x64xf32>
    %4 = arith.mulf %1, %3 : vector<25x64xf32>
    %c0_4 = arith.constant 0 : index
    %c0_5 = arith.constant 0 : index
    %5 = vector.load %arg4[%c0_4, %c0_5] : memref<1x64xf32, #tpu.memory_space<vmem>>, vector<1x64xf32>
    %6 = vector.broadcast %5 : vector<1x64xf32> to vector<25x64xf32>
    %7 = arith.addf %4, %6 : vector<25x64xf32>
    %cst = arith.constant 0.000000e+00 : f32
    %8 = vector.broadcast %cst : f32 to vector<25x64xf32>
    %9 = arith.cmpf ogt, %7, %8 : vector<25x64xf32>
    %cst_6 = arith.constant 2.000000e-01 : f32
    %10 = vector.broadcast %cst_6 : f32 to vector<25x64xf32>
    %11 = arith.mulf %10, %7 : vector<25x64xf32>
    %12 = arith.select %9, %7, %11 : vector<25x64xi1>, vector<25x64xf32>
    %13 = tpu.iota {dimensions = array<i32: 0>} : vector<25x1xi32>
    %c5_i32 = arith.constant 5 : i32
    %c0_i32 = arith.constant 0 : i32
    %14 = arith.cmpi eq, %c5_i32, %c0_i32 : i32
    %c1_i32 = arith.constant 1 : i32
    %15 = arith.select %14, %c1_i32, %c5_i32 : i32
    %16 = vector.broadcast %15 : i32 to vector<25x1xi32>
    %17 = arith.remsi %13, %16 : vector<25x1xi32>
    %c0_i32_7 = arith.constant 0 : i32
    %18 = vector.broadcast %c0_i32_7 : i32 to vector<25x1xi32>
    %19 = arith.cmpi ne, %17, %18 : vector<25x1xi32>
    %c0_i32_8 = arith.constant 0 : i32
    %20 = vector.broadcast %c0_i32_8 : i32 to vector<25x1xi32>
    %21 = arith.cmpi slt, %17, %20 : vector<25x1xi32>
    %c0_i32_9 = arith.constant 0 : i32
    %22 = arith.cmpi slt, %15, %c0_i32_9 : i32
    %23 = vector.broadcast %22 : i1 to vector<25x1xi1>
    %24 = vector.broadcast %23 : vector<25x1xi1> to vector<25x1xi1>
    %25 = arith.xori %21, %24 : vector<25x1xi1>
    %26 = arith.andi %25, %19 : vector<25x1xi1>
    %27 = vector.broadcast %15 : i32 to vector<25x1xi32>
    %28 = arith.addi %17, %27 : vector<25x1xi32>
    %29 = arith.select %26, %28, %17 : vector<25x1xi1>, vector<25x1xi32>
    %c5_i32_10 = arith.constant 5 : i32
    %30 = vector.broadcast %c5_i32_10 : i32 to vector<25x1xi32>
    %31 = arith.cmpi sge, %13, %30 : vector<25x1xi32>
    %c20_i32 = arith.constant 20 : i32
    %32 = vector.broadcast %c20_i32 : i32 to vector<25x1xi32>
    %33 = arith.cmpi slt, %13, %32 : vector<25x1xi32>
    %c1_i32_11 = arith.constant 1 : i32
    %34 = vector.broadcast %c1_i32_11 : i32 to vector<25x1xi32>
    %35 = arith.cmpi sge, %29, %34 : vector<25x1xi32>
    %c3_i32 = arith.constant 3 : i32
    %36 = vector.broadcast %c3_i32 : i32 to vector<25x1xi32>
    %37 = arith.cmpi sle, %29, %36 : vector<25x1xi32>
    %38 = arith.andi %31, %33 : vector<25x1xi1>
    %39 = arith.andi %38, %35 : vector<25x1xi1>
    %40 = arith.andi %39, %37 : vector<25x1xi1>
    %cst_12 = arith.constant 0.000000e+00 : f32
    %41 = vector.shape_cast %40 : vector<25x1xi1> to vector<25x1xi1>
    %42 = vector.broadcast %41 : vector<25x1xi1> to vector<25x64xi1>
    %43 = vector.broadcast %cst_12 : f32 to vector<25x64xf32>
    %44 = arith.select %42, %12, %43 : vector<25x64xi1>, vector<25x64xf32>
    %cst_13 = arith.constant 0.000000e+00 : f32
    %45 = vector.broadcast %cst_13 : f32 to vector<7x1xf32>
    %46 = vector.extract_strided_slice %44 {offsets = [0, 0], sizes = [7, 64], strides = [1, 1]} : vector<25x64xf32> to vector<7x64xf32>
    %c0_14 = arith.constant 0 : index
    %c0_15 = arith.constant 0 : index
    %c0_16 = arith.constant 0 : index
    %c0_17 = arith.constant 0 : index
    %47 = vector.load %arg2[%c0_14, %c0_15, %c0_16, %c0_17] : memref<4x4x64x1xf32, #tpu.memory_space<vmem>>, vector<1x1x64x1xf32>
    %48 = vector.shape_cast %47 : vector<1x1x64x1xf32> to vector<64x1xf32>
    %cst_18 = arith.constant dense<0.000000e+00> : vector<7x1xf32>
    %49 = tpu.matmul %46, %48, %cst_18 {dimension_numbers = #tpu.dot_dimension_numbers<[1], [0], [0], [1], [0, 0, 1, 1], [], []>} : vector<7x64xf32>, vector<64x1xf32>, vector<7x1xf32> -> vector<7x1xf32>
    %50 = arith.addf %45, %49 : vector<7x1xf32>
    %51 = vector.extract_strided_slice %44 {offsets = [1, 0], sizes = [7, 64], strides = [1, 1]} : vector<25x64xf32> to vector<7x64xf32>
    %c0_19 = arith.constant 0 : index
    %c1 = arith.constant 1 : index
    %c0_20 = arith.constant 0 : index
    %c0_21 = arith.constant 0 : index
    %52 = vector.load %arg2[%c0_19, %c1, %c0_20, %c0_21] : memref<4x4x64x1xf32, #tpu.memory_space<vmem>>, vector<1x1x64x1xf32>
    %53 = vector.shape_cast %52 : vector<1x1x64x1xf32> to vector<64x1xf32>
    %cst_22 = arith.constant dense<0.000000e+00> : vector<7x1xf32>
    %54 = tpu.matmul %51, %53, %cst_22 {dimension_numbers = #tpu.dot_dimension_numbers<[1], [0], [0], [1], [0, 0, 1, 1], [], []>} : vector<7x64xf32>, vector<64x1xf32>, vector<7x1xf32> -> vector<7x1xf32>
    %55 = arith.addf %50, %54 : vector<7x1xf32>
    %56 = vector.extract_strided_slice %44 {offsets = [2, 0], sizes = [7, 64], strides = [1, 1]} : vector<25x64xf32> to vector<7x64xf32>
    %c0_23 = arith.constant 0 : index
    %c2 = arith.constant 2 : index
    %c0_24 = arith.constant 0 : index
    %c0_25 = arith.constant 0 : index
    %57 = vector.load %arg2[%c0_23, %c2, %c0_24, %c0_25] : memref<4x4x64x1xf32, #tpu.memory_space<vmem>>, vector<1x1x64x1xf32>
    %58 = vector.shape_cast %57 : vector<1x1x64x1xf32> to vector<64x1xf32>
    %cst_26 = arith.constant dense<0.000000e+00> : vector<7x1xf32>
    %59 = tpu.matmul %56, %58, %cst_26 {dimension_numbers = #tpu.dot_dimension_numbers<[1], [0], [0], [1], [0, 0, 1, 1], [], []>} : vector<7x64xf32>, vector<64x1xf32>, vector<7x1xf32> -> vector<7x1xf32>
    %60 = arith.addf %55, %59 : vector<7x1xf32>
    %61 = vector.extract_strided_slice %44 {offsets = [3, 0], sizes = [7, 64], strides = [1, 1]} : vector<25x64xf32> to vector<7x64xf32>
    %c0_27 = arith.constant 0 : index
    %c3 = arith.constant 3 : index
    %c0_28 = arith.constant 0 : index
    %c0_29 = arith.constant 0 : index
    %62 = vector.load %arg2[%c0_27, %c3, %c0_28, %c0_29] : memref<4x4x64x1xf32, #tpu.memory_space<vmem>>, vector<1x1x64x1xf32>
    %63 = vector.shape_cast %62 : vector<1x1x64x1xf32> to vector<64x1xf32>
    %cst_30 = arith.constant dense<0.000000e+00> : vector<7x1xf32>
    %64 = tpu.matmul %61, %63, %cst_30 {dimension_numbers = #tpu.dot_dimension_numbers<[1], [0], [0], [1], [0, 0, 1, 1], [], []>} : vector<7x64xf32>, vector<64x1xf32>, vector<7x1xf32> -> vector<7x1xf32>
    %65 = arith.addf %60, %64 : vector<7x1xf32>
    %66 = vector.extract_strided_slice %44 {offsets = [5, 0], sizes = [7, 64], strides = [1, 1]} : vector<25x64xf32> to vector<7x64xf32>
    %c1_31 = arith.constant 1 : index
    %c0_32 = arith.constant 0 : index
    %c0_33 = arith.constant 0 : index
    %c0_34 = arith.constant 0 : index
    %67 = vector.load %arg2[%c1_31, %c0_32, %c0_33, %c0_34] : memref<4x4x64x1xf32, #tpu.memory_space<vmem>>, vector<1x1x64x1xf32>
    %68 = vector.shape_cast %67 : vector<1x1x64x1xf32> to vector<64x1xf32>
    %cst_35 = arith.constant dense<0.000000e+00> : vector<7x1xf32>
    %69 = tpu.matmul %66, %68, %cst_35 {dimension_numbers = #tpu.dot_dimension_numbers<[1], [0], [0], [1], [0, 0, 1, 1], [], []>} : vector<7x64xf32>, vector<64x1xf32>, vector<7x1xf32> -> vector<7x1xf32>
    %70 = arith.addf %65, %69 : vector<7x1xf32>
    %71 = vector.extract_strided_slice %44 {offsets = [6, 0], sizes = [7, 64], strides = [1, 1]} : vector<25x64xf32> to vector<7x64xf32>
    %c1_36 = arith.constant 1 : index
    %c1_37 = arith.constant 1 : index
    %c0_38 = arith.constant 0 : index
    %c0_39 = arith.constant 0 : index
    %72 = vector.load %arg2[%c1_36, %c1_37, %c0_38, %c0_39] : memref<4x4x64x1xf32, #tpu.memory_space<vmem>>, vector<1x1x64x1xf32>
    %73 = vector.shape_cast %72 : vector<1x1x64x1xf32> to vector<64x1xf32>
    %cst_40 = arith.constant dense<0.000000e+00> : vector<7x1xf32>
    %74 = tpu.matmul %71, %73, %cst_40 {dimension_numbers = #tpu.dot_dimension_numbers<[1], [0], [0], [1], [0, 0, 1, 1], [], []>} : vector<7x64xf32>, vector<64x1xf32>, vector<7x1xf32> -> vector<7x1xf32>
    %75 = arith.addf %70, %74 : vector<7x1xf32>
    %76 = vector.extract_strided_slice %44 {offsets = [7, 0], sizes = [7, 64], strides = [1, 1]} : vector<25x64xf32> to vector<7x64xf32>
    %c1_41 = arith.constant 1 : index
    %c2_42 = arith.constant 2 : index
    %c0_43 = arith.constant 0 : index
    %c0_44 = arith.constant 0 : index
    %77 = vector.load %arg2[%c1_41, %c2_42, %c0_43, %c0_44] : memref<4x4x64x1xf32, #tpu.memory_space<vmem>>, vector<1x1x64x1xf32>
    %78 = vector.shape_cast %77 : vector<1x1x64x1xf32> to vector<64x1xf32>
    %cst_45 = arith.constant dense<0.000000e+00> : vector<7x1xf32>
    %79 = tpu.matmul %76, %78, %cst_45 {dimension_numbers = #tpu.dot_dimension_numbers<[1], [0], [0], [1], [0, 0, 1, 1], [], []>} : vector<7x64xf32>, vector<64x1xf32>, vector<7x1xf32> -> vector<7x1xf32>
    %80 = arith.addf %75, %79 : vector<7x1xf32>
    %81 = vector.extract_strided_slice %44 {offsets = [8, 0], sizes = [7, 64], strides = [1, 1]} : vector<25x64xf32> to vector<7x64xf32>
    %c1_46 = arith.constant 1 : index
    %c3_47 = arith.constant 3 : index
    %c0_48 = arith.constant 0 : index
    %c0_49 = arith.constant 0 : index
    %82 = vector.load %arg2[%c1_46, %c3_47, %c0_48, %c0_49] : memref<4x4x64x1xf32, #tpu.memory_space<vmem>>, vector<1x1x64x1xf32>
    %83 = vector.shape_cast %82 : vector<1x1x64x1xf32> to vector<64x1xf32>
    %cst_50 = arith.constant dense<0.000000e+00> : vector<7x1xf32>
    %84 = tpu.matmul %81, %83, %cst_50 {dimension_numbers = #tpu.dot_dimension_numbers<[1], [0], [0], [1], [0, 0, 1, 1], [], []>} : vector<7x64xf32>, vector<64x1xf32>, vector<7x1xf32> -> vector<7x1xf32>
    %85 = arith.addf %80, %84 : vector<7x1xf32>
    %86 = vector.extract_strided_slice %44 {offsets = [10, 0], sizes = [7, 64], strides = [1, 1]} : vector<25x64xf32> to vector<7x64xf32>
    %c2_51 = arith.constant 2 : index
    %c0_52 = arith.constant 0 : index
    %c0_53 = arith.constant 0 : index
    %c0_54 = arith.constant 0 : index
    %87 = vector.load %arg2[%c2_51, %c0_52, %c0_53, %c0_54] : memref<4x4x64x1xf32, #tpu.memory_space<vmem>>, vector<1x1x64x1xf32>
    %88 = vector.shape_cast %87 : vector<1x1x64x1xf32> to vector<64x1xf32>
    %cst_55 = arith.constant dense<0.000000e+00> : vector<7x1xf32>
    %89 = tpu.matmul %86, %88, %cst_55 {dimension_numbers = #tpu.dot_dimension_numbers<[1], [0], [0], [1], [0, 0, 1, 1], [], []>} : vector<7x64xf32>, vector<64x1xf32>, vector<7x1xf32> -> vector<7x1xf32>
    %90 = arith.addf %85, %89 : vector<7x1xf32>
    %91 = vector.extract_strided_slice %44 {offsets = [11, 0], sizes = [7, 64], strides = [1, 1]} : vector<25x64xf32> to vector<7x64xf32>
    %c2_56 = arith.constant 2 : index
    %c1_57 = arith.constant 1 : index
    %c0_58 = arith.constant 0 : index
    %c0_59 = arith.constant 0 : index
    %92 = vector.load %arg2[%c2_56, %c1_57, %c0_58, %c0_59] : memref<4x4x64x1xf32, #tpu.memory_space<vmem>>, vector<1x1x64x1xf32>
    %93 = vector.shape_cast %92 : vector<1x1x64x1xf32> to vector<64x1xf32>
    %cst_60 = arith.constant dense<0.000000e+00> : vector<7x1xf32>
    %94 = tpu.matmul %91, %93, %cst_60 {dimension_numbers = #tpu.dot_dimension_numbers<[1], [0], [0], [1], [0, 0, 1, 1], [], []>} : vector<7x64xf32>, vector<64x1xf32>, vector<7x1xf32> -> vector<7x1xf32>
    %95 = arith.addf %90, %94 : vector<7x1xf32>
    %96 = vector.extract_strided_slice %44 {offsets = [12, 0], sizes = [7, 64], strides = [1, 1]} : vector<25x64xf32> to vector<7x64xf32>
    %c2_61 = arith.constant 2 : index
    %c2_62 = arith.constant 2 : index
    %c0_63 = arith.constant 0 : index
    %c0_64 = arith.constant 0 : index
    %97 = vector.load %arg2[%c2_61, %c2_62, %c0_63, %c0_64] : memref<4x4x64x1xf32, #tpu.memory_space<vmem>>, vector<1x1x64x1xf32>
    %98 = vector.shape_cast %97 : vector<1x1x64x1xf32> to vector<64x1xf32>
    %cst_65 = arith.constant dense<0.000000e+00> : vector<7x1xf32>
    %99 = tpu.matmul %96, %98, %cst_65 {dimension_numbers = #tpu.dot_dimension_numbers<[1], [0], [0], [1], [0, 0, 1, 1], [], []>} : vector<7x64xf32>, vector<64x1xf32>, vector<7x1xf32> -> vector<7x1xf32>
    %100 = arith.addf %95, %99 : vector<7x1xf32>
    %101 = vector.extract_strided_slice %44 {offsets = [13, 0], sizes = [7, 64], strides = [1, 1]} : vector<25x64xf32> to vector<7x64xf32>
    %c2_66 = arith.constant 2 : index
    %c3_67 = arith.constant 3 : index
    %c0_68 = arith.constant 0 : index
    %c0_69 = arith.constant 0 : index
    %102 = vector.load %arg2[%c2_66, %c3_67, %c0_68, %c0_69] : memref<4x4x64x1xf32, #tpu.memory_space<vmem>>, vector<1x1x64x1xf32>
    %103 = vector.shape_cast %102 : vector<1x1x64x1xf32> to vector<64x1xf32>
    %cst_70 = arith.constant dense<0.000000e+00> : vector<7x1xf32>
    %104 = tpu.matmul %101, %103, %cst_70 {dimension_numbers = #tpu.dot_dimension_numbers<[1], [0], [0], [1], [0, 0, 1, 1], [], []>} : vector<7x64xf32>, vector<64x1xf32>, vector<7x1xf32> -> vector<7x1xf32>
    %105 = arith.addf %100, %104 : vector<7x1xf32>
    %106 = vector.extract_strided_slice %44 {offsets = [15, 0], sizes = [7, 64], strides = [1, 1]} : vector<25x64xf32> to vector<7x64xf32>
    %c3_71 = arith.constant 3 : index
    %c0_72 = arith.constant 0 : index
    %c0_73 = arith.constant 0 : index
    %c0_74 = arith.constant 0 : index
    %107 = vector.load %arg2[%c3_71, %c0_72, %c0_73, %c0_74] : memref<4x4x64x1xf32, #tpu.memory_space<vmem>>, vector<1x1x64x1xf32>
    %108 = vector.shape_cast %107 : vector<1x1x64x1xf32> to vector<64x1xf32>
    %cst_75 = arith.constant dense<0.000000e+00> : vector<7x1xf32>
    %109 = tpu.matmul %106, %108, %cst_75 {dimension_numbers = #tpu.dot_dimension_numbers<[1], [0], [0], [1], [0, 0, 1, 1], [], []>} : vector<7x64xf32>, vector<64x1xf32>, vector<7x1xf32> -> vector<7x1xf32>
    %110 = arith.addf %105, %109 : vector<7x1xf32>
    %111 = vector.extract_strided_slice %44 {offsets = [16, 0], sizes = [7, 64], strides = [1, 1]} : vector<25x64xf32> to vector<7x64xf32>
    %c3_76 = arith.constant 3 : index
    %c1_77 = arith.constant 1 : index
    %c0_78 = arith.constant 0 : index
    %c0_79 = arith.constant 0 : index
    %112 = vector.load %arg2[%c3_76, %c1_77, %c0_78, %c0_79] : memref<4x4x64x1xf32, #tpu.memory_space<vmem>>, vector<1x1x64x1xf32>
    %113 = vector.shape_cast %112 : vector<1x1x64x1xf32> to vector<64x1xf32>
    %cst_80 = arith.constant dense<0.000000e+00> : vector<7x1xf32>
    %114 = tpu.matmul %111, %113, %cst_80 {dimension_numbers = #tpu.dot_dimension_numbers<[1], [0], [0], [1], [0, 0, 1, 1], [], []>} : vector<7x64xf32>, vector<64x1xf32>, vector<7x1xf32> -> vector<7x1xf32>
    %115 = arith.addf %110, %114 : vector<7x1xf32>
    %116 = vector.extract_strided_slice %44 {offsets = [17, 0], sizes = [7, 64], strides = [1, 1]} : vector<25x64xf32> to vector<7x64xf32>
    %c3_81 = arith.constant 3 : index
    %c2_82 = arith.constant 2 : index
    %c0_83 = arith.constant 0 : index
    %c0_84 = arith.constant 0 : index
    %117 = vector.load %arg2[%c3_81, %c2_82, %c0_83, %c0_84] : memref<4x4x64x1xf32, #tpu.memory_space<vmem>>, vector<1x1x64x1xf32>
    %118 = vector.shape_cast %117 : vector<1x1x64x1xf32> to vector<64x1xf32>
    %cst_85 = arith.constant dense<0.000000e+00> : vector<7x1xf32>
    %119 = tpu.matmul %116, %118, %cst_85 {dimension_numbers = #tpu.dot_dimension_numbers<[1], [0], [0], [1], [0, 0, 1, 1], [], []>} : vector<7x64xf32>, vector<64x1xf32>, vector<7x1xf32> -> vector<7x1xf32>
    %120 = arith.addf %115, %119 : vector<7x1xf32>
    %121 = vector.extract_strided_slice %44 {offsets = [18, 0], sizes = [7, 64], strides = [1, 1]} : vector<25x64xf32> to vector<7x64xf32>
    %c3_86 = arith.constant 3 : index
    %c3_87 = arith.constant 3 : index
    %c0_88 = arith.constant 0 : index
    %c0_89 = arith.constant 0 : index
    %122 = vector.load %arg2[%c3_86, %c3_87, %c0_88, %c0_89] : memref<4x4x64x1xf32, #tpu.memory_space<vmem>>, vector<1x1x64x1xf32>
    %123 = vector.shape_cast %122 : vector<1x1x64x1xf32> to vector<64x1xf32>
    %cst_90 = arith.constant dense<0.000000e+00> : vector<7x1xf32>
    %124 = tpu.matmul %121, %123, %cst_90 {dimension_numbers = #tpu.dot_dimension_numbers<[1], [0], [0], [1], [0, 0, 1, 1], [], []>} : vector<7x64xf32>, vector<64x1xf32>, vector<7x1xf32> -> vector<7x1xf32>
    %125 = arith.addf %120, %124 : vector<7x1xf32>
    %c0_91 = arith.constant 0 : index
    %c0_92 = arith.constant 0 : index
    %126 = vector.load %arg5[%c0_91, %c0_92] : memref<1x1xf32, #tpu.memory_space<vmem>>, vector<1x1xf32>
    %127 = vector.broadcast %126 : vector<1x1xf32> to vector<7x1xf32>
    %128 = arith.addf %125, %127 : vector<7x1xf32>
    %c0_93 = arith.constant 0 : index
    %c0_94 = arith.constant 0 : index
    %c0_95 = arith.constant 0 : index
    %129 = vector.load %arg6[%c0_93, %c0_94, %c0_95] : memref<1x7x1xf32, #tpu.memory_space<vmem>>, vector<1x7x1xf32>
    %130 = vector.shape_cast %129 : vector<1x7x1xf32> to vector<7x1xf32>
    %131 = vector.shape_cast %128 : vector<7x1xf32> to vector<1x7x1xf32>
    tpu.vector_store %arg6[%c0_93, %c0_94, %c0_95], %131 {strides = array<i32>} : memref<1x7x1xf32, #tpu.memory_space<vmem>>, vector<1x7x1xf32>,
    return
  }
  func.func @transform_0(%arg0: i32) -> (i32, i32, i32) {
    %c0_i32 = arith.constant 0 : i32
    %c0_i32_0 = arith.constant 0 : i32
    %c0_i32_1 = arith.constant 0 : i32
    return %arg0, %c0_i32, %c0_i32_0 : i32, i32, i32
  }
  func.func @transform_1(%arg0: i32) -> (i32, i32, i32, i32) {
    %c0_i32 = arith.constant 0 : i32
    %c0_i32_0 = arith.constant 0 : i32
    %c0_i32_1 = arith.constant 0 : i32
    %c0_i32_2 = arith.constant 0 : i32
    %c0_i32_3 = arith.constant 0 : i32
    return %c0_i32, %c0_i32_0, %c0_i32_1, %c0_i32_2 : i32, i32, i32, i32
  }
  func.func @transform_2(%arg0: i32) -> (i32, i32) {
    %c0_i32 = arith.constant 0 : i32
    %c0_i32_0 = arith.constant 0 : i32
    %c0_i32_1 = arith.constant 0 : i32
    return %c0_i32, %c0_i32_0 : i32, i32
  }
  func.func @transform_3(%arg0: i32) -> (i32, i32) {
    %c0_i32 = arith.constant 0 : i32
    %c0_i32_0 = arith.constant 0 : i32
    %c0_i32_1 = arith.constant 0 : i32
    return %c0_i32, %c0_i32_0 : i32, i32
  }
  func.func @transform_4(%arg0: i32) -> (i32, i32) {
    %c0_i32 = arith.constant 0 : i32
    %c0_i32_0 = arith.constant 0 : i32
    %c0_i32_1 = arith.constant 0 : i32
    return %c0_i32, %c0_i32_0 : i32, i32
  }
  func.func @transform_5(%arg0: i32) -> (i32, i32, i32) {
    %c0_i32 = arith.constant 0 : i32
    %c0_i32_0 = arith.constant 0 : i32
    %c0_i32_1 = arith.constant 0 : i32
    return %arg0, %c0_i32, %c0_i32_0 : i32, i32, i32
  }
}

</mosaic_0001>

<llo_original>
// kernel: patch_discriminator_forward.5
$region0: #{patch_discriminator_forward.5}
  #allocation0 [shape = 'u32[]', space=smem, size = 0x4, offset = 0x4, fixed_abs, tag = 'smem constant byte address 0x4 - core index']
  #allocation1 [shape = 'u32[144,128]{1,0:T(1,128)}', space=vmem, size = 0x12000, scoped, tag = 'internal scratch']
  %s0 = inlined_call_operand.vmem [shape: f32[2,289,12], index: 0, kind: input, shape index: {}]
  %s1 = inlined_call_operand.vmem [shape: f32[2,2,12,8], index: 1, kind: input, shape index: {}]
  %s2 = inlined_call_operand.vmem [shape: f32[1,8], index: 2, kind: input, shape index: {}]
  %s3 = inlined_call_operand.vmem [shape: f32[2,271,8], index: 3, kind: output, shape index: {}]
  %s4 = sld [smem:[#allocation0]]
  $region45: #{patch_discriminator_forward.5} parent=0
    _
  %s6 = ssub.s32 1, %s4
  %s7 = scalar_select 0, %s6, %s4
  loop: start=0, step=1, limit=4
  $region2: #{patch_discriminator_forward.5} parent=0 // loop_pre_header
    _
  $region3: #{patch_discriminator_forward.5} parent=0 // loop_header
    %s9 = sphi 0, %s13
    %p10 = scmp.ge.s32.totalorder %s9, 4
    %s19 = sphi 0, %s21
    %s22 = sphi 0, %s19
    %s23 = sphi 0, %s22
    %s39 = sphi 0, %s23
    %s43 = sphi 0, %s43
    %s45 = sphi 0, %s43
    %s46 = sphi 0, %s45
    %s60 = sphi 0, %s46
    %s64 = sphi 0, %s64
    %s66 = sphi 0, %s64
    %s67 = sphi 0, %s66
    %s81 = sphi 0, %s67
    %s87 = sphi 0, %s89
    %s90 = sphi 0, %s87
    %s91 = sphi 0, %s90
    %s107 = sphi 0, %s91
  $region4: #{patch_discriminator_forward.5} parent=0 // loop_header_branch
    %12 = sbr.rel (%p10) target = $region8
  $region5: #{patch_discriminator_forward.5} parent=0 // loop_body
    %s14 = ssub.s32 %s9, 1
    %s15 = ssub.s32 %s9, 2
    %s16 = sadd.s32 %s9, 1
    %s17 = ssub.s32 %s9, %s16
    %p18 = scmp.eq.s32.totalorder %s17, 0
    %s20 = sadd.s32 %s19, 1
    %s21 = scalar_select %p18, %s19, %s20
    %p24 = pneg %p18
    %p25 = scmp.eq.s32.totalorder %s9, 1
    %p26 = por %p24, %p25
    %p27 = scmp.ne.s32.totalorder %s19, %s22
    %p28 = scmp.eq.s32.totalorder %s9, 0
    %p29 = por %p27, %p28
    %p30 = scmp.ne.s32.totalorder %s19, %s22
    %p31 = scmp.eq.s32.totalorder %s14, 1
    %p32 = por %p30, %p31
    %p33 = scmp.ne.s32.totalorder %s22, %s23
    %p34 = scmp.eq.s32.totalorder %s14, 0
    %p35 = por %p33, %p34
    %p36 = scmp.ne.s32.totalorder %s22, %s23
    %p37 = scmp.eq.s32.totalorder %s15, 1
    %p38 = por %p36, %p37
    %p40 = scmp.ne.s32.totalorder %s23, %s39
    %p41 = scmp.eq.s32.totalorder %s15, 0
    %p42 = por %p40, %p41
    %s44 = sadd.s32 %s43, 1
    %p47 = scmp.eq.s32.totalorder %s9, 1
    %p48 = scmp.ne.s32.totalorder %s43, %s45
    %p49 = scmp.eq.s32.totalorder %s9, 0
    %p50 = por %p48, %p49
    %p51 = scmp.ne.s32.totalorder %s43, %s45
    %p52 = scmp.eq.s32.totalorder %s14, 1
    %p53 = por %p51, %p52
    %p54 = scmp.ne.s32.totalorder %s45, %s46
    %p55 = scmp.eq.s32.totalorder %s14, 0
    %p56 = por %p54, %p55
    %p57 = scmp.ne.s32.totalorder %s45, %s46
    %p58 = scmp.eq.s32.totalorder %s15, 1
    %p59 = por %p57, %p58
    %p61 = scmp.ne.s32.totalorder %s46, %s60
    %p62 = scmp.eq.s32.totalorder %s15, 0
    %p63 = por %p61, %p62
    %s65 = sadd.s32 %s64, 1
    %p68 = scmp.eq.s32.totalorder %s9, 1
    %p69 = scmp.ne.s32.totalorder %s64, %s66
    %p70 = scmp.eq.s32.totalorder %s9, 0
    %p71 = por %p69, %p70
    %p72 = scmp.ne.s32.totalorder %s64, %s66
    %p73 = scmp.eq.s32.totalorder %s14, 1
    %p74 = por %p72, %p73
    %p75 = scmp.ne.s32.totalorder %s66, %s67
    %p76 = scmp.eq.s32.totalorder %s14, 0
    %p77 = por %p75, %p76
    %p78 = scmp.ne.s32.totalorder %s66, %s67
    %p79 = scmp.eq.s32.totalorder %s15, 1
    %p80 = por %p78, %p79
    %p82 = scmp.ne.s32.totalorder %s67, %s81
    %p83 = scmp.eq.s32.totalorder %s15, 0
    %p84 = por %p82, %p83
    %s85 = ssub.s32 %s9, %s16
    %p86 = scmp.eq.s32.totalorder %s85, 0
    %s88 = sadd.s32 %s87, 1
    %s89 = scalar_select %p86, %s87, %s88
    %p92 = pneg %p86
    %p93 = scmp.eq.s32.totalorder %s9, 1
    %p94 = por %p92, %p93
    %p95 = scmp.ne.s32.totalorder %s87, %s90
    %p96 = scmp.eq.s32.totalorder %s9, 0
    %p97 = por %p95, %p96
    %p98 = scmp.ne.s32.totalorder %s87, %s90
    %p99 = scmp.eq.s32.totalorder %s14, 1
    %p100 = por %p98, %p99
    %p101 = scmp.ne.s32.totalorder %s90, %s91
    %p102 = scmp.eq.s32.totalorder %s14, 0
    %p103 = por %p101, %p102
    %p104 = scmp.ne.s32.totalorder %s90, %s91
    %p105 = scmp.eq.s32.totalorder %s15, 1
    %p106 = por %p104, %p105
    %p108 = scmp.ne.s32.totalorder %s91, %s107
    %p109 = scmp.eq.s32.totalorder %s15, 0
    %p110 = por %p108, %p109
    %p111 = scmp.le.s32.totalorder 1, %s9
    %p112 = scmp.lt.s32.totalorder %s9, 3
    %p113 = pnand %p111, %p112
    %p114 = pneg %p113
    // Predicated region
    $region9: #{patch_discriminator_forward.5} parent=5 // pred_check
      _
    $region10: #{patch_discriminator_forward.5} parent=5 // pred_check_branch
      %116 = sbr.rel (%p113) target = $region12
    $region11: #{patch_discriminator_forward.5} parent=5 // pred_region
      %s117 = ssub.s32 %s9, 1
      // Predicated region
      $region13: #{patch_discriminator_forward.5} parent=11 // pred_check
        %p118 = pneg %p56
      $region14: #{patch_discriminator_forward.5} parent=11 // pred_check_branch
        %120 = sbr.rel (%p118) target = $region16
      $region15: #{patch_discriminator_forward.5} parent=11 // pred_region
        _
      $region16: #{patch_discriminator_forward.5} parent=11 // pred_fallthru
        _
      // Predicated region
      $region17: #{patch_discriminator_forward.5} parent=11 // pred_check
        %p121 = pneg %p77
      $region18: #{patch_discriminator_forward.5} parent=11 // pred_check_branch
        %123 = sbr.rel (%p121) target = $region20
      $region19: #{patch_discriminator_forward.5} parent=11 // pred_region
        _
      $region20: #{patch_discriminator_forward.5} parent=11 // pred_fallthru
        _
    $region12: #{patch_discriminator_forward.5} parent=5 // pred_fallthru
      _
    %p124 = scmp.lt.s32.totalorder %s9, 2
    // Predicated region
    $region21: #{patch_discriminator_forward.5} parent=5 // pred_check
      %p125 = pneg %p124
    $region22: #{patch_discriminator_forward.5} parent=5 // pred_check_branch
      %127 = sbr.rel (%p125) target = $region24
    $region23: #{patch_discriminator_forward.5} parent=5 // pred_region
      // Predicated region
      $region25: #{patch_discriminator_forward.5} parent=23 // pred_check
        %p128 = pneg %p29
      $region26: #{patch_discriminator_forward.5} parent=23 // pred_check_branch
        %130 = sbr.rel (%p128) target = $region28
      $region27: #{patch_discriminator_forward.5} parent=23 // pred_region
        %p131 = scmp.lt.s32.totalorder %s9, 1
        %s132 = scalar_select %p131, %s9, 1
        %s133 = smul.addr %s132, 37
        %s134 = smul.addr %s133, 8
        %s135 = scalar_lea.vmem %s0, %s134
      $region28: #{patch_discriminator_forward.5} parent=23 // pred_fallthru
        _
    $region24: #{patch_discriminator_forward.5} parent=5 // pred_fallthru
      _
    %p136 = scmp.le.s32.totalorder 1, %s9
    %p137 = scmp.lt.s32.totalorder %s9, 3
    %p138 = pnand %p136, %p137
    %p139 = pneg %p138
    // Predicated region
    $region29: #{patch_discriminator_forward.5} parent=5 // pred_check
      _
    $region30: #{patch_discriminator_forward.5} parent=5 // pred_check_branch
      %141 = sbr.rel (%p138) target = $region32
    $region31: #{patch_discriminator_forward.5} parent=5 // pred_region
      %s142 = ssub.s32 %s9, 1
      %p143 = scmp.lt.s32.totalorder %s14, 1
      %s144 = scalar_select %p143, %s14, 1
      %s145 = smul.addr %s144, 37
      %s146 = smul.addr %s145, 8
      %s147 = scalar_lea.vmem %s0, %s146
      %p148 = pneg %p35
      %p149 = pneg %p32
      %p150 = pneg %p56
      %p151 = pneg %p53
      %p152 = pneg %p77
      %p153 = pneg %p74
      %p154 = pneg %p103
      %p155 = pneg %p100
      %p156 = scmp.lt.s32.totalorder %s14, 1
      %s157 = scalar_select %p156, %s14, 1
      %s158 = smul.addr %s157, 34
      %s159 = smul.addr %s158, 8
      %s160 = scalar_lea.vmem %s3, %s159
      %p161 = scmp.lt.s32.totalorder %s14, 1
      %s162 = scalar_select %p161, %s14, 1
      %s163 = smul.addr %s162, 37
      %s164 = smul.addr %s163, 8
      %s165 = scalar_lea.vmem %s0, %s164
      %p166 = scmp.lt.s32.totalorder %s14, 1
      %s167 = scalar_select %p166, %s14, 1
      %s168 = smul.addr %s167, 34
      %s169 = smul.addr %s168, 8
      %s170 = scalar_lea.vmem %s3, %s169
      %v171 = vld [vmem:[%s165] sm:$0xff]
      %v172 = vld [vmem:[%s165 + $0x8] sm:$0xff]
      %v173 = vld [vmem:[%s165 + $0x10] sm:$0xff]
      %v174 = vld [vmem:[%s165 + $0x18] sm:$0xff]
      %v175 = vld [vmem:[%s165 + $0x20] sm:$0xff]
      %v176 = vld [vmem:[%s165 + $0x28] sm:$0xff]
      %v177 = vld [vmem:[%s165 + $0x30] sm:$0xff]
      %v178 = vld [vmem:[%s165 + $0x38] sm:$0xff]
      %v179 = vld [vmem:[%s165 + $0x40] sm:$0xff]
      %v180 = vld [vmem:[%s165 + $0x48] sm:$0xff]
      %v181 = vld [vmem:[%s165 + $0x50] sm:$0xff]
      %v182 = vld [vmem:[%s165 + $0x58] sm:$0xff]
      %v183 = vld [vmem:[%s165 + $0x60] sm:$0xff]
      %v184 = vld [vmem:[%s165 + $0x68] sm:$0xff]
      %v185 = vld [vmem:[%s165 + $0x70] sm:$0xff]
      %v186 = vld [vmem:[%s165 + $0x78] sm:$0xff]
      %v187 = vld [vmem:[%s165 + $0x80] sm:$0xff]
      %v188 = vld [vmem:[%s165 + $0x88] sm:$0xff]
      %v189 = vld [vmem:[%s165 + $0x90] sm:$0xff]
      %v190 = vld [vmem:[%s165 + $0x98] sm:$0xff]
      %v191 = vld [vmem:[%s165 + $0xa0] sm:$0xff]
      %v192 = vld [vmem:[%s165 + $0xa8] sm:$0xff]
      %v193 = vld [vmem:[%s165 + $0xb0] sm:$0xff]
      %v194 = vld [vmem:[%s165 + $0xb8] sm:$0xff]
      %v195 = vld [vmem:[%s165 + $0xc0] sm:$0xff]
      %v196 = vld [vmem:[%s165 + $0xc8] sm:$0xff]
      %v197 = vld [vmem:[%s165 + $0xd0] sm:$0xff]
      %v198 = vld [vmem:[%s165 + $0xd8] sm:$0xff]
      %v199 = vld [vmem:[%s165 + $0xe0] sm:$0xff]
      %v200 = vld [vmem:[%s165 + $0xe8] sm:$0xff]
      %v201 = vld [vmem:[%s165 + $0xf0] sm:$0xff]
      %v202 = vld [vmem:[%s165 + $0xf8] sm:$0xff]
      %v203 = vld [vmem:[%s165 + $0x100] sm:$0xff]
      %v204 = vld [vmem:[%s165 + $0x108] sm:$0x7f]
      %v205 = vld [vmem:[%s1] sm:$0xff]
      %v206 = vld [vmem:[%s1 + $0x8] sm:$0xf]
      %v207 = vld [vmem:[%s165 + $0x1] sm:$0xff]
      %v208 = vld [vmem:[%s165 + $0x9] sm:$0xff]
      %v209 = vld [vmem:[%s165 + $0x11] sm:$0xff]
      %v210 = vld [vmem:[%s165 + $0x19] sm:$0xff]
      %v211 = vld [vmem:[%s165 + $0x21] sm:$0xff]
      %v212 = vld [vmem:[%s165 + $0x29] sm:$0xff]
      %v213 = vld [vmem:[%s165 + $0x31] sm:$0xff]
      %v214 = vld [vmem:[%s165 + $0x39] sm:$0xff]
      %v215 = vld [vmem:[%s165 + $0x41] sm:$0xff]
      %v216 = vld [vmem:[%s165 + $0x49] sm:$0xff]
      %v217 = vld [vmem:[%s165 + $0x51] sm:$0xff]
      %v218 = vld [vmem:[%s165 + $0x59] sm:$0xff]
      %v219 = vld [vmem:[%s165 + $0x61] sm:$0xff]
      %v220 = vld [vmem:[%s165 + $0x69] sm:$0xff]
      %v221 = vld [vmem:[%s165 + $0x71] sm:$0xff]
      %v222 = vld [vmem:[%s165 + $0x79] sm:$0xff]
      %v223 = vld [vmem:[%s165 + $0x81] sm:$0xff]
      %v224 = vld [vmem:[%s165 + $0x89] sm:$0xff]
      %v225 = vld [vmem:[%s165 + $0x91] sm:$0xff]
      %v226 = vld [vmem:[%s165 + $0x99] sm:$0xff]
      %v227 = vld [vmem:[%s165 + $0xa1] sm:$0xff]
      %v228 = vld [vmem:[%s165 + $0xa9] sm:$0xff]
      %v229 = vld [vmem:[%s165 + $0xb1] sm:$0xff]
      %v230 = vld [vmem:[%s165 + $0xb9] sm:$0xff]
      %v231 = vld [vmem:[%s165 + $0xc1] sm:$0xff]
      %v232 = vld [vmem:[%s165 + $0xc9] sm:$0xff]
      %v233 = vld [vmem:[%s165 + $0xd1] sm:$0xff]
      %v234 = vld [vmem:[%s165 + $0xd9] sm:$0xff]
      %v235 = vld [vmem:[%s165 + $0xe1] sm:$0xff]
      %v236 = vld [vmem:[%s165 + $0xe9] sm:$0xff]
      %v237 = vld [vmem:[%s165 + $0xf1] sm:$0xff]
      %v238 = vld [vmem:[%s165 + $0xf9] sm:$0xff]
      %v239 = vld [vmem:[%s165 + $0x101] sm:$0xff]
      %v240 = vld [vmem:[%s165 + $0x109] sm:$0x7f]
      %s241 = scalar_lea.vmem %s1, 16
      %v242 = vld [vmem:[%s241] sm:$0xff]
      %v243 = vld [vmem:[%s241 + $0x8] sm:$0xf]
      %vm244 = vcmask 97280
      %v246 = vsel %vm244, %v207, 0
      %v249 = vsel %vm244, %v208, 0
      %v252 = vsel %vm244, %v209, 0
      %v255 = vsel %vm244, %v210, 0
      %v258 = vsel %vm244, %v211, 0
      %v261 = vsel %vm244, %v212, 0
      %v264 = vsel %vm244, %v213, 0
      %v267 = vsel %vm244, %v214, 0
      %v270 = vsel %vm244, %v215, 0
      %v273 = vsel %vm244, %v216, 0
      %v276 = vsel %vm244, %v217, 0
      %v279 = vsel %vm244, %v218, 0
      %v282 = vsel %vm244, %v219, 0
      %v285 = vsel %vm244, %v220, 0
      %v288 = vsel %vm244, %v221, 0
      %v291 = vsel %vm244, %v222, 0
      %v294 = vsel %vm244, %v223, 0
      %v297 = vsel %vm244, %v224, 0
      %v300 = vsel %vm244, %v225, 0
      %v303 = vsel %vm244, %v226, 0
      %v306 = vsel %vm244, %v227, 0
      %v309 = vsel %vm244, %v228, 0
      %v312 = vsel %vm244, %v229, 0
      %v315 = vsel %vm244, %v230, 0
      %v318 = vsel %vm244, %v231, 0
      %v321 = vsel %vm244, %v232, 0
      %v324 = vsel %vm244, %v233, 0
      %v327 = vsel %vm244, %v234, 0
      %v330 = vsel %vm244, %v235, 0
      %v333 = vsel %vm244, %v236, 0
      %v336 = vsel %vm244, %v237, 0
      %v339 = vsel %vm244, %v238, 0
      %v342 = vsel %vm244, %v239, 0
      %v345 = vsel %vm244, %v240, 0
      %vm347 = vcmask 1043456
      %v349 = vsel %vm347, %v243, 0
      %351 = vmatprep.subr.mxu0 0.0
      %352 = vmatpush1.msra.mxu0 %v242
      %353 = vmatprep.subr.mxu0 0.0
      %354 = vmatpush1.msra.mxu0 %v349
      %355 = vmatprep.subr.mxu0 0.0
      %356 = vmatpush1.msra.mxu0 0.0
      %357 = vmatprep.subr.mxu0 0.0
      %358 = vmatpush1.msra.mxu0 0.0
      %359 = vmatprep.subr.mxu0 0.0
      %360 = vmatpush1.msra.mxu0 0.0
      %361 = vmatprep.subr.mxu0 0.0
      %362 = vmatpush1.msra.mxu0 0.0
      %363 = vmatprep.subr.mxu0 0.0
      %364 = vmatpush1.msra.mxu0 0.0
      %365 = vmatprep.subr.mxu0 0.0
      %366 = vmatpush1.msra.mxu0 0.0
      %367 = vmatprep.subr.mxu0 0.0
      %368 = vmatpush1.msra.mxu0 0.0
      %369 = vmatprep.subr.mxu0 0.0
      %370 = vmatpush1.msra.mxu0 0.0
      %371 = vmatprep.subr.mxu0 0.0
      %372 = vmatpush1.msra.mxu0 0.0
      %373 = vmatprep.subr.mxu0 0.0
      %374 = vmatpush1.msra.mxu0 0.0
      %375 = vmatprep.subr.mxu0 0.0
      %376 = vmatpush1.msra.mxu0 0.0
      %377 = vmatprep.subr.mxu0 0.0
      %378 = vmatpush1.msra.mxu0 0.0
      %379 = vmatprep.subr.mxu0 0.0
      %380 = vmatpush1.msra.mxu0 0.0
      %381 = vmatprep.subr.mxu0 0.0
      %382 = vmatpush1.msra.mxu0 0.0
      %383 = vmatprep.subr.mxu0 0.0
      %384 = vmatpush1.msra.mxu0 0.0
      %385 = vmatprep.subr.mxu0 0.0
      %386 = vmatpush1.msra.mxu0 0.0
      %387 = vmatprep.subr.mxu0 0.0
      %388 = vmatpush1.msra.mxu0 0.0
      %389 = vmatprep.subr.mxu0 0.0
      %390 = vmatpush1.msra.mxu0 0.0
      %391 = vmatprep.subr.mxu0 0.0
      %392 = vmatpush1.msra.mxu0 0.0
      %393 = vmatprep.subr.mxu0 0.0
      %394 = vmatpush1.msra.mxu0 0.0
      %395 = vmatprep.subr.mxu0 0.0
      %396 = vmatpush1.msra.mxu0 0.0
      %397 = vmatprep.subr.mxu0 0.0
      %398 = vmatpush1.msra.mxu0 0.0
      %399 = vmatprep.subr.mxu0 0.0
      %400 = vmatpush1.msra.mxu0 0.0
      %401 = vmatprep.subr.mxu0 0.0
      %402 = vmatpush1.msra.mxu0 0.0
      %403 = vmatprep.subr.mxu0 0.0
      %404 = vmatpush1.msra.mxu0 0.0
      %405 = vmatprep.subr.mxu0 0.0
      %406 = vmatpush1.msra.mxu0 0.0
      %407 = vmatprep.subr.mxu0 0.0
      %408 = vmatpush1.msra.mxu0 0.0
      %409 = vmatprep.subr.mxu0 0.0
      %410 = vmatpush1.msra.mxu0 0.0
      %411 = vmatprep.subr.mxu0 0.0
      %412 = vmatpush1.msra.mxu0 0.0
      %413 = vmatprep.subr.mxu0 0.0
      %414 = vmatpush1.msra.mxu0 0.0
      %415 = vmatprep.mubr.f32.mxu0 0.0
      %416 = vmatmul.mubr.f32.gmra.mrb[0].mxu0 %v246
      %v417 = vpop.f32.mrb[0].mxu0
      %v418 = vadd.f32 0.0, %v417
      %v419 = vpop.f32.mrb[0].mxu0
      %420 = vmatprep.mubr.f32.mxu0 0.0
      %421 = vmatmul.mubr.f32.gmra.mrb[0].mxu0 %v249
      %v422 = vpop.f32.mrb[0].mxu0
      %v423 = vadd.f32 0.0, %v422
      %v424 = vpop.f32.mrb[0].mxu0
      %425 = vmatprep.mubr.f32.mxu0 0.0
      %426 = vmatmul.mubr.f32.gmra.mrb[0].mxu0 %v252
      %v427 = vpop.f32.mrb[0].mxu0
      %v428 = vadd.f32 0.0, %v427
      %v429 = vpop.f32.mrb[0].mxu0
      %430 = vmatprep.mubr.f32.mxu0 0.0
      %431 = vmatmul.mubr.f32.gmra.mrb[0].mxu0 %v255
      %v432 = vpop.f32.mrb[0].mxu0
      %v433 = vadd.f32 0.0, %v432
      %v434 = vpop.f32.mrb[0].mxu0
      %435 = vmatprep.mubr.f32.mxu0 0.0
      %436 = vmatmul.mubr.f32.gmra.mrb[0].mxu0 %v258
      %v437 = vpop.f32.mrb[0].mxu0
      %v438 = vadd.f32 0.0, %v437
      %v439 = vpop.f32.mrb[0].mxu0
      %440 = vmatprep.mubr.f32.mxu0 0.0
      %441 = vmatmul.mubr.f32.gmra.mrb[0].mxu0 %v261
      %v442 = vpop.f32.mrb[0].mxu0
      %v443 = vadd.f32 0.0, %v442
      %v444 = vpop.f32.mrb[0].mxu0
      %445 = vmatprep.mubr.f32.mxu0 0.0
      %446 = vmatmul.mubr.f32.gmra.mrb[0].mxu0 %v264
      %v447 = vpop.f32.mrb[0].mxu0
      %v448 = vadd.f32 0.0, %v447
      %v449 = vpop.f32.mrb[0].mxu0
      %450 = vmatprep.mubr.f32.mxu0 0.0
      %451 = vmatmul.mubr.f32.gmra.mrb[0].mxu0 %v267
      %v452 = vpop.f32.mrb[0].mxu0
      %v453 = vadd.f32 0.0, %v452
      %v454 = vpop.f32.mrb[0].mxu0
      %455 = vmatprep.mubr.f32.mxu0 0.0
      %456 = vmatmul.mubr.f32.gmra.mrb[0].mxu0 %v270
      %v457 = vpop.f32.mrb[0].mxu0
      %v458 = vadd.f32 0.0, %v457
      %v459 = vpop.f32.mrb[0].mxu0
      %460 = vmatprep.mubr.f32.mxu0 0.0
      %461 = vmatmul.mubr.f32.gmra.mrb[0].mxu0 %v273
      %v462 = vpop.f32.mrb[0].mxu0
      %v463 = vadd.f32 0.0, %v462
      %v464 = vpop.f32.mrb[0].mxu0
      %465 = vmatprep.mubr.f32.mxu0 0.0
      %466 = vmatmul.mubr.f32.gmra.mrb[0].mxu0 %v276
      %v467 = vpop.f32.mrb[0].mxu0
      %v468 = vadd.f32 0.0, %v467
      %v469 = vpop.f32.mrb[0].mxu0
      %470 = vmatprep.mubr.f32.mxu0 0.0
      %471 = vmatmul.mubr.f32.gmra.mrb[0].mxu0 %v279
      %v472 = vpop.f32.mrb[0].mxu0
      %v473 = vadd.f32 0.0, %v472
      %v474 = vpop.f32.mrb[0].mxu0
      %475 = vmatprep.mubr.f32.mxu0 0.0
      %476 = vmatmul.mubr.f32.gmra.mrb[0].mxu0 %v282
      %v477 = vpop.f32.mrb[0].mxu0
      %v478 = vadd.f32 0.0, %v477
      %v479 = vpop.f32.mrb[0].mxu0
      %480 = vmatprep.mubr.f32.mxu0 0.0
      %481 = vmatmul.mubr.f32.gmra.mrb[0].mxu0 %v285
      %v482 = vpop.f32.mrb[0].mxu0
      %v483 = vadd.f32 0.0, %v482
      %v484 = vpop.f32.mrb[0].mxu0
      %485 = vmatprep.mubr.f32.mxu0 0.0
      %486 = vmatmul.mubr.f32.gmra.mrb[0].mxu0 %v288
      %v487 = vpop.f32.mrb[0].mxu0
      %v488 = vadd.f32 0.0, %v487
      %v489 = vpop.f32.mrb[0].mxu0
      %490 = vmatprep.mubr.f32.mxu0 0.0
      %491 = vmatmul.mubr.f32.gmra.mrb[0].mxu0 %v291
      %v492 = vpop.f32.mrb[0].mxu0
      %v493 = vadd.f32 0.0, %v492
      %v494 = vpop.f32.mrb[0].mxu0
      %495 = vmatprep.mubr.f32.mxu0 0.0
      %496 = vmatmul.mubr.f32.gmra.mrb[0].mxu0 %v294
      %v497 = vpop.f32.mrb[0].mxu0
      %v498 = vadd.f32 0.0, %v497
      %v499 = vpop.f32.mrb[0].mxu0
      %500 = vmatprep.mubr.f32.mxu0 0.0
      %501 = vmatmul.mubr.f32.gmra.mrb[0].mxu0 %v297
      %v502 = vpop.f32.mrb[0].mxu0
      %v503 = vadd.f32 0.0, %v502
      %v504 = vpop.f32.mrb[0].mxu0
      %505 = vmatprep.mubr.f32.mxu0 0.0
      %506 = vmatmul.mubr.f32.gmra.mrb[0].mxu0 %v300
      %v507 = vpop.f32.mrb[0].mxu0
      %v508 = vadd.f32 0.0, %v507
      %v509 = vpop.f32.mrb[0].mxu0
      %510 = vmatprep.mubr.f32.mxu0 0.0
      %511 = vmatmul.mubr.f32.gmra.mrb[0].mxu0 %v303
      %v512 = vpop.f32.mrb[0].mxu0
      %v513 = vadd.f32 0.0, %v512
      %v514 = vpop.f32.mrb[0].mxu0
      %515 = vmatprep.mubr.f32.mxu0 0.0
      %516 = vmatmul.mubr.f32.gmra.mrb[0].mxu0 %v306
      %v517 = vpop.f32.mrb[0].mxu0
      %v518 = vadd.f32 0.0, %v517
      %v519 = vpop.f32.mrb[0].mxu0
      %520 = vmatprep.mubr.f32.mxu0 0.0
      %521 = vmatmul.mubr.f32.gmra.mrb[0].mxu0 %v309
      %v522 = vpop.f32.mrb[0].mxu0
      %v523 = vadd.f32 0.0, %v522
      %v524 = vpop.f32.mrb[0].mxu0
      %525 = vmatprep.mubr.f32.mxu0 0.0
      %526 = vmatmul.mubr.f32.gmra.mrb[0].mxu0 %v312
      %v527 = vpop.f32.mrb[0].mxu0
      %v528 = vadd.f32 0.0, %v527
      %v529 = vpop.f32.mrb[0].mxu0
      %530 = vmatprep.mubr.f32.mxu0 0.0
      %531 = vmatmul.mubr.f32.gmra.mrb[0].mxu0 %v315
      %v532 = vpop.f32.mrb[0].mxu0
      %v533 = vadd.f32 0.0, %v532
      %v534 = vpop.f32.mrb[0].mxu0
      %535 = vmatprep.mubr.f32.mxu0 0.0
      %536 = vmatmul.mubr.f32.gmra.mrb[0].mxu0 %v318
      %v537 = vpop.f32.mrb[0].mxu0
      %v538 = vadd.f32 0.0, %v537
      %v539 = vpop.f32.mrb[0].mxu0
      %540 = vmatprep.mubr.f32.mxu0 0.0
      %541 = vmatmul.mubr.f32.gmra.mrb[0].mxu0 %v321
      %v542 = vpop.f32.mrb[0].mxu0
      %v543 = vadd.f32 0.0, %v542
      %v544 = vpop.f32.mrb[0].mxu0
      %545 = vmatprep.mubr.f32.mxu0 0.0
      %546 = vmatmul.mubr.f32.gmra.mrb[0].mxu0 %v324
      %v547 = vpop.f32.mrb[0].mxu0
      %v548 = vadd.f32 0.0, %v547
      %v549 = vpop.f32.mrb[0].mxu0
      %550 = vmatprep.mubr.f32.mxu0 0.0
      %551 = vmatmul.mubr.f32.gmra.mrb[0].mxu0 %v327
      %v552 = vpop.f32.mrb[0].mxu0
      %v553 = vadd.f32 0.0, %v552
      %v554 = vpop.f32.mrb[0].mxu0
      %555 = vmatprep.mubr.f32.mxu0 0.0
      %556 = vmatmul.mubr.f32.gmra.mrb[0].mxu0 %v330
      %v557 = vpop.f32.mrb[0].mxu0
      %v558 = vadd.f32 0.0, %v557
      %v559 = vpop.f32.mrb[0].mxu0
      %560 = vmatprep.mubr.f32.mxu0 0.0
      %561 = vmatmul.mubr.f32.gmra.mrb[0].mxu0 %v333
      %v562 = vpop.f32.mrb[0].mxu0
      %v563 = vadd.f32 0.0, %v562
      %v564 = vpop.f32.mrb[0].mxu0
      %565 = vmatprep.mubr.f32.mxu0 0.0
      %566 = vmatmul.mubr.f32.gmra.mrb[0].mxu0 %v336
      %v567 = vpop.f32.mrb[0].mxu0
      %v568 = vadd.f32 0.0, %v567
      %v569 = vpop.f32.mrb[0].mxu0
      %570 = vmatprep.mubr.f32.mxu0 0.0
      %571 = vmatmul.mubr.f32.gmra.mrb[0].mxu0 %v339
      %v572 = vpop.f32.mrb[0].mxu0
      %v573 = vadd.f32 0.0, %v572
      %v574 = vpop.f32.mrb[0].mxu0
      %575 = vmatprep.mubr.f32.mxu0 0.0
      %576 = vmatmul.mubr.f32.gmra.mrb[0].mxu0 %v342
      %v577 = vpop.f32.mrb[0].mxu0
      %v578 = vadd.f32 0.0, %v577
      %v579 = vpop.f32.mrb[0].mxu0
      %580 = vmatprep.mubr.f32.mxu0 0.0
      %581 = vmatmul.mubr.f32.gmra.mrb[0].mxu0 %v345
      %v582 = vpop.f32.mrb[0].mxu0
      %v583 = vadd.f32 0.0, %v582
      %v584 = vpop.f32.mrb[0].mxu0
      %585 = vdwg.mxu0
      %v587 = vsel %vm244, %v171, 0
      %v590 = vsel %vm244, %v172, 0
      %v593 = vsel %vm244, %v173, 0
      %v596 = vsel %vm244, %v174, 0
      %v599 = vsel %vm244, %v175, 0
      %v602 = vsel %vm244, %v176, 0
      %v605 = vsel %vm244, %v177, 0
      %v608 = vsel %vm244, %v178, 0
      %v611 = vsel %vm244, %v179, 0
      %v614 = vsel %vm244, %v180, 0
      %v617 = vsel %vm244, %v181, 0
      %v620 = vsel %vm244, %v182, 0
      %v623 = vsel %vm244, %v183, 0
      %v626 = vsel %vm244, %v184, 0
      %v629 = vsel %vm244, %v185, 0
      %v632 = vsel %vm244, %v186, 0
      %v635 = vsel %vm244, %v187, 0
      %v638 = vsel %vm244, %v188, 0
      %v641 = vsel %vm244, %v189, 0
      %v644 = vsel %vm244, %v190, 0
      %v647 = vsel %vm244, %v191, 0
      %v650 = vsel %vm244, %v192, 0
      %v653 = vsel %vm244, %v193, 0
      %v656 = vsel %vm244, %v194, 0
      %v659 = vsel %vm244, %v195, 0
      %v662 = vsel %vm244, %v196, 0
      %v665 = vsel %vm244, %v197, 0
      %v668 = vsel %vm244, %v198, 0
      %v671 = vsel %vm244, %v199, 0
      %v674 = vsel %vm244, %v200, 0
      %v677 = vsel %vm244, %v201, 0
      %v680 = vsel %vm244, %v202, 0
      %v683 = vsel %vm244, %v203, 0
      %v686 = vsel %vm244, %v204, 0
      %v689 = vsel %vm347, %v206, 0
      %691 = vmatprep.subr.mxu0 0.0
      %692 = vmatpush1.msra.mxu0 %v205
      %693 = vmatprep.subr.mxu0 0.0
      %694 = vmatpush1.msra.mxu0 %v689
      %695 = vmatprep.subr.mxu0 0.0
      %696 = vmatpush1.msra.mxu0 0.0
      %697 = vmatprep.subr.mxu0 0.0
      %698 = vmatpush1.msra.mxu0 0.0
      %699 = vmatprep.subr.mxu0 0.0
      %700 = vmatpush1.msra.mxu0 0.0
      %701 = vmatprep.subr.mxu0 0.0
      %702 = vmatpush1.msra.mxu0 0.0
      %703 = vmatprep.subr.mxu0 0.0
      %704 = vmatpush1.msra.mxu0 0.0
      %705 = vmatprep.subr.mxu0 0.0
      %706 = vmatpush1.msra.mxu0 0.0
      %707 = vmatprep.subr.mxu0 0.0
      %708 = vmatpush1.msra.mxu0 0.0
      %709 = vmatprep.subr.mxu0 0.0
      %710 = vmatpush1.msra.mxu0 0.0
      %711 = vmatprep.subr.mxu0 0.0
      %712 = vmatpush1.msra.mxu0 0.0
      %713 = vmatprep.subr.mxu0 0.0
      %714 = vmatpush1.msra.mxu0 0.0
      %715 = vmatprep.subr.mxu0 0.0
      %716 = vmatpush1.msra.mxu0 0.0
      %717 = vmatprep.subr.mxu0 0.0
      %718 = vmatpush1.msra.mxu0 0.0
      %719 = vmatprep.subr.mxu0 0.0
      %720 = vmatpush1.msra.mxu0 0.0
      %721 = vmatprep.subr.mxu0 0.0
      %722 = vmatpush1.msra.mxu0 0.0
      %723 = vmatprep.subr.mxu0 0.0
      %724 = vmatpush1.msra.mxu0 0.0
      %725 = vmatprep.subr.mxu0 0.0
      %726 = vmatpush1.msra.mxu0 0.0
      %727 = vmatprep.subr.mxu0 0.0
      %728 = vmatpush1.msra.mxu0 0.0
      %729 = vmatprep.subr.mxu0 0.0
      %730 = vmatpush1.msra.mxu0 0.0
      %731 = vmatprep.subr.mxu0 0.0
      %732 = vmatpush1.msra.mxu0 0.0
      %733 = vmatprep.subr.mxu0 0.0
      %734 = vmatpush1.msra.mxu0 0.0
      %735 = vmatprep.subr.mxu0 0.0
      %736 = vmatpush1.msra.mxu0 0.0
      %737 = vmatprep.subr.mxu0 0.0
      %738 = vmatpush1.msra.mxu0 0.0
      %739 = vmatprep.subr.mxu0 0.0
      %740 = vmatpush1.msra.mxu0 0.0
      %741 = vmatprep.subr.mxu0 0.0
      %742 = vmatpush1.msra.mxu0 0.0
      %743 = vmatprep.subr.mxu0 0.0
      %744 = vmatpush1.msra.mxu0 0.0
      %745 = vmatprep.subr.mxu0 0.0
      %746 = vmatpush1.msra.mxu0 0.0
      %747 = vmatprep.subr.mxu0 0.0
      %748 = vmatpush1.msra.mxu0 0.0
      %749 = vmatprep.subr.mxu0 0.0
      %750 = vmatpush1.msra.mxu0 0.0
      %751 = vmatprep.subr.mxu0 0.0
      %752 = vmatpush1.msra.mxu0 0.0
      %753 = vmatprep.subr.mxu0 0.0
      %754 = vmatpush1.msra.mxu0 0.0
      %755 = vmatprep.mubr.f32.mxu0 0.0
      %756 = vmatmul.mubr.f32.gmra.mrb[0].mxu0 %v587
      %v757 = vpop.f32.mrb[0].mxu0
      %v758 = vadd.f32 %v418, %v757
      %v759 = vpop.f32.mrb[0].mxu0
      %760 = vmatprep.mubr.f32.mxu0 0.0
      %761 = vmatmul.mubr.f32.gmra.mrb[0].mxu0 %v590
      %v762 = vpop.f32.mrb[0].mxu0
      %v763 = vadd.f32 %v423, %v762
      %v764 = vpop.f32.mrb[0].mxu0
      %765 = vmatprep.mubr.f32.mxu0 0.0
      %766 = vmatmul.mubr.f32.gmra.mrb[0].mxu0 %v593
      %v767 = vpop.f32.mrb[0].mxu0
      %v768 = vadd.f32 %v428, %v767
      %v769 = vpop.f32.mrb[0].mxu0
      %770 = vmatprep.mubr.f32.mxu0 0.0
      %771 = vmatmul.mubr.f32.gmra.mrb[0].mxu0 %v596
      %v772 = vpop.f32.mrb[0].mxu0
      %v773 = vadd.f32 %v433, %v772
      %v774 = vpop.f32.mrb[0].mxu0
      %775 = vmatprep.mubr.f32.mxu0 0.0
      %776 = vmatmul.mubr.f32.gmra.mrb[0].mxu0 %v599
      %v777 = vpop.f32.mrb[0].mxu0
      %v778 = vadd.f32 %v438, %v777
      %v779 = vpop.f32.mrb[0].mxu0
      %780 = vmatprep.mubr.f32.mxu0 0.0
      %781 = vmatmul.mubr.f32.gmra.mrb[0].mxu0 %v602
      %v782 = vpop.f32.mrb[0].mxu0
      %v783 = vadd.f32 %v443, %v782
      %v784 = vpop.f32.mrb[0].mxu0
      %785 = vmatprep.mubr.f32.mxu0 0.0
      %786 = vmatmul.mubr.f32.gmra.mrb[0].mxu0 %v605
      %v787 = vpop.f32.mrb[0].mxu0
      %v788 = vadd.f32 %v448, %v787
      %v789 = vpop.f32.mrb[0].mxu0
      %790 = vmatprep.mubr.f32.mxu0 0.0
      %791 = vmatmul.mubr.f32.gmra.mrb[0].mxu0 %v608
      %v792 = vpop.f32.mrb[0].mxu0
      %v793 = vadd.f32 %v453, %v792
      %v794 = vpop.f32.mrb[0].mxu0
      %795 = vmatprep.mubr.f32.mxu0 0.0
      %796 = vmatmul.mubr.f32.gmra.mrb[0].mxu0 %v611
      %v797 = vpop.f32.mrb[0].mxu0
      %v798 = vadd.f32 %v458, %v797
      %v799 = vpop.f32.mrb[0].mxu0
      %800 = vmatprep.mubr.f32.mxu0 0.0
      %801 = vmatmul.mubr.f32.gmra.mrb[0].mxu0 %v614
      %v802 = vpop.f32.mrb[0].mxu0
      %v803 = vadd.f32 %v463, %v802
      %v804 = vpop.f32.mrb[0].mxu0
      %805 = vmatprep.mubr.f32.mxu0 0.0
      %806 = vmatmul.mubr.f32.gmra.mrb[0].mxu0 %v617
      %v807 = vpop.f32.mrb[0].mxu0
      %v808 = vadd.f32 %v468, %v807
      %v809 = vpop.f32.mrb[0].mxu0
      %810 = vmatprep.mubr.f32.mxu0 0.0
      %811 = vmatmul.mubr.f32.gmra.mrb[0].mxu0 %v620
      %v812 = vpop.f32.mrb[0].mxu0
      %v813 = vadd.f32 %v473, %v812
      %v814 = vpop.f32.mrb[0].mxu0
      %815 = vmatprep.mubr.f32.mxu0 0.0
      %816 = vmatmul.mubr.f32.gmra.mrb[0].mxu0 %v623
      %v817 = vpop.f32.mrb[0].mxu0
      %v818 = vadd.f32 %v478, %v817
      %v819 = vpop.f32.mrb[0].mxu0
      %820 = vmatprep.mubr.f32.mxu0 0.0
      %821 = vmatmul.mubr.f32.gmra.mrb[0].mxu0 %v626
      %v822 = vpop.f32.mrb[0].mxu0
      %v823 = vadd.f32 %v483, %v822
      %v824 = vpop.f32.mrb[0].mxu0
      %825 = vmatprep.mubr.f32.mxu0 0.0
      %826 = vmatmul.mubr.f32.gmra.mrb[0].mxu0 %v629
      %v827 = vpop.f32.mrb[0].mxu0
      %v828 = vadd.f32 %v488, %v827
      %v829 = vpop.f32.mrb[0].mxu0
      %830 = vmatprep.mubr.f32.mxu0 0.0
      %831 = vmatmul.mubr.f32.gmra.mrb[0].mxu0 %v632
      %v832 = vpop.f32.mrb[0].mxu0
      %v833 = vadd.f32 %v493, %v832
      %v834 = vpop.f32.mrb[0].mxu0
      %835 = vmatprep.mubr.f32.mxu0 0.0
      %836 = vmatmul.mubr.f32.gmra.mrb[0].mxu0 %v635
      %v837 = vpop.f32.mrb[0].mxu0
      %v838 = vadd.f32 %v498, %v837
      %v839 = vpop.f32.mrb[0].mxu0
      %840 = vmatprep.mubr.f32.mxu0 0.0
      %841 = vmatmul.mubr.f32.gmra.mrb[0].mxu0 %v638
      %v842 = vpop.f32.mrb[0].mxu0
      %v843 = vadd.f32 %v503, %v842
      %v844 = vpop.f32.mrb[0].mxu0
      %845 = vmatprep.mubr.f32.mxu0 0.0
      %846 = vmatmul.mubr.f32.gmra.mrb[0].mxu0 %v641
      %v847 = vpop.f32.mrb[0].mxu0
      %v848 = vadd.f32 %v508, %v847
      %v849 = vpop.f32.mrb[0].mxu0
      %850 = vmatprep.mubr.f32.mxu0 0.0
      %851 = vmatmul.mubr.f32.gmra.mrb[0].mxu0 %v644
      %v852 = vpop.f32.mrb[0].mxu0
      %v853 = vadd.f32 %v513, %v852
      %v854 = vpop.f32.mrb[0].mxu0
      %855 = vmatprep.mubr.f32.mxu0 0.0
      %856 = vmatmul.mubr.f32.gmra.mrb[0].mxu0 %v647
      %v857 = vpop.f32.mrb[0].mxu0
      %v858 = vadd.f32 %v518, %v857
      %v859 = vpop.f32.mrb[0].mxu0
      %860 = vmatprep.mubr.f32.mxu0 0.0
      %861 = vmatmul.mubr.f32.gmra.mrb[0].mxu0 %v650
      %v862 = vpop.f32.mrb[0].mxu0
      %v863 = vadd.f32 %v523, %v862
      %v864 = vpop.f32.mrb[0].mxu0
      %865 = vmatprep.mubr.f32.mxu0 0.0
      %866 = vmatmul.mubr.f32.gmra.mrb[0].mxu0 %v653
      %v867 = vpop.f32.mrb[0].mxu0
      %v868 = vadd.f32 %v528, %v867
      %v869 = vpop.f32.mrb[0].mxu0
      %870 = vmatprep.mubr.f32.mxu0 0.0
      %871 = vmatmul.mubr.f32.gmra.mrb[0].mxu0 %v656
      %v872 = vpop.f32.mrb[0].mxu0
      %v873 = vadd.f32 %v533, %v872
      %v874 = vpop.f32.mrb[0].mxu0
      %875 = vmatprep.mubr.f32.mxu0 0.0
      %876 = vmatmul.mubr.f32.gmra.mrb[0].mxu0 %v659
      %v877 = vpop.f32.mrb[0].mxu0
      %v878 = vadd.f32 %v538, %v877
      %v879 = vpop.f32.mrb[0].mxu0
      %880 = vmatprep.mubr.f32.mxu0 0.0
      %881 = vmatmul.mubr.f32.gmra.mrb[0].mxu0 %v662
      %v882 = vpop.f32.mrb[0].mxu0
      %v883 = vadd.f32 %v543, %v882
      %v884 = vpop.f32.mrb[0].mxu0
      %885 = vmatprep.mubr.f32.mxu0 0.0
      %886 = vmatmul.mubr.f32.gmra.mrb[0].mxu0 %v665
      %v887 = vpop.f32.mrb[0].mxu0
      %v888 = vadd.f32 %v548, %v887
      %v889 = vpop.f32.mrb[0].mxu0
      %890 = vmatprep.mubr.f32.mxu0 0.0
      %891 = vmatmul.mubr.f32.gmra.mrb[0].mxu0 %v668
      %v892 = vpop.f32.mrb[0].mxu0
      %v893 = vadd.f32 %v553, %v892
      %v894 = vpop.f32.mrb[0].mxu0
      %895 = vmatprep.mubr.f32.mxu0 0.0
      %896 = vmatmul.mubr.f32.gmra.mrb[0].mxu0 %v671
      %v897 = vpop.f32.mrb[0].mxu0
      %v898 = vadd.f32 %v558, %v897
      %v899 = vpop.f32.mrb[0].mxu0
      %900 = vmatprep.mubr.f32.mxu0 0.0
      %901 = vmatmul.mubr.f32.gmra.mrb[0].mxu0 %v674
      %v902 = vpop.f32.mrb[0].mxu0
      %v903 = vadd.f32 %v563, %v902
      %v904 = vpop.f32.mrb[0].mxu0
      %905 = vmatprep.mubr.f32.mxu0 0.0
      %906 = vmatmul.mubr.f32.gmra.mrb[0].mxu0 %v677
      %v907 = vpop.f32.mrb[0].mxu0
      %v908 = vadd.f32 %v568, %v907
      %v909 = vpop.f32.mrb[0].mxu0
      %910 = vmatprep.mubr.f32.mxu0 0.0
      %911 = vmatmul.mubr.f32.gmra.mrb[0].mxu0 %v680
      %v912 = vpop.f32.mrb[0].mxu0
      %v913 = vadd.f32 %v573, %v912
      %v914 = vpop.f32.mrb[0].mxu0
      %915 = vmatprep.mubr.f32.mxu0 0.0
      %916 = vmatmul.mubr.f32.gmra.mrb[0].mxu0 %v683
      %v917 = vpop.f32.mrb[0].mxu0
      %v918 = vadd.f32 %v578, %v917
      %v919 = vpop.f32.mrb[0].mxu0
      %920 = vmatprep.mubr.f32.mxu0 0.0
      %921 = vmatmul.mubr.f32.gmra.mrb[0].mxu0 %v686
      %v922 = vpop.f32.mrb[0].mxu0
      %v923 = vadd.f32 %v583, %v922
      %v924 = vpop.f32.mrb[0].mxu0
      %925 = vdwg.mxu0
      %v926 = vld [vmem:[%s165 + $0x11] sm:$0xff]
      %v927 = vld [vmem:[%s165 + $0x19] sm:$0xff]
      %v928 = vld [vmem:[%s165 + $0x21] sm:$0xff]
      %v929 = vld [vmem:[%s165 + $0x29] sm:$0xff]
      %v930 = vld [vmem:[%s165 + $0x31] sm:$0xff]
      %v931 = vld [vmem:[%s165 + $0x39] sm:$0xff]
      %v932 = vld [vmem:[%s165 + $0x41] sm:$0xff]
      %v933 = vld [vmem:[%s165 + $0x49] sm:$0xff]
      %v934 = vld [vmem:[%s165 + $0x51] sm:$0xff]
      %v935 = vld [vmem:[%s165 + $0x59] sm:$0xff]
      %v936 = vld [vmem:[%s165 + $0x61] sm:$0xff]
      %v937 = vld [vmem:[%s165 + $0x69] sm:$0xff]
      %v938 = vld [vmem:[%s165 + $0x71] sm:$0xff]
      %v939 = vld [vmem:[%s165 + $0x79] sm:$0xff]
      %v940 = vld [vmem:[%s165 + $0x81] sm:$0xff]
      %v941 = vld [vmem:[%s165 + $0x89] sm:$0xff]
      %v942 = vld [vmem:[%s165 + $0x91] sm:$0xff]
      %v943 = vld [vmem:[%s165 + $0x99] sm:$0xff]
      %v944 = vld [vmem:[%s165 + $0xa1] sm:$0xff]
      %v945 = vld [vmem:[%s165 + $0xa9] sm:$0xff]
      %v946 = vld [vmem:[%s165 + $0xb1] sm:$0xff]
      %v947 = vld [vmem:[%s165 + $0xb9] sm:$0xff]
      %v948 = vld [vmem:[%s165 + $0xc1] sm:$0xff]
      %v949 = vld [vmem:[%s165 + $0xc9] sm:$0xff]
      %v950 = vld [vmem:[%s165 + $0xd1] sm:$0xff]
      %v951 = vld [vmem:[%s165 + $0xd9] sm:$0xff]
      %v952 = vld [vmem:[%s165 + $0xe1] sm:$0xff]
      %v953 = vld [vmem:[%s165 + $0xe9] sm:$0xff]
      %v954 = vld [vmem:[%s165 + $0xf1] sm:$0xff]
      %v955 = vld [vmem:[%s165 + $0xf9] sm:$0xff]
      %v956 = vld [vmem:[%s165 + $0x101] sm:$0xff]
      %v957 = vld [vmem:[%s165 + $0x109] sm:$0xff]
      %v958 = vld [vmem:[%s165 + $0x111] sm:$0xff]
      %v959 = vld [vmem:[%s165 + $0x119] sm:$0x7f]
      %s960 = scalar_lea.vmem %s1, 32
      %v961 = vld [vmem:[%s960] sm:$0xff]
      %v962 = vld [vmem:[%s960 + $0x8] sm:$0xf]
      %v964 = vsel %vm244, %v926, 0
      %v967 = vsel %vm244, %v927, 0
      %v970 = vsel %vm244, %v928, 0
      %v973 = vsel %vm244, %v929, 0
      %v976 = vsel %vm244, %v930, 0
      %v979 = vsel %vm244, %v931, 0
      %v982 = vsel %vm244, %v932, 0
      %v985 = vsel %vm244, %v933, 0
      %v988 = vsel %vm244, %v934, 0
      %v991 = vsel %vm244, %v935, 0
      %v994 = vsel %vm244, %v936, 0
      %v997 = vsel %vm244, %v937, 0
      %v1000 = vsel %vm244, %v938, 0
      %v1003 = vsel %vm244, %v939, 0
      %v1006 = vsel %vm244, %v940, 0
      %v1009 = vsel %vm244, %v941, 0
      %v1012 = vsel %vm244, %v942, 0
      %v1015 = vsel %vm244, %v943, 0
      %v1018 = vsel %vm244, %v944, 0
      %v1021 = vsel %vm244, %v945, 0
      %v1024 = vsel %vm244, %v946, 0
      %v1027 = vsel %vm244, %v947, 0
      %v1030 = vsel %vm244, %v948, 0
      %v1033 = vsel %vm244, %v949, 0
      %v1036 = vsel %vm244, %v950, 0
      %v1039 = vsel %vm244, %v951, 0
      %v1042 = vsel %vm244, %v952, 0
      %v1045 = vsel %vm244, %v953, 0
      %v1048 = vsel %vm244, %v954, 0
      %v1051 = vsel %vm244, %v955, 0
      %v1054 = vsel %vm244, %v956, 0
      %v1057 = vsel %vm244, %v957, 0
      %v1060 = vsel %vm244, %v958, 0
      %v1063 = vsel %vm244, %v959, 0
      %v1066 = vsel %vm347, %v962, 0
      %1068 = vmatprep.subr.mxu0 0.0
      %1069 = vmatpush1.msra.mxu0 %v961
      %1070 = vmatprep.subr.mxu0 0.0
      %1071 = vmatpush1.msra.mxu0 %v1066
      %1072 = vmatprep.subr.mxu0 0.0
      %1073 = vmatpush1.msra.mxu0 0.0
      %1074 = vmatprep.subr.mxu0 0.0
      %1075 = vmatpush1.msra.mxu0 0.0
      %1076 = vmatprep.subr.mxu0 0.0
      %1077 = vmatpush1.msra.mxu0 0.0
      %1078 = vmatprep.subr.mxu0 0.0
      %1079 = vmatpush1.msra.mxu0 0.0
      %1080 = vmatprep.subr.mxu0 0.0
      %1081 = vmatpush1.msra.mxu0 0.0
      %1082 = vmatprep.subr.mxu0 0.0
      %1083 = vmatpush1.msra.mxu0 0.0
      %1084 = vmatprep.subr.mxu0 0.0
      %1085 = vmatpush1.msra.mxu0 0.0
      %1086 = vmatprep.subr.mxu0 0.0
      %1087 = vmatpush1.msra.mxu0 0.0
      %1088 = vmatprep.subr.mxu0 0.0
      %1089 = vmatpush1.msra.mxu0 0.0
      %1090 = vmatprep.subr.mxu0 0.0
      %1091 = vmatpush1.msra.mxu0 0.0
      %1092 = vmatprep.subr.mxu0 0.0
      %1093 = vmatpush1.msra.mxu0 0.0
      %1094 = vmatprep.subr.mxu0 0.0
      %1095 = vmatpush1.msra.mxu0 0.0
      %1096 = vmatprep.subr.mxu0 0.0
      %1097 = vmatpush1.msra.mxu0 0.0
      %1098 = vmatprep.subr.mxu0 0.0
      %1099 = vmatpush1.msra.mxu0 0.0
      %1100 = vmatprep.subr.mxu0 0.0
      %1101 = vmatpush1.msra.mxu0 0.0
      %1102 = vmatprep.subr.mxu0 0.0
      %1103 = vmatpush1.msra.mxu0 0.0
      %1104 = vmatprep.subr.mxu0 0.0
      %1105 = vmatpush1.msra.mxu0 0.0
      %1106 = vmatprep.subr.mxu0 0.0
      %1107 = vmatpush1.msra.mxu0 0.0
      %1108 = vmatprep.subr.mxu0 0.0
      %1109 = vmatpush1.msra.mxu0 0.0
      %1110 = vmatprep.subr.mxu0 0.0
      %1111 = vmatpush1.msra.mxu0 0.0
      %1112 = vmatprep.subr.mxu0 0.0
      %1113 = vmatpush1.msra.mxu0 0.0
      %1114 = vmatprep.subr.mxu0 0.0
      %1115 = vmatpush1.msra.mxu0 0.0
      %1116 = vmatprep.subr.mxu0 0.0
      %1117 = vmatpush1.msra.mxu0 0.0
      %1118 = vmatprep.subr.mxu0 0.0
      %1119 = vmatpush1.msra.mxu0 0.0
      %1120 = vmatprep.subr.mxu0 0.0
      %1121 = vmatpush1.msra.mxu0 0.0
      %1122 = vmatprep.subr.mxu0 0.0
      %1123 = vmatpush1.msra.mxu0 0.0
      %1124 = vmatprep.subr.mxu0 0.0
      %1125 = vmatpush1.msra.mxu0 0.0
      %1126 = vmatprep.subr.mxu0 0.0
      %1127 = vmatpush1.msra.mxu0 0.0
      %1128 = vmatprep.subr.mxu0 0.0
      %1129 = vmatpush1.msra.mxu0 0.0
      %1130 = vmatprep.subr.mxu0 0.0
      %1131 = vmatpush1.msra.mxu0 0.0
      %1132 = vmatprep.mubr.f32.mxu0 0.0
      %1133 = vmatmul.mubr.f32.gmra.mrb[0].mxu0 %v964
      %v1134 = vpop.f32.mrb[0].mxu0
      %v1135 = vadd.f32 0.0, %v1134
      %v1136 = vpop.f32.mrb[0].mxu0
      %1137 = vmatprep.mubr.f32.mxu0 0.0
      %1138 = vmatmul.mubr.f32.gmra.mrb[0].mxu0 %v967
      %v1139 = vpop.f32.mrb[0].mxu0
      %v1140 = vadd.f32 0.0, %v1139
      %v1141 = vpop.f32.mrb[0].mxu0
      %1142 = vmatprep.mubr.f32.mxu0 0.0
      %1143 = vmatmul.mubr.f32.gmra.mrb[0].mxu0 %v970
      %v1144 = vpop.f32.mrb[0].mxu0
      %v1145 = vadd.f32 0.0, %v1144
      %v1146 = vpop.f32.mrb[0].mxu0
      %1147 = vmatprep.mubr.f32.mxu0 0.0
      %1148 = vmatmul.mubr.f32.gmra.mrb[0].mxu0 %v973
      %v1149 = vpop.f32.mrb[0].mxu0
      %v1150 = vadd.f32 0.0, %v1149
      %v1151 = vpop.f32.mrb[0].mxu0
      %1152 = vmatprep.mubr.f32.mxu0 0.0
      %1153 = vmatmul.mubr.f32.gmra.mrb[0].mxu0 %v976
      %v1154 = vpop.f32.mrb[0].mxu0
      %v1155 = vadd.f32 0.0, %v1154
      %v1156 = vpop.f32.mrb[0].mxu0
      %1157 = vmatprep.mubr.f32.mxu0 0.0
      %1158 = vmatmul.mubr.f32.gmra.mrb[0].mxu0 %v979
      %v1159 = vpop.f32.mrb[0].mxu0
      %v1160 = vadd.f32 0.0, %v1159
      %v1161 = vpop.f32.mrb[0].mxu0
      %1162 = vmatprep.mubr.f32.mxu0 0.0
      %1163 = vmatmul.mubr.f32.gmra.mrb[0].mxu0 %v982
      %v1164 = vpop.f32.mrb[0].mxu0
      %v1165 = vadd.f32 0.0, %v1164
      %v1166 = vpop.f32.mrb[0].mxu0
      %1167 = vmatprep.mubr.f32.mxu0 0.0
      %1168 = vmatmul.mubr.f32.gmra.mrb[0].mxu0 %v985
      %v1169 = vpop.f32.mrb[0].mxu0
      %v1170 = vadd.f32 0.0, %v1169
      %v1171 = vpop.f32.mrb[0].mxu0
      %1172 = vmatprep.mubr.f32.mxu0 0.0
      %1173 = vmatmul.mubr.f32.gmra.mrb[0].mxu0 %v988
      %v1174 = vpop.f32.mrb[0].mxu0
      %v1175 = vadd.f32 0.0, %v1174
      %v1176 = vpop.f32.mrb[0].mxu0
      %1177 = vmatprep.mubr.f32.mxu0 0.0
      %1178 = vmatmul.mubr.f32.gmra.mrb[0].mxu0 %v991
      %v1179 = vpop.f32.mrb[0].mxu0
      %v1180 = vadd.f32 0.0, %v1179
      %v1181 = vpop.f32.mrb[0].mxu0
      %1182 = vmatprep.mubr.f32.mxu0 0.0
      %1183 = vmatmul.mubr.f32.gmra.mrb[0].mxu0 %v994
      %v1184 = vpop.f32.mrb[0].mxu0
      %v1185 = vadd.f32 0.0, %v1184
      %v1186 = vpop.f32.mrb[0].mxu0
      %1187 = vmatprep.mubr.f32.mxu0 0.0
      %1188 = vmatmul.mubr.f32.gmra.mrb[0].mxu0 %v997
      %v1189 = vpop.f32.mrb[0].mxu0
      %v1190 = vadd.f32 0.0, %v1189
      %v1191 = vpop.f32.mrb[0].mxu0
      %1192 = vmatprep.mubr.f32.mxu0 0.0
      %1193 = vmatmul.mubr.f32.gmra.mrb[0].mxu0 %v1000
      %v1194 = vpop.f32.mrb[0].mxu0
      %v1195 = vadd.f32 0.0, %v1194
      %v1196 = vpop.f32.mrb[0].mxu0
      %1197 = vmatprep.mubr.f32.mxu0 0.0
      %1198 = vmatmul.mubr.f32.gmra.mrb[0].mxu0 %v1003
      %v1199 = vpop.f32.mrb[0].mxu0
      %v1200 = vadd.f32 0.0, %v1199
      %v1201 = vpop.f32.mrb[0].mxu0
      %1202 = vmatprep.mubr.f32.mxu0 0.0
      %1203 = vmatmul.mubr.f32.gmra.mrb[0].mxu0 %v1006
      %v1204 = vpop.f32.mrb[0].mxu0
      %v1205 = vadd.f32 0.0, %v1204
      %v1206 = vpop.f32.mrb[0].mxu0
      %1207 = vmatprep.mubr.f32.mxu0 0.0
      %1208 = vmatmul.mubr.f32.gmra.mrb[0].mxu0 %v1009
      %v1209 = vpop.f32.mrb[0].mxu0
      %v1210 = vadd.f32 0.0, %v1209
      %v1211 = vpop.f32.mrb[0].mxu0
      %1212 = vmatprep.mubr.f32.mxu0 0.0
      %1213 = vmatmul.mubr.f32.gmra.mrb[0].mxu0 %v1012
      %v1214 = vpop.f32.mrb[0].mxu0
      %v1215 = vadd.f32 0.0, %v1214
      %v1216 = vpop.f32.mrb[0].mxu0
      %1217 = vmatprep.mubr.f32.mxu0 0.0
      %1218 = vmatmul.mubr.f32.gmra.mrb[0].mxu0 %v1015
      %v1219 = vpop.f32.mrb[0].mxu0
      %v1220 = vadd.f32 0.0, %v1219
      %v1221 = vpop.f32.mrb[0].mxu0
      %1222 = vmatprep.mubr.f32.mxu0 0.0
      %1223 = vmatmul.mubr.f32.gmra.mrb[0].mxu0 %v1018
      %v1224 = vpop.f32.mrb[0].mxu0
      %v1225 = vadd.f32 0.0, %v1224
      %v1226 = vpop.f32.mrb[0].mxu0
      %1227 = vmatprep.mubr.f32.mxu0 0.0
      %1228 = vmatmul.mubr.f32.gmra.mrb[0].mxu0 %v1021
      %v1229 = vpop.f32.mrb[0].mxu0
      %v1230 = vadd.f32 0.0, %v1229
      %v1231 = vpop.f32.mrb[0].mxu0
      %1232 = vmatprep.mubr.f32.mxu0 0.0
      %1233 = vmatmul.mubr.f32.gmra.mrb[0].mxu0 %v1024
      %v1234 = vpop.f32.mrb[0].mxu0
      %v1235 = vadd.f32 0.0, %v1234
      %v1236 = vpop.f32.mrb[0].mxu0
      %1237 = vmatprep.mubr.f32.mxu0 0.0
      %1238 = vmatmul.mubr.f32.gmra.mrb[0].mxu0 %v1027
      %v1239 = vpop.f32.mrb[0].mxu0
      %v1240 = vadd.f32 0.0, %v1239
      %v1241 = vpop.f32.mrb[0].mxu0
      %1242 = vmatprep.mubr.f32.mxu0 0.0
      %1243 = vmatmul.mubr.f32.gmra.mrb[0].mxu0 %v1030
      %v1244 = vpop.f32.mrb[0].mxu0
      %v1245 = vadd.f32 0.0, %v1244
      %v1246 = vpop.f32.mrb[0].mxu0
      %1247 = vmatprep.mubr.f32.mxu0 0.0
      %1248 = vmatmul.mubr.f32.gmra.mrb[0].mxu0 %v1033
      %v1249 = vpop.f32.mrb[0].mxu0
      %v1250 = vadd.f32 0.0, %v1249
      %v1251 = vpop.f32.mrb[0].mxu0
      %1252 = vmatprep.mubr.f32.mxu0 0.0
      %1253 = vmatmul.mubr.f32.gmra.mrb[0].mxu0 %v1036
      %v1254 = vpop.f32.mrb[0].mxu0
      %v1255 = vadd.f32 0.0, %v1254
      %v1256 = vpop.f32.mrb[0].mxu0
      %1257 = vmatprep.mubr.f32.mxu0 0.0
      %1258 = vmatmul.mubr.f32.gmra.mrb[0].mxu0 %v1039
      %v1259 = vpop.f32.mrb[0].mxu0
      %v1260 = vadd.f32 0.0, %v1259
      %v1261 = vpop.f32.mrb[0].mxu0
      %1262 = vmatprep.mubr.f32.mxu0 0.0
      %1263 = vmatmul.mubr.f32.gmra.mrb[0].mxu0 %v1042
      %v1264 = vpop.f32.mrb[0].mxu0
      %v1265 = vadd.f32 0.0, %v1264
      %v1266 = vpop.f32.mrb[0].mxu0
      %1267 = vmatprep.mubr.f32.mxu0 0.0
      %1268 = vmatmul.mubr.f32.gmra.mrb[0].mxu0 %v1045
      %v1269 = vpop.f32.mrb[0].mxu0
      %v1270 = vadd.f32 0.0, %v1269
      %v1271 = vpop.f32.mrb[0].mxu0
      %1272 = vmatprep.mubr.f32.mxu0 0.0
      %1273 = vmatmul.mubr.f32.gmra.mrb[0].mxu0 %v1048
      %v1274 = vpop.f32.mrb[0].mxu0
      %v1275 = vadd.f32 0.0, %v1274
      %v1276 = vpop.f32.mrb[0].mxu0
      %1277 = vmatprep.mubr.f32.mxu0 0.0
      %1278 = vmatmul.mubr.f32.gmra.mrb[0].mxu0 %v1051
      %v1279 = vpop.f32.mrb[0].mxu0
      %v1280 = vadd.f32 0.0, %v1279
      %v1281 = vpop.f32.mrb[0].mxu0
      %1282 = vmatprep.mubr.f32.mxu0 0.0
      %1283 = vmatmul.mubr.f32.gmra.mrb[0].mxu0 %v1054
      %v1284 = vpop.f32.mrb[0].mxu0
      %v1285 = vadd.f32 0.0, %v1284
      %v1286 = vpop.f32.mrb[0].mxu0
      %1287 = vmatprep.mubr.f32.mxu0 0.0
      %1288 = vmatmul.mubr.f32.gmra.mrb[0].mxu0 %v1057
      %v1289 = vpop.f32.mrb[0].mxu0
      %v1290 = vadd.f32 0.0, %v1289
      %v1291 = vpop.f32.mrb[0].mxu0
      %1292 = vmatprep.mubr.f32.mxu0 0.0
      %1293 = vmatmul.mubr.f32.gmra.mrb[0].mxu0 %v1060
      %v1294 = vpop.f32.mrb[0].mxu0
      %v1295 = vadd.f32 0.0, %v1294
      %v1296 = vpop.f32.mrb[0].mxu0
      %1297 = vmatprep.mubr.f32.mxu0 0.0
      %1298 = vmatmul.mubr.f32.gmra.mrb[0].mxu0 %v1063
      %v1299 = vpop.f32.mrb[0].mxu0
      %v1300 = vadd.f32 0.0, %v1299
      %v1301 = vpop.f32.mrb[0].mxu0
      %1302 = vdwg.mxu0
      %v1303 = vadd.f32 %v758, %v1135
      %v1304 = vadd.f32 %v763, %v1140
      %v1305 = vadd.f32 %v768, %v1145
      %v1306 = vadd.f32 %v773, %v1150
      %v1307 = vadd.f32 %v778, %v1155
      %v1308 = vadd.f32 %v783, %v1160
      %v1309 = vadd.f32 %v788, %v1165
      %v1310 = vadd.f32 %v793, %v1170
      %v1311 = vadd.f32 %v798, %v1175
      %v1312 = vadd.f32 %v803, %v1180
      %v1313 = vadd.f32 %v808, %v1185
      %v1314 = vadd.f32 %v813, %v1190
      %v1315 = vadd.f32 %v818, %v1195
      %v1316 = vadd.f32 %v823, %v1200
      %v1317 = vadd.f32 %v828, %v1205
      %v1318 = vadd.f32 %v833, %v1210
      %v1319 = vadd.f32 %v838, %v1215
      %v1320 = vadd.f32 %v843, %v1220
      %v1321 = vadd.f32 %v848, %v1225
      %v1322 = vadd.f32 %v853, %v1230
      %v1323 = vadd.f32 %v858, %v1235
      %v1324 = vadd.f32 %v863, %v1240
      %v1325 = vadd.f32 %v868, %v1245
      %v1326 = vadd.f32 %v873, %v1250
      %v1327 = vadd.f32 %v878, %v1255
      %v1328 = vadd.f32 %v883, %v1260
      %v1329 = vadd.f32 %v888, %v1265
      %v1330 = vadd.f32 %v893, %v1270
      %v1331 = vadd.f32 %v898, %v1275
      %v1332 = vadd.f32 %v903, %v1280
      %v1333 = vadd.f32 %v908, %v1285
      %v1334 = vadd.f32 %v913, %v1290
      %v1335 = vadd.f32 %v918, %v1295
      %v1336 = vadd.f32 %v923, %v1300
      %v1337 = vld [vmem:[%s165 + $0x12] sm:$0xff]
      %v1338 = vld [vmem:[%s165 + $0x1a] sm:$0xff]
      %v1339 = vld [vmem:[%s165 + $0x22] sm:$0xff]
      %v1340 = vld [vmem:[%s165 + $0x2a] sm:$0xff]
      %v1341 = vld [vmem:[%s165 + $0x32] sm:$0xff]
      %v1342 = vld [vmem:[%s165 + $0x3a] sm:$0xff]
      %v1343 = vld [vmem:[%s165 + $0x42] sm:$0xff]
      %v1344 = vld [vmem:[%s165 + $0x4a] sm:$0xff]
      %v1345 = vld [vmem:[%s165 + $0x52] sm:$0xff]
      %v1346 = vld [vmem:[%s165 + $0x5a] sm:$0xff]
      %v1347 = vld [vmem:[%s165 + $0x62] sm:$0xff]
      %v1348 = vld [vmem:[%s165 + $0x6a] sm:$0xff]
      %v1349 = vld [vmem:[%s165 + $0x72] sm:$0xff]
      %v1350 = vld [vmem:[%s165 + $0x7a] sm:$0xff]
      %v1351 = vld [vmem:[%s165 + $0x82] sm:$0xff]
      %v1352 = vld [vmem:[%s165 + $0x8a] sm:$0xff]
      %v1353 = vld [vmem:[%s165 + $0x92] sm:$0xff]
      %v1354 = vld [vmem:[%s165 + $0x9a] sm:$0xff]
      %v1355 = vld [vmem:[%s165 + $0xa2] sm:$0xff]
      %v1356 = vld [vmem:[%s165 + $0xaa] sm:$0xff]
      %v1357 = vld [vmem:[%s165 + $0xb2] sm:$0xff]
      %v1358 = vld [vmem:[%s165 + $0xba] sm:$0xff]
      %v1359 = vld [vmem:[%s165 + $0xc2] sm:$0xff]
      %v1360 = vld [vmem:[%s165 + $0xca] sm:$0xff]
      %v1361 = vld [vmem:[%s165 + $0xd2] sm:$0xff]
      %v1362 = vld [vmem:[%s165 + $0xda] sm:$0xff]
      %v1363 = vld [vmem:[%s165 + $0xe2] sm:$0xff]
      %v1364 = vld [vmem:[%s165 + $0xea] sm:$0xff]
      %v1365 = vld [vmem:[%s165 + $0xf2] sm:$0xff]
      %v1366 = vld [vmem:[%s165 + $0xfa] sm:$0xff]
      %v1367 = vld [vmem:[%s165 + $0x102] sm:$0xff]
      %v1368 = vld [vmem:[%s165 + $0x10a] sm:$0xff]
      %v1369 = vld [vmem:[%s165 + $0x112] sm:$0xff]
      %v1370 = vld [vmem:[%s165 + $0x11a] sm:$0x7f]
      %s1371 = scalar_lea.vmem %s1, 48
      %v1372 = vld [vmem:[%s1371] sm:$0xff]
      %v1373 = vld [vmem:[%s1371 + $0x8] sm:$0xf]
      %v1375 = vsel %vm244, %v1337, 0
      %v1378 = vsel %vm244, %v1338, 0
      %v1381 = vsel %vm244, %v1339, 0
      %v1384 = vsel %vm244, %v1340, 0
      %v1387 = vsel %vm244, %v1341, 0
      %v1390 = vsel %vm244, %v1342, 0
      %v1393 = vsel %vm244, %v1343, 0
      %v1396 = vsel %vm244, %v1344, 0
      %v1399 = vsel %vm244, %v1345, 0
      %v1402 = vsel %vm244, %v1346, 0
      %v1405 = vsel %vm244, %v1347, 0
      %v1408 = vsel %vm244, %v1348, 0
      %v1411 = vsel %vm244, %v1349, 0
      %v1414 = vsel %vm244, %v1350, 0
      %v1417 = vsel %vm244, %v1351, 0
      %v1420 = vsel %vm244, %v1352, 0
      %v1423 = vsel %vm244, %v1353, 0
      %v1426 = vsel %vm244, %v1354, 0
      %v1429 = vsel %vm244, %v1355, 0
      %v1432 = vsel %vm244, %v1356, 0
      %v1435 = vsel %vm244, %v1357, 0
      %v1438 = vsel %vm244, %v1358, 0
      %v1441 = vsel %vm244, %v1359, 0
      %v1444 = vsel %vm244, %v1360, 0
      %v1447 = vsel %vm244, %v1361, 0
      %v1450 = vsel %vm244, %v1362, 0
      %v1453 = vsel %vm244, %v1363, 0
      %v1456 = vsel %vm244, %v1364, 0
      %v1459 = vsel %vm244, %v1365, 0
      %v1462 = vsel %vm244, %v1366, 0
      %v1465 = vsel %vm244, %v1367, 0
      %v1468 = vsel %vm244, %v1368, 0
      %v1471 = vsel %vm244, %v1369, 0
      %v1474 = vsel %vm244, %v1370, 0
      %v1477 = vsel %vm347, %v1373, 0
      %1479 = vmatprep.subr.mxu0 0.0
      %1480 = vmatpush1.msra.mxu0 %v1372
      %1481 = vmatprep.subr.mxu0 0.0
      %1482 = vmatpush1.msra.mxu0 %v1477
      %1483 = vmatprep.subr.mxu0 0.0
      %1484 = vmatpush1.msra.mxu0 0.0
      %1485 = vmatprep.subr.mxu0 0.0
      %1486 = vmatpush1.msra.mxu0 0.0
      %1487 = vmatprep.subr.mxu0 0.0
      %1488 = vmatpush1.msra.mxu0 0.0
      %1489 = vmatprep.subr.mxu0 0.0
      %1490 = vmatpush1.msra.mxu0 0.0
      %1491 = vmatprep.subr.mxu0 0.0
      %1492 = vmatpush1.msra.mxu0 0.0
      %1493 = vmatprep.subr.mxu0 0.0
      %1494 = vmatpush1.msra.mxu0 0.0
      %1495 = vmatprep.subr.mxu0 0.0
      %1496 = vmatpush1.msra.mxu0 0.0
      %1497 = vmatprep.subr.mxu0 0.0
      %1498 = vmatpush1.msra.mxu0 0.0
      %1499 = vmatprep.subr.mxu0 0.0
      %1500 = vmatpush1.msra.mxu0 0.0
      %1501 = vmatprep.subr.mxu0 0.0
      %1502 = vmatpush1.msra.mxu0 0.0
      %1503 = vmatprep.subr.mxu0 0.0
      %1504 = vmatpush1.msra.mxu0 0.0
      %1505 = vmatprep.subr.mxu0 0.0
      %1506 = vmatpush1.msra.mxu0 0.0
      %1507 = vmatprep.subr.mxu0 0.0
      %1508 = vmatpush1.msra.mxu0 0.0
      %1509 = vmatprep.subr.mxu0 0.0
      %1510 = vmatpush1.msra.mxu0 0.0
      %1511 = vmatprep.subr.mxu0 0.0
      %1512 = vmatpush1.msra.mxu0 0.0
      %1513 = vmatprep.subr.mxu0 0.0
      %1514 = vmatpush1.msra.mxu0 0.0
      %1515 = vmatprep.subr.mxu0 0.0
      %1516 = vmatpush1.msra.mxu0 0.0
      %1517 = vmatprep.subr.mxu0 0.0
      %1518 = vmatpush1.msra.mxu0 0.0
      %1519 = vmatprep.subr.mxu0 0.0
      %1520 = vmatpush1.msra.mxu0 0.0
      %1521 = vmatprep.subr.mxu0 0.0
      %1522 = vmatpush1.msra.mxu0 0.0
      %1523 = vmatprep.subr.mxu0 0.0
      %1524 = vmatpush1.msra.mxu0 0.0
      %1525 = vmatprep.subr.mxu0 0.0
      %1526 = vmatpush1.msra.mxu0 0.0
      %1527 = vmatprep.subr.mxu0 0.0
      %1528 = vmatpush1.msra.mxu0 0.0
      %1529 = vmatprep.subr.mxu0 0.0
      %1530 = vmatpush1.msra.mxu0 0.0
      %1531 = vmatprep.subr.mxu0 0.0
      %1532 = vmatpush1.msra.mxu0 0.0
      %1533 = vmatprep.subr.mxu0 0.0
      %1534 = vmatpush1.msra.mxu0 0.0
      %1535 = vmatprep.subr.mxu0 0.0
      %1536 = vmatpush1.msra.mxu0 0.0
      %1537 = vmatprep.subr.mxu0 0.0
      %1538 = vmatpush1.msra.mxu0 0.0
      %1539 = vmatprep.subr.mxu0 0.0
      %1540 = vmatpush1.msra.mxu0 0.0
      %1541 = vmatprep.subr.mxu0 0.0
      %1542 = vmatpush1.msra.mxu0 0.0
      %1543 = vmatprep.mubr.f32.mxu0 0.0
      %1544 = vmatmul.mubr.f32.gmra.mrb[0].mxu0 %v1375
      %v1545 = vpop.f32.mrb[0].mxu0
      %v1546 = vadd.f32 0.0, %v1545
      %v1547 = vpop.f32.mrb[0].mxu0
      %1548 = vmatprep.mubr.f32.mxu0 0.0
      %1549 = vmatmul.mubr.f32.gmra.mrb[0].mxu0 %v1378
      %v1550 = vpop.f32.mrb[0].mxu0
      %v1551 = vadd.f32 0.0, %v1550
      %v1552 = vpop.f32.mrb[0].mxu0
      %1553 = vmatprep.mubr.f32.mxu0 0.0
      %1554 = vmatmul.mubr.f32.gmra.mrb[0].mxu0 %v1381
      %v1555 = vpop.f32.mrb[0].mxu0
      %v1556 = vadd.f32 0.0, %v1555
      %v1557 = vpop.f32.mrb[0].mxu0
      %1558 = vmatprep.mubr.f32.mxu0 0.0
      %1559 = vmatmul.mubr.f32.gmra.mrb[0].mxu0 %v1384
      %v1560 = vpop.f32.mrb[0].mxu0
      %v1561 = vadd.f32 0.0, %v1560
      %v1562 = vpop.f32.mrb[0].mxu0
      %1563 = vmatprep.mubr.f32.mxu0 0.0
      %1564 = vmatmul.mubr.f32.gmra.mrb[0].mxu0 %v1387
      %v1565 = vpop.f32.mrb[0].mxu0
      %v1566 = vadd.f32 0.0, %v1565
      %v1567 = vpop.f32.mrb[0].mxu0
      %1568 = vmatprep.mubr.f32.mxu0 0.0
      %1569 = vmatmul.mubr.f32.gmra.mrb[0].mxu0 %v1390
      %v1570 = vpop.f32.mrb[0].mxu0
      %v1571 = vadd.f32 0.0, %v1570
      %v1572 = vpop.f32.mrb[0].mxu0
      %1573 = vmatprep.mubr.f32.mxu0 0.0
      %1574 = vmatmul.mubr.f32.gmra.mrb[0].mxu0 %v1393
      %v1575 = vpop.f32.mrb[0].mxu0
      %v1576 = vadd.f32 0.0, %v1575
      %v1577 = vpop.f32.mrb[0].mxu0
      %1578 = vmatprep.mubr.f32.mxu0 0.0
      %1579 = vmatmul.mubr.f32.gmra.mrb[0].mxu0 %v1396
      %v1580 = vpop.f32.mrb[0].mxu0
      %v1581 = vadd.f32 0.0, %v1580
      %v1582 = vpop.f32.mrb[0].mxu0
      %1583 = vmatprep.mubr.f32.mxu0 0.0
      %1584 = vmatmul.mubr.f32.gmra.mrb[0].mxu0 %v1399
      %v1585 = vpop.f32.mrb[0].mxu0
      %v1586 = vadd.f32 0.0, %v1585
      %v1587 = vpop.f32.mrb[0].mxu0
      %1588 = vmatprep.mubr.f32.mxu0 0.0
      %1589 = vmatmul.mubr.f32.gmra.mrb[0].mxu0 %v1402
      %v1590 = vpop.f32.mrb[0].mxu0
      %v1591 = vadd.f32 0.0, %v1590
      %v1592 = vpop.f32.mrb[0].mxu0
      %1593 = vmatprep.mubr.f32.mxu0 0.0
      %1594 = vmatmul.mubr.f32.gmra.mrb[0].mxu0 %v1405
      %v1595 = vpop.f32.mrb[0].mxu0
      %v1596 = vadd.f32 0.0, %v1595
      %v1597 = vpop.f32.mrb[0].mxu0
      %1598 = vmatprep.mubr.f32.mxu0 0.0
      %1599 = vmatmul.mubr.f32.gmra.mrb[0].mxu0 %v1408
      %v1600 = vpop.f32.mrb[0].mxu0
      %v1601 = vadd.f32 0.0, %v1600
      %v1602 = vpop.f32.mrb[0].mxu0
      %1603 = vmatprep.mubr.f32.mxu0 0.0
      %1604 = vmatmul.mubr.f32.gmra.mrb[0].mxu0 %v1411
      %v1605 = vpop.f32.mrb[0].mxu0
      %v1606 = vadd.f32 0.0, %v1605
      %v1607 = vpop.f32.mrb[0].mxu0
      %1608 = vmatprep.mubr.f32.mxu0 0.0
      %1609 = vmatmul.mubr.f32.gmra.mrb[0].mxu0 %v1414
      %v1610 = vpop.f32.mrb[0].mxu0
      %v1611 = vadd.f32 0.0, %v1610
      %v1612 = vpop.f32.mrb[0].mxu0
      %1613 = vmatprep.mubr.f32.mxu0 0.0
      %1614 = vmatmul.mubr.f32.gmra.mrb[0].mxu0 %v1417
      %v1615 = vpop.f32.mrb[0].mxu0
      %v1616 = vadd.f32 0.0, %v1615
      %v1617 = vpop.f32.mrb[0].mxu0
      %1618 = vmatprep.mubr.f32.mxu0 0.0
      %1619 = vmatmul.mubr.f32.gmra.mrb[0].mxu0 %v1420
      %v1620 = vpop.f32.mrb[0].mxu0
      %v1621 = vadd.f32 0.0, %v1620
      %v1622 = vpop.f32.mrb[0].mxu0
      %1623 = vmatprep.mubr.f32.mxu0 0.0
      %1624 = vmatmul.mubr.f32.gmra.mrb[0].mxu0 %v1423
      %v1625 = vpop.f32.mrb[0].mxu0
      %v1626 = vadd.f32 0.0, %v1625
      %v1627 = vpop.f32.mrb[0].mxu0
      %1628 = vmatprep.mubr.f32.mxu0 0.0
      %1629 = vmatmul.mubr.f32.gmra.mrb[0].mxu0 %v1426
      %v1630 = vpop.f32.mrb[0].mxu0
      %v1631 = vadd.f32 0.0, %v1630
      %v1632 = vpop.f32.mrb[0].mxu0
      %1633 = vmatprep.mubr.f32.mxu0 0.0
      %1634 = vmatmul.mubr.f32.gmra.mrb[0].mxu0 %v1429
      %v1635 = vpop.f32.mrb[0].mxu0
      %v1636 = vadd.f32 0.0, %v1635
      %v1637 = vpop.f32.mrb[0].mxu0
      %1638 = vmatprep.mubr.f32.mxu0 0.0
      %1639 = vmatmul.mubr.f32.gmra.mrb[0].mxu0 %v1432
      %v1640 = vpop.f32.mrb[0].mxu0
      %v1641 = vadd.f32 0.0, %v1640
      %v1642 = vpop.f32.mrb[0].mxu0
      %1643 = vmatprep.mubr.f32.mxu0 0.0
      %1644 = vmatmul.mubr.f32.gmra.mrb[0].mxu0 %v1435
      %v1645 = vpop.f32.mrb[0].mxu0
      %v1646 = vadd.f32 0.0, %v1645
      %v1647 = vpop.f32.mrb[0].mxu0
      %1648 = vmatprep.mubr.f32.mxu0 0.0
      %1649 = vmatmul.mubr.f32.gmra.mrb[0].mxu0 %v1438
      %v1650 = vpop.f32.mrb[0].mxu0
      %v1651 = vadd.f32 0.0, %v1650
      %v1652 = vpop.f32.mrb[0].mxu0
      %1653 = vmatprep.mubr.f32.mxu0 0.0
      %1654 = vmatmul.mubr.f32.gmra.mrb[0].mxu0 %v1441
      %v1655 = vpop.f32.mrb[0].mxu0
      %v1656 = vadd.f32 0.0, %v1655
      %v1657 = vpop.f32.mrb[0].mxu0
      %1658 = vmatprep.mubr.f32.mxu0 0.0
      %1659 = vmatmul.mubr.f32.gmra.mrb[0].mxu0 %v1444
      %v1660 = vpop.f32.mrb[0].mxu0
      %v1661 = vadd.f32 0.0, %v1660
      %v1662 = vpop.f32.mrb[0].mxu0
      %1663 = vmatprep.mubr.f32.mxu0 0.0
      %1664 = vmatmul.mubr.f32.gmra.mrb[0].mxu0 %v1447
      %v1665 = vpop.f32.mrb[0].mxu0
      %v1666 = vadd.f32 0.0, %v1665
      %v1667 = vpop.f32.mrb[0].mxu0
      %1668 = vmatprep.mubr.f32.mxu0 0.0
      %1669 = vmatmul.mubr.f32.gmra.mrb[0].mxu0 %v1450
      %v1670 = vpop.f32.mrb[0].mxu0
      %v1671 = vadd.f32 0.0, %v1670
      %v1672 = vpop.f32.mrb[0].mxu0
      %1673 = vmatprep.mubr.f32.mxu0 0.0
      %1674 = vmatmul.mubr.f32.gmra.mrb[0].mxu0 %v1453
      %v1675 = vpop.f32.mrb[0].mxu0
      %v1676 = vadd.f32 0.0, %v1675
      %v1677 = vpop.f32.mrb[0].mxu0
      %1678 = vmatprep.mubr.f32.mxu0 0.0
      %1679 = vmatmul.mubr.f32.gmra.mrb[0].mxu0 %v1456
      %v1680 = vpop.f32.mrb[0].mxu0
      %v1681 = vadd.f32 0.0, %v1680
      %v1682 = vpop.f32.mrb[0].mxu0
      %1683 = vmatprep.mubr.f32.mxu0 0.0
      %1684 = vmatmul.mubr.f32.gmra.mrb[0].mxu0 %v1459
      %v1685 = vpop.f32.mrb[0].mxu0
      %v1686 = vadd.f32 0.0, %v1685
      %v1687 = vpop.f32.mrb[0].mxu0
      %1688 = vmatprep.mubr.f32.mxu0 0.0
      %1689 = vmatmul.mubr.f32.gmra.mrb[0].mxu0 %v1462
      %v1690 = vpop.f32.mrb[0].mxu0
      %v1691 = vadd.f32 0.0, %v1690
      %v1692 = vpop.f32.mrb[0].mxu0
      %1693 = vmatprep.mubr.f32.mxu0 0.0
      %1694 = vmatmul.mubr.f32.gmra.mrb[0].mxu0 %v1465
      %v1695 = vpop.f32.mrb[0].mxu0
      %v1696 = vadd.f32 0.0, %v1695
      %v1697 = vpop.f32.mrb[0].mxu0
      %1698 = vmatprep.mubr.f32.mxu0 0.0
      %1699 = vmatmul.mubr.f32.gmra.mrb[0].mxu0 %v1468
      %v1700 = vpop.f32.mrb[0].mxu0
      %v1701 = vadd.f32 0.0, %v1700
      %v1702 = vpop.f32.mrb[0].mxu0
      %1703 = vmatprep.mubr.f32.mxu0 0.0
      %1704 = vmatmul.mubr.f32.gmra.mrb[0].mxu0 %v1471
      %v1705 = vpop.f32.mrb[0].mxu0
      %v1706 = vadd.f32 0.0, %v1705
      %v1707 = vpop.f32.mrb[0].mxu0
      %1708 = vmatprep.mubr.f32.mxu0 0.0
      %1709 = vmatmul.mubr.f32.gmra.mrb[0].mxu0 %v1474
      %v1710 = vpop.f32.mrb[0].mxu0
      %v1711 = vadd.f32 0.0, %v1710
      %v1712 = vpop.f32.mrb[0].mxu0
      %1713 = vdwg.mxu0
      %v1714 = vadd.f32 %v1303, %v1546
      %v1715 = vadd.f32 %v1304, %v1551
      %v1716 = vadd.f32 %v1305, %v1556
      %v1717 = vadd.f32 %v1306, %v1561
      %v1718 = vadd.f32 %v1307, %v1566
      %v1719 = vadd.f32 %v1308, %v1571
      %v1720 = vadd.f32 %v1309, %v1576
      %v1721 = vadd.f32 %v1310, %v1581
      %v1722 = vadd.f32 %v1311, %v1586
      %v1723 = vadd.f32 %v1312, %v1591
      %v1724 = vadd.f32 %v1313, %v1596
      %v1725 = vadd.f32 %v1314, %v1601
      %v1726 = vadd.f32 %v1315, %v1606
      %v1727 = vadd.f32 %v1316, %v1611
      %v1728 = vadd.f32 %v1317, %v1616
      %v1729 = vadd.f32 %v1318, %v1621
      %v1730 = vadd.f32 %v1319, %v1626
      %v1731 = vadd.f32 %v1320, %v1631
      %v1732 = vadd.f32 %v1321, %v1636
      %v1733 = vadd.f32 %v1322, %v1641
      %v1734 = vadd.f32 %v1323, %v1646
      %v1735 = vadd.f32 %v1324, %v1651
      %v1736 = vadd.f32 %v1325, %v1656
      %v1737 = vadd.f32 %v1326, %v1661
      %v1738 = vadd.f32 %v1327, %v1666
      %v1739 = vadd.f32 %v1328, %v1671
      %v1740 = vadd.f32 %v1329, %v1676
      %v1741 = vadd.f32 %v1330, %v1681
      %v1742 = vadd.f32 %v1331, %v1686
      %v1743 = vadd.f32 %v1332, %v1691
      %v1744 = vadd.f32 %v1333, %v1696
      %v1745 = vadd.f32 %v1334, %v1701
      %v1746 = vadd.f32 %v1335, %v1706
      %v1747 = vadd.f32 %v1336, %v1711
      %v1748 = vld [vmem:[%s2] sm:$0x1]
      %v1750 = vlaneseq
      %v1751 = vshrl.u32 %v1750, 7
      %v1752 = vsub.s32 0, %v1751
      %v1753 = vrot.slane %v1748, %v1752
      %v1755 = vadd.f32 %v1714, %v1753
      %v1756 = vadd.f32 %v1715, %v1753
      %v1757 = vadd.f32 %v1716, %v1753
      %v1758 = vadd.f32 %v1717, %v1753
      %v1759 = vadd.f32 %v1718, %v1753
      %v1760 = vadd.f32 %v1719, %v1753
      %v1761 = vadd.f32 %v1720, %v1753
      %v1762 = vadd.f32 %v1721, %v1753
      %v1763 = vadd.f32 %v1722, %v1753
      %v1764 = vadd.f32 %v1723, %v1753
      %v1765 = vadd.f32 %v1724, %v1753
      %v1766 = vadd.f32 %v1725, %v1753
      %v1767 = vadd.f32 %v1726, %v1753
      %v1768 = vadd.f32 %v1727, %v1753
      %v1769 = vadd.f32 %v1728, %v1753
      %v1770 = vadd.f32 %v1729, %v1753
      %v1771 = vadd.f32 %v1730, %v1753
      %v1772 = vadd.f32 %v1731, %v1753
      %v1773 = vadd.f32 %v1732, %v1753
      %v1774 = vadd.f32 %v1733, %v1753
      %v1775 = vadd.f32 %v1734, %v1753
      %v1776 = vadd.f32 %v1735, %v1753
      %v1777 = vadd.f32 %v1736, %v1753
      %v1778 = vadd.f32 %v1737, %v1753
      %v1779 = vadd.f32 %v1738, %v1753
      %v1780 = vadd.f32 %v1739, %v1753
      %v1781 = vadd.f32 %v1740, %v1753
      %v1782 = vadd.f32 %v1741, %v1753
      %v1783 = vadd.f32 %v1742, %v1753
      %v1784 = vadd.f32 %v1743, %v1753
      %v1785 = vadd.f32 %v1744, %v1753
      %v1786 = vadd.f32 %v1745, %v1753
      %v1787 = vadd.f32 %v1746, %v1753
      %v1788 = vadd.f32 %v1747, %v1753
      %vm1789 = vcmp.gt.f32.partialorder %v1755, 0.0
      %vm1790 = vcmp.gt.f32.partialorder %v1756, 0.0
      %vm1791 = vcmp.gt.f32.partialorder %v1757, 0.0
      %vm1792 = vcmp.gt.f32.partialorder %v1758, 0.0
      %vm1793 = vcmp.gt.f32.partialorder %v1759, 0.0
      %vm1794 = vcmp.gt.f32.partialorder %v1760, 0.0
      %vm1795 = vcmp.gt.f32.partialorder %v1761, 0.0
      %vm1796 = vcmp.gt.f32.partialorder %v1762, 0.0
      %vm1797 = vcmp.gt.f32.partialorder %v1763, 0.0
      %vm1798 = vcmp.gt.f32.partialorder %v1764, 0.0
      %vm1799 = vcmp.gt.f32.partialorder %v1765, 0.0
      %vm1800 = vcmp.gt.f32.partialorder %v1766, 0.0
      %vm1801 = vcmp.gt.f32.partialorder %v1767, 0.0
      %vm1802 = vcmp.gt.f32.partialorder %v1768, 0.0
      %vm1803 = vcmp.gt.f32.partialorder %v1769, 0.0
      %vm1804 = vcmp.gt.f32.partialorder %v1770, 0.0
      %vm1805 = vcmp.gt.f32.partialorder %v1771, 0.0
      %vm1806 = vcmp.gt.f32.partialorder %v1772, 0.0
      %vm1807 = vcmp.gt.f32.partialorder %v1773, 0.0
      %vm1808 = vcmp.gt.f32.partialorder %v1774, 0.0
      %vm1809 = vcmp.gt.f32.partialorder %v1775, 0.0
      %vm1810 = vcmp.gt.f32.partialorder %v1776, 0.0
      %vm1811 = vcmp.gt.f32.partialorder %v1777, 0.0
      %vm1812 = vcmp.gt.f32.partialorder %v1778, 0.0
      %vm1813 = vcmp.gt.f32.partialorder %v1779, 0.0
      %vm1814 = vcmp.gt.f32.partialorder %v1780, 0.0
      %vm1815 = vcmp.gt.f32.partialorder %v1781, 0.0
      %vm1816 = vcmp.gt.f32.partialorder %v1782, 0.0
      %vm1817 = vcmp.gt.f32.partialorder %v1783, 0.0
      %vm1818 = vcmp.gt.f32.partialorder %v1784, 0.0
      %vm1819 = vcmp.gt.f32.partialorder %v1785, 0.0
      %vm1820 = vcmp.gt.f32.partialorder %v1786, 0.0
      %vm1821 = vcmp.gt.f32.partialorder %v1787, 0.0
      %vm1822 = vcmp.gt.f32.partialorder %v1788, 0.0
      %v1823 = vmul.f32 %v1755, 0.2
      %v1824 = vmul.f32 %v1756, 0.2
      %v1825 = vmul.f32 %v1757, 0.2
      %v1826 = vmul.f32 %v1758, 0.2
      %v1827 = vmul.f32 %v1759, 0.2
      %v1828 = vmul.f32 %v1760, 0.2
      %v1829 = vmul.f32 %v1761, 0.2
      %v1830 = vmul.f32 %v1762, 0.2
      %v1831 = vmul.f32 %v1763, 0.2
      %v1832 = vmul.f32 %v1764, 0.2
      %v1833 = vmul.f32 %v1765, 0.2
      %v1834 = vmul.f32 %v1766, 0.2
      %v1835 = vmul.f32 %v1767, 0.2
      %v1836 = vmul.f32 %v1768, 0.2
      %v1837 = vmul.f32 %v1769, 0.2
      %v1838 = vmul.f32 %v1770, 0.2
      %v1839 = vmul.f32 %v1771, 0.2
      %v1840 = vmul.f32 %v1772, 0.2
      %v1841 = vmul.f32 %v1773, 0.2
      %v1842 = vmul.f32 %v1774, 0.2
      %v1843 = vmul.f32 %v1775, 0.2
      %v1844 = vmul.f32 %v1776, 0.2
      %v1845 = vmul.f32 %v1777, 0.2
      %v1846 = vmul.f32 %v1778, 0.2
      %v1847 = vmul.f32 %v1779, 0.2
      %v1848 = vmul.f32 %v1780, 0.2
      %v1849 = vmul.f32 %v1781, 0.2
      %v1850 = vmul.f32 %v1782, 0.2
      %v1851 = vmul.f32 %v1783, 0.2
      %v1852 = vmul.f32 %v1784, 0.2
      %v1853 = vmul.f32 %v1785, 0.2
      %v1854 = vmul.f32 %v1786, 0.2
      %v1855 = vmul.f32 %v1787, 0.2
      %v1856 = vmul.f32 %v1788, 0.2
      %v1857 = vsel %vm1789, %v1755, %v1823
      %v1858 = vsel %vm1790, %v1756, %v1824
      %v1859 = vsel %vm1791, %v1757, %v1825
      %v1860 = vsel %vm1792, %v1758, %v1826
      %v1861 = vsel %vm1793, %v1759, %v1827
      %v1862 = vsel %vm1794, %v1760, %v1828
      %v1863 = vsel %vm1795, %v1761, %v1829
      %v1864 = vsel %vm1796, %v1762, %v1830
      %v1865 = vsel %vm1797, %v1763, %v1831
      %v1866 = vsel %vm1798, %v1764, %v1832
      %v1867 = vsel %vm1799, %v1765, %v1833
      %v1868 = vsel %vm1800, %v1766, %v1834
      %v1869 = vsel %vm1801, %v1767, %v1835
      %v1870 = vsel %vm1802, %v1768, %v1836
      %v1871 = vsel %vm1803, %v1769, %v1837
      %v1872 = vsel %vm1804, %v1770, %v1838
      %v1873 = vsel %vm1805, %v1771, %v1839
      %v1874 = vsel %vm1806, %v1772, %v1840
      %v1875 = vsel %vm1807, %v1773, %v1841
      %v1876 = vsel %vm1808, %v1774, %v1842
      %v1877 = vsel %vm1809, %v1775, %v1843
      %v1878 = vsel %vm1810, %v1776, %v1844
      %v1879 = vsel %vm1811, %v1777, %v1845
      %v1880 = vsel %vm1812, %v1778, %v1846
      %v1881 = vsel %vm1813, %v1779, %v1847
      %v1882 = vsel %vm1814, %v1780, %v1848
      %v1883 = vsel %vm1815, %v1781, %v1849
      %v1884 = vsel %vm1816, %v1782, %v1850
      %v1885 = vsel %vm1817, %v1783, %v1851
      %v1886 = vsel %vm1818, %v1784, %v1852
      %v1887 = vsel %vm1819, %v1785, %v1853
      %v1888 = vsel %vm1820, %v1786, %v1854
      %v1889 = vsel %vm1821, %v1787, %v1855
      %v1890 = vsel %vm1822, %v1788, %v1856
      %vm1891 = vcmask 64512
      %1892 = vst.msk [vmem:[%s170] sm:$0xff] %vm1891, %v1857
      %1893 = vst.msk [vmem:[%s170 + $0x8] sm:$0xff] %vm1891, %v1858
      %1894 = vst.msk [vmem:[%s170 + $0x10] sm:$0xff] %vm1891, %v1859
      %1895 = vst.msk [vmem:[%s170 + $0x18] sm:$0xff] %vm1891, %v1860
      %1896 = vst.msk [vmem:[%s170 + $0x20] sm:$0xff] %vm1891, %v1861
      %1897 = vst.msk [vmem:[%s170 + $0x28] sm:$0xff] %vm1891, %v1862
      %1898 = vst.msk [vmem:[%s170 + $0x30] sm:$0xff] %vm1891, %v1863
      %1899 = vst.msk [vmem:[%s170 + $0x38] sm:$0xff] %vm1891, %v1864
      %1900 = vst.msk [vmem:[%s170 + $0x40] sm:$0xff] %vm1891, %v1865
      %1901 = vst.msk [vmem:[%s170 + $0x48] sm:$0xff] %vm1891, %v1866
      %1902 = vst.msk [vmem:[%s170 + $0x50] sm:$0xff] %vm1891, %v1867
      %1903 = vst.msk [vmem:[%s170 + $0x58] sm:$0xff] %vm1891, %v1868
      %1904 = vst.msk [vmem:[%s170 + $0x60] sm:$0xff] %vm1891, %v1869
      %1905 = vst.msk [vmem:[%s170 + $0x68] sm:$0xff] %vm1891, %v1870
      %1906 = vst.msk [vmem:[%s170 + $0x70] sm:$0xff] %vm1891, %v1871
      %1907 = vst.msk [vmem:[%s170 + $0x78] sm:$0xff] %vm1891, %v1872
      %1908 = vst.msk [vmem:[%s170 + $0x80] sm:$0xff] %vm1891, %v1873
      %1909 = vst.msk [vmem:[%s170 + $0x88] sm:$0xff] %vm1891, %v1874
      %1910 = vst.msk [vmem:[%s170 + $0x90] sm:$0xff] %vm1891, %v1875
      %1911 = vst.msk [vmem:[%s170 + $0x98] sm:$0xff] %vm1891, %v1876
      %1912 = vst.msk [vmem:[%s170 + $0xa0] sm:$0xff] %vm1891, %v1877
      %1913 = vst.msk [vmem:[%s170 + $0xa8] sm:$0xff] %vm1891, %v1878
      %1914 = vst.msk [vmem:[%s170 + $0xb0] sm:$0xff] %vm1891, %v1879
      %1915 = vst.msk [vmem:[%s170 + $0xb8] sm:$0xff] %vm1891, %v1880
      %1916 = vst.msk [vmem:[%s170 + $0xc0] sm:$0xff] %vm1891, %v1881
      %1917 = vst.msk [vmem:[%s170 + $0xc8] sm:$0xff] %vm1891, %v1882
      %1918 = vst.msk [vmem:[%s170 + $0xd0] sm:$0xff] %vm1891, %v1883
      %1919 = vst.msk [vmem:[%s170 + $0xd8] sm:$0xff] %vm1891, %v1884
      %1920 = vst.msk [vmem:[%s170 + $0xe0] sm:$0xff] %vm1891, %v1885
      %1921 = vst.msk [vmem:[%s170 + $0xe8] sm:$0xff] %vm1891, %v1886
      %1922 = vst.msk [vmem:[%s170 + $0xf0] sm:$0xff] %vm1891, %v1887
      %1923 = vst.msk [vmem:[%s170 + $0xf8] sm:$0xff] %vm1891, %v1888
      %1924 = vst.msk [vmem:[%s170 + $0x100] sm:$0xff] %vm1891, %v1889
      %vm1925 = vcmask 63488
      %1926 = vst.msk [vmem:[%s170 + $0x108] sm:$0x7f] %vm1925, %v1890
      %p1927 = scmp.lt.s32.totalorder %s14, 1
      %s1928 = scalar_select %p1927, %s14, 1
      %s1929 = smul.addr %s1928, 34
      %s1930 = smul.addr %s1929, 8
      %s1931 = scalar_lea.vmem %s3, %s1930
      // Predicated region
      $region33: #{patch_discriminator_forward.5} parent=31 // pred_check
        %p1932 = pneg %p100
      $region34: #{patch_discriminator_forward.5} parent=31 // pred_check_branch
        %1934 = sbr.rel (%p1932) target = $region36
      $region35: #{patch_discriminator_forward.5} parent=31 // pred_region
        _
      $region36: #{patch_discriminator_forward.5} parent=31 // pred_fallthru
        _
    $region32: #{patch_discriminator_forward.5} parent=5 // pred_fallthru
      _
    %p1935 = scmp.le.s32.totalorder 2, %s9
    // Predicated region
    $region37: #{patch_discriminator_forward.5} parent=5 // pred_check
      %p1936 = pneg %p1935
    $region38: #{patch_discriminator_forward.5} parent=5 // pred_check_branch
      %1938 = sbr.rel (%p1936) target = $region40
    $region39: #{patch_discriminator_forward.5} parent=5 // pred_region
      %s1939 = ssub.s32 %s9, 2
      // Predicated region
      $region41: #{patch_discriminator_forward.5} parent=39 // pred_check
        %p1940 = pneg %p106
      $region42: #{patch_discriminator_forward.5} parent=39 // pred_check_branch
        %1942 = sbr.rel (%p1940) target = $region44
      $region43: #{patch_discriminator_forward.5} parent=39 // pred_region
        %p1943 = scmp.lt.s32.totalorder %s15, 1
        %s1944 = scalar_select %p1943, %s15, 1
        %s1945 = smul.addr %s1944, 34
        %s1946 = smul.addr %s1945, 8
        %s1947 = scalar_lea.vmem %s3, %s1946
      $region44: #{patch_discriminator_forward.5} parent=39 // pred_fallthru
        _
    $region40: #{patch_discriminator_forward.5} parent=5 // pred_fallthru
      _
  $region6: #{patch_discriminator_forward.5} parent=0 // loop_footer
    %s13 = sadd.s32 1, %s9
  $region7: #{patch_discriminator_forward.5} parent=0 // loop_footer_branch
    %8 = sbr.rel target = $region3
  $region8: #{patch_discriminator_forward.5} parent=0 // loop_exit
    _

// kernel: tile.13
$region0: #{tile.13}
  #allocation0 [shape = 's32[1]{0}', space=sflag, size = 0x4, scoped, tag = 'scoped memory for tile.13']
  %s0 = inlined_call_operand.vmem [shape: f32[16], index: 0, kind: input, shape index: {}]
  %s1 = inlined_call_operand.vmem [shape: f32[4,16], index: 1, kind: output, shape index: {}]
  // Predicated region
  $region2: #{tile.13} parent=0 // pred_check
    _
  $region3: #{tile.13} parent=0 // pred_check_branch
    %3 = sbr.rel (0) target = $region5
  $region4: #{tile.13} parent=0 // pred_region
    _
  $region5: #{tile.13} parent=0 // pred_fallthru
    _
  %v4 = vld [vmem:[%s0] ss:$0 sm:$0xff]
  %5 = vst [vmem:[%s1] sm:$0xf] %v4

// kernel: tile.18
$region0: #{tile.18}
  %s0 = inlined_call_operand.vmem [shape: f32[4,16], index: 0, kind: input, shape index: {}]
  %s1 = inlined_call_operand.vmem [shape: f32[1,64], index: 1, kind: output, shape index: {}]
  $region1: #{tile.18} parent=0
    #allocation0 [shape = 'u8[4096]{0}', space=vmem, size = 0x1000, scoped, tag = 'scoped mem for output reshape']
    #allocation1 [shape = 'u8[4096]{0}', space=vmem, size = 0x1000, scoped, tag = 'scoped mem for input reshape']
    %s3 = sshllo.u32 0, 4
    %v4 = vld [vmem:[%s0] sm:%s3]
    %5 = vst [vmem:[#allocation1] sm:%s3] %v4
    %v6 = vld [vmem:[#allocation1] sm:$0x1]
    %vm7 = vcmask 130048
    %8 = vst.msk [vmem:[#allocation0] sm:$0x1] %vm7, %v6
    %s9 = scalar_lea.vmem [#allocation1], 3
    %v10 = vld [vmem:[%s9] sm:$0x1]
    %11 = vrot.lane.b32.xlu0 %v10, 48
    %v12 = vpop.permute.xlu0 %11
    %vm13 = vcmask 523648
    %14 = vst.msk [vmem:[#allocation0] sm:$0x1] %vm13, %v12
    %s15 = scalar_lea.vmem [#allocation1], 2
    %v16 = vld [vmem:[%s15] sm:$0x1]
    %17 = vrot.lane.b32.xlu0 %v16, 32
    %v18 = vpop.permute.xlu0 %17
    %vm19 = vcmask 392448
    %20 = vst.msk [vmem:[#allocation0] sm:$0x1] %vm19, %v18
    %s21 = scalar_lea.vmem [#allocation1], 1
    %v22 = vld [vmem:[%s21] sm:$0x1]
    %23 = vrot.lane.b32.xlu0 %v22, 16
    %v24 = vpop.permute.xlu0 %23
    %vm25 = vcmask 261248
    %26 = vst.msk [vmem:[#allocation0] sm:$0x1] %vm25, %v24
    %s28 = sshllo.u32 0, 1
    %v30 = vld [vmem:[#allocation0] sm:%s28]
    %s31 = sshllo.u32 0, 1
    %32 = vst [vmem:[%s1] sm:%s31] %v30

// kernel: patch_discriminator_forward.6
$region0: #{patch_discriminator_forward.6}
  #allocation0 [shape = 'u32[]', space=smem, size = 0x4, offset = 0x4, fixed_abs, tag = 'smem constant byte address 0x4 - core index']
  #allocation1 [shape = 'u32[144,128]{1,0:T(1,128)}', space=vmem, size = 0x12000, scoped, tag = 'internal scratch']
  %s0 = inlined_call_operand.vmem [shape: f32[2,81,32], index: 0, kind: input, shape index: {}]
  %s1 = inlined_call_operand.vmem [shape: f32[2,2,32,16], index: 1, kind: input, shape index: {}]
  %s2 = inlined_call_operand.vmem [shape: f32[2,71,16], index: 2, kind: output, shape index: {0}]
  %s3 = inlined_call_operand.vmem [shape: f32[2,2,16], index: 3, kind: output, shape index: {1}]
  %4 = xla_tuple %s2, %s3
  %s5 = sld [smem:[#allocation0]]
  $region49: #{patch_discriminator_forward.6} parent=0
    _
  %s7 = ssub.s32 1, %s5
  %s8 = scalar_select 0, %s7, %s5
  loop: start=0, step=1, limit=4
  $region2: #{patch_discriminator_forward.6} parent=0 // loop_pre_header
    _
  $region3: #{patch_discriminator_forward.6} parent=0 // loop_header
    %s10 = sphi 0, %s14
    %p11 = scmp.ge.s32.totalorder %s10, 4
    %s20 = sphi 0, %s22
    %s23 = sphi 0, %s20
    %s24 = sphi 0, %s23
    %s40 = sphi 0, %s24
    %s44 = sphi 0, %s44
    %s46 = sphi 0, %s44
    %s47 = sphi 0, %s46
    %s61 = sphi 0, %s47
    %s67 = sphi 0, %s69
    %s70 = sphi 0, %s67
    %s71 = sphi 0, %s70
    %s87 = sphi 0, %s71
    %s93 = sphi 0, %s95
    %s96 = sphi 0, %s93
    %s97 = sphi 0, %s96
    %s113 = sphi 0, %s97
  $region4: #{patch_discriminator_forward.6} parent=0 // loop_header_branch
    %13 = sbr.rel (%p11) target = $region8
  $region5: #{patch_discriminator_forward.6} parent=0 // loop_body
    %s15 = ssub.s32 %s10, 1
    %s16 = ssub.s32 %s10, 2
    %s17 = sadd.s32 %s10, 1
    %s18 = ssub.s32 %s10, %s17
    %p19 = scmp.eq.s32.totalorder %s18, 0
    %s21 = sadd.s32 %s20, 1
    %s22 = scalar_select %p19, %s20, %s21
    %p25 = pneg %p19
    %p26 = scmp.eq.s32.totalorder %s10, 1
    %p27 = por %p25, %p26
    %p28 = scmp.ne.s32.totalorder %s20, %s23
    %p29 = scmp.eq.s32.totalorder %s10, 0
    %p30 = por %p28, %p29
    %p31 = scmp.ne.s32.totalorder %s20, %s23
    %p32 = scmp.eq.s32.totalorder %s15, 1
    %p33 = por %p31, %p32
    %p34 = scmp.ne.s32.totalorder %s23, %s24
    %p35 = scmp.eq.s32.totalorder %s15, 0
    %p36 = por %p34, %p35
    %p37 = scmp.ne.s32.totalorder %s23, %s24
    %p38 = scmp.eq.s32.totalorder %s16, 1
    %p39 = por %p37, %p38
    %p41 = scmp.ne.s32.totalorder %s24, %s40
    %p42 = scmp.eq.s32.totalorder %s16, 0
    %p43 = por %p41, %p42
    %s45 = sadd.s32 %s44, 1
    %p48 = scmp.eq.s32.totalorder %s10, 1
    %p49 = scmp.ne.s32.totalorder %s44, %s46
    %p50 = scmp.eq.s32.totalorder %s10, 0
    %p51 = por %p49, %p50
    %p52 = scmp.ne.s32.totalorder %s44, %s46
    %p53 = scmp.eq.s32.totalorder %s15, 1
    %p54 = por %p52, %p53
    %p55 = scmp.ne.s32.totalorder %s46, %s47
    %p56 = scmp.eq.s32.totalorder %s15, 0
    %p57 = por %p55, %p56
    %p58 = scmp.ne.s32.totalorder %s46, %s47
    %p59 = scmp.eq.s32.totalorder %s16, 1
    %p60 = por %p58, %p59
    %p62 = scmp.ne.s32.totalorder %s47, %s61
    %p63 = scmp.eq.s32.totalorder %s16, 0
    %p64 = por %p62, %p63
    %s65 = ssub.s32 %s10, %s17
    %p66 = scmp.eq.s32.totalorder %s65, 0
    %s68 = sadd.s32 %s67, 1
    %s69 = scalar_select %p66, %s67, %s68
    %p72 = pneg %p66
    %p73 = scmp.eq.s32.totalorder %s10, 1
    %p74 = por %p72, %p73
    %p75 = scmp.ne.s32.totalorder %s67, %s70
    %p76 = scmp.eq.s32.totalorder %s10, 0
    %p77 = por %p75, %p76
    %p78 = scmp.ne.s32.totalorder %s67, %s70
    %p79 = scmp.eq.s32.totalorder %s15, 1
    %p80 = por %p78, %p79
    %p81 = scmp.ne.s32.totalorder %s70, %s71
    %p82 = scmp.eq.s32.totalorder %s15, 0
    %p83 = por %p81, %p82
    %p84 = scmp.ne.s32.totalorder %s70, %s71
    %p85 = scmp.eq.s32.totalorder %s16, 1
    %p86 = por %p84, %p85
    %p88 = scmp.ne.s32.totalorder %s71, %s87
    %p89 = scmp.eq.s32.totalorder %s16, 0
    %p90 = por %p88, %p89
    %s91 = ssub.s32 %s10, %s17
    %p92 = scmp.eq.s32.totalorder %s91, 0
    %s94 = sadd.s32 %s93, 1
    %s95 = scalar_select %p92, %s93, %s94
    %p98 = pneg %p92
    %p99 = scmp.eq.s32.totalorder %s10, 1
    %p100 = por %p98, %p99
    %p101 = scmp.ne.s32.totalorder %s93, %s96
    %p102 = scmp.eq.s32.totalorder %s10, 0
    %p103 = por %p101, %p102
    %p104 = scmp.ne.s32.totalorder %s93, %s96
    %p105 = scmp.eq.s32.totalorder %s15, 1
    %p106 = por %p104, %p105
    %p107 = scmp.ne.s32.totalorder %s96, %s97
    %p108 = scmp.eq.s32.totalorder %s15, 0
    %p109 = por %p107, %p108
    %p110 = scmp.ne.s32.totalorder %s96, %s97
    %p111 = scmp.eq.s32.totalorder %s16, 1
    %p112 = por %p110, %p111
    %p114 = scmp.ne.s32.totalorder %s97, %s113
    %p115 = scmp.eq.s32.totalorder %s16, 0
    %p116 = por %p114, %p115
    %p117 = scmp.le.s32.totalorder 1, %s10
    %p118 = scmp.lt.s32.totalorder %s10, 3
    %p119 = pnand %p117, %p118
    %p120 = pneg %p119
    // Predicated region
    $region9: #{patch_discriminator_forward.6} parent=5 // pred_check
      _
    $region10: #{patch_discriminator_forward.6} parent=5 // pred_check_branch
      %122 = sbr.rel (%p119) target = $region12
    $region11: #{patch_discriminator_forward.6} parent=5 // pred_region
      %s123 = ssub.s32 %s10, 1
      // Predicated region
      $region13: #{patch_discriminator_forward.6} parent=11 // pred_check
        %p124 = pneg %p57
      $region14: #{patch_discriminator_forward.6} parent=11 // pred_check_branch
        %126 = sbr.rel (%p124) target = $region16
      $region15: #{patch_discriminator_forward.6} parent=11 // pred_region
        _
      $region16: #{patch_discriminator_forward.6} parent=11 // pred_fallthru
        _
    $region12: #{patch_discriminator_forward.6} parent=5 // pred_fallthru
      _
    %p127 = scmp.lt.s32.totalorder %s10, 2
    // Predicated region
    $region17: #{patch_discriminator_forward.6} parent=5 // pred_check
      %p128 = pneg %p127
    $region18: #{patch_discriminator_forward.6} parent=5 // pred_check_branch
      %130 = sbr.rel (%p128) target = $region20
    $region19: #{patch_discriminator_forward.6} parent=5 // pred_region
      // Predicated region
      $region21: #{patch_discriminator_forward.6} parent=19 // pred_check
        %p131 = pneg %p30
      $region22: #{patch_discriminator_forward.6} parent=19 // pred_check_branch
        %133 = sbr.rel (%p131) target = $region24
      $region23: #{patch_discriminator_forward.6} parent=19 // pred_region
        %p134 = scmp.lt.s32.totalorder %s10, 1
        %s135 = scalar_select %p134, %s10, 1
        %s136 = smul.addr %s135, 11
        %s137 = smul.addr %s136, 8
        %s138 = scalar_lea.vmem %s0, %s137
      $region24: #{patch_discriminator_forward.6} parent=19 // pred_fallthru
        _
    $region20: #{patch_discriminator_forward.6} parent=5 // pred_fallthru
      _
    %p139 = scmp.le.s32.totalorder 1, %s10
    %p140 = scmp.lt.s32.totalorder %s10, 3
    %p141 = pnand %p139, %p140
    %p142 = pneg %p141
    // Predicated region
    $region25: #{patch_discriminator_forward.6} parent=5 // pred_check
      _
    $region26: #{patch_discriminator_forward.6} parent=5 // pred_check_branch
      %144 = sbr.rel (%p141) target = $region28
    $region27: #{patch_discriminator_forward.6} parent=5 // pred_region
      %s145 = ssub.s32 %s10, 1
      %p146 = scmp.lt.s32.totalorder %s15, 1
      %s147 = scalar_select %p146, %s15, 1
      %s148 = smul.addr %s147, 11
      %s149 = smul.addr %s148, 8
      %s150 = scalar_lea.vmem %s0, %s149
      %p151 = pneg %p36
      %p152 = pneg %p33
      %p153 = pneg %p57
      %p154 = pneg %p54
      %p155 = pneg %p83
      %p156 = pneg %p80
      %p157 = scmp.lt.s32.totalorder %s15, 1
      %s158 = scalar_select %p157, %s15, 1
      %s159 = smul.addr %s158, 9
      %s160 = smul.addr %s159, 8
      %s161 = scalar_lea.vmem %s2, %s160
      %p162 = pneg %p109
      %p163 = pneg %p106
      %p164 = scmp.lt.s32.totalorder %s15, 1
      %s165 = scalar_select %p164, %s15, 1
      %s166 = smul.addr %s165, 2
      %s167 = scalar_lea.vmem %s3, %s166
      %p168 = scmp.lt.s32.totalorder %s15, 1
      %s169 = scalar_select %p168, %s15, 1
      %s170 = smul.addr %s169, 11
      %s171 = smul.addr %s170, 8
      %s172 = scalar_lea.vmem %s0, %s171
      %p173 = scmp.lt.s32.totalorder %s15, 1
      %s174 = scalar_select %p173, %s15, 1
      %s175 = smul.addr %s174, 9
      %s176 = smul.addr %s175, 8
      %s177 = scalar_lea.vmem %s2, %s176
      %p178 = scmp.lt.s32.totalorder %s15, 1
      %s179 = scalar_select %p178, %s15, 1
      %s180 = smul.addr %s179, 2
      %s181 = scalar_lea.vmem %s3, %s180
      %v182 = vld [vmem:[%s172] sm:$0xff]
      %v183 = vld [vmem:[%s172 + $0x8] sm:$0xff]
      %v184 = vld [vmem:[%s172 + $0x10] sm:$0xff]
      %v185 = vld [vmem:[%s172 + $0x18] sm:$0xff]
      %v186 = vld [vmem:[%s172 + $0x20] sm:$0xff]
      %v187 = vld [vmem:[%s172 + $0x28] sm:$0xff]
      %v188 = vld [vmem:[%s172 + $0x30] sm:$0xff]
      %v189 = vld [vmem:[%s172 + $0x38] sm:$0xff]
      %v190 = vld [vmem:[%s172 + $0x40] sm:$0x7f]
      %v191 = vld [vmem:[%s1] sm:$0xff]
      %v192 = vld [vmem:[%s1 + $0x8] sm:$0xff]
      %v193 = vld [vmem:[%s1 + $0x10] sm:$0xff]
      %v194 = vld [vmem:[%s1 + $0x18] sm:$0xff]
      %v195 = vld [vmem:[%s172 + $0x1] sm:$0xff]
      %v196 = vld [vmem:[%s172 + $0x9] sm:$0xff]
      %v197 = vld [vmem:[%s172 + $0x11] sm:$0xff]
      %v198 = vld [vmem:[%s172 + $0x19] sm:$0xff]
      %v199 = vld [vmem:[%s172 + $0x21] sm:$0xff]
      %v200 = vld [vmem:[%s172 + $0x29] sm:$0xff]
      %v201 = vld [vmem:[%s172 + $0x31] sm:$0xff]
      %v202 = vld [vmem:[%s172 + $0x39] sm:$0xff]
      %v203 = vld [vmem:[%s172 + $0x41] sm:$0x7f]
      %s204 = scalar_lea.vmem %s1, 32
      %v205 = vld [vmem:[%s204] sm:$0xff]
      %v206 = vld [vmem:[%s204 + $0x8] sm:$0xff]
      %v207 = vld [vmem:[%s204 + $0x10] sm:$0xff]
      %v208 = vld [vmem:[%s204 + $0x18] sm:$0xff]
      %vm209 = vcmask 261120
      %v211 = vsel %vm209, %v195, 0
      %v214 = vsel %vm209, %v196, 0
      %v217 = vsel %vm209, %v197, 0
      %v220 = vsel %vm209, %v198, 0
      %v223 = vsel %vm209, %v199, 0
      %v226 = vsel %vm209, %v200, 0
      %v229 = vsel %vm209, %v201, 0
      %v232 = vsel %vm209, %v202, 0
      %v235 = vsel %vm209, %v203, 0
      %237 = vmatprep.subr.mxu0 0.0
      %238 = vmatpush1.msra.mxu0 %v205
      %239 = vmatprep.subr.mxu0 0.0
      %240 = vmatpush1.msra.mxu0 %v206
      %241 = vmatprep.subr.mxu0 0.0
      %242 = vmatpush1.msra.mxu0 %v207
      %243 = vmatprep.subr.mxu0 0.0
      %244 = vmatpush1.msra.mxu0 %v208
      %245 = vmatprep.subr.mxu0 0.0
      %246 = vmatpush1.msra.mxu0 0.0
      %247 = vmatprep.subr.mxu0 0.0
      %248 = vmatpush1.msra.mxu0 0.0
      %249 = vmatprep.subr.mxu0 0.0
      %250 = vmatpush1.msra.mxu0 0.0
      %251 = vmatprep.subr.mxu0 0.0
      %252 = vmatpush1.msra.mxu0 0.0
      %253 = vmatprep.subr.mxu0 0.0
      %254 = vmatpush1.msra.mxu0 0.0
      %255 = vmatprep.subr.mxu0 0.0
      %256 = vmatpush1.msra.mxu0 0.0
      %257 = vmatprep.subr.mxu0 0.0
      %258 = vmatpush1.msra.mxu0 0.0
      %259 = vmatprep.subr.mxu0 0.0
      %260 = vmatpush1.msra.mxu0 0.0
      %261 = vmatprep.subr.mxu0 0.0
      %262 = vmatpush1.msra.mxu0 0.0
      %263 = vmatprep.subr.mxu0 0.0
      %264 = vmatpush1.msra.mxu0 0.0
      %265 = vmatprep.subr.mxu0 0.0
      %266 = vmatpush1.msra.mxu0 0.0
      %267 = vmatprep.subr.mxu0 0.0
      %268 = vmatpush1.msra.mxu0 0.0
      %269 = vmatprep.subr.mxu0 0.0
      %270 = vmatpush1.msra.mxu0 0.0
      %271 = vmatprep.subr.mxu0 0.0
      %272 = vmatpush1.msra.mxu0 0.0
      %273 = vmatprep.subr.mxu0 0.0
      %274 = vmatpush1.msra.mxu0 0.0
      %275 = vmatprep.subr.mxu0 0.0
      %276 = vmatpush1.msra.mxu0 0.0
      %277 = vmatprep.subr.mxu0 0.0
      %278 = vmatpush1.msra.mxu0 0.0
      %279 = vmatprep.subr.mxu0 0.0
      %280 = vmatpush1.msra.mxu0 0.0
      %281 = vmatprep.subr.mxu0 0.0
      %282 = vmatpush1.msra.mxu0 0.0
      %283 = vmatprep.subr.mxu0 0.0
      %284 = vmatpush1.msra.mxu0 0.0
      %285 = vmatprep.subr.mxu0 0.0
      %286 = vmatpush1.msra.mxu0 0.0
      %287 = vmatprep.subr.mxu0 0.0
      %288 = vmatpush1.msra.mxu0 0.0
      %289 = vmatprep.subr.mxu0 0.0
      %290 = vmatpush1.msra.mxu0 0.0
      %291 = vmatprep.subr.mxu0 0.0
      %292 = vmatpush1.msra.mxu0 0.0
      %293 = vmatprep.subr.mxu0 0.0
      %294 = vmatpush1.msra.mxu0 0.0
      %295 = vmatprep.subr.mxu0 0.0
      %296 = vmatpush1.msra.mxu0 0.0
      %297 = vmatprep.subr.mxu0 0.0
      %298 = vmatpush1.msra.mxu0 0.0
      %299 = vmatprep.subr.mxu0 0.0
      %300 = vmatpush1.msra.mxu0 0.0
      %301 = vmatprep.mubr.f32.mxu0 0.0
      %302 = vmatmul.mubr.f32.gmra.mrb[0].mxu0 %v211
      %v303 = vpop.f32.mrb[0].mxu0
      %v304 = vadd.f32 0.0, %v303
      %v305 = vpop.f32.mrb[0].mxu0
      %306 = vmatprep.mubr.f32.mxu0 0.0
      %307 = vmatmul.mubr.f32.gmra.mrb[0].mxu0 %v214
      %v308 = vpop.f32.mrb[0].mxu0
      %v309 = vadd.f32 0.0, %v308
      %v310 = vpop.f32.mrb[0].mxu0
      %311 = vmatprep.mubr.f32.mxu0 0.0
      %312 = vmatmul.mubr.f32.gmra.mrb[0].mxu0 %v217
      %v313 = vpop.f32.mrb[0].mxu0
      %v314 = vadd.f32 0.0, %v313
      %v315 = vpop.f32.mrb[0].mxu0
      %316 = vmatprep.mubr.f32.mxu0 0.0
      %317 = vmatmul.mubr.f32.gmra.mrb[0].mxu0 %v220
      %v318 = vpop.f32.mrb[0].mxu0
      %v319 = vadd.f32 0.0, %v318
      %v320 = vpop.f32.mrb[0].mxu0
      %321 = vmatprep.mubr.f32.mxu0 0.0
      %322 = vmatmul.mubr.f32.gmra.mrb[0].mxu0 %v223
      %v323 = vpop.f32.mrb[0].mxu0
      %v324 = vadd.f32 0.0, %v323
      %v325 = vpop.f32.mrb[0].mxu0
      %326 = vmatprep.mubr.f32.mxu0 0.0
      %327 = vmatmul.mubr.f32.gmra.mrb[0].mxu0 %v226
      %v328 = vpop.f32.mrb[0].mxu0
      %v329 = vadd.f32 0.0, %v328
      %v330 = vpop.f32.mrb[0].mxu0
      %331 = vmatprep.mubr.f32.mxu0 0.0
      %332 = vmatmul.mubr.f32.gmra.mrb[0].mxu0 %v229
      %v333 = vpop.f32.mrb[0].mxu0
      %v334 = vadd.f32 0.0, %v333
      %v335 = vpop.f32.mrb[0].mxu0
      %336 = vmatprep.mubr.f32.mxu0 0.0
      %337 = vmatmul.mubr.f32.gmra.mrb[0].mxu0 %v232
      %v338 = vpop.f32.mrb[0].mxu0
      %v339 = vadd.f32 0.0, %v338
      %v340 = vpop.f32.mrb[0].mxu0
      %341 = vmatprep.mubr.f32.mxu0 0.0
      %342 = vmatmul.mubr.f32.gmra.mrb[0].mxu0 %v235
      %v343 = vpop.f32.mrb[0].mxu0
      %v344 = vadd.f32 0.0, %v343
      %v345 = vpop.f32.mrb[0].mxu0
      %346 = vdwg.mxu0
      %v348 = vsel %vm209, %v182, 0
      %v351 = vsel %vm209, %v183, 0
      %v354 = vsel %vm209, %v184, 0
      %v357 = vsel %vm209, %v185, 0
      %v360 = vsel %vm209, %v186, 0
      %v363 = vsel %vm209, %v187, 0
      %v366 = vsel %vm209, %v188, 0
      %v369 = vsel %vm209, %v189, 0
      %v372 = vsel %vm209, %v190, 0
      %374 = vmatprep.subr.mxu0 0.0
      %375 = vmatpush1.msra.mxu0 %v191
      %376 = vmatprep.subr.mxu0 0.0
      %377 = vmatpush1.msra.mxu0 %v192
      %378 = vmatprep.subr.mxu0 0.0
      %379 = vmatpush1.msra.mxu0 %v193
      %380 = vmatprep.subr.mxu0 0.0
      %381 = vmatpush1.msra.mxu0 %v194
      %382 = vmatprep.subr.mxu0 0.0
      %383 = vmatpush1.msra.mxu0 0.0
      %384 = vmatprep.subr.mxu0 0.0
      %385 = vmatpush1.msra.mxu0 0.0
      %386 = vmatprep.subr.mxu0 0.0
      %387 = vmatpush1.msra.mxu0 0.0
      %388 = vmatprep.subr.mxu0 0.0
      %389 = vmatpush1.msra.mxu0 0.0
      %390 = vmatprep.subr.mxu0 0.0
      %391 = vmatpush1.msra.mxu0 0.0
      %392 = vmatprep.subr.mxu0 0.0
      %393 = vmatpush1.msra.mxu0 0.0
      %394 = vmatprep.subr.mxu0 0.0
      %395 = vmatpush1.msra.mxu0 0.0
      %396 = vmatprep.subr.mxu0 0.0
      %397 = vmatpush1.msra.mxu0 0.0
      %398 = vmatprep.subr.mxu0 0.0
      %399 = vmatpush1.msra.mxu0 0.0
      %400 = vmatprep.subr.mxu0 0.0
      %401 = vmatpush1.msra.mxu0 0.0
      %402 = vmatprep.subr.mxu0 0.0
      %403 = vmatpush1.msra.mxu0 0.0
      %404 = vmatprep.subr.mxu0 0.0
      %405 = vmatpush1.msra.mxu0 0.0
      %406 = vmatprep.subr.mxu0 0.0
      %407 = vmatpush1.msra.mxu0 0.0
      %408 = vmatprep.subr.mxu0 0.0
      %409 = vmatpush1.msra.mxu0 0.0
      %410 = vmatprep.subr.mxu0 0.0
      %411 = vmatpush1.msra.mxu0 0.0
      %412 = vmatprep.subr.mxu0 0.0
      %413 = vmatpush1.msra.mxu0 0.0
      %414 = vmatprep.subr.mxu0 0.0
      %415 = vmatpush1.msra.mxu0 0.0
      %416 = vmatprep.subr.mxu0 0.0
      %417 = vmatpush1.msra.mxu0 0.0
      %418 = vmatprep.subr.mxu0 0.0
      %419 = vmatpush1.msra.mxu0 0.0
      %420 = vmatprep.subr.mxu0 0.0
      %421 = vmatpush1.msra.mxu0 0.0
      %422 = vmatprep.subr.mxu0 0.0
      %423 = vmatpush1.msra.mxu0 0.0
      %424 = vmatprep.subr.mxu0 0.0
      %425 = vmatpush1.msra.mxu0 0.0
      %426 = vmatprep.subr.mxu0 0.0
      %427 = vmatpush1.msra.mxu0 0.0
      %428 = vmatprep.subr.mxu0 0.0
      %429 = vmatpush1.msra.mxu0 0.0
      %430 = vmatprep.subr.mxu0 0.0
      %431 = vmatpush1.msra.mxu0 0.0
      %432 = vmatprep.subr.mxu0 0.0
      %433 = vmatpush1.msra.mxu0 0.0
      %434 = vmatprep.subr.mxu0 0.0
      %435 = vmatpush1.msra.mxu0 0.0
      %436 = vmatprep.subr.mxu0 0.0
      %437 = vmatpush1.msra.mxu0 0.0
      %438 = vmatprep.mubr.f32.mxu0 0.0
      %439 = vmatmul.mubr.f32.gmra.mrb[0].mxu0 %v348
      %v440 = vpop.f32.mrb[0].mxu0
      %v441 = vadd.f32 %v304, %v440
      %v442 = vpop.f32.mrb[0].mxu0
      %443 = vmatprep.mubr.f32.mxu0 0.0
      %444 = vmatmul.mubr.f32.gmra.mrb[0].mxu0 %v351
      %v445 = vpop.f32.mrb[0].mxu0
      %v446 = vadd.f32 %v309, %v445
      %v447 = vpop.f32.mrb[0].mxu0
      %448 = vmatprep.mubr.f32.mxu0 0.0
      %449 = vmatmul.mubr.f32.gmra.mrb[0].mxu0 %v354
      %v450 = vpop.f32.mrb[0].mxu0
      %v451 = vadd.f32 %v314, %v450
      %v452 = vpop.f32.mrb[0].mxu0
      %453 = vmatprep.mubr.f32.mxu0 0.0
      %454 = vmatmul.mubr.f32.gmra.mrb[0].mxu0 %v357
      %v455 = vpop.f32.mrb[0].mxu0
      %v456 = vadd.f32 %v319, %v455
      %v457 = vpop.f32.mrb[0].mxu0
      %458 = vmatprep.mubr.f32.mxu0 0.0
      %459 = vmatmul.mubr.f32.gmra.mrb[0].mxu0 %v360
      %v460 = vpop.f32.mrb[0].mxu0
      %v461 = vadd.f32 %v324, %v460
      %v462 = vpop.f32.mrb[0].mxu0
      %463 = vmatprep.mubr.f32.mxu0 0.0
      %464 = vmatmul.mubr.f32.gmra.mrb[0].mxu0 %v363
      %v465 = vpop.f32.mrb[0].mxu0
      %v466 = vadd.f32 %v329, %v465
      %v467 = vpop.f32.mrb[0].mxu0
      %468 = vmatprep.mubr.f32.mxu0 0.0
      %469 = vmatmul.mubr.f32.gmra.mrb[0].mxu0 %v366
      %v470 = vpop.f32.mrb[0].mxu0
      %v471 = vadd.f32 %v334, %v470
      %v472 = vpop.f32.mrb[0].mxu0
      %473 = vmatprep.mubr.f32.mxu0 0.0
      %474 = vmatmul.mubr.f32.gmra.mrb[0].mxu0 %v369
      %v475 = vpop.f32.mrb[0].mxu0
      %v476 = vadd.f32 %v339, %v475
      %v477 = vpop.f32.mrb[0].mxu0
      %478 = vmatprep.mubr.f32.mxu0 0.0
      %479 = vmatmul.mubr.f32.gmra.mrb[0].mxu0 %v372
      %v480 = vpop.f32.mrb[0].mxu0
      %v481 = vadd.f32 %v344, %v480
      %v482 = vpop.f32.mrb[0].mxu0
      %483 = vdwg.mxu0
      %v484 = vld [vmem:[%s172 + $0x9] sm:$0xff]
      %v485 = vld [vmem:[%s172 + $0x11] sm:$0xff]
      %v486 = vld [vmem:[%s172 + $0x19] sm:$0xff]
      %v487 = vld [vmem:[%s172 + $0x21] sm:$0xff]
      %v488 = vld [vmem:[%s172 + $0x29] sm:$0xff]
      %v489 = vld [vmem:[%s172 + $0x31] sm:$0xff]
      %v490 = vld [vmem:[%s172 + $0x39] sm:$0xff]
      %v491 = vld [vmem:[%s172 + $0x41] sm:$0xff]
      %v492 = vld [vmem:[%s172 + $0x49] sm:$0x7f]
      %s493 = scalar_lea.vmem %s1, 64
      %v494 = vld [vmem:[%s493] sm:$0xff]
      %v495 = vld [vmem:[%s493 + $0x8] sm:$0xff]
      %v496 = vld [vmem:[%s493 + $0x10] sm:$0xff]
      %v497 = vld [vmem:[%s493 + $0x18] sm:$0xff]
      %v499 = vsel %vm209, %v484, 0
      %v502 = vsel %vm209, %v485, 0
      %v505 = vsel %vm209, %v486, 0
      %v508 = vsel %vm209, %v487, 0
      %v511 = vsel %vm209, %v488, 0
      %v514 = vsel %vm209, %v489, 0
      %v517 = vsel %vm209, %v490, 0
      %v520 = vsel %vm209, %v491, 0
      %v523 = vsel %vm209, %v492, 0
      %525 = vmatprep.subr.mxu0 0.0
      %526 = vmatpush1.msra.mxu0 %v494
      %527 = vmatprep.subr.mxu0 0.0
      %528 = vmatpush1.msra.mxu0 %v495
      %529 = vmatprep.subr.mxu0 0.0
      %530 = vmatpush1.msra.mxu0 %v496
      %531 = vmatprep.subr.mxu0 0.0
      %532 = vmatpush1.msra.mxu0 %v497
      %533 = vmatprep.subr.mxu0 0.0
      %534 = vmatpush1.msra.mxu0 0.0
      %535 = vmatprep.subr.mxu0 0.0
      %536 = vmatpush1.msra.mxu0 0.0
      %537 = vmatprep.subr.mxu0 0.0
      %538 = vmatpush1.msra.mxu0 0.0
      %539 = vmatprep.subr.mxu0 0.0
      %540 = vmatpush1.msra.mxu0 0.0
      %541 = vmatprep.subr.mxu0 0.0
      %542 = vmatpush1.msra.mxu0 0.0
      %543 = vmatprep.subr.mxu0 0.0
      %544 = vmatpush1.msra.mxu0 0.0
      %545 = vmatprep.subr.mxu0 0.0
      %546 = vmatpush1.msra.mxu0 0.0
      %547 = vmatprep.subr.mxu0 0.0
      %548 = vmatpush1.msra.mxu0 0.0
      %549 = vmatprep.subr.mxu0 0.0
      %550 = vmatpush1.msra.mxu0 0.0
      %551 = vmatprep.subr.mxu0 0.0
      %552 = vmatpush1.msra.mxu0 0.0
      %553 = vmatprep.subr.mxu0 0.0
      %554 = vmatpush1.msra.mxu0 0.0
      %555 = vmatprep.subr.mxu0 0.0
      %556 = vmatpush1.msra.mxu0 0.0
      %557 = vmatprep.subr.mxu0 0.0
      %558 = vmatpush1.msra.mxu0 0.0
      %559 = vmatprep.subr.mxu0 0.0
      %560 = vmatpush1.msra.mxu0 0.0
      %561 = vmatprep.subr.mxu0 0.0
      %562 = vmatpush1.msra.mxu0 0.0
      %563 = vmatprep.subr.mxu0 0.0
      %564 = vmatpush1.msra.mxu0 0.0
      %565 = vmatprep.subr.mxu0 0.0
      %566 = vmatpush1.msra.mxu0 0.0
      %567 = vmatprep.subr.mxu0 0.0
      %568 = vmatpush1.msra.mxu0 0.0
      %569 = vmatprep.subr.mxu0 0.0
      %570 = vmatpush1.msra.mxu0 0.0
      %571 = vmatprep.subr.mxu0 0.0
      %572 = vmatpush1.msra.mxu0 0.0
      %573 = vmatprep.subr.mxu0 0.0
      %574 = vmatpush1.msra.mxu0 0.0
      %575 = vmatprep.subr.mxu0 0.0
      %576 = vmatpush1.msra.mxu0 0.0
      %577 = vmatprep.subr.mxu0 0.0
      %578 = vmatpush1.msra.mxu0 0.0
      %579 = vmatprep.subr.mxu0 0.0
      %580 = vmatpush1.msra.mxu0 0.0
      %581 = vmatprep.subr.mxu0 0.0
      %582 = vmatpush1.msra.mxu0 0.0
      %583 = vmatprep.subr.mxu0 0.0
      %584 = vmatpush1.msra.mxu0 0.0
      %585 = vmatprep.subr.mxu0 0.0
      %586 = vmatpush1.msra.mxu0 0.0
      %587 = vmatprep.subr.mxu0 0.0
      %588 = vmatpush1.msra.mxu0 0.0
      %589 = vmatprep.mubr.f32.mxu0 0.0
      %590 = vmatmul.mubr.f32.gmra.mrb[0].mxu0 %v499
      %v591 = vpop.f32.mrb[0].mxu0
      %v592 = vadd.f32 0.0, %v591
      %v593 = vpop.f32.mrb[0].mxu0
      %594 = vmatprep.mubr.f32.mxu0 0.0
      %595 = vmatmul.mubr.f32.gmra.mrb[0].mxu0 %v502
      %v596 = vpop.f32.mrb[0].mxu0
      %v597 = vadd.f32 0.0, %v596
      %v598 = vpop.f32.mrb[0].mxu0
      %599 = vmatprep.mubr.f32.mxu0 0.0
      %600 = vmatmul.mubr.f32.gmra.mrb[0].mxu0 %v505
      %v601 = vpop.f32.mrb[0].mxu0
      %v602 = vadd.f32 0.0, %v601
      %v603 = vpop.f32.mrb[0].mxu0
      %604 = vmatprep.mubr.f32.mxu0 0.0
      %605 = vmatmul.mubr.f32.gmra.mrb[0].mxu0 %v508
      %v606 = vpop.f32.mrb[0].mxu0
      %v607 = vadd.f32 0.0, %v606
      %v608 = vpop.f32.mrb[0].mxu0
      %609 = vmatprep.mubr.f32.mxu0 0.0
      %610 = vmatmul.mubr.f32.gmra.mrb[0].mxu0 %v511
      %v611 = vpop.f32.mrb[0].mxu0
      %v612 = vadd.f32 0.0, %v611
      %v613 = vpop.f32.mrb[0].mxu0
      %614 = vmatprep.mubr.f32.mxu0 0.0
      %615 = vmatmul.mubr.f32.gmra.mrb[0].mxu0 %v514
      %v616 = vpop.f32.mrb[0].mxu0
      %v617 = vadd.f32 0.0, %v616
      %v618 = vpop.f32.mrb[0].mxu0
      %619 = vmatprep.mubr.f32.mxu0 0.0
      %620 = vmatmul.mubr.f32.gmra.mrb[0].mxu0 %v517
      %v621 = vpop.f32.mrb[0].mxu0
      %v622 = vadd.f32 0.0, %v621
      %v623 = vpop.f32.mrb[0].mxu0
      %624 = vmatprep.mubr.f32.mxu0 0.0
      %625 = vmatmul.mubr.f32.gmra.mrb[0].mxu0 %v520
      %v626 = vpop.f32.mrb[0].mxu0
      %v627 = vadd.f32 0.0, %v626
      %v628 = vpop.f32.mrb[0].mxu0
      %629 = vmatprep.mubr.f32.mxu0 0.0
      %630 = vmatmul.mubr.f32.gmra.mrb[0].mxu0 %v523
      %v631 = vpop.f32.mrb[0].mxu0
      %v632 = vadd.f32 0.0, %v631
      %v633 = vpop.f32.mrb[0].mxu0
      %634 = vdwg.mxu0
      %v635 = vadd.f32 %v441, %v592
      %v636 = vadd.f32 %v446, %v597
      %v637 = vadd.f32 %v451, %v602
      %v638 = vadd.f32 %v456, %v607
      %v639 = vadd.f32 %v461, %v612
      %v640 = vadd.f32 %v466, %v617
      %v641 = vadd.f32 %v471, %v622
      %v642 = vadd.f32 %v476, %v627
      %v643 = vadd.f32 %v481, %v632
      %v644 = vld [vmem:[%s172 + $0xa] sm:$0xff]
      %v645 = vld [vmem:[%s172 + $0x12] sm:$0xff]
      %v646 = vld [vmem:[%s172 + $0x1a] sm:$0xff]
      %v647 = vld [vmem:[%s172 + $0x22] sm:$0xff]
      %v648 = vld [vmem:[%s172 + $0x2a] sm:$0xff]
      %v649 = vld [vmem:[%s172 + $0x32] sm:$0xff]
      %v650 = vld [vmem:[%s172 + $0x3a] sm:$0xff]
      %v651 = vld [vmem:[%s172 + $0x42] sm:$0xff]
      %v652 = vld [vmem:[%s172 + $0x4a] sm:$0x7f]
      %s653 = scalar_lea.vmem %s1, 96
      %v654 = vld [vmem:[%s653] sm:$0xff]
      %v655 = vld [vmem:[%s653 + $0x8] sm:$0xff]
      %v656 = vld [vmem:[%s653 + $0x10] sm:$0xff]
      %v657 = vld [vmem:[%s653 + $0x18] sm:$0xff]
      %v659 = vsel %vm209, %v644, 0
      %v662 = vsel %vm209, %v645, 0
      %v665 = vsel %vm209, %v646, 0
      %v668 = vsel %vm209, %v647, 0
      %v671 = vsel %vm209, %v648, 0
      %v674 = vsel %vm209, %v649, 0
      %v677 = vsel %vm209, %v650, 0
      %v680 = vsel %vm209, %v651, 0
      %v683 = vsel %vm209, %v652, 0
      %685 = vmatprep.subr.mxu0 0.0
      %686 = vmatpush1.msra.mxu0 %v654
      %687 = vmatprep.subr.mxu0 0.0
      %688 = vmatpush1.msra.mxu0 %v655
      %689 = vmatprep.subr.mxu0 0.0
      %690 = vmatpush1.msra.mxu0 %v656
      %691 = vmatprep.subr.mxu0 0.0
      %692 = vmatpush1.msra.mxu0 %v657
      %693 = vmatprep.subr.mxu0 0.0
      %694 = vmatpush1.msra.mxu0 0.0
      %695 = vmatprep.subr.mxu0 0.0
      %696 = vmatpush1.msra.mxu0 0.0
      %697 = vmatprep.subr.mxu0 0.0
      %698 = vmatpush1.msra.mxu0 0.0
      %699 = vmatprep.subr.mxu0 0.0
      %700 = vmatpush1.msra.mxu0 0.0
      %701 = vmatprep.subr.mxu0 0.0
      %702 = vmatpush1.msra.mxu0 0.0
      %703 = vmatprep.subr.mxu0 0.0
      %704 = vmatpush1.msra.mxu0 0.0
      %705 = vmatprep.subr.mxu0 0.0
      %706 = vmatpush1.msra.mxu0 0.0
      %707 = vmatprep.subr.mxu0 0.0
      %708 = vmatpush1.msra.mxu0 0.0
      %709 = vmatprep.subr.mxu0 0.0
      %710 = vmatpush1.msra.mxu0 0.0
      %711 = vmatprep.subr.mxu0 0.0
      %712 = vmatpush1.msra.mxu0 0.0
      %713 = vmatprep.subr.mxu0 0.0
      %714 = vmatpush1.msra.mxu0 0.0
      %715 = vmatprep.subr.mxu0 0.0
      %716 = vmatpush1.msra.mxu0 0.0
      %717 = vmatprep.subr.mxu0 0.0
      %718 = vmatpush1.msra.mxu0 0.0
      %719 = vmatprep.subr.mxu0 0.0
      %720 = vmatpush1.msra.mxu0 0.0
      %721 = vmatprep.subr.mxu0 0.0
      %722 = vmatpush1.msra.mxu0 0.0
      %723 = vmatprep.subr.mxu0 0.0
      %724 = vmatpush1.msra.mxu0 0.0
      %725 = vmatprep.subr.mxu0 0.0
      %726 = vmatpush1.msra.mxu0 0.0
      %727 = vmatprep.subr.mxu0 0.0
      %728 = vmatpush1.msra.mxu0 0.0
      %729 = vmatprep.subr.mxu0 0.0
      %730 = vmatpush1.msra.mxu0 0.0
      %731 = vmatprep.subr.mxu0 0.0
      %732 = vmatpush1.msra.mxu0 0.0
      %733 = vmatprep.subr.mxu0 0.0
      %734 = vmatpush1.msra.mxu0 0.0
      %735 = vmatprep.subr.mxu0 0.0
      %736 = vmatpush1.msra.mxu0 0.0
      %737 = vmatprep.subr.mxu0 0.0
      %738 = vmatpush1.msra.mxu0 0.0
      %739 = vmatprep.subr.mxu0 0.0
      %740 = vmatpush1.msra.mxu0 0.0
      %741 = vmatprep.subr.mxu0 0.0
      %742 = vmatpush1.msra.mxu0 0.0
      %743 = vmatprep.subr.mxu0 0.0
      %744 = vmatpush1.msra.mxu0 0.0
      %745 = vmatprep.subr.mxu0 0.0
      %746 = vmatpush1.msra.mxu0 0.0
      %747 = vmatprep.subr.mxu0 0.0
      %748 = vmatpush1.msra.mxu0 0.0
      %749 = vmatprep.mubr.f32.mxu0 0.0
      %750 = vmatmul.mubr.f32.gmra.mrb[0].mxu0 %v659
      %v751 = vpop.f32.mrb[0].mxu0
      %v752 = vadd.f32 0.0, %v751
      %v753 = vpop.f32.mrb[0].mxu0
      %754 = vmatprep.mubr.f32.mxu0 0.0
      %755 = vmatmul.mubr.f32.gmra.mrb[0].mxu0 %v662
      %v756 = vpop.f32.mrb[0].mxu0
      %v757 = vadd.f32 0.0, %v756
      %v758 = vpop.f32.mrb[0].mxu0
      %759 = vmatprep.mubr.f32.mxu0 0.0
      %760 = vmatmul.mubr.f32.gmra.mrb[0].mxu0 %v665
      %v761 = vpop.f32.mrb[0].mxu0
      %v762 = vadd.f32 0.0, %v761
      %v763 = vpop.f32.mrb[0].mxu0
      %764 = vmatprep.mubr.f32.mxu0 0.0
      %765 = vmatmul.mubr.f32.gmra.mrb[0].mxu0 %v668
      %v766 = vpop.f32.mrb[0].mxu0
      %v767 = vadd.f32 0.0, %v766
      %v768 = vpop.f32.mrb[0].mxu0
      %769 = vmatprep.mubr.f32.mxu0 0.0
      %770 = vmatmul.mubr.f32.gmra.mrb[0].mxu0 %v671
      %v771 = vpop.f32.mrb[0].mxu0
      %v772 = vadd.f32 0.0, %v771
      %v773 = vpop.f32.mrb[0].mxu0
      %774 = vmatprep.mubr.f32.mxu0 0.0
      %775 = vmatmul.mubr.f32.gmra.mrb[0].mxu0 %v674
      %v776 = vpop.f32.mrb[0].mxu0
      %v777 = vadd.f32 0.0, %v776
      %v778 = vpop.f32.mrb[0].mxu0
      %779 = vmatprep.mubr.f32.mxu0 0.0
      %780 = vmatmul.mubr.f32.gmra.mrb[0].mxu0 %v677
      %v781 = vpop.f32.mrb[0].mxu0
      %v782 = vadd.f32 0.0, %v781
      %v783 = vpop.f32.mrb[0].mxu0
      %784 = vmatprep.mubr.f32.mxu0 0.0
      %785 = vmatmul.mubr.f32.gmra.mrb[0].mxu0 %v680
      %v786 = vpop.f32.mrb[0].mxu0
      %v787 = vadd.f32 0.0, %v786
      %v788 = vpop.f32.mrb[0].mxu0
      %789 = vmatprep.mubr.f32.mxu0 0.0
      %790 = vmatmul.mubr.f32.gmra.mrb[0].mxu0 %v683
      %v791 = vpop.f32.mrb[0].mxu0
      %v792 = vadd.f32 0.0, %v791
      %v793 = vpop.f32.mrb[0].mxu0
      %794 = vdwg.mxu0
      %v795 = vadd.f32 %v635, %v752
      %v796 = vadd.f32 %v636, %v757
      %v797 = vadd.f32 %v637, %v762
      %v798 = vadd.f32 %v638, %v767
      %v799 = vadd.f32 %v639, %v772
      %v800 = vadd.f32 %v640, %v777
      %v801 = vadd.f32 %v641, %v782
      %v802 = vadd.f32 %v642, %v787
      %v803 = vadd.f32 %v643, %v792
      %vm804 = vcmask 130048
      %805 = vst.msk [vmem:[%s177] sm:$0xff] %vm804, %v795
      %806 = vst.msk [vmem:[%s177 + $0x8] sm:$0xff] %vm804, %v796
      %807 = vst.msk [vmem:[%s177 + $0x10] sm:$0xff] %vm804, %v797
      %808 = vst.msk [vmem:[%s177 + $0x18] sm:$0xff] %vm804, %v798
      %809 = vst.msk [vmem:[%s177 + $0x20] sm:$0xff] %vm804, %v799
      %810 = vst.msk [vmem:[%s177 + $0x28] sm:$0xff] %vm804, %v800
      %811 = vst.msk [vmem:[%s177 + $0x30] sm:$0xff] %vm804, %v801
      %812 = vst.msk [vmem:[%s177 + $0x38] sm:$0xff] %vm804, %v802
      %vm813 = vcmask 129024
      %814 = vst.msk [vmem:[%s177 + $0x40] sm:$0x7f] %vm813, %v803
      %v815 = vlaneseq
      %v816 = vand.u32 %v815, 127
      %vm817 = vcmp.lt.s32.totalorder %v816, 0
      %v818 = vsub.s32 0, %v816
      %v819 = vsel %vm817, %v818, %v816
      %v820 = vmul.u32.u64.compose %v819, 3817748708
      %v821 = vextract.low.u32 %v820
      %v822 = vextract.high.u32 %v820
      %v823 = vshrl.u32 %v822, 3
      %v824 = vmul.u32 %v823, 9
      %v825 = vsub.s32 %v819, %v824
      %v826 = vsub.s32 0, %v825
      %v827 = vsel %vm817, %v826, %v825
      %vm828 = vcmp.ne.s32.totalorder %v827, 0
      %vm829 = vcmp.lt.s32.totalorder %v827, 0
      %vm830 = vmand %vm829, %vm828
      %v831 = vadd.s32 %v827, 9
      %v832 = vsel %vm830, %v831, %v827
      %vm833 = vcmp.lt.s32.totalorder %v832, 8
      %v834 = vsel %vm833, 1, 0
      %v835 = vcvt.s32.f32 %v834
      %vm836 = vcmask 580608
      %v838 = vsel %vm836, %v835, 0
      %vm840 = vcmask 1046528
      %v842 = vsel %vm840, %v803, 0
      %844 = vmatprep.subr.mxu0 0.0
      %845 = vmatpush1.msra.mxu0 %v795
      %846 = vmatprep.subr.mxu0 0.0
      %847 = vmatpush1.msra.mxu0 %v796
      %848 = vmatprep.subr.mxu0 0.0
      %849 = vmatpush1.msra.mxu0 %v797
      %850 = vmatprep.subr.mxu0 0.0
      %851 = vmatpush1.msra.mxu0 %v798
      %852 = vmatprep.subr.mxu0 0.0
      %853 = vmatpush1.msra.mxu0 %v799
      %854 = vmatprep.subr.mxu0 0.0
      %855 = vmatpush1.msra.mxu0 %v800
      %856 = vmatprep.subr.mxu0 0.0
      %857 = vmatpush1.msra.mxu0 %v801
      %858 = vmatprep.subr.mxu0 0.0
      %859 = vmatpush1.msra.mxu0 %v802
      %860 = vmatprep.subr.mxu0 0.0
      %861 = vmatpush1.msra.mxu0 %v842
      %862 = vmatprep.subr.mxu0 0.0
      %863 = vmatpush1.msra.mxu0 0.0
      %864 = vmatprep.subr.mxu0 0.0
      %865 = vmatpush1.msra.mxu0 0.0
      %866 = vmatprep.subr.mxu0 0.0
      %867 = vmatpush1.msra.mxu0 0.0
      %868 = vmatprep.subr.mxu0 0.0
      %869 = vmatpush1.msra.mxu0 0.0
      %870 = vmatprep.subr.mxu0 0.0
      %871 = vmatpush1.msra.mxu0 0.0
      %872 = vmatprep.subr.mxu0 0.0
      %873 = vmatpush1.msra.mxu0 0.0
      %874 = vmatprep.subr.mxu0 0.0
      %875 = vmatpush1.msra.mxu0 0.0
      %876 = vmatprep.subr.mxu0 0.0
      %877 = vmatpush1.msra.mxu0 0.0
      %878 = vmatprep.subr.mxu0 0.0
      %879 = vmatpush1.msra.mxu0 0.0
      %880 = vmatprep.subr.mxu0 0.0
      %881 = vmatpush1.msra.mxu0 0.0
      %882 = vmatprep.subr.mxu0 0.0
      %883 = vmatpush1.msra.mxu0 0.0
      %884 = vmatprep.subr.mxu0 0.0
      %885 = vmatpush1.msra.mxu0 0.0
      %886 = vmatprep.subr.mxu0 0.0
      %887 = vmatpush1.msra.mxu0 0.0
      %888 = vmatprep.subr.mxu0 0.0
      %889 = vmatpush1.msra.mxu0 0.0
      %890 = vmatprep.subr.mxu0 0.0
      %891 = vmatpush1.msra.mxu0 0.0
      %892 = vmatprep.subr.mxu0 0.0
      %893 = vmatpush1.msra.mxu0 0.0
      %894 = vmatprep.subr.mxu0 0.0
      %895 = vmatpush1.msra.mxu0 0.0
      %896 = vmatprep.subr.mxu0 0.0
      %897 = vmatpush1.msra.mxu0 0.0
      %898 = vmatprep.subr.mxu0 0.0
      %899 = vmatpush1.msra.mxu0 0.0
      %900 = vmatprep.subr.mxu0 0.0
      %901 = vmatpush1.msra.mxu0 0.0
      %902 = vmatprep.subr.mxu0 0.0
      %903 = vmatpush1.msra.mxu0 0.0
      %904 = vmatprep.subr.mxu0 0.0
      %905 = vmatpush1.msra.mxu0 0.0
      %906 = vmatprep.subr.mxu0 0.0
      %907 = vmatpush1.msra.mxu0 0.0
      %908 = vmatprep.mubr.f32.mxu0 0.0
      %909 = vmatmul.mubr.f32.gmra.mrb[0].mxu0 %v838
      %v910 = vpop.f32.mrb[0].mxu0
      %v911 = vadd.f32 0.0, %v910
      %v912 = vpop.f32.mrb[0].mxu0
      %913 = vdwg.mxu0
      %vm914 = vcmask 122880
      %915 = vst.msk [vmem:[%s181] sm:$0x1] %vm914, %v911
      %v916 = vmul.f32 %v795, %v795
      %v917 = vmul.f32 %v796, %v796
      %v918 = vmul.f32 %v797, %v797
      %v919 = vmul.f32 %v798, %v798
      %v920 = vmul.f32 %v799, %v799
      %v921 = vmul.f32 %v800, %v800
      %v922 = vmul.f32 %v801, %v801
      %v923 = vmul.f32 %v802, %v802
      %v924 = vmul.f32 %v803, %v803
      %v926 = vsel %vm840, %v924, 0
      %928 = vmatprep.subr.mxu0 0.0
      %929 = vmatpush1.msra.mxu0 %v916
      %930 = vmatprep.subr.mxu0 0.0
      %931 = vmatpush1.msra.mxu0 %v917
      %932 = vmatprep.subr.mxu0 0.0
      %933 = vmatpush1.msra.mxu0 %v918
      %934 = vmatprep.subr.mxu0 0.0
      %935 = vmatpush1.msra.mxu0 %v919
      %936 = vmatprep.subr.mxu0 0.0
      %937 = vmatpush1.msra.mxu0 %v920
      %938 = vmatprep.subr.mxu0 0.0
      %939 = vmatpush1.msra.mxu0 %v921
      %940 = vmatprep.subr.mxu0 0.0
      %941 = vmatpush1.msra.mxu0 %v922
      %942 = vmatprep.subr.mxu0 0.0
      %943 = vmatpush1.msra.mxu0 %v923
      %944 = vmatprep.subr.mxu0 0.0
      %945 = vmatpush1.msra.mxu0 %v926
      %946 = vmatprep.subr.mxu0 0.0
      %947 = vmatpush1.msra.mxu0 0.0
      %948 = vmatprep.subr.mxu0 0.0
      %949 = vmatpush1.msra.mxu0 0.0
      %950 = vmatprep.subr.mxu0 0.0
      %951 = vmatpush1.msra.mxu0 0.0
      %952 = vmatprep.subr.mxu0 0.0
      %953 = vmatpush1.msra.mxu0 0.0
      %954 = vmatprep.subr.mxu0 0.0
      %955 = vmatpush1.msra.mxu0 0.0
      %956 = vmatprep.subr.mxu0 0.0
      %957 = vmatpush1.msra.mxu0 0.0
      %958 = vmatprep.subr.mxu0 0.0
      %959 = vmatpush1.msra.mxu0 0.0
      %960 = vmatprep.subr.mxu0 0.0
      %961 = vmatpush1.msra.mxu0 0.0
      %962 = vmatprep.subr.mxu0 0.0
      %963 = vmatpush1.msra.mxu0 0.0
      %964 = vmatprep.subr.mxu0 0.0
      %965 = vmatpush1.msra.mxu0 0.0
      %966 = vmatprep.subr.mxu0 0.0
      %967 = vmatpush1.msra.mxu0 0.0
      %968 = vmatprep.subr.mxu0 0.0
      %969 = vmatpush1.msra.mxu0 0.0
      %970 = vmatprep.subr.mxu0 0.0
      %971 = vmatpush1.msra.mxu0 0.0
      %972 = vmatprep.subr.mxu0 0.0
      %973 = vmatpush1.msra.mxu0 0.0
      %974 = vmatprep.subr.mxu0 0.0
      %975 = vmatpush1.msra.mxu0 0.0
      %976 = vmatprep.subr.mxu0 0.0
      %977 = vmatpush1.msra.mxu0 0.0
      %978 = vmatprep.subr.mxu0 0.0
      %979 = vmatpush1.msra.mxu0 0.0
      %980 = vmatprep.subr.mxu0 0.0
      %981 = vmatpush1.msra.mxu0 0.0
      %982 = vmatprep.subr.mxu0 0.0
      %983 = vmatpush1.msra.mxu0 0.0
      %984 = vmatprep.subr.mxu0 0.0
      %985 = vmatpush1.msra.mxu0 0.0
      %986 = vmatprep.subr.mxu0 0.0
      %987 = vmatpush1.msra.mxu0 0.0
      %988 = vmatprep.subr.mxu0 0.0
      %989 = vmatpush1.msra.mxu0 0.0
      %990 = vmatprep.subr.mxu0 0.0
      %991 = vmatpush1.msra.mxu0 0.0
      %992 = vmatprep.mubr.f32.mxu0 0.0
      %993 = vmatmul.mubr.f32.gmra.mrb[0].mxu0 %v838
      %v994 = vpop.f32.mrb[0].mxu0
      %v995 = vadd.f32 0.0, %v994
      %v996 = vpop.f32.mrb[0].mxu0
      %997 = vdwg.mxu0
      %998 = vst.msk [vmem:[%s181 + $0x1] sm:$0x1] %vm914, %v995
      %p999 = scmp.lt.s32.totalorder %s15, 1
      %s1000 = scalar_select %p999, %s15, 1
      %s1001 = smul.addr %s1000, 9
      %s1002 = smul.addr %s1001, 8
      %s1003 = scalar_lea.vmem %s2, %s1002
      %p1004 = scmp.lt.s32.totalorder %s15, 1
      %s1005 = scalar_select %p1004, %s15, 1
      %s1006 = smul.addr %s1005, 2
      %s1007 = scalar_lea.vmem %s3, %s1006
      // Predicated region
      $region29: #{patch_discriminator_forward.6} parent=27 // pred_check
        %p1008 = pneg %p80
      $region30: #{patch_discriminator_forward.6} parent=27 // pred_check_branch
        %1010 = sbr.rel (%p1008) target = $region32
      $region31: #{patch_discriminator_forward.6} parent=27 // pred_region
        _
      $region32: #{patch_discriminator_forward.6} parent=27 // pred_fallthru
        _
      // Predicated region
      $region33: #{patch_discriminator_forward.6} parent=27 // pred_check
        %p1011 = pneg %p106
      $region34: #{patch_discriminator_forward.6} parent=27 // pred_check_branch
        %1013 = sbr.rel (%p1011) target = $region36
      $region35: #{patch_discriminator_forward.6} parent=27 // pred_region
        _
      $region36: #{patch_discriminator_forward.6} parent=27 // pred_fallthru
        _
    $region28: #{patch_discriminator_forward.6} parent=5 // pred_fallthru
      _
    %p1014 = scmp.le.s32.totalorder 2, %s10
    // Predicated region
    $region37: #{patch_discriminator_forward.6} parent=5 // pred_check
      %p1015 = pneg %p1014
    $region38: #{patch_discriminator_forward.6} parent=5 // pred_check_branch
      %1017 = sbr.rel (%p1015) target = $region40
    $region39: #{patch_discriminator_forward.6} parent=5 // pred_region
      %s1018 = ssub.s32 %s10, 2
      // Predicated region
      $region41: #{patch_discriminator_forward.6} parent=39 // pred_check
        %p1019 = pneg %p86
      $region42: #{patch_discriminator_forward.6} parent=39 // pred_check_branch
        %1021 = sbr.rel (%p1019) target = $region44
      $region43: #{patch_discriminator_forward.6} parent=39 // pred_region
        %p1022 = scmp.lt.s32.totalorder %s16, 1
        %s1023 = scalar_select %p1022, %s16, 1
        %s1024 = smul.addr %s1023, 9
        %s1025 = smul.addr %s1024, 8
        %s1026 = scalar_lea.vmem %s2, %s1025
      $region44: #{patch_discriminator_forward.6} parent=39 // pred_fallthru
        _
      // Predicated region
      $region45: #{patch_discriminator_forward.6} parent=39 // pred_check
        %p1027 = pneg %p112
      $region46: #{patch_discriminator_forward.6} parent=39 // pred_check_branch
        %1029 = sbr.rel (%p1027) target = $region48
      $region47: #{patch_discriminator_forward.6} parent=39 // pred_region
        %p1030 = scmp.lt.s32.totalorder %s16, 1
        %s1031 = scalar_select %p1030, %s16, 1
        %s1032 = smul.addr %s1031, 2
        %s1033 = scalar_lea.vmem %s3, %s1032
      $region48: #{patch_discriminator_forward.6} parent=39 // pred_fallthru
        _
    $region40: #{patch_discriminator_forward.6} parent=5 // pred_fallthru
      _
  $region6: #{patch_discriminator_forward.6} parent=0 // loop_footer
    %s14 = sadd.s32 1, %s10
  $region7: #{patch_discriminator_forward.6} parent=0 // loop_footer_branch
    %9 = sbr.rel target = $region3
  $region8: #{patch_discriminator_forward.6} parent=0 // loop_exit
    _

// kernel: patch_discriminator_forward.7
$region0: #{patch_discriminator_forward.7}
  #allocation0 [shape = 'u32[]', space=smem, size = 0x4, offset = 0x4, fixed_abs, tag = 'smem constant byte address 0x4 - core index']
  #allocation1 [shape = 'u32[144,128]{1,0:T(1,128)}', space=vmem, size = 0x12000, scoped, tag = 'internal scratch']
  %s0 = inlined_call_operand.vmem [shape: f32[2,25,64], index: 0, kind: input, shape index: {}]
  %s1 = inlined_call_operand.vmem [shape: f32[2,2,64,32], index: 1, kind: input, shape index: {}]
  %s2 = inlined_call_operand.vmem [shape: f32[1,64], index: 2, kind: input, shape index: {}]
  %s3 = inlined_call_operand.vmem [shape: f32[1,64], index: 3, kind: input, shape index: {}]
  %s4 = inlined_call_operand.vmem [shape: f32[2,19,32], index: 4, kind: output, shape index: {0}]
  %s5 = inlined_call_operand.vmem [shape: f32[2,2,32], index: 5, kind: output, shape index: {1}]
  %6 = xla_tuple %s4, %s5
  %s7 = sld [smem:[#allocation0]]
  $region57: #{patch_discriminator_forward.7} parent=0
    _
  %s9 = ssub.s32 1, %s7
  %s10 = scalar_select 0, %s9, %s7
  loop: start=0, step=1, limit=4
  $region2: #{patch_discriminator_forward.7} parent=0 // loop_pre_header
    _
  $region3: #{patch_discriminator_forward.7} parent=0 // loop_header
    %s12 = sphi 0, %s16
    %p13 = scmp.ge.s32.totalorder %s12, 4
    %s22 = sphi 0, %s24
    %s25 = sphi 0, %s22
    %s26 = sphi 0, %s25
    %s42 = sphi 0, %s26
    %s46 = sphi 0, %s46
    %s48 = sphi 0, %s46
    %s49 = sphi 0, %s48
    %s63 = sphi 0, %s49
    %s67 = sphi 0, %s67
    %s69 = sphi 0, %s67
    %s70 = sphi 0, %s69
    %s84 = sphi 0, %s70
    %s88 = sphi 0, %s88
    %s90 = sphi 0, %s88
    %s91 = sphi 0, %s90
    %s105 = sphi 0, %s91
    %s111 = sphi 0, %s113
    %s114 = sphi 0, %s111
    %s115 = sphi 0, %s114
    %s131 = sphi 0, %s115
    %s137 = sphi 0, %s139
    %s140 = sphi 0, %s137
    %s141 = sphi 0, %s140
    %s157 = sphi 0, %s141
  $region4: #{patch_discriminator_forward.7} parent=0 // loop_header_branch
    %15 = sbr.rel (%p13) target = $region8
  $region5: #{patch_discriminator_forward.7} parent=0 // loop_body
    %s17 = ssub.s32 %s12, 1
    %s18 = ssub.s32 %s12, 2
    %s19 = sadd.s32 %s12, 1
    %s20 = ssub.s32 %s12, %s19
    %p21 = scmp.eq.s32.totalorder %s20, 0
    %s23 = sadd.s32 %s22, 1
    %s24 = scalar_select %p21, %s22, %s23
    %p27 = pneg %p21
    %p28 = scmp.eq.s32.totalorder %s12, 1
    %p29 = por %p27, %p28
    %p30 = scmp.ne.s32.totalorder %s22, %s25
    %p31 = scmp.eq.s32.totalorder %s12, 0
    %p32 = por %p30, %p31
    %p33 = scmp.ne.s32.totalorder %s22, %s25
    %p34 = scmp.eq.s32.totalorder %s17, 1
    %p35 = por %p33, %p34
    %p36 = scmp.ne.s32.totalorder %s25, %s26
    %p37 = scmp.eq.s32.totalorder %s17, 0
    %p38 = por %p36, %p37
    %p39 = scmp.ne.s32.totalorder %s25, %s26
    %p40 = scmp.eq.s32.totalorder %s18, 1
    %p41 = por %p39, %p40
    %p43 = scmp.ne.s32.totalorder %s26, %s42
    %p44 = scmp.eq.s32.totalorder %s18, 0
    %p45 = por %p43, %p44
    %s47 = sadd.s32 %s46, 1
    %p50 = scmp.eq.s32.totalorder %s12, 1
    %p51 = scmp.ne.s32.totalorder %s46, %s48
    %p52 = scmp.eq.s32.totalorder %s12, 0
    %p53 = por %p51, %p52
    %p54 = scmp.ne.s32.totalorder %s46, %s48
    %p55 = scmp.eq.s32.totalorder %s17, 1
    %p56 = por %p54, %p55
    %p57 = scmp.ne.s32.totalorder %s48, %s49
    %p58 = scmp.eq.s32.totalorder %s17, 0
    %p59 = por %p57, %p58
    %p60 = scmp.ne.s32.totalorder %s48, %s49
    %p61 = scmp.eq.s32.totalorder %s18, 1
    %p62 = por %p60, %p61
    %p64 = scmp.ne.s32.totalorder %s49, %s63
    %p65 = scmp.eq.s32.totalorder %s18, 0
    %p66 = por %p64, %p65
    %s68 = sadd.s32 %s67, 1
    %p71 = scmp.eq.s32.totalorder %s12, 1
    %p72 = scmp.ne.s32.totalorder %s67, %s69
    %p73 = scmp.eq.s32.totalorder %s12, 0
    %p74 = por %p72, %p73
    %p75 = scmp.ne.s32.totalorder %s67, %s69
    %p76 = scmp.eq.s32.totalorder %s17, 1
    %p77 = por %p75, %p76
    %p78 = scmp.ne.s32.totalorder %s69, %s70
    %p79 = scmp.eq.s32.totalorder %s17, 0
    %p80 = por %p78, %p79
    %p81 = scmp.ne.s32.totalorder %s69, %s70
    %p82 = scmp.eq.s32.totalorder %s18, 1
    %p83 = por %p81, %p82
    %p85 = scmp.ne.s32.totalorder %s70, %s84
    %p86 = scmp.eq.s32.totalorder %s18, 0
    %p87 = por %p85, %p86
    %s89 = sadd.s32 %s88, 1
    %p92 = scmp.eq.s32.totalorder %s12, 1
    %p93 = scmp.ne.s32.totalorder %s88, %s90
    %p94 = scmp.eq.s32.totalorder %s12, 0
    %p95 = por %p93, %p94
    %p96 = scmp.ne.s32.totalorder %s88, %s90
    %p97 = scmp.eq.s32.totalorder %s17, 1
    %p98 = por %p96, %p97
    %p99 = scmp.ne.s32.totalorder %s90, %s91
    %p100 = scmp.eq.s32.totalorder %s17, 0
    %p101 = por %p99, %p100
    %p102 = scmp.ne.s32.totalorder %s90, %s91
    %p103 = scmp.eq.s32.totalorder %s18, 1
    %p104 = por %p102, %p103
    %p106 = scmp.ne.s32.totalorder %s91, %s105
    %p107 = scmp.eq.s32.totalorder %s18, 0
    %p108 = por %p106, %p107
    %s109 = ssub.s32 %s12, %s19
    %p110 = scmp.eq.s32.totalorder %s109, 0
    %s112 = sadd.s32 %s111, 1
    %s113 = scalar_select %p110, %s111, %s112
    %p116 = pneg %p110
    %p117 = scmp.eq.s32.totalorder %s12, 1
    %p118 = por %p116, %p117
    %p119 = scmp.ne.s32.totalorder %s111, %s114
    %p120 = scmp.eq.s32.totalorder %s12, 0
    %p121 = por %p119, %p120
    %p122 = scmp.ne.s32.totalorder %s111, %s114
    %p123 = scmp.eq.s32.totalorder %s17, 1
    %p124 = por %p122, %p123
    %p125 = scmp.ne.s32.totalorder %s114, %s115
    %p126 = scmp.eq.s32.totalorder %s17, 0
    %p127 = por %p125, %p126
    %p128 = scmp.ne.s32.totalorder %s114, %s115
    %p129 = scmp.eq.s32.totalorder %s18, 1
    %p130 = por %p128, %p129
    %p132 = scmp.ne.s32.totalorder %s115, %s131
    %p133 = scmp.eq.s32.totalorder %s18, 0
    %p134 = por %p132, %p133
    %s135 = ssub.s32 %s12, %s19
    %p136 = scmp.eq.s32.totalorder %s135, 0
    %s138 = sadd.s32 %s137, 1
    %s139 = scalar_select %p136, %s137, %s138
    %p142 = pneg %p136
    %p143 = scmp.eq.s32.totalorder %s12, 1
    %p144 = por %p142, %p143
    %p145 = scmp.ne.s32.totalorder %s137, %s140
    %p146 = scmp.eq.s32.totalorder %s12, 0
    %p147 = por %p145, %p146
    %p148 = scmp.ne.s32.totalorder %s137, %s140
    %p149 = scmp.eq.s32.totalorder %s17, 1
    %p150 = por %p148, %p149
    %p151 = scmp.ne.s32.totalorder %s140, %s141
    %p152 = scmp.eq.s32.totalorder %s17, 0
    %p153 = por %p151, %p152
    %p154 = scmp.ne.s32.totalorder %s140, %s141
    %p155 = scmp.eq.s32.totalorder %s18, 1
    %p156 = por %p154, %p155
    %p158 = scmp.ne.s32.totalorder %s141, %s157
    %p159 = scmp.eq.s32.totalorder %s18, 0
    %p160 = por %p158, %p159
    %p161 = scmp.le.s32.totalorder 1, %s12
    %p162 = scmp.lt.s32.totalorder %s12, 3
    %p163 = pnand %p161, %p162
    %p164 = pneg %p163
    // Predicated region
    $region9: #{patch_discriminator_forward.7} parent=5 // pred_check
      _
    $region10: #{patch_discriminator_forward.7} parent=5 // pred_check_branch
      %166 = sbr.rel (%p163) target = $region12
    $region11: #{patch_discriminator_forward.7} parent=5 // pred_region
      %s167 = ssub.s32 %s12, 1
      // Predicated region
      $region13: #{patch_discriminator_forward.7} parent=11 // pred_check
        %p168 = pneg %p59
      $region14: #{patch_discriminator_forward.7} parent=11 // pred_check_branch
        %170 = sbr.rel (%p168) target = $region16
      $region15: #{patch_discriminator_forward.7} parent=11 // pred_region
        _
      $region16: #{patch_discriminator_forward.7} parent=11 // pred_fallthru
        _
      // Predicated region
      $region17: #{patch_discriminator_forward.7} parent=11 // pred_check
        %p171 = pneg %p80
      $region18: #{patch_discriminator_forward.7} parent=11 // pred_check_branch
        %173 = sbr.rel (%p171) target = $region20
      $region19: #{patch_discriminator_forward.7} parent=11 // pred_region
        _
      $region20: #{patch_discriminator_forward.7} parent=11 // pred_fallthru
        _
      // Predicated region
      $region21: #{patch_discriminator_forward.7} parent=11 // pred_check
        %p174 = pneg %p101
      $region22: #{patch_discriminator_forward.7} parent=11 // pred_check_branch
        %176 = sbr.rel (%p174) target = $region24
      $region23: #{patch_discriminator_forward.7} parent=11 // pred_region
        _
      $region24: #{patch_discriminator_forward.7} parent=11 // pred_fallthru
        _
    $region12: #{patch_discriminator_forward.7} parent=5 // pred_fallthru
      _
    %p177 = scmp.lt.s32.totalorder %s12, 2
    // Predicated region
    $region25: #{patch_discriminator_forward.7} parent=5 // pred_check
      %p178 = pneg %p177
    $region26: #{patch_discriminator_forward.7} parent=5 // pred_check_branch
      %180 = sbr.rel (%p178) target = $region28
    $region27: #{patch_discriminator_forward.7} parent=5 // pred_region
      // Predicated region
      $region29: #{patch_discriminator_forward.7} parent=27 // pred_check
        %p181 = pneg %p32
      $region30: #{patch_discriminator_forward.7} parent=27 // pred_check_branch
        %183 = sbr.rel (%p181) target = $region32
      $region31: #{patch_discriminator_forward.7} parent=27 // pred_region
        %p184 = scmp.lt.s32.totalorder %s12, 1
        %s185 = scalar_select %p184, %s12, 1
        %s186 = smul.addr %s185, 4
        %s187 = smul.addr %s186, 8
        %s188 = scalar_lea.vmem %s0, %s187
      $region32: #{patch_discriminator_forward.7} parent=27 // pred_fallthru
        _
    $region28: #{patch_discriminator_forward.7} parent=5 // pred_fallthru
      _
    %p189 = scmp.le.s32.totalorder 1, %s12
    %p190 = scmp.lt.s32.totalorder %s12, 3
    %p191 = pnand %p189, %p190
    %p192 = pneg %p191
    // Predicated region
    $region33: #{patch_discriminator_forward.7} parent=5 // pred_check
      _
    $region34: #{patch_discriminator_forward.7} parent=5 // pred_check_branch
      %194 = sbr.rel (%p191) target = $region36
    $region35: #{patch_discriminator_forward.7} parent=5 // pred_region
      %s195 = ssub.s32 %s12, 1
      %p196 = scmp.lt.s32.totalorder %s17, 1
      %s197 = scalar_select %p196, %s17, 1
      %s198 = smul.addr %s197, 4
      %s199 = smul.addr %s198, 8
      %s200 = scalar_lea.vmem %s0, %s199
      %p201 = pneg %p38
      %p202 = pneg %p35
      %p203 = pneg %p59
      %p204 = pneg %p56
      %p205 = pneg %p80
      %p206 = pneg %p77
      %p207 = pneg %p101
      %p208 = pneg %p98
      %p209 = pneg %p127
      %p210 = pneg %p124
      %p211 = scmp.lt.s32.totalorder %s17, 1
      %s212 = scalar_select %p211, %s17, 1
      %s213 = smul.addr %s212, 3
      %s214 = smul.addr %s213, 8
      %s215 = scalar_lea.vmem %s4, %s214
      %p216 = pneg %p153
      %p217 = pneg %p150
      %p218 = scmp.lt.s32.totalorder %s17, 1
      %s219 = scalar_select %p218, %s17, 1
      %s220 = smul.addr %s219, 2
      %s221 = scalar_lea.vmem %s5, %s220
      %p222 = scmp.lt.s32.totalorder %s17, 1
      %s223 = scalar_select %p222, %s17, 1
      %s224 = smul.addr %s223, 4
      %s225 = smul.addr %s224, 8
      %s226 = scalar_lea.vmem %s0, %s225
      %p227 = scmp.lt.s32.totalorder %s17, 1
      %s228 = scalar_select %p227, %s17, 1
      %s229 = smul.addr %s228, 3
      %s230 = smul.addr %s229, 8
      %s231 = scalar_lea.vmem %s4, %s230
      %p232 = scmp.lt.s32.totalorder %s17, 1
      %s233 = scalar_select %p232, %s17, 1
      %s234 = smul.addr %s233, 2
      %s235 = scalar_lea.vmem %s5, %s234
      %v236 = vld [vmem:[%s226] sm:$0xff]
      %v237 = vld [vmem:[%s226 + $0x8] sm:$0xff]
      %v238 = vld [vmem:[%s226 + $0x10] sm:$0xff]
      %v239 = vld [vmem:[%s226 + $0x18] sm:$0x1]
      %v240 = vld [vmem:[%s2] sm:$0x1]
      %v242 = vlaneseq
      %v243 = vshrl.u32 %v242, 7
      %v244 = vsub.s32 0, %v243
      %v245 = vrot.slane %v240, %v244
      %v247 = vmul.f32 %v236, %v245
      %v248 = vmul.f32 %v237, %v245
      %v249 = vmul.f32 %v238, %v245
      %v250 = vmul.f32 %v239, %v245
      %v251 = vld [vmem:[%s3] sm:$0x1]
      %v253 = vlaneseq
      %v254 = vshrl.u32 %v253, 7
      %v255 = vsub.s32 0, %v254
      %v256 = vrot.slane %v251, %v255
      %v258 = vadd.f32 %v247, %v256
      %v259 = vadd.f32 %v248, %v256
      %v260 = vadd.f32 %v249, %v256
      %v261 = vadd.f32 %v250, %v256
      %vm262 = vcmp.gt.f32.partialorder %v258, 0.0
      %vm263 = vcmp.gt.f32.partialorder %v259, 0.0
      %vm264 = vcmp.gt.f32.partialorder %v260, 0.0
      %vm265 = vcmp.gt.f32.partialorder %v261, 0.0
      %v266 = vmul.f32 %v258, 0.2
      %v267 = vmul.f32 %v259, 0.2
      %v268 = vmul.f32 %v260, 0.2
      %v269 = vmul.f32 %v261, 0.2
      %v270 = vsel %vm262, %v258, %v266
      %v271 = vsel %vm263, %v259, %v267
      %v272 = vsel %vm264, %v260, %v268
      %v273 = vsel %vm265, %v261, %v269
      %v274 = vlaneseq
      %v275 = vshrl.u32 %v274, 7
      %v276 = vadd.s32 %v275, 8
      %v277 = vadd.s32 %v275, 16
      %v278 = vadd.s32 %v275, 24
      %vm279 = vcmp.lt.s32.totalorder %v275, 0
      %v280 = vsub.s32 0, %v275
      %v281 = vsel %vm279, %v280, %v275
      %v282 = vmul.u32.u64.compose %v281, 3435973837
      %v283 = vextract.low.u32 %v282
      %v284 = vextract.high.u32 %v282
      %v285 = vshrl.u32 %v284, 2
      %v286 = vmul.u32 %v285, 5
      %v287 = vsub.s32 %v281, %v286
      %v288 = vsub.s32 0, %v287
      %v289 = vsel %vm279, %v288, %v287
      %vm290 = vcmp.lt.s32.totalorder %v276, 0
      %v291 = vsub.s32 0, %v276
      %v292 = vsel %vm290, %v291, %v276
      %v293 = vmul.u32.u64.compose %v292, 3435973837
      %v294 = vextract.low.u32 %v293
      %v295 = vextract.high.u32 %v293
      %v296 = vshrl.u32 %v295, 2
      %v297 = vmul.u32 %v296, 5
      %v298 = vsub.s32 %v292, %v297
      %v299 = vsub.s32 0, %v298
      %v300 = vsel %vm290, %v299, %v298
      %vm301 = vcmp.lt.s32.totalorder %v277, 0
      %v302 = vsub.s32 0, %v277
      %v303 = vsel %vm301, %v302, %v277
      %v304 = vmul.u32.u64.compose %v303, 3435973837
      %v305 = vextract.low.u32 %v304
      %v306 = vextract.high.u32 %v304
      %v307 = vshrl.u32 %v306, 2
      %v308 = vmul.u32 %v307, 5
      %v309 = vsub.s32 %v303, %v308
      %v310 = vsub.s32 0, %v309
      %v311 = vsel %vm301, %v310, %v309
      %vm312 = vcmp.lt.s32.totalorder %v278, 0
      %v313 = vsub.s32 0, %v278
      %v314 = vsel %vm312, %v313, %v278
      %v315 = vmul.u32.u64.compose %v314, 3435973837
      %v316 = vextract.low.u32 %v315
      %v317 = vextract.high.u32 %v315
      %v318 = vshrl.u32 %v317, 2
      %v319 = vmul.u32 %v318, 5
      %v320 = vsub.s32 %v314, %v319
      %v321 = vsub.s32 0, %v320
      %v322 = vsel %vm312, %v321, %v320
      %vm323 = vcmp.ne.s32.totalorder %v289, 0
      %vm324 = vcmp.ne.s32.totalorder %v300, 0
      %vm325 = vcmp.ne.s32.totalorder %v311, 0
      %vm326 = vcmp.ne.s32.totalorder %v322, 0
      %vm327 = vcmp.lt.s32.totalorder %v289, 0
      %vm328 = vcmp.lt.s32.totalorder %v300, 0
      %vm329 = vcmp.lt.s32.totalorder %v311, 0
      %vm330 = vcmp.lt.s32.totalorder %v322, 0
      %vm331 = vmand %vm327, %vm323
      %vm332 = vmand %vm328, %vm324
      %vm333 = vmand %vm329, %vm325
      %vm334 = vmand %vm330, %vm326
      %v335 = vadd.s32 %v289, 5
      %v336 = vadd.s32 %v300, 5
      %v337 = vadd.s32 %v311, 5
      %v338 = vadd.s32 %v322, 5
      %v339 = vsel %vm331, %v335, %v289
      %v340 = vsel %vm332, %v336, %v300
      %v341 = vsel %vm333, %v337, %v311
      %v342 = vsel %vm334, %v338, %v322
      %vm343 = vcmp.ge.s32.totalorder %v275, 5
      %vm344 = vcmp.ge.s32.totalorder %v276, 5
      %vm345 = vcmp.ge.s32.totalorder %v277, 5
      %vm346 = vcmp.ge.s32.totalorder %v278, 5
      %vm347 = vcmp.lt.s32.totalorder %v275, 20
      %vm348 = vcmp.lt.s32.totalorder %v276, 20
      %vm349 = vcmp.lt.s32.totalorder %v277, 20
      %vm350 = vcmp.lt.s32.totalorder %v278, 20
      %vm351 = vcmp.ge.s32.totalorder %v339, 1
      %vm352 = vcmp.ge.s32.totalorder %v340, 1
      %vm353 = vcmp.ge.s32.totalorder %v341, 1
      %vm354 = vcmp.ge.s32.totalorder %v342, 1
      %vm355 = vcmp.le.s32.totalorder %v339, 3
      %vm356 = vcmp.le.s32.totalorder %v340, 3
      %vm357 = vcmp.le.s32.totalorder %v341, 3
      %vm358 = vcmp.le.s32.totalorder %v342, 3
      %v359 = vlaneseq
      %v360 = vand.u32 %v359, 127
      %vm361 = vcmp.ge.s32.totalorder %v360, 32
      %vm362 = vcmp.lt.s32.totalorder %v360, 32
      %vm363 = vcmp.ge.s32.totalorder %v360, 16
      %vm364 = vmand %vm363, %vm362
      %vm365 = vcmp.ge.s32.totalorder %v360, 48
      %vm366 = vmor %vm364, %vm365
      %vm367 = vcmp.lt.s32.totalorder %v360, 16
      %vm368 = vcmp.lt.s32.totalorder %v360, 48
      %vm369 = vmand %vm361, %vm368
      %vm370 = vmor %vm367, %vm369
      %v371 = vsel %vm343, 1, 0
      %v372 = vsel %vm344, 1, 0
      %v373 = vsel %vm345, 1, 0
      %v374 = vsel %vm346, 1, 0
      %vm375 = vcmp.eq.s32.totalorder %v371, 1
      %vm376 = vcmp.eq.s32.totalorder %v372, 1
      %vm377 = vcmp.eq.s32.totalorder %v373, 1
      %vm378 = vcmp.eq.s32.totalorder %v374, 1
      %v379 = vsel %vm361, 1, 0
      %vm380 = vcmp.eq.s32.totalorder %v379, 1
      %vm381 = vmor %vm375, %vm380
      %vm382 = vmor %vm376, %vm380
      %vm383 = vmor %vm377, %vm380
      %vm384 = vmor %vm378, %vm380
      %v385 = vsel %vm347, 1, 0
      %v386 = vsel %vm348, 1, 0
      %v387 = vsel %vm349, 1, 0
      %v388 = vsel %vm350, 1, 0
      %vm389 = vcmp.eq.s32.totalorder %v385, 1
      %vm390 = vcmp.eq.s32.totalorder %v386, 1
      %vm391 = vcmp.eq.s32.totalorder %v387, 1
      %vm392 = vcmp.eq.s32.totalorder %v388, 1
      %v393 = vsel %vm362, 1, 0
      %vm394 = vcmp.eq.s32.totalorder %v393, 1
      %vm395 = vmor %vm389, %vm394
      %vm396 = vmor %vm390, %vm394
      %vm397 = vmor %vm391, %vm394
      %vm398 = vmor %vm392, %vm394
      %vm399 = vmand %vm381, %vm395
      %vm400 = vmand %vm382, %vm396
      %vm401 = vmand %vm383, %vm397
      %vm402 = vmand %vm384, %vm398
      %v403 = vsel %vm351, 1, 0
      %v404 = vsel %vm352, 1, 0
      %v405 = vsel %vm353, 1, 0
      %v406 = vsel %vm354, 1, 0
      %vm407 = vcmp.eq.s32.totalorder %v403, 1
      %vm408 = vcmp.eq.s32.totalorder %v404, 1
      %vm409 = vcmp.eq.s32.totalorder %v405, 1
      %vm410 = vcmp.eq.s32.totalorder %v406, 1
      %v411 = vsel %vm366, 1, 0
      %vm412 = vcmp.eq.s32.totalorder %v411, 1
      %vm413 = vmor %vm407, %vm412
      %vm414 = vmor %vm408, %vm412
      %vm415 = vmor %vm409, %vm412
      %vm416 = vmor %vm410, %vm412
      %vm417 = vmand %vm399, %vm413
      %vm418 = vmand %vm400, %vm414
      %vm419 = vmand %vm401, %vm415
      %vm420 = vmand %vm402, %vm416
      %v421 = vsel %vm355, 1, 0
      %v422 = vsel %vm356, 1, 0
      %v423 = vsel %vm357, 1, 0
      %v424 = vsel %vm358, 1, 0
      %vm425 = vcmp.eq.s32.totalorder %v421, 1
      %vm426 = vcmp.eq.s32.totalorder %v422, 1
      %vm427 = vcmp.eq.s32.totalorder %v423, 1
      %vm428 = vcmp.eq.s32.totalorder %v424, 1
      %v429 = vsel %vm370, 1, 0
      %vm430 = vcmp.eq.s32.totalorder %v429, 1
      %vm431 = vmor %vm425, %vm430
      %vm432 = vmor %vm426, %vm430
      %vm433 = vmor %vm427, %vm430
      %vm434 = vmor %vm428, %vm430
      %vm435 = vmand %vm417, %vm431
      %vm436 = vmand %vm418, %vm432
      %vm437 = vmand %vm419, %vm433
      %vm438 = vmand %vm420, %vm434
      %v439 = vsel %vm435, %v270, 0.0
      %v440 = vsel %vm436, %v271, 0.0
      %v441 = vsel %vm437, %v272, 0.0
      %v442 = vsel %vm438, %v273, 0.0
      %v443 = vld [vmem:[%s1] sm:$0xff]
      %v444 = vld [vmem:[%s1 + $0x8] sm:$0xff]
      %v445 = vld [vmem:[%s1 + $0x10] sm:$0xff]
      %v446 = vld [vmem:[%s1 + $0x18] sm:$0xff]
      %v447 = vld [vmem:[%s1 + $0x20] sm:$0xff]
      %v448 = vld [vmem:[%s1 + $0x28] sm:$0xff]
      %v449 = vld [vmem:[%s1 + $0x30] sm:$0xff]
      %v450 = vld [vmem:[%s1 + $0x38] sm:$0xff]
      %s451 = scalar_lea.vmem %s1, 64
      %v452 = vld [vmem:[%s451] sm:$0xff]
      %v453 = vld [vmem:[%s451 + $0x8] sm:$0xff]
      %v454 = vld [vmem:[%s451 + $0x10] sm:$0xff]
      %v455 = vld [vmem:[%s451 + $0x18] sm:$0xff]
      %v456 = vld [vmem:[%s451 + $0x20] sm:$0xff]
      %v457 = vld [vmem:[%s451 + $0x28] sm:$0xff]
      %v458 = vld [vmem:[%s451 + $0x30] sm:$0xff]
      %v459 = vld [vmem:[%s451 + $0x38] sm:$0xff]
      %vm463 = vcmask 1046528
      %v464 = vrot.slane %v439, 1
      %v465 = vrot.slane %v440, 1
      %v466 = vsel %vm463, %v464, %v465
      %v467 = vrot.slane %v441, 1
      %v468 = vsel %vm463, %v465, %v467
      %vm469 = vcmask 523264
      %v470 = vsel %vm469, %v466, 0
      %v472 = vsel %vm469, %v468, 0
      %v474 = vsel %vm469, %v467, 0
      %476 = vmatprep.subr.mxu0 0.0
      %477 = vmatpush1.msra.mxu0 %v452
      %478 = vmatprep.subr.mxu0 0.0
      %479 = vmatpush1.msra.mxu0 %v453
      %480 = vmatprep.subr.mxu0 0.0
      %481 = vmatpush1.msra.mxu0 %v454
      %482 = vmatprep.subr.mxu0 0.0
      %483 = vmatpush1.msra.mxu0 %v455
      %484 = vmatprep.subr.mxu0 0.0
      %485 = vmatpush1.msra.mxu0 %v456
      %486 = vmatprep.subr.mxu0 0.0
      %487 = vmatpush1.msra.mxu0 %v457
      %488 = vmatprep.subr.mxu0 0.0
      %489 = vmatpush1.msra.mxu0 %v458
      %490 = vmatprep.subr.mxu0 0.0
      %491 = vmatpush1.msra.mxu0 %v459
      %492 = vmatprep.subr.mxu0 0.0
      %493 = vmatpush1.msra.mxu0 0.0
      %494 = vmatprep.subr.mxu0 0.0
      %495 = vmatpush1.msra.mxu0 0.0
      %496 = vmatprep.subr.mxu0 0.0
      %497 = vmatpush1.msra.mxu0 0.0
      %498 = vmatprep.subr.mxu0 0.0
      %499 = vmatpush1.msra.mxu0 0.0
      %500 = vmatprep.subr.mxu0 0.0
      %501 = vmatpush1.msra.mxu0 0.0
      %502 = vmatprep.subr.mxu0 0.0
      %503 = vmatpush1.msra.mxu0 0.0
      %504 = vmatprep.subr.mxu0 0.0
      %505 = vmatpush1.msra.mxu0 0.0
      %506 = vmatprep.subr.mxu0 0.0
      %507 = vmatpush1.msra.mxu0 0.0
      %508 = vmatprep.subr.mxu0 0.0
      %509 = vmatpush1.msra.mxu0 0.0
      %510 = vmatprep.subr.mxu0 0.0
      %511 = vmatpush1.msra.mxu0 0.0
      %512 = vmatprep.subr.mxu0 0.0
      %513 = vmatpush1.msra.mxu0 0.0
      %514 = vmatprep.subr.mxu0 0.0
      %515 = vmatpush1.msra.mxu0 0.0
      %516 = vmatprep.subr.mxu0 0.0
      %517 = vmatpush1.msra.mxu0 0.0
      %518 = vmatprep.subr.mxu0 0.0
      %519 = vmatpush1.msra.mxu0 0.0
      %520 = vmatprep.subr.mxu0 0.0
      %521 = vmatpush1.msra.mxu0 0.0
      %522 = vmatprep.subr.mxu0 0.0
      %523 = vmatpush1.msra.mxu0 0.0
      %524 = vmatprep.subr.mxu0 0.0
      %525 = vmatpush1.msra.mxu0 0.0
      %526 = vmatprep.subr.mxu0 0.0
      %527 = vmatpush1.msra.mxu0 0.0
      %528 = vmatprep.subr.mxu0 0.0
      %529 = vmatpush1.msra.mxu0 0.0
      %530 = vmatprep.subr.mxu0 0.0
      %531 = vmatpush1.msra.mxu0 0.0
      %532 = vmatprep.subr.mxu0 0.0
      %533 = vmatpush1.msra.mxu0 0.0
      %534 = vmatprep.subr.mxu0 0.0
      %535 = vmatpush1.msra.mxu0 0.0
      %536 = vmatprep.subr.mxu0 0.0
      %537 = vmatpush1.msra.mxu0 0.0
      %538 = vmatprep.subr.mxu0 0.0
      %539 = vmatpush1.msra.mxu0 0.0
      %540 = vmatprep.mubr.f32.mxu0 0.0
      %541 = vmatmul.mubr.f32.gmra.mrb[0].mxu0 %v470
      %v542 = vpop.f32.mrb[0].mxu0
      %v543 = vadd.f32 0.0, %v542
      %v544 = vpop.f32.mrb[0].mxu0
      %545 = vmatprep.mubr.f32.mxu0 0.0
      %546 = vmatmul.mubr.f32.gmra.mrb[0].mxu0 %v472
      %v547 = vpop.f32.mrb[0].mxu0
      %v548 = vadd.f32 0.0, %v547
      %v549 = vpop.f32.mrb[0].mxu0
      %550 = vmatprep.mubr.f32.mxu0 0.0
      %551 = vmatmul.mubr.f32.gmra.mrb[0].mxu0 %v474
      %v552 = vpop.f32.mrb[0].mxu0
      %v553 = vadd.f32 0.0, %v552
      %v554 = vpop.f32.mrb[0].mxu0
      %555 = vdwg.mxu0
      %v556 = vsel %vm469, %v439, 0
      %v558 = vsel %vm469, %v440, 0
      %v560 = vsel %vm469, %v441, 0
      %562 = vmatprep.subr.mxu0 0.0
      %563 = vmatpush1.msra.mxu0 %v443
      %564 = vmatprep.subr.mxu0 0.0
      %565 = vmatpush1.msra.mxu0 %v444
      %566 = vmatprep.subr.mxu0 0.0
      %567 = vmatpush1.msra.mxu0 %v445
      %568 = vmatprep.subr.mxu0 0.0
      %569 = vmatpush1.msra.mxu0 %v446
      %570 = vmatprep.subr.mxu0 0.0
      %571 = vmatpush1.msra.mxu0 %v447
      %572 = vmatprep.subr.mxu0 0.0
      %573 = vmatpush1.msra.mxu0 %v448
      %574 = vmatprep.subr.mxu0 0.0
      %575 = vmatpush1.msra.mxu0 %v449
      %576 = vmatprep.subr.mxu0 0.0
      %577 = vmatpush1.msra.mxu0 %v450
      %578 = vmatprep.subr.mxu0 0.0
      %579 = vmatpush1.msra.mxu0 0.0
      %580 = vmatprep.subr.mxu0 0.0
      %581 = vmatpush1.msra.mxu0 0.0
      %582 = vmatprep.subr.mxu0 0.0
      %583 = vmatpush1.msra.mxu0 0.0
      %584 = vmatprep.subr.mxu0 0.0
      %585 = vmatpush1.msra.mxu0 0.0
      %586 = vmatprep.subr.mxu0 0.0
      %587 = vmatpush1.msra.mxu0 0.0
      %588 = vmatprep.subr.mxu0 0.0
      %589 = vmatpush1.msra.mxu0 0.0
      %590 = vmatprep.subr.mxu0 0.0
      %591 = vmatpush1.msra.mxu0 0.0
      %592 = vmatprep.subr.mxu0 0.0
      %593 = vmatpush1.msra.mxu0 0.0
      %594 = vmatprep.subr.mxu0 0.0
      %595 = vmatpush1.msra.mxu0 0.0
      %596 = vmatprep.subr.mxu0 0.0
      %597 = vmatpush1.msra.mxu0 0.0
      %598 = vmatprep.subr.mxu0 0.0
      %599 = vmatpush1.msra.mxu0 0.0
      %600 = vmatprep.subr.mxu0 0.0
      %601 = vmatpush1.msra.mxu0 0.0
      %602 = vmatprep.subr.mxu0 0.0
      %603 = vmatpush1.msra.mxu0 0.0
      %604 = vmatprep.subr.mxu0 0.0
      %605 = vmatpush1.msra.mxu0 0.0
      %606 = vmatprep.subr.mxu0 0.0
      %607 = vmatpush1.msra.mxu0 0.0
      %608 = vmatprep.subr.mxu0 0.0
      %609 = vmatpush1.msra.mxu0 0.0
      %610 = vmatprep.subr.mxu0 0.0
      %611 = vmatpush1.msra.mxu0 0.0
      %612 = vmatprep.subr.mxu0 0.0
      %613 = vmatpush1.msra.mxu0 0.0
      %614 = vmatprep.subr.mxu0 0.0
      %615 = vmatpush1.msra.mxu0 0.0
      %616 = vmatprep.subr.mxu0 0.0
      %617 = vmatpush1.msra.mxu0 0.0
      %618 = vmatprep.subr.mxu0 0.0
      %619 = vmatpush1.msra.mxu0 0.0
      %620 = vmatprep.subr.mxu0 0.0
      %621 = vmatpush1.msra.mxu0 0.0
      %622 = vmatprep.subr.mxu0 0.0
      %623 = vmatpush1.msra.mxu0 0.0
      %624 = vmatprep.subr.mxu0 0.0
      %625 = vmatpush1.msra.mxu0 0.0
      %626 = vmatprep.mubr.f32.mxu0 0.0
      %627 = vmatmul.mubr.f32.gmra.mrb[0].mxu0 %v556
      %v628 = vpop.f32.mrb[0].mxu0
      %v629 = vadd.f32 %v543, %v628
      %v630 = vpop.f32.mrb[0].mxu0
      %631 = vmatprep.mubr.f32.mxu0 0.0
      %632 = vmatmul.mubr.f32.gmra.mrb[0].mxu0 %v558
      %v633 = vpop.f32.mrb[0].mxu0
      %v634 = vadd.f32 %v548, %v633
      %v635 = vpop.f32.mrb[0].mxu0
      %636 = vmatprep.mubr.f32.mxu0 0.0
      %637 = vmatmul.mubr.f32.gmra.mrb[0].mxu0 %v560
      %v638 = vpop.f32.mrb[0].mxu0
      %v639 = vadd.f32 %v553, %v638
      %v640 = vpop.f32.mrb[0].mxu0
      %641 = vdwg.mxu0
      %s642 = scalar_lea.vmem %s1, 128
      %v643 = vld [vmem:[%s642] sm:$0xff]
      %v644 = vld [vmem:[%s642 + $0x8] sm:$0xff]
      %v645 = vld [vmem:[%s642 + $0x10] sm:$0xff]
      %v646 = vld [vmem:[%s642 + $0x18] sm:$0xff]
      %v647 = vld [vmem:[%s642 + $0x20] sm:$0xff]
      %v648 = vld [vmem:[%s642 + $0x28] sm:$0xff]
      %v649 = vld [vmem:[%s642 + $0x30] sm:$0xff]
      %v650 = vld [vmem:[%s642 + $0x38] sm:$0xff]
      %vm651 = vcmask 1042432
      %v652 = vrot.slane %v439, 5
      %v653 = vrot.slane %v440, 5
      %v654 = vsel %vm651, %v652, %v653
      %v655 = vrot.slane %v441, 5
      %v656 = vsel %vm651, %v653, %v655
      %v657 = vsel %vm469, %v654, 0
      %v659 = vsel %vm469, %v656, 0
      %v661 = vsel %vm469, %v655, 0
      %663 = vmatprep.subr.mxu0 0.0
      %664 = vmatpush1.msra.mxu0 %v643
      %665 = vmatprep.subr.mxu0 0.0
      %666 = vmatpush1.msra.mxu0 %v644
      %667 = vmatprep.subr.mxu0 0.0
      %668 = vmatpush1.msra.mxu0 %v645
      %669 = vmatprep.subr.mxu0 0.0
      %670 = vmatpush1.msra.mxu0 %v646
      %671 = vmatprep.subr.mxu0 0.0
      %672 = vmatpush1.msra.mxu0 %v647
      %673 = vmatprep.subr.mxu0 0.0
      %674 = vmatpush1.msra.mxu0 %v648
      %675 = vmatprep.subr.mxu0 0.0
      %676 = vmatpush1.msra.mxu0 %v649
      %677 = vmatprep.subr.mxu0 0.0
      %678 = vmatpush1.msra.mxu0 %v650
      %679 = vmatprep.subr.mxu0 0.0
      %680 = vmatpush1.msra.mxu0 0.0
      %681 = vmatprep.subr.mxu0 0.0
      %682 = vmatpush1.msra.mxu0 0.0
      %683 = vmatprep.subr.mxu0 0.0
      %684 = vmatpush1.msra.mxu0 0.0
      %685 = vmatprep.subr.mxu0 0.0
      %686 = vmatpush1.msra.mxu0 0.0
      %687 = vmatprep.subr.mxu0 0.0
      %688 = vmatpush1.msra.mxu0 0.0
      %689 = vmatprep.subr.mxu0 0.0
      %690 = vmatpush1.msra.mxu0 0.0
      %691 = vmatprep.subr.mxu0 0.0
      %692 = vmatpush1.msra.mxu0 0.0
      %693 = vmatprep.subr.mxu0 0.0
      %694 = vmatpush1.msra.mxu0 0.0
      %695 = vmatprep.subr.mxu0 0.0
      %696 = vmatpush1.msra.mxu0 0.0
      %697 = vmatprep.subr.mxu0 0.0
      %698 = vmatpush1.msra.mxu0 0.0
      %699 = vmatprep.subr.mxu0 0.0
      %700 = vmatpush1.msra.mxu0 0.0
      %701 = vmatprep.subr.mxu0 0.0
      %702 = vmatpush1.msra.mxu0 0.0
      %703 = vmatprep.subr.mxu0 0.0
      %704 = vmatpush1.msra.mxu0 0.0
      %705 = vmatprep.subr.mxu0 0.0
      %706 = vmatpush1.msra.mxu0 0.0
      %707 = vmatprep.subr.mxu0 0.0
      %708 = vmatpush1.msra.mxu0 0.0
      %709 = vmatprep.subr.mxu0 0.0
      %710 = vmatpush1.msra.mxu0 0.0
      %711 = vmatprep.subr.mxu0 0.0
      %712 = vmatpush1.msra.mxu0 0.0
      %713 = vmatprep.subr.mxu0 0.0
      %714 = vmatpush1.msra.mxu0 0.0
      %715 = vmatprep.subr.mxu0 0.0
      %716 = vmatpush1.msra.mxu0 0.0
      %717 = vmatprep.subr.mxu0 0.0
      %718 = vmatpush1.msra.mxu0 0.0
      %719 = vmatprep.subr.mxu0 0.0
      %720 = vmatpush1.msra.mxu0 0.0
      %721 = vmatprep.subr.mxu0 0.0
      %722 = vmatpush1.msra.mxu0 0.0
      %723 = vmatprep.subr.mxu0 0.0
      %724 = vmatpush1.msra.mxu0 0.0
      %725 = vmatprep.subr.mxu0 0.0
      %726 = vmatpush1.msra.mxu0 0.0
      %727 = vmatprep.mubr.f32.mxu0 0.0
      %728 = vmatmul.mubr.f32.gmra.mrb[0].mxu0 %v657
      %v729 = vpop.f32.mrb[0].mxu0
      %v730 = vadd.f32 0.0, %v729
      %v731 = vpop.f32.mrb[0].mxu0
      %732 = vmatprep.mubr.f32.mxu0 0.0
      %733 = vmatmul.mubr.f32.gmra.mrb[0].mxu0 %v659
      %v734 = vpop.f32.mrb[0].mxu0
      %v735 = vadd.f32 0.0, %v734
      %v736 = vpop.f32.mrb[0].mxu0
      %737 = vmatprep.mubr.f32.mxu0 0.0
      %738 = vmatmul.mubr.f32.gmra.mrb[0].mxu0 %v661
      %v739 = vpop.f32.mrb[0].mxu0
      %v740 = vadd.f32 0.0, %v739
      %v741 = vpop.f32.mrb[0].mxu0
      %742 = vdwg.mxu0
      %v743 = vadd.f32 %v629, %v730
      %v744 = vadd.f32 %v634, %v735
      %v745 = vadd.f32 %v639, %v740
      %s746 = scalar_lea.vmem %s1, 192
      %v747 = vld [vmem:[%s746] sm:$0xff]
      %v748 = vld [vmem:[%s746 + $0x8] sm:$0xff]
      %v749 = vld [vmem:[%s746 + $0x10] sm:$0xff]
      %v750 = vld [vmem:[%s746 + $0x18] sm:$0xff]
      %v751 = vld [vmem:[%s746 + $0x20] sm:$0xff]
      %v752 = vld [vmem:[%s746 + $0x28] sm:$0xff]
      %v753 = vld [vmem:[%s746 + $0x30] sm:$0xff]
      %v754 = vld [vmem:[%s746 + $0x38] sm:$0xff]
      %vm756 = vcmask 1041408
      %v757 = vrot.slane %v439, 6
      %v758 = vrot.slane %v440, 6
      %v759 = vsel %vm756, %v757, %v758
      %v760 = vrot.slane %v441, 6
      %v761 = vsel %vm756, %v758, %v760
      %v762 = vrot.slane %v442, 6
      %v763 = vsel %vm756, %v760, %v762
      %v764 = vsel %vm469, %v759, 0
      %v766 = vsel %vm469, %v761, 0
      %v768 = vsel %vm469, %v763, 0
      %770 = vmatprep.subr.mxu0 0.0
      %771 = vmatpush1.msra.mxu0 %v747
      %772 = vmatprep.subr.mxu0 0.0
      %773 = vmatpush1.msra.mxu0 %v748
      %774 = vmatprep.subr.mxu0 0.0
      %775 = vmatpush1.msra.mxu0 %v749
      %776 = vmatprep.subr.mxu0 0.0
      %777 = vmatpush1.msra.mxu0 %v750
      %778 = vmatprep.subr.mxu0 0.0
      %779 = vmatpush1.msra.mxu0 %v751
      %780 = vmatprep.subr.mxu0 0.0
      %781 = vmatpush1.msra.mxu0 %v752
      %782 = vmatprep.subr.mxu0 0.0
      %783 = vmatpush1.msra.mxu0 %v753
      %784 = vmatprep.subr.mxu0 0.0
      %785 = vmatpush1.msra.mxu0 %v754
      %786 = vmatprep.subr.mxu0 0.0
      %787 = vmatpush1.msra.mxu0 0.0
      %788 = vmatprep.subr.mxu0 0.0
      %789 = vmatpush1.msra.mxu0 0.0
      %790 = vmatprep.subr.mxu0 0.0
      %791 = vmatpush1.msra.mxu0 0.0
      %792 = vmatprep.subr.mxu0 0.0
      %793 = vmatpush1.msra.mxu0 0.0
      %794 = vmatprep.subr.mxu0 0.0
      %795 = vmatpush1.msra.mxu0 0.0
      %796 = vmatprep.subr.mxu0 0.0
      %797 = vmatpush1.msra.mxu0 0.0
      %798 = vmatprep.subr.mxu0 0.0
      %799 = vmatpush1.msra.mxu0 0.0
      %800 = vmatprep.subr.mxu0 0.0
      %801 = vmatpush1.msra.mxu0 0.0
      %802 = vmatprep.subr.mxu0 0.0
      %803 = vmatpush1.msra.mxu0 0.0
      %804 = vmatprep.subr.mxu0 0.0
      %805 = vmatpush1.msra.mxu0 0.0
      %806 = vmatprep.subr.mxu0 0.0
      %807 = vmatpush1.msra.mxu0 0.0
      %808 = vmatprep.subr.mxu0 0.0
      %809 = vmatpush1.msra.mxu0 0.0
      %810 = vmatprep.subr.mxu0 0.0
      %811 = vmatpush1.msra.mxu0 0.0
      %812 = vmatprep.subr.mxu0 0.0
      %813 = vmatpush1.msra.mxu0 0.0
      %814 = vmatprep.subr.mxu0 0.0
      %815 = vmatpush1.msra.mxu0 0.0
      %816 = vmatprep.subr.mxu0 0.0
      %817 = vmatpush1.msra.mxu0 0.0
      %818 = vmatprep.subr.mxu0 0.0
      %819 = vmatpush1.msra.mxu0 0.0
      %820 = vmatprep.subr.mxu0 0.0
      %821 = vmatpush1.msra.mxu0 0.0
      %822 = vmatprep.subr.mxu0 0.0
      %823 = vmatpush1.msra.mxu0 0.0
      %824 = vmatprep.subr.mxu0 0.0
      %825 = vmatpush1.msra.mxu0 0.0
      %826 = vmatprep.subr.mxu0 0.0
      %827 = vmatpush1.msra.mxu0 0.0
      %828 = vmatprep.subr.mxu0 0.0
      %829 = vmatpush1.msra.mxu0 0.0
      %830 = vmatprep.subr.mxu0 0.0
      %831 = vmatpush1.msra.mxu0 0.0
      %832 = vmatprep.subr.mxu0 0.0
      %833 = vmatpush1.msra.mxu0 0.0
      %834 = vmatprep.mubr.f32.mxu0 0.0
      %835 = vmatmul.mubr.f32.gmra.mrb[0].mxu0 %v764
      %v836 = vpop.f32.mrb[0].mxu0
      %v837 = vadd.f32 0.0, %v836
      %v838 = vpop.f32.mrb[0].mxu0
      %839 = vmatprep.mubr.f32.mxu0 0.0
      %840 = vmatmul.mubr.f32.gmra.mrb[0].mxu0 %v766
      %v841 = vpop.f32.mrb[0].mxu0
      %v842 = vadd.f32 0.0, %v841
      %v843 = vpop.f32.mrb[0].mxu0
      %844 = vmatprep.mubr.f32.mxu0 0.0
      %845 = vmatmul.mubr.f32.gmra.mrb[0].mxu0 %v768
      %v846 = vpop.f32.mrb[0].mxu0
      %v847 = vadd.f32 0.0, %v846
      %v848 = vpop.f32.mrb[0].mxu0
      %849 = vdwg.mxu0
      %v850 = vadd.f32 %v743, %v837
      %v851 = vadd.f32 %v744, %v842
      %v852 = vadd.f32 %v745, %v847
      %vm853 = vcmask 261120
      %854 = vst.msk [vmem:[%s231] sm:$0xff] %vm853, %v850
      %855 = vst.msk [vmem:[%s231 + $0x8] sm:$0xff] %vm853, %v851
      %vm856 = vcmask 256000
      %857 = vst.msk [vmem:[%s231 + $0x10] sm:$0x7] %vm856, %v852
      %vm858 = vcmp.lt.s32.totalorder %v360, 0
      %v859 = vsub.s32 0, %v360
      %v860 = vsel %vm858, %v859, %v360
      %v861 = vmul.u32.u64.compose %v860, 3435973837
      %v862 = vextract.low.u32 %v861
      %v863 = vextract.high.u32 %v861
      %v864 = vshrl.u32 %v863, 2
      %v865 = vmul.u32 %v864, 5
      %v866 = vsub.s32 %v860, %v865
      %v867 = vsub.s32 0, %v866
      %v868 = vsel %vm858, %v867, %v866
      %vm869 = vcmp.ne.s32.totalorder %v868, 0
      %vm870 = vcmp.lt.s32.totalorder %v868, 0
      %vm871 = vmand %vm870, %vm869
      %v872 = vadd.s32 %v868, 5
      %v873 = vsel %vm871, %v872, %v868
      %vm874 = vcmp.lt.s32.totalorder %v873, 4
      %v875 = vsel %vm874, 1, 0
      %v876 = vcvt.s32.f32 %v875
      %vm877 = vcmask 154624
      %v879 = vsel %vm877, %v876, 0
      %v882 = vsel %vm651, %v852, 0
      %884 = vmatprep.subr.mxu0 0.0
      %885 = vmatpush1.msra.mxu0 %v850
      %886 = vmatprep.subr.mxu0 0.0
      %887 = vmatpush1.msra.mxu0 %v851
      %888 = vmatprep.subr.mxu0 0.0
      %889 = vmatpush1.msra.mxu0 %v882
      %890 = vmatprep.subr.mxu0 0.0
      %891 = vmatpush1.msra.mxu0 0.0
      %892 = vmatprep.subr.mxu0 0.0
      %893 = vmatpush1.msra.mxu0 0.0
      %894 = vmatprep.subr.mxu0 0.0
      %895 = vmatpush1.msra.mxu0 0.0
      %896 = vmatprep.subr.mxu0 0.0
      %897 = vmatpush1.msra.mxu0 0.0
      %898 = vmatprep.subr.mxu0 0.0
      %899 = vmatpush1.msra.mxu0 0.0
      %900 = vmatprep.subr.mxu0 0.0
      %901 = vmatpush1.msra.mxu0 0.0
      %902 = vmatprep.subr.mxu0 0.0
      %903 = vmatpush1.msra.mxu0 0.0
      %904 = vmatprep.subr.mxu0 0.0
      %905 = vmatpush1.msra.mxu0 0.0
      %906 = vmatprep.subr.mxu0 0.0
      %907 = vmatpush1.msra.mxu0 0.0
      %908 = vmatprep.subr.mxu0 0.0
      %909 = vmatpush1.msra.mxu0 0.0
      %910 = vmatprep.subr.mxu0 0.0
      %911 = vmatpush1.msra.mxu0 0.0
      %912 = vmatprep.subr.mxu0 0.0
      %913 = vmatpush1.msra.mxu0 0.0
      %914 = vmatprep.subr.mxu0 0.0
      %915 = vmatpush1.msra.mxu0 0.0
      %916 = vmatprep.subr.mxu0 0.0
      %917 = vmatpush1.msra.mxu0 0.0
      %918 = vmatprep.subr.mxu0 0.0
      %919 = vmatpush1.msra.mxu0 0.0
      %920 = vmatprep.subr.mxu0 0.0
      %921 = vmatpush1.msra.mxu0 0.0
      %922 = vmatprep.subr.mxu0 0.0
      %923 = vmatpush1.msra.mxu0 0.0
      %924 = vmatprep.subr.mxu0 0.0
      %925 = vmatpush1.msra.mxu0 0.0
      %926 = vmatprep.subr.mxu0 0.0
      %927 = vmatpush1.msra.mxu0 0.0
      %928 = vmatprep.subr.mxu0 0.0
      %929 = vmatpush1.msra.mxu0 0.0
      %930 = vmatprep.subr.mxu0 0.0
      %931 = vmatpush1.msra.mxu0 0.0
      %932 = vmatprep.subr.mxu0 0.0
      %933 = vmatpush1.msra.mxu0 0.0
      %934 = vmatprep.subr.mxu0 0.0
      %935 = vmatpush1.msra.mxu0 0.0
      %936 = vmatprep.subr.mxu0 0.0
      %937 = vmatpush1.msra.mxu0 0.0
      %938 = vmatprep.subr.mxu0 0.0
      %939 = vmatpush1.msra.mxu0 0.0
      %940 = vmatprep.subr.mxu0 0.0
      %941 = vmatpush1.msra.mxu0 0.0
      %942 = vmatprep.subr.mxu0 0.0
      %943 = vmatpush1.msra.mxu0 0.0
      %944 = vmatprep.subr.mxu0 0.0
      %945 = vmatpush1.msra.mxu0 0.0
      %946 = vmatprep.subr.mxu0 0.0
      %947 = vmatpush1.msra.mxu0 0.0
      %948 = vmatprep.mubr.f32.mxu0 0.0
      %949 = vmatmul.mubr.f32.gmra.mrb[0].mxu0 %v879
      %v950 = vpop.f32.mrb[0].mxu0
      %v951 = vadd.f32 0.0, %v950
      %v952 = vpop.f32.mrb[0].mxu0
      %953 = vdwg.mxu0
      %vm954 = vcmask 253952
      %955 = vst.msk [vmem:[%s235] sm:$0x1] %vm954, %v951
      %v956 = vmul.f32 %v850, %v850
      %v957 = vmul.f32 %v851, %v851
      %v958 = vmul.f32 %v852, %v852
      %v960 = vsel %vm651, %v958, 0
      %962 = vmatprep.subr.mxu0 0.0
      %963 = vmatpush1.msra.mxu0 %v956
      %964 = vmatprep.subr.mxu0 0.0
      %965 = vmatpush1.msra.mxu0 %v957
      %966 = vmatprep.subr.mxu0 0.0
      %967 = vmatpush1.msra.mxu0 %v960
      %968 = vmatprep.subr.mxu0 0.0
      %969 = vmatpush1.msra.mxu0 0.0
      %970 = vmatprep.subr.mxu0 0.0
      %971 = vmatpush1.msra.mxu0 0.0
      %972 = vmatprep.subr.mxu0 0.0
      %973 = vmatpush1.msra.mxu0 0.0
      %974 = vmatprep.subr.mxu0 0.0
      %975 = vmatpush1.msra.mxu0 0.0
      %976 = vmatprep.subr.mxu0 0.0
      %977 = vmatpush1.msra.mxu0 0.0
      %978 = vmatprep.subr.mxu0 0.0
      %979 = vmatpush1.msra.mxu0 0.0
      %980 = vmatprep.subr.mxu0 0.0
      %981 = vmatpush1.msra.mxu0 0.0
      %982 = vmatprep.subr.mxu0 0.0
      %983 = vmatpush1.msra.mxu0 0.0
      %984 = vmatprep.subr.mxu0 0.0
      %985 = vmatpush1.msra.mxu0 0.0
      %986 = vmatprep.subr.mxu0 0.0
      %987 = vmatpush1.msra.mxu0 0.0
      %988 = vmatprep.subr.mxu0 0.0
      %989 = vmatpush1.msra.mxu0 0.0
      %990 = vmatprep.subr.mxu0 0.0
      %991 = vmatpush1.msra.mxu0 0.0
      %992 = vmatprep.subr.mxu0 0.0
      %993 = vmatpush1.msra.mxu0 0.0
      %994 = vmatprep.subr.mxu0 0.0
      %995 = vmatpush1.msra.mxu0 0.0
      %996 = vmatprep.subr.mxu0 0.0
      %997 = vmatpush1.msra.mxu0 0.0
      %998 = vmatprep.subr.mxu0 0.0
      %999 = vmatpush1.msra.mxu0 0.0
      %1000 = vmatprep.subr.mxu0 0.0
      %1001 = vmatpush1.msra.mxu0 0.0
      %1002 = vmatprep.subr.mxu0 0.0
      %1003 = vmatpush1.msra.mxu0 0.0
      %1004 = vmatprep.subr.mxu0 0.0
      %1005 = vmatpush1.msra.mxu0 0.0
      %1006 = vmatprep.subr.mxu0 0.0
      %1007 = vmatpush1.msra.mxu0 0.0
      %1008 = vmatprep.subr.mxu0 0.0
      %1009 = vmatpush1.msra.mxu0 0.0
      %1010 = vmatprep.subr.mxu0 0.0
      %1011 = vmatpush1.msra.mxu0 0.0
      %1012 = vmatprep.subr.mxu0 0.0
      %1013 = vmatpush1.msra.mxu0 0.0
      %1014 = vmatprep.subr.mxu0 0.0
      %1015 = vmatpush1.msra.mxu0 0.0
      %1016 = vmatprep.subr.mxu0 0.0
      %1017 = vmatpush1.msra.mxu0 0.0
      %1018 = vmatprep.subr.mxu0 0.0
      %1019 = vmatpush1.msra.mxu0 0.0
      %1020 = vmatprep.subr.mxu0 0.0
      %1021 = vmatpush1.msra.mxu0 0.0
      %1022 = vmatprep.subr.mxu0 0.0
      %1023 = vmatpush1.msra.mxu0 0.0
      %1024 = vmatprep.subr.mxu0 0.0
      %1025 = vmatpush1.msra.mxu0 0.0
      %1026 = vmatprep.mubr.f32.mxu0 0.0
      %1027 = vmatmul.mubr.f32.gmra.mrb[0].mxu0 %v879
      %v1028 = vpop.f32.mrb[0].mxu0
      %v1029 = vadd.f32 0.0, %v1028
      %v1030 = vpop.f32.mrb[0].mxu0
      %1031 = vdwg.mxu0
      %1032 = vst.msk [vmem:[%s235 + $0x1] sm:$0x1] %vm954, %v1029
      %p1033 = scmp.lt.s32.totalorder %s17, 1
      %s1034 = scalar_select %p1033, %s17, 1
      %s1035 = smul.addr %s1034, 3
      %s1036 = smul.addr %s1035, 8
      %s1037 = scalar_lea.vmem %s4, %s1036
      %p1038 = scmp.lt.s32.totalorder %s17, 1
      %s1039 = scalar_select %p1038, %s17, 1
      %s1040 = smul.addr %s1039, 2
      %s1041 = scalar_lea.vmem %s5, %s1040
      // Predicated region
      $region37: #{patch_discriminator_forward.7} parent=35 // pred_check
        %p1042 = pneg %p124
      $region38: #{patch_discriminator_forward.7} parent=35 // pred_check_branch
        %1044 = sbr.rel (%p1042) target = $region40
      $region39: #{patch_discriminator_forward.7} parent=35 // pred_region
        _
      $region40: #{patch_discriminator_forward.7} parent=35 // pred_fallthru
        _
      // Predicated region
      $region41: #{patch_discriminator_forward.7} parent=35 // pred_check
        %p1045 = pneg %p150
      $region42: #{patch_discriminator_forward.7} parent=35 // pred_check_branch
        %1047 = sbr.rel (%p1045) target = $region44
      $region43: #{patch_discriminator_forward.7} parent=35 // pred_region
        _
      $region44: #{patch_discriminator_forward.7} parent=35 // pred_fallthru
        _
    $region36: #{patch_discriminator_forward.7} parent=5 // pred_fallthru
      _
    %p1048 = scmp.le.s32.totalorder 2, %s12
    // Predicated region
    $region45: #{patch_discriminator_forward.7} parent=5 // pred_check
      %p1049 = pneg %p1048
    $region46: #{patch_discriminator_forward.7} parent=5 // pred_check_branch
      %1051 = sbr.rel (%p1049) target = $region48
    $region47: #{patch_discriminator_forward.7} parent=5 // pred_region
      %s1052 = ssub.s32 %s12, 2
      // Predicated region
      $region49: #{patch_discriminator_forward.7} parent=47 // pred_check
        %p1053 = pneg %p130
      $region50: #{patch_discriminator_forward.7} parent=47 // pred_check_branch
        %1055 = sbr.rel (%p1053) target = $region52
      $region51: #{patch_discriminator_forward.7} parent=47 // pred_region
        %p1056 = scmp.lt.s32.totalorder %s18, 1
        %s1057 = scalar_select %p1056, %s18, 1
        %s1058 = smul.addr %s1057, 3
        %s1059 = smul.addr %s1058, 8
        %s1060 = scalar_lea.vmem %s4, %s1059
      $region52: #{patch_discriminator_forward.7} parent=47 // pred_fallthru
        _
      // Predicated region
      $region53: #{patch_discriminator_forward.7} parent=47 // pred_check
        %p1061 = pneg %p156
      $region54: #{patch_discriminator_forward.7} parent=47 // pred_check_branch
        %1063 = sbr.rel (%p1061) target = $region56
      $region55: #{patch_discriminator_forward.7} parent=47 // pred_region
        %p1064 = scmp.lt.s32.totalorder %s18, 1
        %s1065 = scalar_select %p1064, %s18, 1
        %s1066 = smul.addr %s1065, 2
        %s1067 = scalar_lea.vmem %s5, %s1066
      $region56: #{patch_discriminator_forward.7} parent=47 // pred_fallthru
        _
    $region48: #{patch_discriminator_forward.7} parent=5 // pred_fallthru
      _
  $region6: #{patch_discriminator_forward.7} parent=0 // loop_footer
    %s16 = sadd.s32 1, %s12
  $region7: #{patch_discriminator_forward.7} parent=0 // loop_footer_branch
    %11 = sbr.rel target = $region3
  $region8: #{patch_discriminator_forward.7} parent=0 // loop_exit
    _

// kernel: patch_discriminator_forward.8
$region0: #{patch_discriminator_forward.8}
  #allocation0 [shape = 'u32[]', space=smem, size = 0x4, offset = 0x4, fixed_abs, tag = 'smem constant byte address 0x4 - core index']
  #allocation1 [shape = 'u32[144,128]{1,0:T(1,128)}', space=vmem, size = 0x12000, scoped, tag = 'internal scratch']
  %s0 = inlined_call_operand.vmem [shape: f32[2,36,32], index: 0, kind: input, shape index: {}]
  %s1 = inlined_call_operand.vmem [shape: f32[4,4,32,64], index: 1, kind: input, shape index: {}]
  %s2 = inlined_call_operand.vmem [shape: f32[1,32], index: 2, kind: input, shape index: {}]
  %s3 = inlined_call_operand.vmem [shape: f32[1,32], index: 3, kind: input, shape index: {}]
  %s4 = inlined_call_operand.vmem [shape: f32[2,15,64], index: 4, kind: output, shape index: {0}]
  %s5 = inlined_call_operand.vmem [shape: f32[2,2,64], index: 5, kind: output, shape index: {1}]
  %6 = xla_tuple %s4, %s5
  %s7 = sld [smem:[#allocation0]]
  $region57: #{patch_discriminator_forward.8} parent=0
    _
  %s9 = ssub.s32 1, %s7
  %s10 = scalar_select 0, %s9, %s7
  loop: start=0, step=1, limit=4
  $region2: #{patch_discriminator_forward.8} parent=0 // loop_pre_header
    _
  $region3: #{patch_discriminator_forward.8} parent=0 // loop_header
    %s12 = sphi 0, %s16
    %p13 = scmp.ge.s32.totalorder %s12, 4
    %s22 = sphi 0, %s24
    %s25 = sphi 0, %s22
    %s26 = sphi 0, %s25
    %s42 = sphi 0, %s26
    %s46 = sphi 0, %s46
    %s48 = sphi 0, %s46
    %s49 = sphi 0, %s48
    %s63 = sphi 0, %s49
    %s67 = sphi 0, %s67
    %s69 = sphi 0, %s67
    %s70 = sphi 0, %s69
    %s84 = sphi 0, %s70
    %s88 = sphi 0, %s88
    %s90 = sphi 0, %s88
    %s91 = sphi 0, %s90
    %s105 = sphi 0, %s91
    %s111 = sphi 0, %s113
    %s114 = sphi 0, %s111
    %s115 = sphi 0, %s114
    %s131 = sphi 0, %s115
    %s137 = sphi 0, %s139
    %s140 = sphi 0, %s137
    %s141 = sphi 0, %s140
    %s157 = sphi 0, %s141
  $region4: #{patch_discriminator_forward.8} parent=0 // loop_header_branch
    %15 = sbr.rel (%p13) target = $region8
  $region5: #{patch_discriminator_forward.8} parent=0 // loop_body
    %s17 = ssub.s32 %s12, 1
    %s18 = ssub.s32 %s12, 2
    %s19 = sadd.s32 %s12, 1
    %s20 = ssub.s32 %s12, %s19
    %p21 = scmp.eq.s32.totalorder %s20, 0
    %s23 = sadd.s32 %s22, 1
    %s24 = scalar_select %p21, %s22, %s23
    %p27 = pneg %p21
    %p28 = scmp.eq.s32.totalorder %s12, 1
    %p29 = por %p27, %p28
    %p30 = scmp.ne.s32.totalorder %s22, %s25
    %p31 = scmp.eq.s32.totalorder %s12, 0
    %p32 = por %p30, %p31
    %p33 = scmp.ne.s32.totalorder %s22, %s25
    %p34 = scmp.eq.s32.totalorder %s17, 1
    %p35 = por %p33, %p34
    %p36 = scmp.ne.s32.totalorder %s25, %s26
    %p37 = scmp.eq.s32.totalorder %s17, 0
    %p38 = por %p36, %p37
    %p39 = scmp.ne.s32.totalorder %s25, %s26
    %p40 = scmp.eq.s32.totalorder %s18, 1
    %p41 = por %p39, %p40
    %p43 = scmp.ne.s32.totalorder %s26, %s42
    %p44 = scmp.eq.s32.totalorder %s18, 0
    %p45 = por %p43, %p44
    %s47 = sadd.s32 %s46, 1
    %p50 = scmp.eq.s32.totalorder %s12, 1
    %p51 = scmp.ne.s32.totalorder %s46, %s48
    %p52 = scmp.eq.s32.totalorder %s12, 0
    %p53 = por %p51, %p52
    %p54 = scmp.ne.s32.totalorder %s46, %s48
    %p55 = scmp.eq.s32.totalorder %s17, 1
    %p56 = por %p54, %p55
    %p57 = scmp.ne.s32.totalorder %s48, %s49
    %p58 = scmp.eq.s32.totalorder %s17, 0
    %p59 = por %p57, %p58
    %p60 = scmp.ne.s32.totalorder %s48, %s49
    %p61 = scmp.eq.s32.totalorder %s18, 1
    %p62 = por %p60, %p61
    %p64 = scmp.ne.s32.totalorder %s49, %s63
    %p65 = scmp.eq.s32.totalorder %s18, 0
    %p66 = por %p64, %p65
    %s68 = sadd.s32 %s67, 1
    %p71 = scmp.eq.s32.totalorder %s12, 1
    %p72 = scmp.ne.s32.totalorder %s67, %s69
    %p73 = scmp.eq.s32.totalorder %s12, 0
    %p74 = por %p72, %p73
    %p75 = scmp.ne.s32.totalorder %s67, %s69
    %p76 = scmp.eq.s32.totalorder %s17, 1
    %p77 = por %p75, %p76
    %p78 = scmp.ne.s32.totalorder %s69, %s70
    %p79 = scmp.eq.s32.totalorder %s17, 0
    %p80 = por %p78, %p79
    %p81 = scmp.ne.s32.totalorder %s69, %s70
    %p82 = scmp.eq.s32.totalorder %s18, 1
    %p83 = por %p81, %p82
    %p85 = scmp.ne.s32.totalorder %s70, %s84
    %p86 = scmp.eq.s32.totalorder %s18, 0
    %p87 = por %p85, %p86
    %s89 = sadd.s32 %s88, 1
    %p92 = scmp.eq.s32.totalorder %s12, 1
    %p93 = scmp.ne.s32.totalorder %s88, %s90
    %p94 = scmp.eq.s32.totalorder %s12, 0
    %p95 = por %p93, %p94
    %p96 = scmp.ne.s32.totalorder %s88, %s90
    %p97 = scmp.eq.s32.totalorder %s17, 1
    %p98 = por %p96, %p97
    %p99 = scmp.ne.s32.totalorder %s90, %s91
    %p100 = scmp.eq.s32.totalorder %s17, 0
    %p101 = por %p99, %p100
    %p102 = scmp.ne.s32.totalorder %s90, %s91
    %p103 = scmp.eq.s32.totalorder %s18, 1
    %p104 = por %p102, %p103
    %p106 = scmp.ne.s32.totalorder %s91, %s105
    %p107 = scmp.eq.s32.totalorder %s18, 0
    %p108 = por %p106, %p107
    %s109 = ssub.s32 %s12, %s19
    %p110 = scmp.eq.s32.totalorder %s109, 0
    %s112 = sadd.s32 %s111, 1
    %s113 = scalar_select %p110, %s111, %s112
    %p116 = pneg %p110
    %p117 = scmp.eq.s32.totalorder %s12, 1
    %p118 = por %p116, %p117
    %p119 = scmp.ne.s32.totalorder %s111, %s114
    %p120 = scmp.eq.s32.totalorder %s12, 0
    %p121 = por %p119, %p120
    %p122 = scmp.ne.s32.totalorder %s111, %s114
    %p123 = scmp.eq.s32.totalorder %s17, 1
    %p124 = por %p122, %p123
    %p125 = scmp.ne.s32.totalorder %s114, %s115
    %p126 = scmp.eq.s32.totalorder %s17, 0
    %p127 = por %p125, %p126
    %p128 = scmp.ne.s32.totalorder %s114, %s115
    %p129 = scmp.eq.s32.totalorder %s18, 1
    %p130 = por %p128, %p129
    %p132 = scmp.ne.s32.totalorder %s115, %s131
    %p133 = scmp.eq.s32.totalorder %s18, 0
    %p134 = por %p132, %p133
    %s135 = ssub.s32 %s12, %s19
    %p136 = scmp.eq.s32.totalorder %s135, 0
    %s138 = sadd.s32 %s137, 1
    %s139 = scalar_select %p136, %s137, %s138
    %p142 = pneg %p136
    %p143 = scmp.eq.s32.totalorder %s12, 1
    %p144 = por %p142, %p143
    %p145 = scmp.ne.s32.totalorder %s137, %s140
    %p146 = scmp.eq.s32.totalorder %s12, 0
    %p147 = por %p145, %p146
    %p148 = scmp.ne.s32.totalorder %s137, %s140
    %p149 = scmp.eq.s32.totalorder %s17, 1
    %p150 = por %p148, %p149
    %p151 = scmp.ne.s32.totalorder %s140, %s141
    %p152 = scmp.eq.s32.totalorder %s17, 0
    %p153 = por %p151, %p152
    %p154 = scmp.ne.s32.totalorder %s140, %s141
    %p155 = scmp.eq.s32.totalorder %s18, 1
    %p156 = por %p154, %p155
    %p158 = scmp.ne.s32.totalorder %s141, %s157
    %p159 = scmp.eq.s32.totalorder %s18, 0
    %p160 = por %p158, %p159
    %p161 = scmp.le.s32.totalorder 1, %s12
    %p162 = scmp.lt.s32.totalorder %s12, 3
    %p163 = pnand %p161, %p162
    %p164 = pneg %p163
    // Predicated region
    $region9: #{patch_discriminator_forward.8} parent=5 // pred_check
      _
    $region10: #{patch_discriminator_forward.8} parent=5 // pred_check_branch
      %166 = sbr.rel (%p163) target = $region12
    $region11: #{patch_discriminator_forward.8} parent=5 // pred_region
      %s167 = ssub.s32 %s12, 1
      // Predicated region
      $region13: #{patch_discriminator_forward.8} parent=11 // pred_check
        %p168 = pneg %p59
      $region14: #{patch_discriminator_forward.8} parent=11 // pred_check_branch
        %170 = sbr.rel (%p168) target = $region16
      $region15: #{patch_discriminator_forward.8} parent=11 // pred_region
        _
      $region16: #{patch_discriminator_forward.8} parent=11 // pred_fallthru
        _
      // Predicated region
      $region17: #{patch_discriminator_forward.8} parent=11 // pred_check
        %p171 = pneg %p80
      $region18: #{patch_discriminator_forward.8} parent=11 // pred_check_branch
        %173 = sbr.rel (%p171) target = $region20
      $region19: #{patch_discriminator_forward.8} parent=11 // pred_region
        _
      $region20: #{patch_discriminator_forward.8} parent=11 // pred_fallthru
        _
      // Predicated region
      $region21: #{patch_discriminator_forward.8} parent=11 // pred_check
        %p174 = pneg %p101
      $region22: #{patch_discriminator_forward.8} parent=11 // pred_check_branch
        %176 = sbr.rel (%p174) target = $region24
      $region23: #{patch_discriminator_forward.8} parent=11 // pred_region
        _
      $region24: #{patch_discriminator_forward.8} parent=11 // pred_fallthru
        _
    $region12: #{patch_discriminator_forward.8} parent=5 // pred_fallthru
      _
    %p177 = scmp.lt.s32.totalorder %s12, 2
    // Predicated region
    $region25: #{patch_discriminator_forward.8} parent=5 // pred_check
      %p178 = pneg %p177
    $region26: #{patch_discriminator_forward.8} parent=5 // pred_check_branch
      %180 = sbr.rel (%p178) target = $region28
    $region27: #{patch_discriminator_forward.8} parent=5 // pred_region
      // Predicated region
      $region29: #{patch_discriminator_forward.8} parent=27 // pred_check
        %p181 = pneg %p32
      $region30: #{patch_discriminator_forward.8} parent=27 // pred_check_branch
        %183 = sbr.rel (%p181) target = $region32
      $region31: #{patch_discriminator_forward.8} parent=27 // pred_region
        %p184 = scmp.lt.s32.totalorder %s12, 1
        %s185 = scalar_select %p184, %s12, 1
        %s186 = smul.addr %s185, 5
        %s187 = smul.addr %s186, 8
        %s188 = scalar_lea.vmem %s0, %s187
      $region32: #{patch_discriminator_forward.8} parent=27 // pred_fallthru
        _
    $region28: #{patch_discriminator_forward.8} parent=5 // pred_fallthru
      _
    %p189 = scmp.le.s32.totalorder 1, %s12
    %p190 = scmp.lt.s32.totalorder %s12, 3
    %p191 = pnand %p189, %p190
    %p192 = pneg %p191
    // Predicated region
    $region33: #{patch_discriminator_forward.8} parent=5 // pred_check
      _
    $region34: #{patch_discriminator_forward.8} parent=5 // pred_check_branch
      %194 = sbr.rel (%p191) target = $region36
    $region35: #{patch_discriminator_forward.8} parent=5 // pred_region
      %s195 = ssub.s32 %s12, 1
      %p196 = scmp.lt.s32.totalorder %s17, 1
      %s197 = scalar_select %p196, %s17, 1
      %s198 = smul.addr %s197, 5
      %s199 = smul.addr %s198, 8
      %s200 = scalar_lea.vmem %s0, %s199
      %p201 = pneg %p38
      %p202 = pneg %p35
      %p203 = pneg %p59
      %p204 = pneg %p56
      %p205 = pneg %p80
      %p206 = pneg %p77
      %p207 = pneg %p101
      %p208 = pneg %p98
      %p209 = pneg %p127
      %p210 = pneg %p124
      %p211 = scmp.lt.s32.totalorder %s17, 1
      %s212 = scalar_select %p211, %s17, 1
      %s213 = smul.addr %s212, 2
      %s214 = smul.addr %s213, 8
      %s215 = scalar_lea.vmem %s4, %s214
      %p216 = pneg %p153
      %p217 = pneg %p150
      %p218 = scmp.lt.s32.totalorder %s17, 1
      %s219 = scalar_select %p218, %s17, 1
      %s220 = smul.addr %s219, 2
      %s221 = scalar_lea.vmem %s5, %s220
      %p222 = scmp.lt.s32.totalorder %s17, 1
      %s223 = scalar_select %p222, %s17, 1
      %s224 = smul.addr %s223, 5
      %s225 = smul.addr %s224, 8
      %s226 = scalar_lea.vmem %s0, %s225
      %p227 = scmp.lt.s32.totalorder %s17, 1
      %s228 = scalar_select %p227, %s17, 1
      %s229 = smul.addr %s228, 2
      %s230 = smul.addr %s229, 8
      %s231 = scalar_lea.vmem %s4, %s230
      %p232 = scmp.lt.s32.totalorder %s17, 1
      %s233 = scalar_select %p232, %s17, 1
      %s234 = smul.addr %s233, 2
      %s235 = scalar_lea.vmem %s5, %s234
      %v236 = vld [vmem:[%s226] sm:$0xff]
      %v237 = vld [vmem:[%s226 + $0x8] sm:$0xff]
      %v238 = vld [vmem:[%s226 + $0x10] sm:$0xff]
      %v239 = vld [vmem:[%s226 + $0x18] sm:$0xff]
      %v240 = vld [vmem:[%s226 + $0x20] sm:$0xf]
      %v241 = vld [vmem:[%s2] sm:$0x1]
      %v243 = vlaneseq
      %v244 = vshrl.u32 %v243, 7
      %v245 = vsub.s32 0, %v244
      %v246 = vrot.slane %v241, %v245
      %v248 = vmul.f32 %v236, %v246
      %v249 = vmul.f32 %v237, %v246
      %v250 = vmul.f32 %v238, %v246
      %v251 = vmul.f32 %v239, %v246
      %v252 = vmul.f32 %v240, %v246
      %v253 = vld [vmem:[%s3] sm:$0x1]
      %v255 = vlaneseq
      %v256 = vshrl.u32 %v255, 7
      %v257 = vsub.s32 0, %v256
      %v258 = vrot.slane %v253, %v257
      %v260 = vadd.f32 %v248, %v258
      %v261 = vadd.f32 %v249, %v258
      %v262 = vadd.f32 %v250, %v258
      %v263 = vadd.f32 %v251, %v258
      %v264 = vadd.f32 %v252, %v258
      %vm265 = vcmp.gt.f32.partialorder %v260, 0.0
      %vm266 = vcmp.gt.f32.partialorder %v261, 0.0
      %vm267 = vcmp.gt.f32.partialorder %v262, 0.0
      %vm268 = vcmp.gt.f32.partialorder %v263, 0.0
      %vm269 = vcmp.gt.f32.partialorder %v264, 0.0
      %v270 = vmul.f32 %v260, 0.2
      %v271 = vmul.f32 %v261, 0.2
      %v272 = vmul.f32 %v262, 0.2
      %v273 = vmul.f32 %v263, 0.2
      %v274 = vmul.f32 %v264, 0.2
      %v275 = vsel %vm265, %v260, %v270
      %v276 = vsel %vm266, %v261, %v271
      %v277 = vsel %vm267, %v262, %v272
      %v278 = vsel %vm268, %v263, %v273
      %v279 = vsel %vm269, %v264, %v274
      %v280 = vlaneseq
      %v281 = vshrl.u32 %v280, 7
      %v282 = vadd.s32 %v281, 8
      %v283 = vadd.s32 %v281, 16
      %v284 = vadd.s32 %v281, 24
      %v285 = vadd.s32 %v281, 32
      %vm286 = vcmp.lt.s32.totalorder %v281, 0
      %v287 = vsub.s32 0, %v281
      %v288 = vsel %vm286, %v287, %v281
      %v289 = vmul.u32.u64.compose %v288, 2863311531
      %v290 = vextract.low.u32 %v289
      %v291 = vextract.high.u32 %v289
      %v292 = vshrl.u32 %v291, 2
      %v293 = vmul.u32 %v292, 6
      %v294 = vsub.s32 %v288, %v293
      %v295 = vsub.s32 0, %v294
      %v296 = vsel %vm286, %v295, %v294
      %vm297 = vcmp.lt.s32.totalorder %v282, 0
      %v298 = vsub.s32 0, %v282
      %v299 = vsel %vm297, %v298, %v282
      %v300 = vmul.u32.u64.compose %v299, 2863311531
      %v301 = vextract.low.u32 %v300
      %v302 = vextract.high.u32 %v300
      %v303 = vshrl.u32 %v302, 2
      %v304 = vmul.u32 %v303, 6
      %v305 = vsub.s32 %v299, %v304
      %v306 = vsub.s32 0, %v305
      %v307 = vsel %vm297, %v306, %v305
      %vm308 = vcmp.lt.s32.totalorder %v283, 0
      %v309 = vsub.s32 0, %v283
      %v310 = vsel %vm308, %v309, %v283
      %v311 = vmul.u32.u64.compose %v310, 2863311531
      %v312 = vextract.low.u32 %v311
      %v313 = vextract.high.u32 %v311
      %v314 = vshrl.u32 %v313, 2
      %v315 = vmul.u32 %v314, 6
      %v316 = vsub.s32 %v310, %v315
      %v317 = vsub.s32 0, %v316
      %v318 = vsel %vm308, %v317, %v316
      %vm319 = vcmp.lt.s32.totalorder %v284, 0
      %v320 = vsub.s32 0, %v284
      %v321 = vsel %vm319, %v320, %v284
      %v322 = vmul.u32.u64.compose %v321, 2863311531
      %v323 = vextract.low.u32 %v322
      %v324 = vextract.high.u32 %v322
      %v325 = vshrl.u32 %v324, 2
      %v326 = vmul.u32 %v325, 6
      %v327 = vsub.s32 %v321, %v326
      %v328 = vsub.s32 0, %v327
      %v329 = vsel %vm319, %v328, %v327
      %vm330 = vcmp.lt.s32.totalorder %v285, 0
      %v331 = vsub.s32 0, %v285
      %v332 = vsel %vm330, %v331, %v285
      %v333 = vmul.u32.u64.compose %v332, 2863311531
      %v334 = vextract.low.u32 %v333
      %v335 = vextract.high.u32 %v333
      %v336 = vshrl.u32 %v335, 2
      %v337 = vmul.u32 %v336, 6
      %v338 = vsub.s32 %v332, %v337
      %v339 = vsub.s32 0, %v338
      %v340 = vsel %vm330, %v339, %v338
      %vm341 = vcmp.ne.s32.totalorder %v296, 0
      %vm342 = vcmp.ne.s32.totalorder %v307, 0
      %vm343 = vcmp.ne.s32.totalorder %v318, 0
      %vm344 = vcmp.ne.s32.totalorder %v329, 0
      %vm345 = vcmp.ne.s32.totalorder %v340, 0
      %vm346 = vcmp.lt.s32.totalorder %v296, 0
      %vm347 = vcmp.lt.s32.totalorder %v307, 0
      %vm348 = vcmp.lt.s32.totalorder %v318, 0
      %vm349 = vcmp.lt.s32.totalorder %v329, 0
      %vm350 = vcmp.lt.s32.totalorder %v340, 0
      %vm351 = vmand %vm346, %vm341
      %vm352 = vmand %vm347, %vm342
      %vm353 = vmand %vm348, %vm343
      %vm354 = vmand %vm349, %vm344
      %vm355 = vmand %vm350, %vm345
      %v356 = vadd.s32 %v296, 6
      %v357 = vadd.s32 %v307, 6
      %v358 = vadd.s32 %v318, 6
      %v359 = vadd.s32 %v329, 6
      %v360 = vadd.s32 %v340, 6
      %v361 = vsel %vm351, %v356, %v296
      %v362 = vsel %vm352, %v357, %v307
      %v363 = vsel %vm353, %v358, %v318
      %v364 = vsel %vm354, %v359, %v329
      %v365 = vsel %vm355, %v360, %v340
      %vm366 = vcmp.ge.s32.totalorder %v281, 6
      %vm367 = vcmp.ge.s32.totalorder %v282, 6
      %vm368 = vcmp.ge.s32.totalorder %v283, 6
      %vm369 = vcmp.ge.s32.totalorder %v284, 6
      %vm370 = vcmp.ge.s32.totalorder %v285, 6
      %vm371 = vcmp.lt.s32.totalorder %v281, 30
      %vm372 = vcmp.lt.s32.totalorder %v282, 30
      %vm373 = vcmp.lt.s32.totalorder %v283, 30
      %vm374 = vcmp.lt.s32.totalorder %v284, 30
      %vm375 = vcmp.lt.s32.totalorder %v285, 30
      %vm376 = vcmp.ge.s32.totalorder %v361, 1
      %vm377 = vcmp.ge.s32.totalorder %v362, 1
      %vm378 = vcmp.ge.s32.totalorder %v363, 1
      %vm379 = vcmp.ge.s32.totalorder %v364, 1
      %vm380 = vcmp.ge.s32.totalorder %v365, 1
      %vm381 = vcmp.le.s32.totalorder %v361, 4
      %vm382 = vcmp.le.s32.totalorder %v362, 4
      %vm383 = vcmp.le.s32.totalorder %v363, 4
      %vm384 = vcmp.le.s32.totalorder %v364, 4
      %vm385 = vcmp.le.s32.totalorder %v365, 4
      %vm386 = vmand %vm366, %vm371
      %vm387 = vmand %vm367, %vm372
      %vm388 = vmand %vm368, %vm373
      %vm389 = vmand %vm369, %vm374
      %vm390 = vmand %vm370, %vm375
      %vm391 = vmand %vm386, %vm376
      %vm392 = vmand %vm387, %vm377
      %vm393 = vmand %vm388, %vm378
      %vm394 = vmand %vm389, %vm379
      %vm395 = vmand %vm390, %vm380
      %vm396 = vmand %vm391, %vm381
      %vm397 = vmand %vm392, %vm382
      %vm398 = vmand %vm393, %vm383
      %vm399 = vmand %vm394, %vm384
      %vm400 = vmand %vm395, %vm385
      %v401 = vsel %vm396, 1, 0
      %v402 = vsel %vm397, 1, 0
      %v403 = vsel %vm398, 1, 0
      %v404 = vsel %vm399, 1, 0
      %v405 = vsel %vm400, 1, 0
      %vm406 = vcmp.eq.s32.totalorder %v401, 1
      %vm407 = vcmp.eq.s32.totalorder %v402, 1
      %vm408 = vcmp.eq.s32.totalorder %v403, 1
      %vm409 = vcmp.eq.s32.totalorder %v404, 1
      %vm410 = vcmp.eq.s32.totalorder %v405, 1
      %v411 = vsel %vm406, %v275, 0.0
      %v412 = vsel %vm407, %v276, 0.0
      %v413 = vsel %vm408, %v277, 0.0
      %v414 = vsel %vm409, %v278, 0.0
      %v415 = vsel %vm410, %v279, 0.0
      %v416 = vld [vmem:[%s1] sm:$0xff]
      %v417 = vld [vmem:[%s1 + $0x8] sm:$0xff]
      %v418 = vld [vmem:[%s1 + $0x10] sm:$0xff]
      %v419 = vld [vmem:[%s1 + $0x18] sm:$0xff]
      %s420 = scalar_lea.vmem %s1, 32
      %v421 = vld [vmem:[%s420] sm:$0xff]
      %v422 = vld [vmem:[%s420 + $0x8] sm:$0xff]
      %v423 = vld [vmem:[%s420 + $0x10] sm:$0xff]
      %v424 = vld [vmem:[%s420 + $0x18] sm:$0xff]
      %vm427 = vcmask 1046528
      %v428 = vrot.slane %v411, 1
      %v429 = vrot.slane %v412, 1
      %v430 = vsel %vm427, %v428, %v429
      %vm431 = vcmask 261120
      %v432 = vsel %vm431, %v430, 0
      %v434 = vsel %vm431, %v429, 0
      %436 = vmatprep.subr.mxu0 0.0
      %437 = vmatpush1.msra.mxu0 %v421
      %438 = vmatprep.subr.mxu0 0.0
      %439 = vmatpush1.msra.mxu0 %v422
      %440 = vmatprep.subr.mxu0 0.0
      %441 = vmatpush1.msra.mxu0 %v423
      %442 = vmatprep.subr.mxu0 0.0
      %443 = vmatpush1.msra.mxu0 %v424
      %444 = vmatprep.subr.mxu0 0.0
      %445 = vmatpush1.msra.mxu0 0.0
      %446 = vmatprep.subr.mxu0 0.0
      %447 = vmatpush1.msra.mxu0 0.0
      %448 = vmatprep.subr.mxu0 0.0
      %449 = vmatpush1.msra.mxu0 0.0
      %450 = vmatprep.subr.mxu0 0.0
      %451 = vmatpush1.msra.mxu0 0.0
      %452 = vmatprep.subr.mxu0 0.0
      %453 = vmatpush1.msra.mxu0 0.0
      %454 = vmatprep.subr.mxu0 0.0
      %455 = vmatpush1.msra.mxu0 0.0
      %456 = vmatprep.subr.mxu0 0.0
      %457 = vmatpush1.msra.mxu0 0.0
      %458 = vmatprep.subr.mxu0 0.0
      %459 = vmatpush1.msra.mxu0 0.0
      %460 = vmatprep.subr.mxu0 0.0
      %461 = vmatpush1.msra.mxu0 0.0
      %462 = vmatprep.subr.mxu0 0.0
      %463 = vmatpush1.msra.mxu0 0.0
      %464 = vmatprep.subr.mxu0 0.0
      %465 = vmatpush1.msra.mxu0 0.0
      %466 = vmatprep.subr.mxu0 0.0
      %467 = vmatpush1.msra.mxu0 0.0
      %468 = vmatprep.subr.mxu0 0.0
      %469 = vmatpush1.msra.mxu0 0.0
      %470 = vmatprep.subr.mxu0 0.0
      %471 = vmatpush1.msra.mxu0 0.0
      %472 = vmatprep.subr.mxu0 0.0
      %473 = vmatpush1.msra.mxu0 0.0
      %474 = vmatprep.subr.mxu0 0.0
      %475 = vmatpush1.msra.mxu0 0.0
      %476 = vmatprep.subr.mxu0 0.0
      %477 = vmatpush1.msra.mxu0 0.0
      %478 = vmatprep.subr.mxu0 0.0
      %479 = vmatpush1.msra.mxu0 0.0
      %480 = vmatprep.subr.mxu0 0.0
      %481 = vmatpush1.msra.mxu0 0.0
      %482 = vmatprep.subr.mxu0 0.0
      %483 = vmatpush1.msra.mxu0 0.0
      %484 = vmatprep.subr.mxu0 0.0
      %485 = vmatpush1.msra.mxu0 0.0
      %486 = vmatprep.subr.mxu0 0.0
      %487 = vmatpush1.msra.mxu0 0.0
      %488 = vmatprep.subr.mxu0 0.0
      %489 = vmatpush1.msra.mxu0 0.0
      %490 = vmatprep.subr.mxu0 0.0
      %491 = vmatpush1.msra.mxu0 0.0
      %492 = vmatprep.subr.mxu0 0.0
      %493 = vmatpush1.msra.mxu0 0.0
      %494 = vmatprep.subr.mxu0 0.0
      %495 = vmatpush1.msra.mxu0 0.0
      %496 = vmatprep.subr.mxu0 0.0
      %497 = vmatpush1.msra.mxu0 0.0
      %498 = vmatprep.subr.mxu0 0.0
      %499 = vmatpush1.msra.mxu0 0.0
      %500 = vmatprep.mubr.f32.mxu0 0.0
      %501 = vmatmul.mubr.f32.gmra.mrb[0].mxu0 %v432
      %v502 = vpop.f32.mrb[0].mxu0
      %v503 = vadd.f32 0.0, %v502
      %v504 = vpop.f32.mrb[0].mxu0
      %505 = vmatprep.mubr.f32.mxu0 0.0
      %506 = vmatmul.mubr.f32.gmra.mrb[0].mxu0 %v434
      %v507 = vpop.f32.mrb[0].mxu0
      %v508 = vadd.f32 0.0, %v507
      %v509 = vpop.f32.mrb[0].mxu0
      %510 = vdwg.mxu0
      %v511 = vsel %vm431, %v411, 0
      %v513 = vsel %vm431, %v412, 0
      %515 = vmatprep.subr.mxu0 0.0
      %516 = vmatpush1.msra.mxu0 %v416
      %517 = vmatprep.subr.mxu0 0.0
      %518 = vmatpush1.msra.mxu0 %v417
      %519 = vmatprep.subr.mxu0 0.0
      %520 = vmatpush1.msra.mxu0 %v418
      %521 = vmatprep.subr.mxu0 0.0
      %522 = vmatpush1.msra.mxu0 %v419
      %523 = vmatprep.subr.mxu0 0.0
      %524 = vmatpush1.msra.mxu0 0.0
      %525 = vmatprep.subr.mxu0 0.0
      %526 = vmatpush1.msra.mxu0 0.0
      %527 = vmatprep.subr.mxu0 0.0
      %528 = vmatpush1.msra.mxu0 0.0
      %529 = vmatprep.subr.mxu0 0.0
      %530 = vmatpush1.msra.mxu0 0.0
      %531 = vmatprep.subr.mxu0 0.0
      %532 = vmatpush1.msra.mxu0 0.0
      %533 = vmatprep.subr.mxu0 0.0
      %534 = vmatpush1.msra.mxu0 0.0
      %535 = vmatprep.subr.mxu0 0.0
      %536 = vmatpush1.msra.mxu0 0.0
      %537 = vmatprep.subr.mxu0 0.0
      %538 = vmatpush1.msra.mxu0 0.0
      %539 = vmatprep.subr.mxu0 0.0
      %540 = vmatpush1.msra.mxu0 0.0
      %541 = vmatprep.subr.mxu0 0.0
      %542 = vmatpush1.msra.mxu0 0.0
      %543 = vmatprep.subr.mxu0 0.0
      %544 = vmatpush1.msra.mxu0 0.0
      %545 = vmatprep.subr.mxu0 0.0
      %546 = vmatpush1.msra.mxu0 0.0
      %547 = vmatprep.subr.mxu0 0.0
      %548 = vmatpush1.msra.mxu0 0.0
      %549 = vmatprep.subr.mxu0 0.0
      %550 = vmatpush1.msra.mxu0 0.0
      %551 = vmatprep.subr.mxu0 0.0
      %552 = vmatpush1.msra.mxu0 0.0
      %553 = vmatprep.subr.mxu0 0.0
      %554 = vmatpush1.msra.mxu0 0.0
      %555 = vmatprep.subr.mxu0 0.0
      %556 = vmatpush1.msra.mxu0 0.0
      %557 = vmatprep.subr.mxu0 0.0
      %558 = vmatpush1.msra.mxu0 0.0
      %559 = vmatprep.subr.mxu0 0.0
      %560 = vmatpush1.msra.mxu0 0.0
      %561 = vmatprep.subr.mxu0 0.0
      %562 = vmatpush1.msra.mxu0 0.0
      %563 = vmatprep.subr.mxu0 0.0
      %564 = vmatpush1.msra.mxu0 0.0
      %565 = vmatprep.subr.mxu0 0.0
      %566 = vmatpush1.msra.mxu0 0.0
      %567 = vmatprep.subr.mxu0 0.0
      %568 = vmatpush1.msra.mxu0 0.0
      %569 = vmatprep.subr.mxu0 0.0
      %570 = vmatpush1.msra.mxu0 0.0
      %571 = vmatprep.subr.mxu0 0.0
      %572 = vmatpush1.msra.mxu0 0.0
      %573 = vmatprep.subr.mxu0 0.0
      %574 = vmatpush1.msra.mxu0 0.0
      %575 = vmatprep.subr.mxu0 0.0
      %576 = vmatpush1.msra.mxu0 0.0
      %577 = vmatprep.subr.mxu0 0.0
      %578 = vmatpush1.msra.mxu0 0.0
      %579 = vmatprep.mubr.f32.mxu0 0.0
      %580 = vmatmul.mubr.f32.gmra.mrb[0].mxu0 %v511
      %v581 = vpop.f32.mrb[0].mxu0
      %v582 = vadd.f32 %v503, %v581
      %v583 = vpop.f32.mrb[0].mxu0
      %584 = vmatprep.mubr.f32.mxu0 0.0
      %585 = vmatmul.mubr.f32.gmra.mrb[0].mxu0 %v513
      %v586 = vpop.f32.mrb[0].mxu0
      %v587 = vadd.f32 %v508, %v586
      %v588 = vpop.f32.mrb[0].mxu0
      %589 = vdwg.mxu0
      %s590 = scalar_lea.vmem %s1, 64
      %v591 = vld [vmem:[%s590] sm:$0xff]
      %v592 = vld [vmem:[%s590 + $0x8] sm:$0xff]
      %v593 = vld [vmem:[%s590 + $0x10] sm:$0xff]
      %v594 = vld [vmem:[%s590 + $0x18] sm:$0xff]
      %vm596 = vcmask 1045504
      %v597 = vrot.slane %v411, 2
      %v598 = vrot.slane %v412, 2
      %v599 = vsel %vm596, %v597, %v598
      %v600 = vrot.slane %v413, 2
      %v601 = vsel %vm596, %v598, %v600
      %v602 = vsel %vm431, %v599, 0
      %v604 = vsel %vm431, %v601, 0
      %606 = vmatprep.subr.mxu0 0.0
      %607 = vmatpush1.msra.mxu0 %v591
      %608 = vmatprep.subr.mxu0 0.0
      %609 = vmatpush1.msra.mxu0 %v592
      %610 = vmatprep.subr.mxu0 0.0
      %611 = vmatpush1.msra.mxu0 %v593
      %612 = vmatprep.subr.mxu0 0.0
      %613 = vmatpush1.msra.mxu0 %v594
      %614 = vmatprep.subr.mxu0 0.0
      %615 = vmatpush1.msra.mxu0 0.0
      %616 = vmatprep.subr.mxu0 0.0
      %617 = vmatpush1.msra.mxu0 0.0
      %618 = vmatprep.subr.mxu0 0.0
      %619 = vmatpush1.msra.mxu0 0.0
      %620 = vmatprep.subr.mxu0 0.0
      %621 = vmatpush1.msra.mxu0 0.0
      %622 = vmatprep.subr.mxu0 0.0
      %623 = vmatpush1.msra.mxu0 0.0
      %624 = vmatprep.subr.mxu0 0.0
      %625 = vmatpush1.msra.mxu0 0.0
      %626 = vmatprep.subr.mxu0 0.0
      %627 = vmatpush1.msra.mxu0 0.0
      %628 = vmatprep.subr.mxu0 0.0
      %629 = vmatpush1.msra.mxu0 0.0
      %630 = vmatprep.subr.mxu0 0.0
      %631 = vmatpush1.msra.mxu0 0.0
      %632 = vmatprep.subr.mxu0 0.0
      %633 = vmatpush1.msra.mxu0 0.0
      %634 = vmatprep.subr.mxu0 0.0
      %635 = vmatpush1.msra.mxu0 0.0
      %636 = vmatprep.subr.mxu0 0.0
      %637 = vmatpush1.msra.mxu0 0.0
      %638 = vmatprep.subr.mxu0 0.0
      %639 = vmatpush1.msra.mxu0 0.0
      %640 = vmatprep.subr.mxu0 0.0
      %641 = vmatpush1.msra.mxu0 0.0
      %642 = vmatprep.subr.mxu0 0.0
      %643 = vmatpush1.msra.mxu0 0.0
      %644 = vmatprep.subr.mxu0 0.0
      %645 = vmatpush1.msra.mxu0 0.0
      %646 = vmatprep.subr.mxu0 0.0
      %647 = vmatpush1.msra.mxu0 0.0
      %648 = vmatprep.subr.mxu0 0.0
      %649 = vmatpush1.msra.mxu0 0.0
      %650 = vmatprep.subr.mxu0 0.0
      %651 = vmatpush1.msra.mxu0 0.0
      %652 = vmatprep.subr.mxu0 0.0
      %653 = vmatpush1.msra.mxu0 0.0
      %654 = vmatprep.subr.mxu0 0.0
      %655 = vmatpush1.msra.mxu0 0.0
      %656 = vmatprep.subr.mxu0 0.0
      %657 = vmatpush1.msra.mxu0 0.0
      %658 = vmatprep.subr.mxu0 0.0
      %659 = vmatpush1.msra.mxu0 0.0
      %660 = vmatprep.subr.mxu0 0.0
      %661 = vmatpush1.msra.mxu0 0.0
      %662 = vmatprep.subr.mxu0 0.0
      %663 = vmatpush1.msra.mxu0 0.0
      %664 = vmatprep.subr.mxu0 0.0
      %665 = vmatpush1.msra.mxu0 0.0
      %666 = vmatprep.subr.mxu0 0.0
      %667 = vmatpush1.msra.mxu0 0.0
      %668 = vmatprep.subr.mxu0 0.0
      %669 = vmatpush1.msra.mxu0 0.0
      %670 = vmatprep.mubr.f32.mxu0 0.0
      %671 = vmatmul.mubr.f32.gmra.mrb[0].mxu0 %v602
      %v672 = vpop.f32.mrb[0].mxu0
      %v673 = vadd.f32 0.0, %v672
      %v674 = vpop.f32.mrb[0].mxu0
      %675 = vmatprep.mubr.f32.mxu0 0.0
      %676 = vmatmul.mubr.f32.gmra.mrb[0].mxu0 %v604
      %v677 = vpop.f32.mrb[0].mxu0
      %v678 = vadd.f32 0.0, %v677
      %v679 = vpop.f32.mrb[0].mxu0
      %680 = vdwg.mxu0
      %v681 = vadd.f32 %v582, %v673
      %v682 = vadd.f32 %v587, %v678
      %s683 = scalar_lea.vmem %s1, 96
      %v684 = vld [vmem:[%s683] sm:$0xff]
      %v685 = vld [vmem:[%s683 + $0x8] sm:$0xff]
      %v686 = vld [vmem:[%s683 + $0x10] sm:$0xff]
      %v687 = vld [vmem:[%s683 + $0x18] sm:$0xff]
      %vm688 = vcmask 1044480
      %v689 = vrot.slane %v411, 3
      %v690 = vrot.slane %v412, 3
      %v691 = vsel %vm688, %v689, %v690
      %v692 = vrot.slane %v413, 3
      %v693 = vsel %vm688, %v690, %v692
      %v694 = vsel %vm431, %v691, 0
      %v696 = vsel %vm431, %v693, 0
      %698 = vmatprep.subr.mxu0 0.0
      %699 = vmatpush1.msra.mxu0 %v684
      %700 = vmatprep.subr.mxu0 0.0
      %701 = vmatpush1.msra.mxu0 %v685
      %702 = vmatprep.subr.mxu0 0.0
      %703 = vmatpush1.msra.mxu0 %v686
      %704 = vmatprep.subr.mxu0 0.0
      %705 = vmatpush1.msra.mxu0 %v687
      %706 = vmatprep.subr.mxu0 0.0
      %707 = vmatpush1.msra.mxu0 0.0
      %708 = vmatprep.subr.mxu0 0.0
      %709 = vmatpush1.msra.mxu0 0.0
      %710 = vmatprep.subr.mxu0 0.0
      %711 = vmatpush1.msra.mxu0 0.0
      %712 = vmatprep.subr.mxu0 0.0
      %713 = vmatpush1.msra.mxu0 0.0
      %714 = vmatprep.subr.mxu0 0.0
      %715 = vmatpush1.msra.mxu0 0.0
      %716 = vmatprep.subr.mxu0 0.0
      %717 = vmatpush1.msra.mxu0 0.0
      %718 = vmatprep.subr.mxu0 0.0
      %719 = vmatpush1.msra.mxu0 0.0
      %720 = vmatprep.subr.mxu0 0.0
      %721 = vmatpush1.msra.mxu0 0.0
      %722 = vmatprep.subr.mxu0 0.0
      %723 = vmatpush1.msra.mxu0 0.0
      %724 = vmatprep.subr.mxu0 0.0
      %725 = vmatpush1.msra.mxu0 0.0
      %726 = vmatprep.subr.mxu0 0.0
      %727 = vmatpush1.msra.mxu0 0.0
      %728 = vmatprep.subr.mxu0 0.0
      %729 = vmatpush1.msra.mxu0 0.0
      %730 = vmatprep.subr.mxu0 0.0
      %731 = vmatpush1.msra.mxu0 0.0
      %732 = vmatprep.subr.mxu0 0.0
      %733 = vmatpush1.msra.mxu0 0.0
      %734 = vmatprep.subr.mxu0 0.0
      %735 = vmatpush1.msra.mxu0 0.0
      %736 = vmatprep.subr.mxu0 0.0
      %737 = vmatpush1.msra.mxu0 0.0
      %738 = vmatprep.subr.mxu0 0.0
      %739 = vmatpush1.msra.mxu0 0.0
      %740 = vmatprep.subr.mxu0 0.0
      %741 = vmatpush1.msra.mxu0 0.0
      %742 = vmatprep.subr.mxu0 0.0
      %743 = vmatpush1.msra.mxu0 0.0
      %744 = vmatprep.subr.mxu0 0.0
      %745 = vmatpush1.msra.mxu0 0.0
      %746 = vmatprep.subr.mxu0 0.0
      %747 = vmatpush1.msra.mxu0 0.0
      %748 = vmatprep.subr.mxu0 0.0
      %749 = vmatpush1.msra.mxu0 0.0
      %750 = vmatprep.subr.mxu0 0.0
      %751 = vmatpush1.msra.mxu0 0.0
      %752 = vmatprep.subr.mxu0 0.0
      %753 = vmatpush1.msra.mxu0 0.0
      %754 = vmatprep.subr.mxu0 0.0
      %755 = vmatpush1.msra.mxu0 0.0
      %756 = vmatprep.subr.mxu0 0.0
      %757 = vmatpush1.msra.mxu0 0.0
      %758 = vmatprep.subr.mxu0 0.0
      %759 = vmatpush1.msra.mxu0 0.0
      %760 = vmatprep.subr.mxu0 0.0
      %761 = vmatpush1.msra.mxu0 0.0
      %762 = vmatprep.mubr.f32.mxu0 0.0
      %763 = vmatmul.mubr.f32.gmra.mrb[0].mxu0 %v694
      %v764 = vpop.f32.mrb[0].mxu0
      %v765 = vadd.f32 0.0, %v764
      %v766 = vpop.f32.mrb[0].mxu0
      %767 = vmatprep.mubr.f32.mxu0 0.0
      %768 = vmatmul.mubr.f32.gmra.mrb[0].mxu0 %v696
      %v769 = vpop.f32.mrb[0].mxu0
      %v770 = vadd.f32 0.0, %v769
      %v771 = vpop.f32.mrb[0].mxu0
      %772 = vdwg.mxu0
      %v773 = vadd.f32 %v681, %v765
      %v774 = vadd.f32 %v682, %v770
      %s775 = scalar_lea.vmem %s1, 128
      %v776 = vld [vmem:[%s775] sm:$0xff]
      %v777 = vld [vmem:[%s775 + $0x8] sm:$0xff]
      %v778 = vld [vmem:[%s775 + $0x10] sm:$0xff]
      %v779 = vld [vmem:[%s775 + $0x18] sm:$0xff]
      %vm780 = vcmask 1041408
      %v781 = vrot.slane %v411, 6
      %v782 = vrot.slane %v412, 6
      %v783 = vsel %vm780, %v781, %v782
      %v784 = vrot.slane %v413, 6
      %v785 = vsel %vm780, %v782, %v784
      %v786 = vsel %vm431, %v783, 0
      %v788 = vsel %vm431, %v785, 0
      %790 = vmatprep.subr.mxu0 0.0
      %791 = vmatpush1.msra.mxu0 %v776
      %792 = vmatprep.subr.mxu0 0.0
      %793 = vmatpush1.msra.mxu0 %v777
      %794 = vmatprep.subr.mxu0 0.0
      %795 = vmatpush1.msra.mxu0 %v778
      %796 = vmatprep.subr.mxu0 0.0
      %797 = vmatpush1.msra.mxu0 %v779
      %798 = vmatprep.subr.mxu0 0.0
      %799 = vmatpush1.msra.mxu0 0.0
      %800 = vmatprep.subr.mxu0 0.0
      %801 = vmatpush1.msra.mxu0 0.0
      %802 = vmatprep.subr.mxu0 0.0
      %803 = vmatpush1.msra.mxu0 0.0
      %804 = vmatprep.subr.mxu0 0.0
      %805 = vmatpush1.msra.mxu0 0.0
      %806 = vmatprep.subr.mxu0 0.0
      %807 = vmatpush1.msra.mxu0 0.0
      %808 = vmatprep.subr.mxu0 0.0
      %809 = vmatpush1.msra.mxu0 0.0
      %810 = vmatprep.subr.mxu0 0.0
      %811 = vmatpush1.msra.mxu0 0.0
      %812 = vmatprep.subr.mxu0 0.0
      %813 = vmatpush1.msra.mxu0 0.0
      %814 = vmatprep.subr.mxu0 0.0
      %815 = vmatpush1.msra.mxu0 0.0
      %816 = vmatprep.subr.mxu0 0.0
      %817 = vmatpush1.msra.mxu0 0.0
      %818 = vmatprep.subr.mxu0 0.0
      %819 = vmatpush1.msra.mxu0 0.0
      %820 = vmatprep.subr.mxu0 0.0
      %821 = vmatpush1.msra.mxu0 0.0
      %822 = vmatprep.subr.mxu0 0.0
      %823 = vmatpush1.msra.mxu0 0.0
      %824 = vmatprep.subr.mxu0 0.0
      %825 = vmatpush1.msra.mxu0 0.0
      %826 = vmatprep.subr.mxu0 0.0
      %827 = vmatpush1.msra.mxu0 0.0
      %828 = vmatprep.subr.mxu0 0.0
      %829 = vmatpush1.msra.mxu0 0.0
      %830 = vmatprep.subr.mxu0 0.0
      %831 = vmatpush1.msra.mxu0 0.0
      %832 = vmatprep.subr.mxu0 0.0
      %833 = vmatpush1.msra.mxu0 0.0
      %834 = vmatprep.subr.mxu0 0.0
      %835 = vmatpush1.msra.mxu0 0.0
      %836 = vmatprep.subr.mxu0 0.0
      %837 = vmatpush1.msra.mxu0 0.0
      %838 = vmatprep.subr.mxu0 0.0
      %839 = vmatpush1.msra.mxu0 0.0
      %840 = vmatprep.subr.mxu0 0.0
      %841 = vmatpush1.msra.mxu0 0.0
      %842 = vmatprep.subr.mxu0 0.0
      %843 = vmatpush1.msra.mxu0 0.0
      %844 = vmatprep.subr.mxu0 0.0
      %845 = vmatpush1.msra.mxu0 0.0
      %846 = vmatprep.subr.mxu0 0.0
      %847 = vmatpush1.msra.mxu0 0.0
      %848 = vmatprep.subr.mxu0 0.0
      %849 = vmatpush1.msra.mxu0 0.0
      %850 = vmatprep.subr.mxu0 0.0
      %851 = vmatpush1.msra.mxu0 0.0
      %852 = vmatprep.subr.mxu0 0.0
      %853 = vmatpush1.msra.mxu0 0.0
      %854 = vmatprep.mubr.f32.mxu0 0.0
      %855 = vmatmul.mubr.f32.gmra.mrb[0].mxu0 %v786
      %v856 = vpop.f32.mrb[0].mxu0
      %v857 = vadd.f32 0.0, %v856
      %v858 = vpop.f32.mrb[0].mxu0
      %859 = vmatprep.mubr.f32.mxu0 0.0
      %860 = vmatmul.mubr.f32.gmra.mrb[0].mxu0 %v788
      %v861 = vpop.f32.mrb[0].mxu0
      %v862 = vadd.f32 0.0, %v861
      %v863 = vpop.f32.mrb[0].mxu0
      %864 = vdwg.mxu0
      %v865 = vadd.f32 %v773, %v857
      %v866 = vadd.f32 %v774, %v862
      %s867 = scalar_lea.vmem %s1, 160
      %v868 = vld [vmem:[%s867] sm:$0xff]
      %v869 = vld [vmem:[%s867 + $0x8] sm:$0xff]
      %v870 = vld [vmem:[%s867 + $0x10] sm:$0xff]
      %v871 = vld [vmem:[%s867 + $0x18] sm:$0xff]
      %vm872 = vcmask 1040384
      %v873 = vrot.slane %v411, 7
      %v874 = vrot.slane %v412, 7
      %v875 = vsel %vm872, %v873, %v874
      %v876 = vrot.slane %v413, 7
      %v877 = vsel %vm872, %v874, %v876
      %v878 = vsel %vm431, %v875, 0
      %v880 = vsel %vm431, %v877, 0
      %882 = vmatprep.subr.mxu0 0.0
      %883 = vmatpush1.msra.mxu0 %v868
      %884 = vmatprep.subr.mxu0 0.0
      %885 = vmatpush1.msra.mxu0 %v869
      %886 = vmatprep.subr.mxu0 0.0
      %887 = vmatpush1.msra.mxu0 %v870
      %888 = vmatprep.subr.mxu0 0.0
      %889 = vmatpush1.msra.mxu0 %v871
      %890 = vmatprep.subr.mxu0 0.0
      %891 = vmatpush1.msra.mxu0 0.0
      %892 = vmatprep.subr.mxu0 0.0
      %893 = vmatpush1.msra.mxu0 0.0
      %894 = vmatprep.subr.mxu0 0.0
      %895 = vmatpush1.msra.mxu0 0.0
      %896 = vmatprep.subr.mxu0 0.0
      %897 = vmatpush1.msra.mxu0 0.0
      %898 = vmatprep.subr.mxu0 0.0
      %899 = vmatpush1.msra.mxu0 0.0
      %900 = vmatprep.subr.mxu0 0.0
      %901 = vmatpush1.msra.mxu0 0.0
      %902 = vmatprep.subr.mxu0 0.0
      %903 = vmatpush1.msra.mxu0 0.0
      %904 = vmatprep.subr.mxu0 0.0
      %905 = vmatpush1.msra.mxu0 0.0
      %906 = vmatprep.subr.mxu0 0.0
      %907 = vmatpush1.msra.mxu0 0.0
      %908 = vmatprep.subr.mxu0 0.0
      %909 = vmatpush1.msra.mxu0 0.0
      %910 = vmatprep.subr.mxu0 0.0
      %911 = vmatpush1.msra.mxu0 0.0
      %912 = vmatprep.subr.mxu0 0.0
      %913 = vmatpush1.msra.mxu0 0.0
      %914 = vmatprep.subr.mxu0 0.0
      %915 = vmatpush1.msra.mxu0 0.0
      %916 = vmatprep.subr.mxu0 0.0
      %917 = vmatpush1.msra.mxu0 0.0
      %918 = vmatprep.subr.mxu0 0.0
      %919 = vmatpush1.msra.mxu0 0.0
      %920 = vmatprep.subr.mxu0 0.0
      %921 = vmatpush1.msra.mxu0 0.0
      %922 = vmatprep.subr.mxu0 0.0
      %923 = vmatpush1.msra.mxu0 0.0
      %924 = vmatprep.subr.mxu0 0.0
      %925 = vmatpush1.msra.mxu0 0.0
      %926 = vmatprep.subr.mxu0 0.0
      %927 = vmatpush1.msra.mxu0 0.0
      %928 = vmatprep.subr.mxu0 0.0
      %929 = vmatpush1.msra.mxu0 0.0
      %930 = vmatprep.subr.mxu0 0.0
      %931 = vmatpush1.msra.mxu0 0.0
      %932 = vmatprep.subr.mxu0 0.0
      %933 = vmatpush1.msra.mxu0 0.0
      %934 = vmatprep.subr.mxu0 0.0
      %935 = vmatpush1.msra.mxu0 0.0
      %936 = vmatprep.subr.mxu0 0.0
      %937 = vmatpush1.msra.mxu0 0.0
      %938 = vmatprep.subr.mxu0 0.0
      %939 = vmatpush1.msra.mxu0 0.0
      %940 = vmatprep.subr.mxu0 0.0
      %941 = vmatpush1.msra.mxu0 0.0
      %942 = vmatprep.subr.mxu0 0.0
      %943 = vmatpush1.msra.mxu0 0.0
      %944 = vmatprep.subr.mxu0 0.0
      %945 = vmatpush1.msra.mxu0 0.0
      %946 = vmatprep.mubr.f32.mxu0 0.0
      %947 = vmatmul.mubr.f32.gmra.mrb[0].mxu0 %v878
      %v948 = vpop.f32.mrb[0].mxu0
      %v949 = vadd.f32 0.0, %v948
      %v950 = vpop.f32.mrb[0].mxu0
      %951 = vmatprep.mubr.f32.mxu0 0.0
      %952 = vmatmul.mubr.f32.gmra.mrb[0].mxu0 %v880
      %v953 = vpop.f32.mrb[0].mxu0
      %v954 = vadd.f32 0.0, %v953
      %v955 = vpop.f32.mrb[0].mxu0
      %956 = vdwg.mxu0
      %v957 = vadd.f32 %v865, %v949
      %v958 = vadd.f32 %v866, %v954
      %s959 = scalar_lea.vmem %s1, 192
      %v960 = vld [vmem:[%s959] sm:$0xff]
      %v961 = vld [vmem:[%s959 + $0x8] sm:$0xff]
      %v962 = vld [vmem:[%s959 + $0x10] sm:$0xff]
      %v963 = vld [vmem:[%s959 + $0x18] sm:$0xff]
      %v964 = vsel %vm431, %v413, 0
      %966 = vmatprep.subr.mxu0 0.0
      %967 = vmatpush1.msra.mxu0 %v960
      %968 = vmatprep.subr.mxu0 0.0
      %969 = vmatpush1.msra.mxu0 %v961
      %970 = vmatprep.subr.mxu0 0.0
      %971 = vmatpush1.msra.mxu0 %v962
      %972 = vmatprep.subr.mxu0 0.0
      %973 = vmatpush1.msra.mxu0 %v963
      %974 = vmatprep.subr.mxu0 0.0
      %975 = vmatpush1.msra.mxu0 0.0
      %976 = vmatprep.subr.mxu0 0.0
      %977 = vmatpush1.msra.mxu0 0.0
      %978 = vmatprep.subr.mxu0 0.0
      %979 = vmatpush1.msra.mxu0 0.0
      %980 = vmatprep.subr.mxu0 0.0
      %981 = vmatpush1.msra.mxu0 0.0
      %982 = vmatprep.subr.mxu0 0.0
      %983 = vmatpush1.msra.mxu0 0.0
      %984 = vmatprep.subr.mxu0 0.0
      %985 = vmatpush1.msra.mxu0 0.0
      %986 = vmatprep.subr.mxu0 0.0
      %987 = vmatpush1.msra.mxu0 0.0
      %988 = vmatprep.subr.mxu0 0.0
      %989 = vmatpush1.msra.mxu0 0.0
      %990 = vmatprep.subr.mxu0 0.0
      %991 = vmatpush1.msra.mxu0 0.0
      %992 = vmatprep.subr.mxu0 0.0
      %993 = vmatpush1.msra.mxu0 0.0
      %994 = vmatprep.subr.mxu0 0.0
      %995 = vmatpush1.msra.mxu0 0.0
      %996 = vmatprep.subr.mxu0 0.0
      %997 = vmatpush1.msra.mxu0 0.0
      %998 = vmatprep.subr.mxu0 0.0
      %999 = vmatpush1.msra.mxu0 0.0
      %1000 = vmatprep.subr.mxu0 0.0
      %1001 = vmatpush1.msra.mxu0 0.0
      %1002 = vmatprep.subr.mxu0 0.0
      %1003 = vmatpush1.msra.mxu0 0.0
      %1004 = vmatprep.subr.mxu0 0.0
      %1005 = vmatpush1.msra.mxu0 0.0
      %1006 = vmatprep.subr.mxu0 0.0
      %1007 = vmatpush1.msra.mxu0 0.0
      %1008 = vmatprep.subr.mxu0 0.0
      %1009 = vmatpush1.msra.mxu0 0.0
      %1010 = vmatprep.subr.mxu0 0.0
      %1011 = vmatpush1.msra.mxu0 0.0
      %1012 = vmatprep.subr.mxu0 0.0
      %1013 = vmatpush1.msra.mxu0 0.0
      %1014 = vmatprep.subr.mxu0 0.0
      %1015 = vmatpush1.msra.mxu0 0.0
      %1016 = vmatprep.subr.mxu0 0.0
      %1017 = vmatpush1.msra.mxu0 0.0
      %1018 = vmatprep.subr.mxu0 0.0
      %1019 = vmatpush1.msra.mxu0 0.0
      %1020 = vmatprep.subr.mxu0 0.0
      %1021 = vmatpush1.msra.mxu0 0.0
      %1022 = vmatprep.subr.mxu0 0.0
      %1023 = vmatpush1.msra.mxu0 0.0
      %1024 = vmatprep.subr.mxu0 0.0
      %1025 = vmatpush1.msra.mxu0 0.0
      %1026 = vmatprep.subr.mxu0 0.0
      %1027 = vmatpush1.msra.mxu0 0.0
      %1028 = vmatprep.subr.mxu0 0.0
      %1029 = vmatpush1.msra.mxu0 0.0
      %1030 = vmatprep.mubr.f32.mxu0 0.0
      %1031 = vmatmul.mubr.f32.gmra.mrb[0].mxu0 %v513
      %v1032 = vpop.f32.mrb[0].mxu0
      %v1033 = vadd.f32 0.0, %v1032
      %v1034 = vpop.f32.mrb[0].mxu0
      %1035 = vmatprep.mubr.f32.mxu0 0.0
      %1036 = vmatmul.mubr.f32.gmra.mrb[0].mxu0 %v964
      %v1037 = vpop.f32.mrb[0].mxu0
      %v1038 = vadd.f32 0.0, %v1037
      %v1039 = vpop.f32.mrb[0].mxu0
      %1040 = vdwg.mxu0
      %v1041 = vadd.f32 %v957, %v1033
      %v1042 = vadd.f32 %v958, %v1038
      %s1043 = scalar_lea.vmem %s1, 224
      %v1044 = vld [vmem:[%s1043] sm:$0xff]
      %v1045 = vld [vmem:[%s1043 + $0x8] sm:$0xff]
      %v1046 = vld [vmem:[%s1043 + $0x10] sm:$0xff]
      %v1047 = vld [vmem:[%s1043 + $0x18] sm:$0xff]
      %v1048 = vrot.slane %v413, 1
      %v1049 = vsel %vm427, %v429, %v1048
      %v1050 = vsel %vm431, %v1049, 0
      %v1052 = vsel %vm431, %v1048, 0
      %1054 = vmatprep.subr.mxu0 0.0
      %1055 = vmatpush1.msra.mxu0 %v1044
      %1056 = vmatprep.subr.mxu0 0.0
      %1057 = vmatpush1.msra.mxu0 %v1045
      %1058 = vmatprep.subr.mxu0 0.0
      %1059 = vmatpush1.msra.mxu0 %v1046
      %1060 = vmatprep.subr.mxu0 0.0
      %1061 = vmatpush1.msra.mxu0 %v1047
      %1062 = vmatprep.subr.mxu0 0.0
      %1063 = vmatpush1.msra.mxu0 0.0
      %1064 = vmatprep.subr.mxu0 0.0
      %1065 = vmatpush1.msra.mxu0 0.0
      %1066 = vmatprep.subr.mxu0 0.0
      %1067 = vmatpush1.msra.mxu0 0.0
      %1068 = vmatprep.subr.mxu0 0.0
      %1069 = vmatpush1.msra.mxu0 0.0
      %1070 = vmatprep.subr.mxu0 0.0
      %1071 = vmatpush1.msra.mxu0 0.0
      %1072 = vmatprep.subr.mxu0 0.0
      %1073 = vmatpush1.msra.mxu0 0.0
      %1074 = vmatprep.subr.mxu0 0.0
      %1075 = vmatpush1.msra.mxu0 0.0
      %1076 = vmatprep.subr.mxu0 0.0
      %1077 = vmatpush1.msra.mxu0 0.0
      %1078 = vmatprep.subr.mxu0 0.0
      %1079 = vmatpush1.msra.mxu0 0.0
      %1080 = vmatprep.subr.mxu0 0.0
      %1081 = vmatpush1.msra.mxu0 0.0
      %1082 = vmatprep.subr.mxu0 0.0
      %1083 = vmatpush1.msra.mxu0 0.0
      %1084 = vmatprep.subr.mxu0 0.0
      %1085 = vmatpush1.msra.mxu0 0.0
      %1086 = vmatprep.subr.mxu0 0.0
      %1087 = vmatpush1.msra.mxu0 0.0
      %1088 = vmatprep.subr.mxu0 0.0
      %1089 = vmatpush1.msra.mxu0 0.0
      %1090 = vmatprep.subr.mxu0 0.0
      %1091 = vmatpush1.msra.mxu0 0.0
      %1092 = vmatprep.subr.mxu0 0.0
      %1093 = vmatpush1.msra.mxu0 0.0
      %1094 = vmatprep.subr.mxu0 0.0
      %1095 = vmatpush1.msra.mxu0 0.0
      %1096 = vmatprep.subr.mxu0 0.0
      %1097 = vmatpush1.msra.mxu0 0.0
      %1098 = vmatprep.subr.mxu0 0.0
      %1099 = vmatpush1.msra.mxu0 0.0
      %1100 = vmatprep.subr.mxu0 0.0
      %1101 = vmatpush1.msra.mxu0 0.0
      %1102 = vmatprep.subr.mxu0 0.0
      %1103 = vmatpush1.msra.mxu0 0.0
      %1104 = vmatprep.subr.mxu0 0.0
      %1105 = vmatpush1.msra.mxu0 0.0
      %1106 = vmatprep.subr.mxu0 0.0
      %1107 = vmatpush1.msra.mxu0 0.0
      %1108 = vmatprep.subr.mxu0 0.0
      %1109 = vmatpush1.msra.mxu0 0.0
      %1110 = vmatprep.subr.mxu0 0.0
      %1111 = vmatpush1.msra.mxu0 0.0
      %1112 = vmatprep.subr.mxu0 0.0
      %1113 = vmatpush1.msra.mxu0 0.0
      %1114 = vmatprep.subr.mxu0 0.0
      %1115 = vmatpush1.msra.mxu0 0.0
      %1116 = vmatprep.subr.mxu0 0.0
      %1117 = vmatpush1.msra.mxu0 0.0
      %1118 = vmatprep.mubr.f32.mxu0 0.0
      %1119 = vmatmul.mubr.f32.gmra.mrb[0].mxu0 %v1050
      %v1120 = vpop.f32.mrb[0].mxu0
      %v1121 = vadd.f32 0.0, %v1120
      %v1122 = vpop.f32.mrb[0].mxu0
      %1123 = vmatprep.mubr.f32.mxu0 0.0
      %1124 = vmatmul.mubr.f32.gmra.mrb[0].mxu0 %v1052
      %v1125 = vpop.f32.mrb[0].mxu0
      %v1126 = vadd.f32 0.0, %v1125
      %v1127 = vpop.f32.mrb[0].mxu0
      %1128 = vdwg.mxu0
      %v1129 = vadd.f32 %v1041, %v1121
      %v1130 = vadd.f32 %v1042, %v1126
      %s1131 = scalar_lea.vmem %s1, 256
      %v1132 = vld [vmem:[%s1131] sm:$0xff]
      %v1133 = vld [vmem:[%s1131 + $0x8] sm:$0xff]
      %v1134 = vld [vmem:[%s1131 + $0x10] sm:$0xff]
      %v1135 = vld [vmem:[%s1131 + $0x18] sm:$0xff]
      %vm1137 = vcmask 1043456
      %v1138 = vrot.slane %v412, 4
      %v1139 = vrot.slane %v413, 4
      %v1140 = vsel %vm1137, %v1138, %v1139
      %v1141 = vrot.slane %v414, 4
      %v1142 = vsel %vm1137, %v1139, %v1141
      %v1143 = vsel %vm431, %v1140, 0
      %v1145 = vsel %vm431, %v1142, 0
      %1147 = vmatprep.subr.mxu0 0.0
      %1148 = vmatpush1.msra.mxu0 %v1132
      %1149 = vmatprep.subr.mxu0 0.0
      %1150 = vmatpush1.msra.mxu0 %v1133
      %1151 = vmatprep.subr.mxu0 0.0
      %1152 = vmatpush1.msra.mxu0 %v1134
      %1153 = vmatprep.subr.mxu0 0.0
      %1154 = vmatpush1.msra.mxu0 %v1135
      %1155 = vmatprep.subr.mxu0 0.0
      %1156 = vmatpush1.msra.mxu0 0.0
      %1157 = vmatprep.subr.mxu0 0.0
      %1158 = vmatpush1.msra.mxu0 0.0
      %1159 = vmatprep.subr.mxu0 0.0
      %1160 = vmatpush1.msra.mxu0 0.0
      %1161 = vmatprep.subr.mxu0 0.0
      %1162 = vmatpush1.msra.mxu0 0.0
      %1163 = vmatprep.subr.mxu0 0.0
      %1164 = vmatpush1.msra.mxu0 0.0
      %1165 = vmatprep.subr.mxu0 0.0
      %1166 = vmatpush1.msra.mxu0 0.0
      %1167 = vmatprep.subr.mxu0 0.0
      %1168 = vmatpush1.msra.mxu0 0.0
      %1169 = vmatprep.subr.mxu0 0.0
      %1170 = vmatpush1.msra.mxu0 0.0
      %1171 = vmatprep.subr.mxu0 0.0
      %1172 = vmatpush1.msra.mxu0 0.0
      %1173 = vmatprep.subr.mxu0 0.0
      %1174 = vmatpush1.msra.mxu0 0.0
      %1175 = vmatprep.subr.mxu0 0.0
      %1176 = vmatpush1.msra.mxu0 0.0
      %1177 = vmatprep.subr.mxu0 0.0
      %1178 = vmatpush1.msra.mxu0 0.0
      %1179 = vmatprep.subr.mxu0 0.0
      %1180 = vmatpush1.msra.mxu0 0.0
      %1181 = vmatprep.subr.mxu0 0.0
      %1182 = vmatpush1.msra.mxu0 0.0
      %1183 = vmatprep.subr.mxu0 0.0
      %1184 = vmatpush1.msra.mxu0 0.0
      %1185 = vmatprep.subr.mxu0 0.0
      %1186 = vmatpush1.msra.mxu0 0.0
      %1187 = vmatprep.subr.mxu0 0.0
      %1188 = vmatpush1.msra.mxu0 0.0
      %1189 = vmatprep.subr.mxu0 0.0
      %1190 = vmatpush1.msra.mxu0 0.0
      %1191 = vmatprep.subr.mxu0 0.0
      %1192 = vmatpush1.msra.mxu0 0.0
      %1193 = vmatprep.subr.mxu0 0.0
      %1194 = vmatpush1.msra.mxu0 0.0
      %1195 = vmatprep.subr.mxu0 0.0
      %1196 = vmatpush1.msra.mxu0 0.0
      %1197 = vmatprep.subr.mxu0 0.0
      %1198 = vmatpush1.msra.mxu0 0.0
      %1199 = vmatprep.subr.mxu0 0.0
      %1200 = vmatpush1.msra.mxu0 0.0
      %1201 = vmatprep.subr.mxu0 0.0
      %1202 = vmatpush1.msra.mxu0 0.0
      %1203 = vmatprep.subr.mxu0 0.0
      %1204 = vmatpush1.msra.mxu0 0.0
      %1205 = vmatprep.subr.mxu0 0.0
      %1206 = vmatpush1.msra.mxu0 0.0
      %1207 = vmatprep.subr.mxu0 0.0
      %1208 = vmatpush1.msra.mxu0 0.0
      %1209 = vmatprep.subr.mxu0 0.0
      %1210 = vmatpush1.msra.mxu0 0.0
      %1211 = vmatprep.mubr.f32.mxu0 0.0
      %1212 = vmatmul.mubr.f32.gmra.mrb[0].mxu0 %v1143
      %v1213 = vpop.f32.mrb[0].mxu0
      %v1214 = vadd.f32 0.0, %v1213
      %v1215 = vpop.f32.mrb[0].mxu0
      %1216 = vmatprep.mubr.f32.mxu0 0.0
      %1217 = vmatmul.mubr.f32.gmra.mrb[0].mxu0 %v1145
      %v1218 = vpop.f32.mrb[0].mxu0
      %v1219 = vadd.f32 0.0, %v1218
      %v1220 = vpop.f32.mrb[0].mxu0
      %1221 = vdwg.mxu0
      %v1222 = vadd.f32 %v1129, %v1214
      %v1223 = vadd.f32 %v1130, %v1219
      %s1224 = scalar_lea.vmem %s1, 288
      %v1225 = vld [vmem:[%s1224] sm:$0xff]
      %v1226 = vld [vmem:[%s1224 + $0x8] sm:$0xff]
      %v1227 = vld [vmem:[%s1224 + $0x10] sm:$0xff]
      %v1228 = vld [vmem:[%s1224 + $0x18] sm:$0xff]
      %vm1229 = vcmask 1042432
      %v1230 = vrot.slane %v412, 5
      %v1231 = vrot.slane %v413, 5
      %v1232 = vsel %vm1229, %v1230, %v1231
      %v1233 = vrot.slane %v414, 5
      %v1234 = vsel %vm1229, %v1231, %v1233
      %v1235 = vsel %vm431, %v1232, 0
      %v1237 = vsel %vm431, %v1234, 0
      %1239 = vmatprep.subr.mxu0 0.0
      %1240 = vmatpush1.msra.mxu0 %v1225
      %1241 = vmatprep.subr.mxu0 0.0
      %1242 = vmatpush1.msra.mxu0 %v1226
      %1243 = vmatprep.subr.mxu0 0.0
      %1244 = vmatpush1.msra.mxu0 %v1227
      %1245 = vmatprep.subr.mxu0 0.0
      %1246 = vmatpush1.msra.mxu0 %v1228
      %1247 = vmatprep.subr.mxu0 0.0
      %1248 = vmatpush1.msra.mxu0 0.0
      %1249 = vmatprep.subr.mxu0 0.0
      %1250 = vmatpush1.msra.mxu0 0.0
      %1251 = vmatprep.subr.mxu0 0.0
      %1252 = vmatpush1.msra.mxu0 0.0
      %1253 = vmatprep.subr.mxu0 0.0
      %1254 = vmatpush1.msra.mxu0 0.0
      %1255 = vmatprep.subr.mxu0 0.0
      %1256 = vmatpush1.msra.mxu0 0.0
      %1257 = vmatprep.subr.mxu0 0.0
      %1258 = vmatpush1.msra.mxu0 0.0
      %1259 = vmatprep.subr.mxu0 0.0
      %1260 = vmatpush1.msra.mxu0 0.0
      %1261 = vmatprep.subr.mxu0 0.0
      %1262 = vmatpush1.msra.mxu0 0.0
      %1263 = vmatprep.subr.mxu0 0.0
      %1264 = vmatpush1.msra.mxu0 0.0
      %1265 = vmatprep.subr.mxu0 0.0
      %1266 = vmatpush1.msra.mxu0 0.0
      %1267 = vmatprep.subr.mxu0 0.0
      %1268 = vmatpush1.msra.mxu0 0.0
      %1269 = vmatprep.subr.mxu0 0.0
      %1270 = vmatpush1.msra.mxu0 0.0
      %1271 = vmatprep.subr.mxu0 0.0
      %1272 = vmatpush1.msra.mxu0 0.0
      %1273 = vmatprep.subr.mxu0 0.0
      %1274 = vmatpush1.msra.mxu0 0.0
      %1275 = vmatprep.subr.mxu0 0.0
      %1276 = vmatpush1.msra.mxu0 0.0
      %1277 = vmatprep.subr.mxu0 0.0
      %1278 = vmatpush1.msra.mxu0 0.0
      %1279 = vmatprep.subr.mxu0 0.0
      %1280 = vmatpush1.msra.mxu0 0.0
      %1281 = vmatprep.subr.mxu0 0.0
      %1282 = vmatpush1.msra.mxu0 0.0
      %1283 = vmatprep.subr.mxu0 0.0
      %1284 = vmatpush1.msra.mxu0 0.0
      %1285 = vmatprep.subr.mxu0 0.0
      %1286 = vmatpush1.msra.mxu0 0.0
      %1287 = vmatprep.subr.mxu0 0.0
      %1288 = vmatpush1.msra.mxu0 0.0
      %1289 = vmatprep.subr.mxu0 0.0
      %1290 = vmatpush1.msra.mxu0 0.0
      %1291 = vmatprep.subr.mxu0 0.0
      %1292 = vmatpush1.msra.mxu0 0.0
      %1293 = vmatprep.subr.mxu0 0.0
      %1294 = vmatpush1.msra.mxu0 0.0
      %1295 = vmatprep.subr.mxu0 0.0
      %1296 = vmatpush1.msra.mxu0 0.0
      %1297 = vmatprep.subr.mxu0 0.0
      %1298 = vmatpush1.msra.mxu0 0.0
      %1299 = vmatprep.subr.mxu0 0.0
      %1300 = vmatpush1.msra.mxu0 0.0
      %1301 = vmatprep.subr.mxu0 0.0
      %1302 = vmatpush1.msra.mxu0 0.0
      %1303 = vmatprep.mubr.f32.mxu0 0.0
      %1304 = vmatmul.mubr.f32.gmra.mrb[0].mxu0 %v1235
      %v1305 = vpop.f32.mrb[0].mxu0
      %v1306 = vadd.f32 0.0, %v1305
      %v1307 = vpop.f32.mrb[0].mxu0
      %1308 = vmatprep.mubr.f32.mxu0 0.0
      %1309 = vmatmul.mubr.f32.gmra.mrb[0].mxu0 %v1237
      %v1310 = vpop.f32.mrb[0].mxu0
      %v1311 = vadd.f32 0.0, %v1310
      %v1312 = vpop.f32.mrb[0].mxu0
      %1313 = vdwg.mxu0
      %v1314 = vadd.f32 %v1222, %v1306
      %v1315 = vadd.f32 %v1223, %v1311
      %s1316 = scalar_lea.vmem %s1, 320
      %v1317 = vld [vmem:[%s1316] sm:$0xff]
      %v1318 = vld [vmem:[%s1316 + $0x8] sm:$0xff]
      %v1319 = vld [vmem:[%s1316 + $0x10] sm:$0xff]
      %v1320 = vld [vmem:[%s1316 + $0x18] sm:$0xff]
      %v1321 = vrot.slane %v414, 6
      %v1322 = vsel %vm780, %v784, %v1321
      %v1323 = vsel %vm431, %v1322, 0
      %1325 = vmatprep.subr.mxu0 0.0
      %1326 = vmatpush1.msra.mxu0 %v1317
      %1327 = vmatprep.subr.mxu0 0.0
      %1328 = vmatpush1.msra.mxu0 %v1318
      %1329 = vmatprep.subr.mxu0 0.0
      %1330 = vmatpush1.msra.mxu0 %v1319
      %1331 = vmatprep.subr.mxu0 0.0
      %1332 = vmatpush1.msra.mxu0 %v1320
      %1333 = vmatprep.subr.mxu0 0.0
      %1334 = vmatpush1.msra.mxu0 0.0
      %1335 = vmatprep.subr.mxu0 0.0
      %1336 = vmatpush1.msra.mxu0 0.0
      %1337 = vmatprep.subr.mxu0 0.0
      %1338 = vmatpush1.msra.mxu0 0.0
      %1339 = vmatprep.subr.mxu0 0.0
      %1340 = vmatpush1.msra.mxu0 0.0
      %1341 = vmatprep.subr.mxu0 0.0
      %1342 = vmatpush1.msra.mxu0 0.0
      %1343 = vmatprep.subr.mxu0 0.0
      %1344 = vmatpush1.msra.mxu0 0.0
      %1345 = vmatprep.subr.mxu0 0.0
      %1346 = vmatpush1.msra.mxu0 0.0
      %1347 = vmatprep.subr.mxu0 0.0
      %1348 = vmatpush1.msra.mxu0 0.0
      %1349 = vmatprep.subr.mxu0 0.0
      %1350 = vmatpush1.msra.mxu0 0.0
      %1351 = vmatprep.subr.mxu0 0.0
      %1352 = vmatpush1.msra.mxu0 0.0
      %1353 = vmatprep.subr.mxu0 0.0
      %1354 = vmatpush1.msra.mxu0 0.0
      %1355 = vmatprep.subr.mxu0 0.0
      %1356 = vmatpush1.msra.mxu0 0.0
      %1357 = vmatprep.subr.mxu0 0.0
      %1358 = vmatpush1.msra.mxu0 0.0
      %1359 = vmatprep.subr.mxu0 0.0
      %1360 = vmatpush1.msra.mxu0 0.0
      %1361 = vmatprep.subr.mxu0 0.0
      %1362 = vmatpush1.msra.mxu0 0.0
      %1363 = vmatprep.subr.mxu0 0.0
      %1364 = vmatpush1.msra.mxu0 0.0
      %1365 = vmatprep.subr.mxu0 0.0
      %1366 = vmatpush1.msra.mxu0 0.0
      %1367 = vmatprep.subr.mxu0 0.0
      %1368 = vmatpush1.msra.mxu0 0.0
      %1369 = vmatprep.subr.mxu0 0.0
      %1370 = vmatpush1.msra.mxu0 0.0
      %1371 = vmatprep.subr.mxu0 0.0
      %1372 = vmatpush1.msra.mxu0 0.0
      %1373 = vmatprep.subr.mxu0 0.0
      %1374 = vmatpush1.msra.mxu0 0.0
      %1375 = vmatprep.subr.mxu0 0.0
      %1376 = vmatpush1.msra.mxu0 0.0
      %1377 = vmatprep.subr.mxu0 0.0
      %1378 = vmatpush1.msra.mxu0 0.0
      %1379 = vmatprep.subr.mxu0 0.0
      %1380 = vmatpush1.msra.mxu0 0.0
      %1381 = vmatprep.subr.mxu0 0.0
      %1382 = vmatpush1.msra.mxu0 0.0
      %1383 = vmatprep.subr.mxu0 0.0
      %1384 = vmatpush1.msra.mxu0 0.0
      %1385 = vmatprep.subr.mxu0 0.0
      %1386 = vmatpush1.msra.mxu0 0.0
      %1387 = vmatprep.subr.mxu0 0.0
      %1388 = vmatpush1.msra.mxu0 0.0
      %1389 = vmatprep.mubr.f32.mxu0 0.0
      %1390 = vmatmul.mubr.f32.gmra.mrb[0].mxu0 %v788
      %v1391 = vpop.f32.mrb[0].mxu0
      %v1392 = vadd.f32 0.0, %v1391
      %v1393 = vpop.f32.mrb[0].mxu0
      %1394 = vmatprep.mubr.f32.mxu0 0.0
      %1395 = vmatmul.mubr.f32.gmra.mrb[0].mxu0 %v1323
      %v1396 = vpop.f32.mrb[0].mxu0
      %v1397 = vadd.f32 0.0, %v1396
      %v1398 = vpop.f32.mrb[0].mxu0
      %1399 = vdwg.mxu0
      %v1400 = vadd.f32 %v1314, %v1392
      %v1401 = vadd.f32 %v1315, %v1397
      %s1402 = scalar_lea.vmem %s1, 352
      %v1403 = vld [vmem:[%s1402] sm:$0xff]
      %v1404 = vld [vmem:[%s1402 + $0x8] sm:$0xff]
      %v1405 = vld [vmem:[%s1402 + $0x10] sm:$0xff]
      %v1406 = vld [vmem:[%s1402 + $0x18] sm:$0xff]
      %v1407 = vrot.slane %v414, 7
      %v1408 = vsel %vm872, %v876, %v1407
      %v1409 = vsel %vm431, %v1408, 0
      %1411 = vmatprep.subr.mxu0 0.0
      %1412 = vmatpush1.msra.mxu0 %v1403
      %1413 = vmatprep.subr.mxu0 0.0
      %1414 = vmatpush1.msra.mxu0 %v1404
      %1415 = vmatprep.subr.mxu0 0.0
      %1416 = vmatpush1.msra.mxu0 %v1405
      %1417 = vmatprep.subr.mxu0 0.0
      %1418 = vmatpush1.msra.mxu0 %v1406
      %1419 = vmatprep.subr.mxu0 0.0
      %1420 = vmatpush1.msra.mxu0 0.0
      %1421 = vmatprep.subr.mxu0 0.0
      %1422 = vmatpush1.msra.mxu0 0.0
      %1423 = vmatprep.subr.mxu0 0.0
      %1424 = vmatpush1.msra.mxu0 0.0
      %1425 = vmatprep.subr.mxu0 0.0
      %1426 = vmatpush1.msra.mxu0 0.0
      %1427 = vmatprep.subr.mxu0 0.0
      %1428 = vmatpush1.msra.mxu0 0.0
      %1429 = vmatprep.subr.mxu0 0.0
      %1430 = vmatpush1.msra.mxu0 0.0
      %1431 = vmatprep.subr.mxu0 0.0
      %1432 = vmatpush1.msra.mxu0 0.0
      %1433 = vmatprep.subr.mxu0 0.0
      %1434 = vmatpush1.msra.mxu0 0.0
      %1435 = vmatprep.subr.mxu0 0.0
      %1436 = vmatpush1.msra.mxu0 0.0
      %1437 = vmatprep.subr.mxu0 0.0
      %1438 = vmatpush1.msra.mxu0 0.0
      %1439 = vmatprep.subr.mxu0 0.0
      %1440 = vmatpush1.msra.mxu0 0.0
      %1441 = vmatprep.subr.mxu0 0.0
      %1442 = vmatpush1.msra.mxu0 0.0
      %1443 = vmatprep.subr.mxu0 0.0
      %1444 = vmatpush1.msra.mxu0 0.0
      %1445 = vmatprep.subr.mxu0 0.0
      %1446 = vmatpush1.msra.mxu0 0.0
      %1447 = vmatprep.subr.mxu0 0.0
      %1448 = vmatpush1.msra.mxu0 0.0
      %1449 = vmatprep.subr.mxu0 0.0
      %1450 = vmatpush1.msra.mxu0 0.0
      %1451 = vmatprep.subr.mxu0 0.0
      %1452 = vmatpush1.msra.mxu0 0.0
      %1453 = vmatprep.subr.mxu0 0.0
      %1454 = vmatpush1.msra.mxu0 0.0
      %1455 = vmatprep.subr.mxu0 0.0
      %1456 = vmatpush1.msra.mxu0 0.0
      %1457 = vmatprep.subr.mxu0 0.0
      %1458 = vmatpush1.msra.mxu0 0.0
      %1459 = vmatprep.subr.mxu0 0.0
      %1460 = vmatpush1.msra.mxu0 0.0
      %1461 = vmatprep.subr.mxu0 0.0
      %1462 = vmatpush1.msra.mxu0 0.0
      %1463 = vmatprep.subr.mxu0 0.0
      %1464 = vmatpush1.msra.mxu0 0.0
      %1465 = vmatprep.subr.mxu0 0.0
      %1466 = vmatpush1.msra.mxu0 0.0
      %1467 = vmatprep.subr.mxu0 0.0
      %1468 = vmatpush1.msra.mxu0 0.0
      %1469 = vmatprep.subr.mxu0 0.0
      %1470 = vmatpush1.msra.mxu0 0.0
      %1471 = vmatprep.subr.mxu0 0.0
      %1472 = vmatpush1.msra.mxu0 0.0
      %1473 = vmatprep.subr.mxu0 0.0
      %1474 = vmatpush1.msra.mxu0 0.0
      %1475 = vmatprep.mubr.f32.mxu0 0.0
      %1476 = vmatmul.mubr.f32.gmra.mrb[0].mxu0 %v880
      %v1477 = vpop.f32.mrb[0].mxu0
      %v1478 = vadd.f32 0.0, %v1477
      %v1479 = vpop.f32.mrb[0].mxu0
      %1480 = vmatprep.mubr.f32.mxu0 0.0
      %1481 = vmatmul.mubr.f32.gmra.mrb[0].mxu0 %v1409
      %v1482 = vpop.f32.mrb[0].mxu0
      %v1483 = vadd.f32 0.0, %v1482
      %v1484 = vpop.f32.mrb[0].mxu0
      %1485 = vdwg.mxu0
      %v1486 = vadd.f32 %v1400, %v1478
      %v1487 = vadd.f32 %v1401, %v1483
      %s1488 = scalar_lea.vmem %s1, 384
      %v1489 = vld [vmem:[%s1488] sm:$0xff]
      %v1490 = vld [vmem:[%s1488 + $0x8] sm:$0xff]
      %v1491 = vld [vmem:[%s1488 + $0x10] sm:$0xff]
      %v1492 = vld [vmem:[%s1488 + $0x18] sm:$0xff]
      %v1494 = vrot.slane %v414, 2
      %v1495 = vsel %vm596, %v600, %v1494
      %v1496 = vrot.slane %v415, 2
      %v1497 = vsel %vm596, %v1494, %v1496
      %v1498 = vsel %vm431, %v1495, 0
      %v1500 = vsel %vm431, %v1497, 0
      %1502 = vmatprep.subr.mxu0 0.0
      %1503 = vmatpush1.msra.mxu0 %v1489
      %1504 = vmatprep.subr.mxu0 0.0
      %1505 = vmatpush1.msra.mxu0 %v1490
      %1506 = vmatprep.subr.mxu0 0.0
      %1507 = vmatpush1.msra.mxu0 %v1491
      %1508 = vmatprep.subr.mxu0 0.0
      %1509 = vmatpush1.msra.mxu0 %v1492
      %1510 = vmatprep.subr.mxu0 0.0
      %1511 = vmatpush1.msra.mxu0 0.0
      %1512 = vmatprep.subr.mxu0 0.0
      %1513 = vmatpush1.msra.mxu0 0.0
      %1514 = vmatprep.subr.mxu0 0.0
      %1515 = vmatpush1.msra.mxu0 0.0
      %1516 = vmatprep.subr.mxu0 0.0
      %1517 = vmatpush1.msra.mxu0 0.0
      %1518 = vmatprep.subr.mxu0 0.0
      %1519 = vmatpush1.msra.mxu0 0.0
      %1520 = vmatprep.subr.mxu0 0.0
      %1521 = vmatpush1.msra.mxu0 0.0
      %1522 = vmatprep.subr.mxu0 0.0
      %1523 = vmatpush1.msra.mxu0 0.0
      %1524 = vmatprep.subr.mxu0 0.0
      %1525 = vmatpush1.msra.mxu0 0.0
      %1526 = vmatprep.subr.mxu0 0.0
      %1527 = vmatpush1.msra.mxu0 0.0
      %1528 = vmatprep.subr.mxu0 0.0
      %1529 = vmatpush1.msra.mxu0 0.0
      %1530 = vmatprep.subr.mxu0 0.0
      %1531 = vmatpush1.msra.mxu0 0.0
      %1532 = vmatprep.subr.mxu0 0.0
      %1533 = vmatpush1.msra.mxu0 0.0
      %1534 = vmatprep.subr.mxu0 0.0
      %1535 = vmatpush1.msra.mxu0 0.0
      %1536 = vmatprep.subr.mxu0 0.0
      %1537 = vmatpush1.msra.mxu0 0.0
      %1538 = vmatprep.subr.mxu0 0.0
      %1539 = vmatpush1.msra.mxu0 0.0
      %1540 = vmatprep.subr.mxu0 0.0
      %1541 = vmatpush1.msra.mxu0 0.0
      %1542 = vmatprep.subr.mxu0 0.0
      %1543 = vmatpush1.msra.mxu0 0.0
      %1544 = vmatprep.subr.mxu0 0.0
      %1545 = vmatpush1.msra.mxu0 0.0
      %1546 = vmatprep.subr.mxu0 0.0
      %1547 = vmatpush1.msra.mxu0 0.0
      %1548 = vmatprep.subr.mxu0 0.0
      %1549 = vmatpush1.msra.mxu0 0.0
      %1550 = vmatprep.subr.mxu0 0.0
      %1551 = vmatpush1.msra.mxu0 0.0
      %1552 = vmatprep.subr.mxu0 0.0
      %1553 = vmatpush1.msra.mxu0 0.0
      %1554 = vmatprep.subr.mxu0 0.0
      %1555 = vmatpush1.msra.mxu0 0.0
      %1556 = vmatprep.subr.mxu0 0.0
      %1557 = vmatpush1.msra.mxu0 0.0
      %1558 = vmatprep.subr.mxu0 0.0
      %1559 = vmatpush1.msra.mxu0 0.0
      %1560 = vmatprep.subr.mxu0 0.0
      %1561 = vmatpush1.msra.mxu0 0.0
      %1562 = vmatprep.subr.mxu0 0.0
      %1563 = vmatpush1.msra.mxu0 0.0
      %1564 = vmatprep.subr.mxu0 0.0
      %1565 = vmatpush1.msra.mxu0 0.0
      %1566 = vmatprep.mubr.f32.mxu0 0.0
      %1567 = vmatmul.mubr.f32.gmra.mrb[0].mxu0 %v1498
      %v1568 = vpop.f32.mrb[0].mxu0
      %v1569 = vadd.f32 0.0, %v1568
      %v1570 = vpop.f32.mrb[0].mxu0
      %1571 = vmatprep.mubr.f32.mxu0 0.0
      %1572 = vmatmul.mubr.f32.gmra.mrb[0].mxu0 %v1500
      %v1573 = vpop.f32.mrb[0].mxu0
      %v1574 = vadd.f32 0.0, %v1573
      %v1575 = vpop.f32.mrb[0].mxu0
      %1576 = vdwg.mxu0
      %v1577 = vadd.f32 %v1486, %v1569
      %v1578 = vadd.f32 %v1487, %v1574
      %s1579 = scalar_lea.vmem %s1, 416
      %v1580 = vld [vmem:[%s1579] sm:$0xff]
      %v1581 = vld [vmem:[%s1579 + $0x8] sm:$0xff]
      %v1582 = vld [vmem:[%s1579 + $0x10] sm:$0xff]
      %v1583 = vld [vmem:[%s1579 + $0x18] sm:$0xff]
      %v1584 = vrot.slane %v414, 3
      %v1585 = vsel %vm688, %v692, %v1584
      %v1586 = vrot.slane %v415, 3
      %v1587 = vsel %vm688, %v1584, %v1586
      %v1588 = vsel %vm431, %v1585, 0
      %v1590 = vsel %vm431, %v1587, 0
      %1592 = vmatprep.subr.mxu0 0.0
      %1593 = vmatpush1.msra.mxu0 %v1580
      %1594 = vmatprep.subr.mxu0 0.0
      %1595 = vmatpush1.msra.mxu0 %v1581
      %1596 = vmatprep.subr.mxu0 0.0
      %1597 = vmatpush1.msra.mxu0 %v1582
      %1598 = vmatprep.subr.mxu0 0.0
      %1599 = vmatpush1.msra.mxu0 %v1583
      %1600 = vmatprep.subr.mxu0 0.0
      %1601 = vmatpush1.msra.mxu0 0.0
      %1602 = vmatprep.subr.mxu0 0.0
      %1603 = vmatpush1.msra.mxu0 0.0
      %1604 = vmatprep.subr.mxu0 0.0
      %1605 = vmatpush1.msra.mxu0 0.0
      %1606 = vmatprep.subr.mxu0 0.0
      %1607 = vmatpush1.msra.mxu0 0.0
      %1608 = vmatprep.subr.mxu0 0.0
      %1609 = vmatpush1.msra.mxu0 0.0
      %1610 = vmatprep.subr.mxu0 0.0
      %1611 = vmatpush1.msra.mxu0 0.0
      %1612 = vmatprep.subr.mxu0 0.0
      %1613 = vmatpush1.msra.mxu0 0.0
      %1614 = vmatprep.subr.mxu0 0.0
      %1615 = vmatpush1.msra.mxu0 0.0
      %1616 = vmatprep.subr.mxu0 0.0
      %1617 = vmatpush1.msra.mxu0 0.0
      %1618 = vmatprep.subr.mxu0 0.0
      %1619 = vmatpush1.msra.mxu0 0.0
      %1620 = vmatprep.subr.mxu0 0.0
      %1621 = vmatpush1.msra.mxu0 0.0
      %1622 = vmatprep.subr.mxu0 0.0
      %1623 = vmatpush1.msra.mxu0 0.0
      %1624 = vmatprep.subr.mxu0 0.0
      %1625 = vmatpush1.msra.mxu0 0.0
      %1626 = vmatprep.subr.mxu0 0.0
      %1627 = vmatpush1.msra.mxu0 0.0
      %1628 = vmatprep.subr.mxu0 0.0
      %1629 = vmatpush1.msra.mxu0 0.0
      %1630 = vmatprep.subr.mxu0 0.0
      %1631 = vmatpush1.msra.mxu0 0.0
      %1632 = vmatprep.subr.mxu0 0.0
      %1633 = vmatpush1.msra.mxu0 0.0
      %1634 = vmatprep.subr.mxu0 0.0
      %1635 = vmatpush1.msra.mxu0 0.0
      %1636 = vmatprep.subr.mxu0 0.0
      %1637 = vmatpush1.msra.mxu0 0.0
      %1638 = vmatprep.subr.mxu0 0.0
      %1639 = vmatpush1.msra.mxu0 0.0
      %1640 = vmatprep.subr.mxu0 0.0
      %1641 = vmatpush1.msra.mxu0 0.0
      %1642 = vmatprep.subr.mxu0 0.0
      %1643 = vmatpush1.msra.mxu0 0.0
      %1644 = vmatprep.subr.mxu0 0.0
      %1645 = vmatpush1.msra.mxu0 0.0
      %1646 = vmatprep.subr.mxu0 0.0
      %1647 = vmatpush1.msra.mxu0 0.0
      %1648 = vmatprep.subr.mxu0 0.0
      %1649 = vmatpush1.msra.mxu0 0.0
      %1650 = vmatprep.subr.mxu0 0.0
      %1651 = vmatpush1.msra.mxu0 0.0
      %1652 = vmatprep.subr.mxu0 0.0
      %1653 = vmatpush1.msra.mxu0 0.0
      %1654 = vmatprep.subr.mxu0 0.0
      %1655 = vmatpush1.msra.mxu0 0.0
      %1656 = vmatprep.mubr.f32.mxu0 0.0
      %1657 = vmatmul.mubr.f32.gmra.mrb[0].mxu0 %v1588
      %v1658 = vpop.f32.mrb[0].mxu0
      %v1659 = vadd.f32 0.0, %v1658
      %v1660 = vpop.f32.mrb[0].mxu0
      %1661 = vmatprep.mubr.f32.mxu0 0.0
      %1662 = vmatmul.mubr.f32.gmra.mrb[0].mxu0 %v1590
      %v1663 = vpop.f32.mrb[0].mxu0
      %v1664 = vadd.f32 0.0, %v1663
      %v1665 = vpop.f32.mrb[0].mxu0
      %1666 = vdwg.mxu0
      %v1667 = vadd.f32 %v1577, %v1659
      %v1668 = vadd.f32 %v1578, %v1664
      %s1669 = scalar_lea.vmem %s1, 448
      %v1670 = vld [vmem:[%s1669] sm:$0xff]
      %v1671 = vld [vmem:[%s1669 + $0x8] sm:$0xff]
      %v1672 = vld [vmem:[%s1669 + $0x10] sm:$0xff]
      %v1673 = vld [vmem:[%s1669 + $0x18] sm:$0xff]
      %v1674 = vrot.slane %v415, 4
      %v1675 = vsel %vm1137, %v1141, %v1674
      %v1676 = vsel %vm431, %v1675, 0
      %1678 = vmatprep.subr.mxu0 0.0
      %1679 = vmatpush1.msra.mxu0 %v1670
      %1680 = vmatprep.subr.mxu0 0.0
      %1681 = vmatpush1.msra.mxu0 %v1671
      %1682 = vmatprep.subr.mxu0 0.0
      %1683 = vmatpush1.msra.mxu0 %v1672
      %1684 = vmatprep.subr.mxu0 0.0
      %1685 = vmatpush1.msra.mxu0 %v1673
      %1686 = vmatprep.subr.mxu0 0.0
      %1687 = vmatpush1.msra.mxu0 0.0
      %1688 = vmatprep.subr.mxu0 0.0
      %1689 = vmatpush1.msra.mxu0 0.0
      %1690 = vmatprep.subr.mxu0 0.0
      %1691 = vmatpush1.msra.mxu0 0.0
      %1692 = vmatprep.subr.mxu0 0.0
      %1693 = vmatpush1.msra.mxu0 0.0
      %1694 = vmatprep.subr.mxu0 0.0
      %1695 = vmatpush1.msra.mxu0 0.0
      %1696 = vmatprep.subr.mxu0 0.0
      %1697 = vmatpush1.msra.mxu0 0.0
      %1698 = vmatprep.subr.mxu0 0.0
      %1699 = vmatpush1.msra.mxu0 0.0
      %1700 = vmatprep.subr.mxu0 0.0
      %1701 = vmatpush1.msra.mxu0 0.0
      %1702 = vmatprep.subr.mxu0 0.0
      %1703 = vmatpush1.msra.mxu0 0.0
      %1704 = vmatprep.subr.mxu0 0.0
      %1705 = vmatpush1.msra.mxu0 0.0
      %1706 = vmatprep.subr.mxu0 0.0
      %1707 = vmatpush1.msra.mxu0 0.0
      %1708 = vmatprep.subr.mxu0 0.0
      %1709 = vmatpush1.msra.mxu0 0.0
      %1710 = vmatprep.subr.mxu0 0.0
      %1711 = vmatpush1.msra.mxu0 0.0
      %1712 = vmatprep.subr.mxu0 0.0
      %1713 = vmatpush1.msra.mxu0 0.0
      %1714 = vmatprep.subr.mxu0 0.0
      %1715 = vmatpush1.msra.mxu0 0.0
      %1716 = vmatprep.subr.mxu0 0.0
      %1717 = vmatpush1.msra.mxu0 0.0
      %1718 = vmatprep.subr.mxu0 0.0
      %1719 = vmatpush1.msra.mxu0 0.0
      %1720 = vmatprep.subr.mxu0 0.0
      %1721 = vmatpush1.msra.mxu0 0.0
      %1722 = vmatprep.subr.mxu0 0.0
      %1723 = vmatpush1.msra.mxu0 0.0
      %1724 = vmatprep.subr.mxu0 0.0
      %1725 = vmatpush1.msra.mxu0 0.0
      %1726 = vmatprep.subr.mxu0 0.0
      %1727 = vmatpush1.msra.mxu0 0.0
      %1728 = vmatprep.subr.mxu0 0.0
      %1729 = vmatpush1.msra.mxu0 0.0
      %1730 = vmatprep.subr.mxu0 0.0
      %1731 = vmatpush1.msra.mxu0 0.0
      %1732 = vmatprep.subr.mxu0 0.0
      %1733 = vmatpush1.msra.mxu0 0.0
      %1734 = vmatprep.subr.mxu0 0.0
      %1735 = vmatpush1.msra.mxu0 0.0
      %1736 = vmatprep.subr.mxu0 0.0
      %1737 = vmatpush1.msra.mxu0 0.0
      %1738 = vmatprep.subr.mxu0 0.0
      %1739 = vmatpush1.msra.mxu0 0.0
      %1740 = vmatprep.subr.mxu0 0.0
      %1741 = vmatpush1.msra.mxu0 0.0
      %1742 = vmatprep.mubr.f32.mxu0 0.0
      %1743 = vmatmul.mubr.f32.gmra.mrb[0].mxu0 %v1145
      %v1744 = vpop.f32.mrb[0].mxu0
      %v1745 = vadd.f32 0.0, %v1744
      %v1746 = vpop.f32.mrb[0].mxu0
      %1747 = vmatprep.mubr.f32.mxu0 0.0
      %1748 = vmatmul.mubr.f32.gmra.mrb[0].mxu0 %v1676
      %v1749 = vpop.f32.mrb[0].mxu0
      %v1750 = vadd.f32 0.0, %v1749
      %v1751 = vpop.f32.mrb[0].mxu0
      %1752 = vdwg.mxu0
      %v1753 = vadd.f32 %v1667, %v1745
      %v1754 = vadd.f32 %v1668, %v1750
      %s1755 = scalar_lea.vmem %s1, 480
      %v1756 = vld [vmem:[%s1755] sm:$0xff]
      %v1757 = vld [vmem:[%s1755 + $0x8] sm:$0xff]
      %v1758 = vld [vmem:[%s1755 + $0x10] sm:$0xff]
      %v1759 = vld [vmem:[%s1755 + $0x18] sm:$0xff]
      %v1760 = vrot.slane %v415, 5
      %v1761 = vsel %vm1229, %v1233, %v1760
      %v1762 = vsel %vm431, %v1761, 0
      %1764 = vmatprep.subr.mxu0 0.0
      %1765 = vmatpush1.msra.mxu0 %v1756
      %1766 = vmatprep.subr.mxu0 0.0
      %1767 = vmatpush1.msra.mxu0 %v1757
      %1768 = vmatprep.subr.mxu0 0.0
      %1769 = vmatpush1.msra.mxu0 %v1758
      %1770 = vmatprep.subr.mxu0 0.0
      %1771 = vmatpush1.msra.mxu0 %v1759
      %1772 = vmatprep.subr.mxu0 0.0
      %1773 = vmatpush1.msra.mxu0 0.0
      %1774 = vmatprep.subr.mxu0 0.0
      %1775 = vmatpush1.msra.mxu0 0.0
      %1776 = vmatprep.subr.mxu0 0.0
      %1777 = vmatpush1.msra.mxu0 0.0
      %1778 = vmatprep.subr.mxu0 0.0
      %1779 = vmatpush1.msra.mxu0 0.0
      %1780 = vmatprep.subr.mxu0 0.0
      %1781 = vmatpush1.msra.mxu0 0.0
      %1782 = vmatprep.subr.mxu0 0.0
      %1783 = vmatpush1.msra.mxu0 0.0
      %1784 = vmatprep.subr.mxu0 0.0
      %1785 = vmatpush1.msra.mxu0 0.0
      %1786 = vmatprep.subr.mxu0 0.0
      %1787 = vmatpush1.msra.mxu0 0.0
      %1788 = vmatprep.subr.mxu0 0.0
      %1789 = vmatpush1.msra.mxu0 0.0
      %1790 = vmatprep.subr.mxu0 0.0
      %1791 = vmatpush1.msra.mxu0 0.0
      %1792 = vmatprep.subr.mxu0 0.0
      %1793 = vmatpush1.msra.mxu0 0.0
      %1794 = vmatprep.subr.mxu0 0.0
      %1795 = vmatpush1.msra.mxu0 0.0
      %1796 = vmatprep.subr.mxu0 0.0
      %1797 = vmatpush1.msra.mxu0 0.0
      %1798 = vmatprep.subr.mxu0 0.0
      %1799 = vmatpush1.msra.mxu0 0.0
      %1800 = vmatprep.subr.mxu0 0.0
      %1801 = vmatpush1.msra.mxu0 0.0
      %1802 = vmatprep.subr.mxu0 0.0
      %1803 = vmatpush1.msra.mxu0 0.0
      %1804 = vmatprep.subr.mxu0 0.0
      %1805 = vmatpush1.msra.mxu0 0.0
      %1806 = vmatprep.subr.mxu0 0.0
      %1807 = vmatpush1.msra.mxu0 0.0
      %1808 = vmatprep.subr.mxu0 0.0
      %1809 = vmatpush1.msra.mxu0 0.0
      %1810 = vmatprep.subr.mxu0 0.0
      %1811 = vmatpush1.msra.mxu0 0.0
      %1812 = vmatprep.subr.mxu0 0.0
      %1813 = vmatpush1.msra.mxu0 0.0
      %1814 = vmatprep.subr.mxu0 0.0
      %1815 = vmatpush1.msra.mxu0 0.0
      %1816 = vmatprep.subr.mxu0 0.0
      %1817 = vmatpush1.msra.mxu0 0.0
      %1818 = vmatprep.subr.mxu0 0.0
      %1819 = vmatpush1.msra.mxu0 0.0
      %1820 = vmatprep.subr.mxu0 0.0
      %1821 = vmatpush1.msra.mxu0 0.0
      %1822 = vmatprep.subr.mxu0 0.0
      %1823 = vmatpush1.msra.mxu0 0.0
      %1824 = vmatprep.subr.mxu0 0.0
      %1825 = vmatpush1.msra.mxu0 0.0
      %1826 = vmatprep.subr.mxu0 0.0
      %1827 = vmatpush1.msra.mxu0 0.0
      %1828 = vmatprep.mubr.f32.mxu0 0.0
      %1829 = vmatmul.mubr.f32.gmra.mrb[0].mxu0 %v1237
      %v1830 = vpop.f32.mrb[0].mxu0
      %v1831 = vadd.f32 0.0, %v1830
      %v1832 = vpop.f32.mrb[0].mxu0
      %1833 = vmatprep.mubr.f32.mxu0 0.0
      %1834 = vmatmul.mubr.f32.gmra.mrb[0].mxu0 %v1762
      %v1835 = vpop.f32.mrb[0].mxu0
      %v1836 = vadd.f32 0.0, %v1835
      %v1837 = vpop.f32.mrb[0].mxu0
      %1838 = vdwg.mxu0
      %v1839 = vadd.f32 %v1753, %v1831
      %v1840 = vadd.f32 %v1754, %v1836
      %vm1841 = vcmask 523264
      %1842 = vst.msk [vmem:[%s231] sm:$0xff] %vm1841, %v1839
      %vm1843 = vcmask 522240
      %1844 = vst.msk [vmem:[%s231 + $0x8] sm:$0x7f] %vm1843, %v1840
      %v1845 = vlaneseq
      %v1846 = vand.u32 %v1845, 127
      %vm1847 = vcmp.lt.s32.totalorder %v1846, 0
      %v1848 = vsub.s32 0, %v1846
      %v1849 = vsel %vm1847, %v1848, %v1846
      %v1850 = vmul.u32.u64.compose %v1849, 2863311531
      %v1851 = vextract.low.u32 %v1850
      %v1852 = vextract.high.u32 %v1850
      %v1853 = vshrl.u32 %v1852, 2
      %v1854 = vmul.u32 %v1853, 6
      %v1855 = vsub.s32 %v1849, %v1854
      %v1856 = vsub.s32 0, %v1855
      %v1857 = vsel %vm1847, %v1856, %v1855
      %vm1858 = vcmp.ne.s32.totalorder %v1857, 0
      %vm1859 = vcmp.lt.s32.totalorder %v1857, 0
      %vm1860 = vmand %vm1859, %vm1858
      %v1861 = vadd.s32 %v1857, 6
      %v1862 = vsel %vm1860, %v1861, %v1857
      %vm1863 = vcmp.lt.s32.totalorder %v1862, 3
      %v1864 = vsel %vm1863, 1, 0
      %v1865 = vcvt.s32.f32 %v1864
      %vm1866 = vcmask 121856
      %v1868 = vsel %vm1866, %v1865, 0
      %v1871 = vsel %vm427, %v1840, 0
      %1873 = vmatprep.subr.mxu0 0.0
      %1874 = vmatpush1.msra.mxu0 %v1839
      %1875 = vmatprep.subr.mxu0 0.0
      %1876 = vmatpush1.msra.mxu0 %v1871
      %1877 = vmatprep.subr.mxu0 0.0
      %1878 = vmatpush1.msra.mxu0 0.0
      %1879 = vmatprep.subr.mxu0 0.0
      %1880 = vmatpush1.msra.mxu0 0.0
      %1881 = vmatprep.subr.mxu0 0.0
      %1882 = vmatpush1.msra.mxu0 0.0
      %1883 = vmatprep.subr.mxu0 0.0
      %1884 = vmatpush1.msra.mxu0 0.0
      %1885 = vmatprep.subr.mxu0 0.0
      %1886 = vmatpush1.msra.mxu0 0.0
      %1887 = vmatprep.subr.mxu0 0.0
      %1888 = vmatpush1.msra.mxu0 0.0
      %1889 = vmatprep.subr.mxu0 0.0
      %1890 = vmatpush1.msra.mxu0 0.0
      %1891 = vmatprep.subr.mxu0 0.0
      %1892 = vmatpush1.msra.mxu0 0.0
      %1893 = vmatprep.subr.mxu0 0.0
      %1894 = vmatpush1.msra.mxu0 0.0
      %1895 = vmatprep.subr.mxu0 0.0
      %1896 = vmatpush1.msra.mxu0 0.0
      %1897 = vmatprep.subr.mxu0 0.0
      %1898 = vmatpush1.msra.mxu0 0.0
      %1899 = vmatprep.subr.mxu0 0.0
      %1900 = vmatpush1.msra.mxu0 0.0
      %1901 = vmatprep.subr.mxu0 0.0
      %1902 = vmatpush1.msra.mxu0 0.0
      %1903 = vmatprep.subr.mxu0 0.0
      %1904 = vmatpush1.msra.mxu0 0.0
      %1905 = vmatprep.subr.mxu0 0.0
      %1906 = vmatpush1.msra.mxu0 0.0
      %1907 = vmatprep.subr.mxu0 0.0
      %1908 = vmatpush1.msra.mxu0 0.0
      %1909 = vmatprep.subr.mxu0 0.0
      %1910 = vmatpush1.msra.mxu0 0.0
      %1911 = vmatprep.subr.mxu0 0.0
      %1912 = vmatpush1.msra.mxu0 0.0
      %1913 = vmatprep.subr.mxu0 0.0
      %1914 = vmatpush1.msra.mxu0 0.0
      %1915 = vmatprep.subr.mxu0 0.0
      %1916 = vmatpush1.msra.mxu0 0.0
      %1917 = vmatprep.subr.mxu0 0.0
      %1918 = vmatpush1.msra.mxu0 0.0
      %1919 = vmatprep.subr.mxu0 0.0
      %1920 = vmatpush1.msra.mxu0 0.0
      %1921 = vmatprep.subr.mxu0 0.0
      %1922 = vmatpush1.msra.mxu0 0.0
      %1923 = vmatprep.subr.mxu0 0.0
      %1924 = vmatpush1.msra.mxu0 0.0
      %1925 = vmatprep.subr.mxu0 0.0
      %1926 = vmatpush1.msra.mxu0 0.0
      %1927 = vmatprep.subr.mxu0 0.0
      %1928 = vmatpush1.msra.mxu0 0.0
      %1929 = vmatprep.subr.mxu0 0.0
      %1930 = vmatpush1.msra.mxu0 0.0
      %1931 = vmatprep.subr.mxu0 0.0
      %1932 = vmatpush1.msra.mxu0 0.0
      %1933 = vmatprep.subr.mxu0 0.0
      %1934 = vmatpush1.msra.mxu0 0.0
      %1935 = vmatprep.subr.mxu0 0.0
      %1936 = vmatpush1.msra.mxu0 0.0
      %1937 = vmatprep.mubr.f32.mxu0 0.0
      %1938 = vmatmul.mubr.f32.gmra.mrb[0].mxu0 %v1868
      %v1939 = vpop.f32.mrb[0].mxu0
      %v1940 = vadd.f32 0.0, %v1939
      %v1941 = vpop.f32.mrb[0].mxu0
      %1942 = vdwg.mxu0
      %vm1943 = vcmask 516096
      %1944 = vst.msk [vmem:[%s235] sm:$0x1] %vm1943, %v1940
      %v1945 = vmul.f32 %v1839, %v1839
      %v1946 = vmul.f32 %v1840, %v1840
      %v1948 = vsel %vm427, %v1946, 0
      %1950 = vmatprep.subr.mxu0 0.0
      %1951 = vmatpush1.msra.mxu0 %v1945
      %1952 = vmatprep.subr.mxu0 0.0
      %1953 = vmatpush1.msra.mxu0 %v1948
      %1954 = vmatprep.subr.mxu0 0.0
      %1955 = vmatpush1.msra.mxu0 0.0
      %1956 = vmatprep.subr.mxu0 0.0
      %1957 = vmatpush1.msra.mxu0 0.0
      %1958 = vmatprep.subr.mxu0 0.0
      %1959 = vmatpush1.msra.mxu0 0.0
      %1960 = vmatprep.subr.mxu0 0.0
      %1961 = vmatpush1.msra.mxu0 0.0
      %1962 = vmatprep.subr.mxu0 0.0
      %1963 = vmatpush1.msra.mxu0 0.0
      %1964 = vmatprep.subr.mxu0 0.0
      %1965 = vmatpush1.msra.mxu0 0.0
      %1966 = vmatprep.subr.mxu0 0.0
      %1967 = vmatpush1.msra.mxu0 0.0
      %1968 = vmatprep.subr.mxu0 0.0
      %1969 = vmatpush1.msra.mxu0 0.0
      %1970 = vmatprep.subr.mxu0 0.0
      %1971 = vmatpush1.msra.mxu0 0.0
      %1972 = vmatprep.subr.mxu0 0.0
      %1973 = vmatpush1.msra.mxu0 0.0
      %1974 = vmatprep.subr.mxu0 0.0
      %1975 = vmatpush1.msra.mxu0 0.0
      %1976 = vmatprep.subr.mxu0 0.0
      %1977 = vmatpush1.msra.mxu0 0.0
      %1978 = vmatprep.subr.mxu0 0.0
      %1979 = vmatpush1.msra.mxu0 0.0
      %1980 = vmatprep.subr.mxu0 0.0
      %1981 = vmatpush1.msra.mxu0 0.0
      %1982 = vmatprep.subr.mxu0 0.0
      %1983 = vmatpush1.msra.mxu0 0.0
      %1984 = vmatprep.subr.mxu0 0.0
      %1985 = vmatpush1.msra.mxu0 0.0
      %1986 = vmatprep.subr.mxu0 0.0
      %1987 = vmatpush1.msra.mxu0 0.0
      %1988 = vmatprep.subr.mxu0 0.0
      %1989 = vmatpush1.msra.mxu0 0.0
      %1990 = vmatprep.subr.mxu0 0.0
      %1991 = vmatpush1.msra.mxu0 0.0
      %1992 = vmatprep.subr.mxu0 0.0
      %1993 = vmatpush1.msra.mxu0 0.0
      %1994 = vmatprep.subr.mxu0 0.0
      %1995 = vmatpush1.msra.mxu0 0.0
      %1996 = vmatprep.subr.mxu0 0.0
      %1997 = vmatpush1.msra.mxu0 0.0
      %1998 = vmatprep.subr.mxu0 0.0
      %1999 = vmatpush1.msra.mxu0 0.0
      %2000 = vmatprep.subr.mxu0 0.0
      %2001 = vmatpush1.msra.mxu0 0.0
      %2002 = vmatprep.subr.mxu0 0.0
      %2003 = vmatpush1.msra.mxu0 0.0
      %2004 = vmatprep.subr.mxu0 0.0
      %2005 = vmatpush1.msra.mxu0 0.0
      %2006 = vmatprep.subr.mxu0 0.0
      %2007 = vmatpush1.msra.mxu0 0.0
      %2008 = vmatprep.subr.mxu0 0.0
      %2009 = vmatpush1.msra.mxu0 0.0
      %2010 = vmatprep.subr.mxu0 0.0
      %2011 = vmatpush1.msra.mxu0 0.0
      %2012 = vmatprep.subr.mxu0 0.0
      %2013 = vmatpush1.msra.mxu0 0.0
      %2014 = vmatprep.mubr.f32.mxu0 0.0
      %2015 = vmatmul.mubr.f32.gmra.mrb[0].mxu0 %v1868
      %v2016 = vpop.f32.mrb[0].mxu0
      %v2017 = vadd.f32 0.0, %v2016
      %v2018 = vpop.f32.mrb[0].mxu0
      %2019 = vdwg.mxu0
      %2020 = vst.msk [vmem:[%s235 + $0x1] sm:$0x1] %vm1943, %v2017
      %p2021 = scmp.lt.s32.totalorder %s17, 1
      %s2022 = scalar_select %p2021, %s17, 1
      %s2023 = smul.addr %s2022, 2
      %s2024 = smul.addr %s2023, 8
      %s2025 = scalar_lea.vmem %s4, %s2024
      %p2026 = scmp.lt.s32.totalorder %s17, 1
      %s2027 = scalar_select %p2026, %s17, 1
      %s2028 = smul.addr %s2027, 2
      %s2029 = scalar_lea.vmem %s5, %s2028
      // Predicated region
      $region37: #{patch_discriminator_forward.8} parent=35 // pred_check
        %p2030 = pneg %p124
      $region38: #{patch_discriminator_forward.8} parent=35 // pred_check_branch
        %2032 = sbr.rel (%p2030) target = $region40
      $region39: #{patch_discriminator_forward.8} parent=35 // pred_region
        _
      $region40: #{patch_discriminator_forward.8} parent=35 // pred_fallthru
        _
      // Predicated region
      $region41: #{patch_discriminator_forward.8} parent=35 // pred_check
        %p2033 = pneg %p150
      $region42: #{patch_discriminator_forward.8} parent=35 // pred_check_branch
        %2035 = sbr.rel (%p2033) target = $region44
      $region43: #{patch_discriminator_forward.8} parent=35 // pred_region
        _
      $region44: #{patch_discriminator_forward.8} parent=35 // pred_fallthru
        _
    $region36: #{patch_discriminator_forward.8} parent=5 // pred_fallthru
      _
    %p2036 = scmp.le.s32.totalorder 2, %s12
    // Predicated region
    $region45: #{patch_discriminator_forward.8} parent=5 // pred_check
      %p2037 = pneg %p2036
    $region46: #{patch_discriminator_forward.8} parent=5 // pred_check_branch
      %2039 = sbr.rel (%p2037) target = $region48
    $region47: #{patch_discriminator_forward.8} parent=5 // pred_region
      %s2040 = ssub.s32 %s12, 2
      // Predicated region
      $region49: #{patch_discriminator_forward.8} parent=47 // pred_check
        %p2041 = pneg %p130
      $region50: #{patch_discriminator_forward.8} parent=47 // pred_check_branch
        %2043 = sbr.rel (%p2041) target = $region52
      $region51: #{patch_discriminator_forward.8} parent=47 // pred_region
        %p2044 = scmp.lt.s32.totalorder %s18, 1
        %s2045 = scalar_select %p2044, %s18, 1
        %s2046 = smul.addr %s2045, 2
        %s2047 = smul.addr %s2046, 8
        %s2048 = scalar_lea.vmem %s4, %s2047
      $region52: #{patch_discriminator_forward.8} parent=47 // pred_fallthru
        _
      // Predicated region
      $region53: #{patch_discriminator_forward.8} parent=47 // pred_check
        %p2049 = pneg %p156
      $region54: #{patch_discriminator_forward.8} parent=47 // pred_check_branch
        %2051 = sbr.rel (%p2049) target = $region56
      $region55: #{patch_discriminator_forward.8} parent=47 // pred_region
        %p2052 = scmp.lt.s32.totalorder %s18, 1
        %s2053 = scalar_select %p2052, %s18, 1
        %s2054 = smul.addr %s2053, 2
        %s2055 = scalar_lea.vmem %s5, %s2054
      $region56: #{patch_discriminator_forward.8} parent=47 // pred_fallthru
        _
    $region48: #{patch_discriminator_forward.8} parent=5 // pred_fallthru
      _
  $region6: #{patch_discriminator_forward.8} parent=0 // loop_footer
    %s16 = sadd.s32 1, %s12
  $region7: #{patch_discriminator_forward.8} parent=0 // loop_footer_branch
    %11 = sbr.rel target = $region3
  $region8: #{patch_discriminator_forward.8} parent=0 // loop_exit
    _

// kernel: patch_discriminator_forward.9
$region0: #{patch_discriminator_forward.9}
  #allocation0 [shape = 'u32[]', space=smem, size = 0x4, offset = 0x4, fixed_abs, tag = 'smem constant byte address 0x4 - core index']
  #allocation1 [shape = 'u32[144,128]{1,0:T(1,128)}', space=vmem, size = 0x12000, scoped, tag = 'internal scratch']
  #allocation2 [shape = 'f32[1,1]{1,0:T(1,128)S(1)}', space=vmem, size = 0x200, scoped, tag = 'scoped memory for patch_discriminator_forward.9']
  %s0 = inlined_call_operand.vmem [shape: f32[2,25,64], index: 0, kind: input, shape index: {}]
  %s1 = inlined_call_operand.vmem [shape: f32[4,4,64,1], index: 1, kind: input, shape index: {}]
  %s2 = inlined_call_operand.vmem [shape: f32[1,64], index: 2, kind: input, shape index: {}]
  %s3 = inlined_call_operand.vmem [shape: f32[1,64], index: 3, kind: input, shape index: {}]
  %s4 = inlined_call_operand.<no memory space> [shape: f32[1,1], index: 4, kind: input, shape index: {}]
  %s5 = inlined_call_operand.vmem [shape: f32[2,7,1], index: 5, kind: output, shape index: {}]
  %s6 = sld [smem:[#allocation0]]
  $region53: #{patch_discriminator_forward.9} parent=0
    _
  %s8 = ssub.s32 1, %s6
  %s9 = scalar_select 0, %s8, %s6
  %v10 = vstv %s4
  %11 = vst [vmem:[#allocation2] sm:$0x1] %v10
  loop: start=0, step=1, limit=4
  $region2: #{patch_discriminator_forward.9} parent=0 // loop_pre_header
    _
  $region3: #{patch_discriminator_forward.9} parent=0 // loop_header
    %s13 = sphi 0, %s17
    %p14 = scmp.ge.s32.totalorder %s13, 4
    %s23 = sphi 0, %s25
    %s26 = sphi 0, %s23
    %s27 = sphi 0, %s26
    %s43 = sphi 0, %s27
    %s47 = sphi 0, %s47
    %s49 = sphi 0, %s47
    %s50 = sphi 0, %s49
    %s64 = sphi 0, %s50
    %s68 = sphi 0, %s68
    %s70 = sphi 0, %s68
    %s71 = sphi 0, %s70
    %s85 = sphi 0, %s71
    %s89 = sphi 0, %s89
    %s91 = sphi 0, %s89
    %s92 = sphi 0, %s91
    %s106 = sphi 0, %s92
    %s110 = sphi 0, %s110
    %s112 = sphi 0, %s110
    %s113 = sphi 0, %s112
    %s127 = sphi 0, %s113
    %s133 = sphi 0, %s135
    %s136 = sphi 0, %s133
    %s137 = sphi 0, %s136
    %s153 = sphi 0, %s137
  $region4: #{patch_discriminator_forward.9} parent=0 // loop_header_branch
    %16 = sbr.rel (%p14) target = $region8
  $region5: #{patch_discriminator_forward.9} parent=0 // loop_body
    %s18 = ssub.s32 %s13, 1
    %s19 = ssub.s32 %s13, 2
    %s20 = sadd.s32 %s13, 1
    %s21 = ssub.s32 %s13, %s20
    %p22 = scmp.eq.s32.totalorder %s21, 0
    %s24 = sadd.s32 %s23, 1
    %s25 = scalar_select %p22, %s23, %s24
    %p28 = pneg %p22
    %p29 = scmp.eq.s32.totalorder %s13, 1
    %p30 = por %p28, %p29
    %p31 = scmp.ne.s32.totalorder %s23, %s26
    %p32 = scmp.eq.s32.totalorder %s13, 0
    %p33 = por %p31, %p32
    %p34 = scmp.ne.s32.totalorder %s23, %s26
    %p35 = scmp.eq.s32.totalorder %s18, 1
    %p36 = por %p34, %p35
    %p37 = scmp.ne.s32.totalorder %s26, %s27
    %p38 = scmp.eq.s32.totalorder %s18, 0
    %p39 = por %p37, %p38
    %p40 = scmp.ne.s32.totalorder %s26, %s27
    %p41 = scmp.eq.s32.totalorder %s19, 1
    %p42 = por %p40, %p41
    %p44 = scmp.ne.s32.totalorder %s27, %s43
    %p45 = scmp.eq.s32.totalorder %s19, 0
    %p46 = por %p44, %p45
    %s48 = sadd.s32 %s47, 1
    %p51 = scmp.eq.s32.totalorder %s13, 1
    %p52 = scmp.ne.s32.totalorder %s47, %s49
    %p53 = scmp.eq.s32.totalorder %s13, 0
    %p54 = por %p52, %p53
    %p55 = scmp.ne.s32.totalorder %s47, %s49
    %p56 = scmp.eq.s32.totalorder %s18, 1
    %p57 = por %p55, %p56
    %p58 = scmp.ne.s32.totalorder %s49, %s50
    %p59 = scmp.eq.s32.totalorder %s18, 0
    %p60 = por %p58, %p59
    %p61 = scmp.ne.s32.totalorder %s49, %s50
    %p62 = scmp.eq.s32.totalorder %s19, 1
    %p63 = por %p61, %p62
    %p65 = scmp.ne.s32.totalorder %s50, %s64
    %p66 = scmp.eq.s32.totalorder %s19, 0
    %p67 = por %p65, %p66
    %s69 = sadd.s32 %s68, 1
    %p72 = scmp.eq.s32.totalorder %s13, 1
    %p73 = scmp.ne.s32.totalorder %s68, %s70
    %p74 = scmp.eq.s32.totalorder %s13, 0
    %p75 = por %p73, %p74
    %p76 = scmp.ne.s32.totalorder %s68, %s70
    %p77 = scmp.eq.s32.totalorder %s18, 1
    %p78 = por %p76, %p77
    %p79 = scmp.ne.s32.totalorder %s70, %s71
    %p80 = scmp.eq.s32.totalorder %s18, 0
    %p81 = por %p79, %p80
    %p82 = scmp.ne.s32.totalorder %s70, %s71
    %p83 = scmp.eq.s32.totalorder %s19, 1
    %p84 = por %p82, %p83
    %p86 = scmp.ne.s32.totalorder %s71, %s85
    %p87 = scmp.eq.s32.totalorder %s19, 0
    %p88 = por %p86, %p87
    %s90 = sadd.s32 %s89, 1
    %p93 = scmp.eq.s32.totalorder %s13, 1
    %p94 = scmp.ne.s32.totalorder %s89, %s91
    %p95 = scmp.eq.s32.totalorder %s13, 0
    %p96 = por %p94, %p95
    %p97 = scmp.ne.s32.totalorder %s89, %s91
    %p98 = scmp.eq.s32.totalorder %s18, 1
    %p99 = por %p97, %p98
    %p100 = scmp.ne.s32.totalorder %s91, %s92
    %p101 = scmp.eq.s32.totalorder %s18, 0
    %p102 = por %p100, %p101
    %p103 = scmp.ne.s32.totalorder %s91, %s92
    %p104 = scmp.eq.s32.totalorder %s19, 1
    %p105 = por %p103, %p104
    %p107 = scmp.ne.s32.totalorder %s92, %s106
    %p108 = scmp.eq.s32.totalorder %s19, 0
    %p109 = por %p107, %p108
    %s111 = sadd.s32 %s110, 1
    %p114 = scmp.eq.s32.totalorder %s13, 1
    %p115 = scmp.ne.s32.totalorder %s110, %s112
    %p116 = scmp.eq.s32.totalorder %s13, 0
    %p117 = por %p115, %p116
    %p118 = scmp.ne.s32.totalorder %s110, %s112
    %p119 = scmp.eq.s32.totalorder %s18, 1
    %p120 = por %p118, %p119
    %p121 = scmp.ne.s32.totalorder %s112, %s113
    %p122 = scmp.eq.s32.totalorder %s18, 0
    %p123 = por %p121, %p122
    %p124 = scmp.ne.s32.totalorder %s112, %s113
    %p125 = scmp.eq.s32.totalorder %s19, 1
    %p126 = por %p124, %p125
    %p128 = scmp.ne.s32.totalorder %s113, %s127
    %p129 = scmp.eq.s32.totalorder %s19, 0
    %p130 = por %p128, %p129
    %s131 = ssub.s32 %s13, %s20
    %p132 = scmp.eq.s32.totalorder %s131, 0
    %s134 = sadd.s32 %s133, 1
    %s135 = scalar_select %p132, %s133, %s134
    %p138 = pneg %p132
    %p139 = scmp.eq.s32.totalorder %s13, 1
    %p140 = por %p138, %p139
    %p141 = scmp.ne.s32.totalorder %s133, %s136
    %p142 = scmp.eq.s32.totalorder %s13, 0
    %p143 = por %p141, %p142
    %p144 = scmp.ne.s32.totalorder %s133, %s136
    %p145 = scmp.eq.s32.totalorder %s18, 1
    %p146 = por %p144, %p145
    %p147 = scmp.ne.s32.totalorder %s136, %s137
    %p148 = scmp.eq.s32.totalorder %s18, 0
    %p149 = por %p147, %p148
    %p150 = scmp.ne.s32.totalorder %s136, %s137
    %p151 = scmp.eq.s32.totalorder %s19, 1
    %p152 = por %p150, %p151
    %p154 = scmp.ne.s32.totalorder %s137, %s153
    %p155 = scmp.eq.s32.totalorder %s19, 0
    %p156 = por %p154, %p155
    %p157 = scmp.le.s32.totalorder 1, %s13
    %p158 = scmp.lt.s32.totalorder %s13, 3
    %p159 = pnand %p157, %p158
    %p160 = pneg %p159
    // Predicated region
    $region9: #{patch_discriminator_forward.9} parent=5 // pred_check
      _
    $region10: #{patch_discriminator_forward.9} parent=5 // pred_check_branch
      %162 = sbr.rel (%p159) target = $region12
    $region11: #{patch_discriminator_forward.9} parent=5 // pred_region
      %s163 = ssub.s32 %s13, 1
      // Predicated region
      $region13: #{patch_discriminator_forward.9} parent=11 // pred_check
        %p164 = pneg %p60
      $region14: #{patch_discriminator_forward.9} parent=11 // pred_check_branch
        %166 = sbr.rel (%p164) target = $region16
      $region15: #{patch_discriminator_forward.9} parent=11 // pred_region
        _
      $region16: #{patch_discriminator_forward.9} parent=11 // pred_fallthru
        _
      // Predicated region
      $region17: #{patch_discriminator_forward.9} parent=11 // pred_check
        %p167 = pneg %p81
      $region18: #{patch_discriminator_forward.9} parent=11 // pred_check_branch
        %169 = sbr.rel (%p167) target = $region20
      $region19: #{patch_discriminator_forward.9} parent=11 // pred_region
        _
      $region20: #{patch_discriminator_forward.9} parent=11 // pred_fallthru
        _
      // Predicated region
      $region21: #{patch_discriminator_forward.9} parent=11 // pred_check
        %p170 = pneg %p102
      $region22: #{patch_discriminator_forward.9} parent=11 // pred_check_branch
        %172 = sbr.rel (%p170) target = $region24
      $region23: #{patch_discriminator_forward.9} parent=11 // pred_region
        _
      $region24: #{patch_discriminator_forward.9} parent=11 // pred_fallthru
        _
      // Predicated region
      $region25: #{patch_discriminator_forward.9} parent=11 // pred_check
        %p173 = pneg %p123
      $region26: #{patch_discriminator_forward.9} parent=11 // pred_check_branch
        %175 = sbr.rel (%p173) target = $region28
      $region27: #{patch_discriminator_forward.9} parent=11 // pred_region
        _
      $region28: #{patch_discriminator_forward.9} parent=11 // pred_fallthru
        _
    $region12: #{patch_discriminator_forward.9} parent=5 // pred_fallthru
      _
    %p176 = scmp.lt.s32.totalorder %s13, 2
    // Predicated region
    $region29: #{patch_discriminator_forward.9} parent=5 // pred_check
      %p177 = pneg %p176
    $region30: #{patch_discriminator_forward.9} parent=5 // pred_check_branch
      %179 = sbr.rel (%p177) target = $region32
    $region31: #{patch_discriminator_forward.9} parent=5 // pred_region
      // Predicated region
      $region33: #{patch_discriminator_forward.9} parent=31 // pred_check
        %p180 = pneg %p33
      $region34: #{patch_discriminator_forward.9} parent=31 // pred_check_branch
        %182 = sbr.rel (%p180) target = $region36
      $region35: #{patch_discriminator_forward.9} parent=31 // pred_region
        %p183 = scmp.lt.s32.totalorder %s13, 1
        %s184 = scalar_select %p183, %s13, 1
        %s185 = smul.addr %s184, 4
        %s186 = smul.addr %s185, 8
        %s187 = scalar_lea.vmem %s0, %s186
      $region36: #{patch_discriminator_forward.9} parent=31 // pred_fallthru
        _
    $region32: #{patch_discriminator_forward.9} parent=5 // pred_fallthru
      _
    %p188 = scmp.le.s32.totalorder 1, %s13
    %p189 = scmp.lt.s32.totalorder %s13, 3
    %p190 = pnand %p188, %p189
    %p191 = pneg %p190
    // Predicated region
    $region37: #{patch_discriminator_forward.9} parent=5 // pred_check
      _
    $region38: #{patch_discriminator_forward.9} parent=5 // pred_check_branch
      %193 = sbr.rel (%p190) target = $region40
    $region39: #{patch_discriminator_forward.9} parent=5 // pred_region
      %s194 = ssub.s32 %s13, 1
      %p195 = scmp.lt.s32.totalorder %s18, 1
      %s196 = scalar_select %p195, %s18, 1
      %s197 = smul.addr %s196, 4
      %s198 = smul.addr %s197, 8
      %s199 = scalar_lea.vmem %s0, %s198
      %p200 = pneg %p39
      %p201 = pneg %p36
      %p202 = pneg %p60
      %p203 = pneg %p57
      %p204 = pneg %p81
      %p205 = pneg %p78
      %p206 = pneg %p102
      %p207 = pneg %p99
      %p208 = pneg %p123
      %p209 = pneg %p120
      %p210 = pneg %p149
      %p211 = pneg %p146
      %p212 = scmp.lt.s32.totalorder %s18, 1
      %s213 = scalar_select %p212, %s18, 1
      %s214 = smul.addr %s213, 8
      %s215 = scalar_lea.vmem %s5, %s214
      %p216 = scmp.lt.s32.totalorder %s18, 1
      %s217 = scalar_select %p216, %s18, 1
      %s218 = smul.addr %s217, 4
      %s219 = smul.addr %s218, 8
      %s220 = scalar_lea.vmem %s0, %s219
      %p221 = scmp.lt.s32.totalorder %s18, 1
      %s222 = scalar_select %p221, %s18, 1
      %s223 = smul.addr %s222, 8
      %s224 = scalar_lea.vmem %s5, %s223
      %v225 = vld [vmem:[%s220] sm:$0xff]
      %v226 = vld [vmem:[%s220 + $0x8] sm:$0xff]
      %v227 = vld [vmem:[%s220 + $0x10] sm:$0xff]
      %v228 = vld [vmem:[%s220 + $0x18] sm:$0x1]
      %v229 = vld [vmem:[%s2] sm:$0x1]
      %v231 = vlaneseq
      %v232 = vshrl.u32 %v231, 7
      %v233 = vsub.s32 0, %v232
      %v234 = vrot.slane %v229, %v233
      %v236 = vmul.f32 %v225, %v234
      %v237 = vmul.f32 %v226, %v234
      %v238 = vmul.f32 %v227, %v234
      %v239 = vmul.f32 %v228, %v234
      %v240 = vld [vmem:[%s3] sm:$0x1]
      %v242 = vlaneseq
      %v243 = vshrl.u32 %v242, 7
      %v244 = vsub.s32 0, %v243
      %v245 = vrot.slane %v240, %v244
      %v247 = vadd.f32 %v236, %v245
      %v248 = vadd.f32 %v237, %v245
      %v249 = vadd.f32 %v238, %v245
      %v250 = vadd.f32 %v239, %v245
      %vm251 = vcmp.gt.f32.partialorder %v247, 0.0
      %vm252 = vcmp.gt.f32.partialorder %v248, 0.0
      %vm253 = vcmp.gt.f32.partialorder %v249, 0.0
      %vm254 = vcmp.gt.f32.partialorder %v250, 0.0
      %v255 = vmul.f32 %v247, 0.2
      %v256 = vmul.f32 %v248, 0.2
      %v257 = vmul.f32 %v249, 0.2
      %v258 = vmul.f32 %v250, 0.2
      %v259 = vsel %vm251, %v247, %v255
      %v260 = vsel %vm252, %v248, %v256
      %v261 = vsel %vm253, %v249, %v257
      %v262 = vsel %vm254, %v250, %v258
      %v263 = vlaneseq
      %v264 = vshrl.u32 %v263, 7
      %v265 = vadd.s32 %v264, 8
      %v266 = vadd.s32 %v264, 16
      %v267 = vadd.s32 %v264, 24
      %vm268 = vcmp.lt.s32.totalorder %v264, 0
      %v269 = vsub.s32 0, %v264
      %v270 = vsel %vm268, %v269, %v264
      %v271 = vmul.u32.u64.compose %v270, 3435973837
      %v272 = vextract.low.u32 %v271
      %v273 = vextract.high.u32 %v271
      %v274 = vshrl.u32 %v273, 2
      %v275 = vmul.u32 %v274, 5
      %v276 = vsub.s32 %v270, %v275
      %v277 = vsub.s32 0, %v276
      %v278 = vsel %vm268, %v277, %v276
      %vm279 = vcmp.lt.s32.totalorder %v265, 0
      %v280 = vsub.s32 0, %v265
      %v281 = vsel %vm279, %v280, %v265
      %v282 = vmul.u32.u64.compose %v281, 3435973837
      %v283 = vextract.low.u32 %v282
      %v284 = vextract.high.u32 %v282
      %v285 = vshrl.u32 %v284, 2
      %v286 = vmul.u32 %v285, 5
      %v287 = vsub.s32 %v281, %v286
      %v288 = vsub.s32 0, %v287
      %v289 = vsel %vm279, %v288, %v287
      %vm290 = vcmp.lt.s32.totalorder %v266, 0
      %v291 = vsub.s32 0, %v266
      %v292 = vsel %vm290, %v291, %v266
      %v293 = vmul.u32.u64.compose %v292, 3435973837
      %v294 = vextract.low.u32 %v293
      %v295 = vextract.high.u32 %v293
      %v296 = vshrl.u32 %v295, 2
      %v297 = vmul.u32 %v296, 5
      %v298 = vsub.s32 %v292, %v297
      %v299 = vsub.s32 0, %v298
      %v300 = vsel %vm290, %v299, %v298
      %vm301 = vcmp.lt.s32.totalorder %v267, 0
      %v302 = vsub.s32 0, %v267
      %v303 = vsel %vm301, %v302, %v267
      %v304 = vmul.u32.u64.compose %v303, 3435973837
      %v305 = vextract.low.u32 %v304
      %v306 = vextract.high.u32 %v304
      %v307 = vshrl.u32 %v306, 2
      %v308 = vmul.u32 %v307, 5
      %v309 = vsub.s32 %v303, %v308
      %v310 = vsub.s32 0, %v309
      %v311 = vsel %vm301, %v310, %v309
      %vm312 = vcmp.ne.s32.totalorder %v278, 0
      %vm313 = vcmp.ne.s32.totalorder %v289, 0
      %vm314 = vcmp.ne.s32.totalorder %v300, 0
      %vm315 = vcmp.ne.s32.totalorder %v311, 0
      %vm316 = vcmp.lt.s32.totalorder %v278, 0
      %vm317 = vcmp.lt.s32.totalorder %v289, 0
      %vm318 = vcmp.lt.s32.totalorder %v300, 0
      %vm319 = vcmp.lt.s32.totalorder %v311, 0
      %vm320 = vmand %vm316, %vm312
      %vm321 = vmand %vm317, %vm313
      %vm322 = vmand %vm318, %vm314
      %vm323 = vmand %vm319, %vm315
      %v324 = vadd.s32 %v278, 5
      %v325 = vadd.s32 %v289, 5
      %v326 = vadd.s32 %v300, 5
      %v327 = vadd.s32 %v311, 5
      %v328 = vsel %vm320, %v324, %v278
      %v329 = vsel %vm321, %v325, %v289
      %v330 = vsel %vm322, %v326, %v300
      %v331 = vsel %vm323, %v327, %v311
      %vm332 = vcmp.ge.s32.totalorder %v264, 5
      %vm333 = vcmp.ge.s32.totalorder %v265, 5
      %vm334 = vcmp.ge.s32.totalorder %v266, 5
      %vm335 = vcmp.ge.s32.totalorder %v267, 5
      %vm336 = vcmp.lt.s32.totalorder %v264, 20
      %vm337 = vcmp.lt.s32.totalorder %v265, 20
      %vm338 = vcmp.lt.s32.totalorder %v266, 20
      %vm339 = vcmp.lt.s32.totalorder %v267, 20
      %vm340 = vcmp.ge.s32.totalorder %v328, 1
      %vm341 = vcmp.ge.s32.totalorder %v329, 1
      %vm342 = vcmp.ge.s32.totalorder %v330, 1
      %vm343 = vcmp.ge.s32.totalorder %v331, 1
      %vm344 = vcmp.le.s32.totalorder %v328, 3
      %vm345 = vcmp.le.s32.totalorder %v329, 3
      %vm346 = vcmp.le.s32.totalorder %v330, 3
      %vm347 = vcmp.le.s32.totalorder %v331, 3
      %vm348 = vmand %vm332, %vm336
      %vm349 = vmand %vm333, %vm337
      %vm350 = vmand %vm334, %vm338
      %vm351 = vmand %vm335, %vm339
      %vm352 = vmand %vm348, %vm340
      %vm353 = vmand %vm349, %vm341
      %vm354 = vmand %vm350, %vm342
      %vm355 = vmand %vm351, %vm343
      %vm356 = vmand %vm352, %vm344
      %vm357 = vmand %vm353, %vm345
      %vm358 = vmand %vm354, %vm346
      %vm359 = vmand %vm355, %vm347
      %v360 = vsel %vm356, 1, 0
      %v361 = vsel %vm357, 1, 0
      %v362 = vsel %vm358, 1, 0
      %v363 = vsel %vm359, 1, 0
      %vm364 = vcmp.eq.s32.totalorder %v360, 1
      %vm365 = vcmp.eq.s32.totalorder %v361, 1
      %vm366 = vcmp.eq.s32.totalorder %v362, 1
      %vm367 = vcmp.eq.s32.totalorder %v363, 1
      %v368 = vsel %vm364, %v259, 0.0
      %v369 = vsel %vm365, %v260, 0.0
      %v370 = vsel %vm366, %v261, 0.0
      %v371 = vsel %vm367, %v262, 0.0
      %v372 = vld [vmem:[%s1] sm:$0xff]
      %v373 = vld [vmem:[%s1 + $0x8] sm:$0xff]
      %v374 = vld [vmem:[%s1 + $0x10] sm:$0xff]
      %v375 = vld [vmem:[%s1 + $0x18] sm:$0xff]
      %v376 = vld [vmem:[%s1 + $0x20] sm:$0xff]
      %v377 = vld [vmem:[%s1 + $0x28] sm:$0xff]
      %v378 = vld [vmem:[%s1 + $0x30] sm:$0xff]
      %v379 = vld [vmem:[%s1 + $0x38] sm:$0xff]
      %s380 = scalar_lea.vmem %s1, 64
      %v381 = vld [vmem:[%s380] sm:$0xff]
      %v382 = vld [vmem:[%s380 + $0x8] sm:$0xff]
      %v383 = vld [vmem:[%s380 + $0x10] sm:$0xff]
      %v384 = vld [vmem:[%s380 + $0x18] sm:$0xff]
      %v385 = vld [vmem:[%s380 + $0x20] sm:$0xff]
      %v386 = vld [vmem:[%s380 + $0x28] sm:$0xff]
      %v387 = vld [vmem:[%s380 + $0x30] sm:$0xff]
      %v388 = vld [vmem:[%s380 + $0x38] sm:$0xff]
      %v390 = vrot.slane %v368, 1
      %vm391 = vcmask 523264
      %v392 = vsel %vm391, %v390, 0
      %394 = vmatprep.subr.mxu0 0.0
      %395 = vmatpush1.msra.mxu0 %v381
      %396 = vmatprep.subr.mxu0 0.0
      %397 = vmatpush1.msra.mxu0 %v382
      %398 = vmatprep.subr.mxu0 0.0
      %399 = vmatpush1.msra.mxu0 %v383
      %400 = vmatprep.subr.mxu0 0.0
      %401 = vmatpush1.msra.mxu0 %v384
      %402 = vmatprep.subr.mxu0 0.0
      %403 = vmatpush1.msra.mxu0 %v385
      %404 = vmatprep.subr.mxu0 0.0
      %405 = vmatpush1.msra.mxu0 %v386
      %406 = vmatprep.subr.mxu0 0.0
      %407 = vmatpush1.msra.mxu0 %v387
      %408 = vmatprep.subr.mxu0 0.0
      %409 = vmatpush1.msra.mxu0 %v388
      %410 = vmatprep.subr.mxu0 0.0
      %411 = vmatpush1.msra.mxu0 0.0
      %412 = vmatprep.subr.mxu0 0.0
      %413 = vmatpush1.msra.mxu0 0.0
      %414 = vmatprep.subr.mxu0 0.0
      %415 = vmatpush1.msra.mxu0 0.0
      %416 = vmatprep.subr.mxu0 0.0
      %417 = vmatpush1.msra.mxu0 0.0
      %418 = vmatprep.subr.mxu0 0.0
      %419 = vmatpush1.msra.mxu0 0.0
      %420 = vmatprep.subr.mxu0 0.0
      %421 = vmatpush1.msra.mxu0 0.0
      %422 = vmatprep.subr.mxu0 0.0
      %423 = vmatpush1.msra.mxu0 0.0
      %424 = vmatprep.subr.mxu0 0.0
      %425 = vmatpush1.msra.mxu0 0.0
      %426 = vmatprep.subr.mxu0 0.0
      %427 = vmatpush1.msra.mxu0 0.0
      %428 = vmatprep.subr.mxu0 0.0
      %429 = vmatpush1.msra.mxu0 0.0
      %430 = vmatprep.subr.mxu0 0.0
      %431 = vmatpush1.msra.mxu0 0.0
      %432 = vmatprep.subr.mxu0 0.0
      %433 = vmatpush1.msra.mxu0 0.0
      %434 = vmatprep.subr.mxu0 0.0
      %435 = vmatpush1.msra.mxu0 0.0
      %436 = vmatprep.subr.mxu0 0.0
      %437 = vmatpush1.msra.mxu0 0.0
      %438 = vmatprep.subr.mxu0 0.0
      %439 = vmatpush1.msra.mxu0 0.0
      %440 = vmatprep.subr.mxu0 0.0
      %441 = vmatpush1.msra.mxu0 0.0
      %442 = vmatprep.subr.mxu0 0.0
      %443 = vmatpush1.msra.mxu0 0.0
      %444 = vmatprep.subr.mxu0 0.0
      %445 = vmatpush1.msra.mxu0 0.0
      %446 = vmatprep.subr.mxu0 0.0
      %447 = vmatpush1.msra.mxu0 0.0
      %448 = vmatprep.subr.mxu0 0.0
      %449 = vmatpush1.msra.mxu0 0.0
      %450 = vmatprep.subr.mxu0 0.0
      %451 = vmatpush1.msra.mxu0 0.0
      %452 = vmatprep.subr.mxu0 0.0
      %453 = vmatpush1.msra.mxu0 0.0
      %454 = vmatprep.subr.mxu0 0.0
      %455 = vmatpush1.msra.mxu0 0.0
      %456 = vmatprep.subr.mxu0 0.0
      %457 = vmatpush1.msra.mxu0 0.0
      %458 = vmatprep.mubr.f32.mxu0 0.0
      %459 = vmatmul.mubr.f32.gmra.mrb[0].mxu0 %v392
      %v460 = vpop.f32.mrb[0].mxu0
      %v461 = vadd.f32 0.0, %v460
      %v462 = vpop.f32.mrb[0].mxu0
      %463 = vdwg.mxu0
      %v464 = vsel %vm391, %v368, 0
      %466 = vmatprep.subr.mxu0 0.0
      %467 = vmatpush1.msra.mxu0 %v372
      %468 = vmatprep.subr.mxu0 0.0
      %469 = vmatpush1.msra.mxu0 %v373
      %470 = vmatprep.subr.mxu0 0.0
      %471 = vmatpush1.msra.mxu0 %v374
      %472 = vmatprep.subr.mxu0 0.0
      %473 = vmatpush1.msra.mxu0 %v375
      %474 = vmatprep.subr.mxu0 0.0
      %475 = vmatpush1.msra.mxu0 %v376
      %476 = vmatprep.subr.mxu0 0.0
      %477 = vmatpush1.msra.mxu0 %v377
      %478 = vmatprep.subr.mxu0 0.0
      %479 = vmatpush1.msra.mxu0 %v378
      %480 = vmatprep.subr.mxu0 0.0
      %481 = vmatpush1.msra.mxu0 %v379
      %482 = vmatprep.subr.mxu0 0.0
      %483 = vmatpush1.msra.mxu0 0.0
      %484 = vmatprep.subr.mxu0 0.0
      %485 = vmatpush1.msra.mxu0 0.0
      %486 = vmatprep.subr.mxu0 0.0
      %487 = vmatpush1.msra.mxu0 0.0
      %488 = vmatprep.subr.mxu0 0.0
      %489 = vmatpush1.msra.mxu0 0.0
      %490 = vmatprep.subr.mxu0 0.0
      %491 = vmatpush1.msra.mxu0 0.0
      %492 = vmatprep.subr.mxu0 0.0
      %493 = vmatpush1.msra.mxu0 0.0
      %494 = vmatprep.subr.mxu0 0.0
      %495 = vmatpush1.msra.mxu0 0.0
      %496 = vmatprep.subr.mxu0 0.0
      %497 = vmatpush1.msra.mxu0 0.0
      %498 = vmatprep.subr.mxu0 0.0
      %499 = vmatpush1.msra.mxu0 0.0
      %500 = vmatprep.subr.mxu0 0.0
      %501 = vmatpush1.msra.mxu0 0.0
      %502 = vmatprep.subr.mxu0 0.0
      %503 = vmatpush1.msra.mxu0 0.0
      %504 = vmatprep.subr.mxu0 0.0
      %505 = vmatpush1.msra.mxu0 0.0
      %506 = vmatprep.subr.mxu0 0.0
      %507 = vmatpush1.msra.mxu0 0.0
      %508 = vmatprep.subr.mxu0 0.0
      %509 = vmatpush1.msra.mxu0 0.0
      %510 = vmatprep.subr.mxu0 0.0
      %511 = vmatpush1.msra.mxu0 0.0
      %512 = vmatprep.subr.mxu0 0.0
      %513 = vmatpush1.msra.mxu0 0.0
      %514 = vmatprep.subr.mxu0 0.0
      %515 = vmatpush1.msra.mxu0 0.0
      %516 = vmatprep.subr.mxu0 0.0
      %517 = vmatpush1.msra.mxu0 0.0
      %518 = vmatprep.subr.mxu0 0.0
      %519 = vmatpush1.msra.mxu0 0.0
      %520 = vmatprep.subr.mxu0 0.0
      %521 = vmatpush1.msra.mxu0 0.0
      %522 = vmatprep.subr.mxu0 0.0
      %523 = vmatpush1.msra.mxu0 0.0
      %524 = vmatprep.subr.mxu0 0.0
      %525 = vmatpush1.msra.mxu0 0.0
      %526 = vmatprep.subr.mxu0 0.0
      %527 = vmatpush1.msra.mxu0 0.0
      %528 = vmatprep.subr.mxu0 0.0
      %529 = vmatpush1.msra.mxu0 0.0
      %530 = vmatprep.mubr.f32.mxu0 0.0
      %531 = vmatmul.mubr.f32.gmra.mrb[0].mxu0 %v464
      %v532 = vpop.f32.mrb[0].mxu0
      %v533 = vadd.f32 %v461, %v532
      %v534 = vpop.f32.mrb[0].mxu0
      %535 = vdwg.mxu0
      %s536 = scalar_lea.vmem %s1, 128
      %v537 = vld [vmem:[%s536] sm:$0xff]
      %v538 = vld [vmem:[%s536 + $0x8] sm:$0xff]
      %v539 = vld [vmem:[%s536 + $0x10] sm:$0xff]
      %v540 = vld [vmem:[%s536 + $0x18] sm:$0xff]
      %v541 = vld [vmem:[%s536 + $0x20] sm:$0xff]
      %v542 = vld [vmem:[%s536 + $0x28] sm:$0xff]
      %v543 = vld [vmem:[%s536 + $0x30] sm:$0xff]
      %v544 = vld [vmem:[%s536 + $0x38] sm:$0xff]
      %vm546 = vcmask 1045504
      %v547 = vrot.slane %v368, 2
      %v548 = vrot.slane %v369, 2
      %v549 = vsel %vm546, %v547, %v548
      %v550 = vsel %vm391, %v549, 0
      %552 = vmatprep.subr.mxu0 0.0
      %553 = vmatpush1.msra.mxu0 %v537
      %554 = vmatprep.subr.mxu0 0.0
      %555 = vmatpush1.msra.mxu0 %v538
      %556 = vmatprep.subr.mxu0 0.0
      %557 = vmatpush1.msra.mxu0 %v539
      %558 = vmatprep.subr.mxu0 0.0
      %559 = vmatpush1.msra.mxu0 %v540
      %560 = vmatprep.subr.mxu0 0.0
      %561 = vmatpush1.msra.mxu0 %v541
      %562 = vmatprep.subr.mxu0 0.0
      %563 = vmatpush1.msra.mxu0 %v542
      %564 = vmatprep.subr.mxu0 0.0
      %565 = vmatpush1.msra.mxu0 %v543
      %566 = vmatprep.subr.mxu0 0.0
      %567 = vmatpush1.msra.mxu0 %v544
      %568 = vmatprep.subr.mxu0 0.0
      %569 = vmatpush1.msra.mxu0 0.0
      %570 = vmatprep.subr.mxu0 0.0
      %571 = vmatpush1.msra.mxu0 0.0
      %572 = vmatprep.subr.mxu0 0.0
      %573 = vmatpush1.msra.mxu0 0.0
      %574 = vmatprep.subr.mxu0 0.0
      %575 = vmatpush1.msra.mxu0 0.0
      %576 = vmatprep.subr.mxu0 0.0
      %577 = vmatpush1.msra.mxu0 0.0
      %578 = vmatprep.subr.mxu0 0.0
      %579 = vmatpush1.msra.mxu0 0.0
      %580 = vmatprep.subr.mxu0 0.0
      %581 = vmatpush1.msra.mxu0 0.0
      %582 = vmatprep.subr.mxu0 0.0
      %583 = vmatpush1.msra.mxu0 0.0
      %584 = vmatprep.subr.mxu0 0.0
      %585 = vmatpush1.msra.mxu0 0.0
      %586 = vmatprep.subr.mxu0 0.0
      %587 = vmatpush1.msra.mxu0 0.0
      %588 = vmatprep.subr.mxu0 0.0
      %589 = vmatpush1.msra.mxu0 0.0
      %590 = vmatprep.subr.mxu0 0.0
      %591 = vmatpush1.msra.mxu0 0.0
      %592 = vmatprep.subr.mxu0 0.0
      %593 = vmatpush1.msra.mxu0 0.0
      %594 = vmatprep.subr.mxu0 0.0
      %595 = vmatpush1.msra.mxu0 0.0
      %596 = vmatprep.subr.mxu0 0.0
      %597 = vmatpush1.msra.mxu0 0.0
      %598 = vmatprep.subr.mxu0 0.0
      %599 = vmatpush1.msra.mxu0 0.0
      %600 = vmatprep.subr.mxu0 0.0
      %601 = vmatpush1.msra.mxu0 0.0
      %602 = vmatprep.subr.mxu0 0.0
      %603 = vmatpush1.msra.mxu0 0.0
      %604 = vmatprep.subr.mxu0 0.0
      %605 = vmatpush1.msra.mxu0 0.0
      %606 = vmatprep.subr.mxu0 0.0
      %607 = vmatpush1.msra.mxu0 0.0
      %608 = vmatprep.subr.mxu0 0.0
      %609 = vmatpush1.msra.mxu0 0.0
      %610 = vmatprep.subr.mxu0 0.0
      %611 = vmatpush1.msra.mxu0 0.0
      %612 = vmatprep.subr.mxu0 0.0
      %613 = vmatpush1.msra.mxu0 0.0
      %614 = vmatprep.subr.mxu0 0.0
      %615 = vmatpush1.msra.mxu0 0.0
      %616 = vmatprep.mubr.f32.mxu0 0.0
      %617 = vmatmul.mubr.f32.gmra.mrb[0].mxu0 %v550
      %v618 = vpop.f32.mrb[0].mxu0
      %v619 = vadd.f32 0.0, %v618
      %v620 = vpop.f32.mrb[0].mxu0
      %621 = vdwg.mxu0
      %v622 = vadd.f32 %v533, %v619
      %s623 = scalar_lea.vmem %s1, 192
      %v624 = vld [vmem:[%s623] sm:$0xff]
      %v625 = vld [vmem:[%s623 + $0x8] sm:$0xff]
      %v626 = vld [vmem:[%s623 + $0x10] sm:$0xff]
      %v627 = vld [vmem:[%s623 + $0x18] sm:$0xff]
      %v628 = vld [vmem:[%s623 + $0x20] sm:$0xff]
      %v629 = vld [vmem:[%s623 + $0x28] sm:$0xff]
      %v630 = vld [vmem:[%s623 + $0x30] sm:$0xff]
      %v631 = vld [vmem:[%s623 + $0x38] sm:$0xff]
      %vm632 = vcmask 1044480
      %v633 = vrot.slane %v368, 3
      %v634 = vrot.slane %v369, 3
      %v635 = vsel %vm632, %v633, %v634
      %v636 = vsel %vm391, %v635, 0
      %638 = vmatprep.subr.mxu0 0.0
      %639 = vmatpush1.msra.mxu0 %v624
      %640 = vmatprep.subr.mxu0 0.0
      %641 = vmatpush1.msra.mxu0 %v625
      %642 = vmatprep.subr.mxu0 0.0
      %643 = vmatpush1.msra.mxu0 %v626
      %644 = vmatprep.subr.mxu0 0.0
      %645 = vmatpush1.msra.mxu0 %v627
      %646 = vmatprep.subr.mxu0 0.0
      %647 = vmatpush1.msra.mxu0 %v628
      %648 = vmatprep.subr.mxu0 0.0
      %649 = vmatpush1.msra.mxu0 %v629
      %650 = vmatprep.subr.mxu0 0.0
      %651 = vmatpush1.msra.mxu0 %v630
      %652 = vmatprep.subr.mxu0 0.0
      %653 = vmatpush1.msra.mxu0 %v631
      %654 = vmatprep.subr.mxu0 0.0
      %655 = vmatpush1.msra.mxu0 0.0
      %656 = vmatprep.subr.mxu0 0.0
      %657 = vmatpush1.msra.mxu0 0.0
      %658 = vmatprep.subr.mxu0 0.0
      %659 = vmatpush1.msra.mxu0 0.0
      %660 = vmatprep.subr.mxu0 0.0
      %661 = vmatpush1.msra.mxu0 0.0
      %662 = vmatprep.subr.mxu0 0.0
      %663 = vmatpush1.msra.mxu0 0.0
      %664 = vmatprep.subr.mxu0 0.0
      %665 = vmatpush1.msra.mxu0 0.0
      %666 = vmatprep.subr.mxu0 0.0
      %667 = vmatpush1.msra.mxu0 0.0
      %668 = vmatprep.subr.mxu0 0.0
      %669 = vmatpush1.msra.mxu0 0.0
      %670 = vmatprep.subr.mxu0 0.0
      %671 = vmatpush1.msra.mxu0 0.0
      %672 = vmatprep.subr.mxu0 0.0
      %673 = vmatpush1.msra.mxu0 0.0
      %674 = vmatprep.subr.mxu0 0.0
      %675 = vmatpush1.msra.mxu0 0.0
      %676 = vmatprep.subr.mxu0 0.0
      %677 = vmatpush1.msra.mxu0 0.0
      %678 = vmatprep.subr.mxu0 0.0
      %679 = vmatpush1.msra.mxu0 0.0
      %680 = vmatprep.subr.mxu0 0.0
      %681 = vmatpush1.msra.mxu0 0.0
      %682 = vmatprep.subr.mxu0 0.0
      %683 = vmatpush1.msra.mxu0 0.0
      %684 = vmatprep.subr.mxu0 0.0
      %685 = vmatpush1.msra.mxu0 0.0
      %686 = vmatprep.subr.mxu0 0.0
      %687 = vmatpush1.msra.mxu0 0.0
      %688 = vmatprep.subr.mxu0 0.0
      %689 = vmatpush1.msra.mxu0 0.0
      %690 = vmatprep.subr.mxu0 0.0
      %691 = vmatpush1.msra.mxu0 0.0
      %692 = vmatprep.subr.mxu0 0.0
      %693 = vmatpush1.msra.mxu0 0.0
      %694 = vmatprep.subr.mxu0 0.0
      %695 = vmatpush1.msra.mxu0 0.0
      %696 = vmatprep.subr.mxu0 0.0
      %697 = vmatpush1.msra.mxu0 0.0
      %698 = vmatprep.subr.mxu0 0.0
      %699 = vmatpush1.msra.mxu0 0.0
      %700 = vmatprep.subr.mxu0 0.0
      %701 = vmatpush1.msra.mxu0 0.0
      %702 = vmatprep.mubr.f32.mxu0 0.0
      %703 = vmatmul.mubr.f32.gmra.mrb[0].mxu0 %v636
      %v704 = vpop.f32.mrb[0].mxu0
      %v705 = vadd.f32 0.0, %v704
      %v706 = vpop.f32.mrb[0].mxu0
      %707 = vdwg.mxu0
      %v708 = vadd.f32 %v622, %v705
      %s709 = scalar_lea.vmem %s1, 256
      %v710 = vld [vmem:[%s709] sm:$0xff]
      %v711 = vld [vmem:[%s709 + $0x8] sm:$0xff]
      %v712 = vld [vmem:[%s709 + $0x10] sm:$0xff]
      %v713 = vld [vmem:[%s709 + $0x18] sm:$0xff]
      %v714 = vld [vmem:[%s709 + $0x20] sm:$0xff]
      %v715 = vld [vmem:[%s709 + $0x28] sm:$0xff]
      %v716 = vld [vmem:[%s709 + $0x30] sm:$0xff]
      %v717 = vld [vmem:[%s709 + $0x38] sm:$0xff]
      %vm718 = vcmask 1042432
      %v719 = vrot.slane %v368, 5
      %v720 = vrot.slane %v369, 5
      %v721 = vsel %vm718, %v719, %v720
      %v722 = vsel %vm391, %v721, 0
      %724 = vmatprep.subr.mxu0 0.0
      %725 = vmatpush1.msra.mxu0 %v710
      %726 = vmatprep.subr.mxu0 0.0
      %727 = vmatpush1.msra.mxu0 %v711
      %728 = vmatprep.subr.mxu0 0.0
      %729 = vmatpush1.msra.mxu0 %v712
      %730 = vmatprep.subr.mxu0 0.0
      %731 = vmatpush1.msra.mxu0 %v713
      %732 = vmatprep.subr.mxu0 0.0
      %733 = vmatpush1.msra.mxu0 %v714
      %734 = vmatprep.subr.mxu0 0.0
      %735 = vmatpush1.msra.mxu0 %v715
      %736 = vmatprep.subr.mxu0 0.0
      %737 = vmatpush1.msra.mxu0 %v716
      %738 = vmatprep.subr.mxu0 0.0
      %739 = vmatpush1.msra.mxu0 %v717
      %740 = vmatprep.subr.mxu0 0.0
      %741 = vmatpush1.msra.mxu0 0.0
      %742 = vmatprep.subr.mxu0 0.0
      %743 = vmatpush1.msra.mxu0 0.0
      %744 = vmatprep.subr.mxu0 0.0
      %745 = vmatpush1.msra.mxu0 0.0
      %746 = vmatprep.subr.mxu0 0.0
      %747 = vmatpush1.msra.mxu0 0.0
      %748 = vmatprep.subr.mxu0 0.0
      %749 = vmatpush1.msra.mxu0 0.0
      %750 = vmatprep.subr.mxu0 0.0
      %751 = vmatpush1.msra.mxu0 0.0
      %752 = vmatprep.subr.mxu0 0.0
      %753 = vmatpush1.msra.mxu0 0.0
      %754 = vmatprep.subr.mxu0 0.0
      %755 = vmatpush1.msra.mxu0 0.0
      %756 = vmatprep.subr.mxu0 0.0
      %757 = vmatpush1.msra.mxu0 0.0
      %758 = vmatprep.subr.mxu0 0.0
      %759 = vmatpush1.msra.mxu0 0.0
      %760 = vmatprep.subr.mxu0 0.0
      %761 = vmatpush1.msra.mxu0 0.0
      %762 = vmatprep.subr.mxu0 0.0
      %763 = vmatpush1.msra.mxu0 0.0
      %764 = vmatprep.subr.mxu0 0.0
      %765 = vmatpush1.msra.mxu0 0.0
      %766 = vmatprep.subr.mxu0 0.0
      %767 = vmatpush1.msra.mxu0 0.0
      %768 = vmatprep.subr.mxu0 0.0
      %769 = vmatpush1.msra.mxu0 0.0
      %770 = vmatprep.subr.mxu0 0.0
      %771 = vmatpush1.msra.mxu0 0.0
      %772 = vmatprep.subr.mxu0 0.0
      %773 = vmatpush1.msra.mxu0 0.0
      %774 = vmatprep.subr.mxu0 0.0
      %775 = vmatpush1.msra.mxu0 0.0
      %776 = vmatprep.subr.mxu0 0.0
      %777 = vmatpush1.msra.mxu0 0.0
      %778 = vmatprep.subr.mxu0 0.0
      %779 = vmatpush1.msra.mxu0 0.0
      %780 = vmatprep.subr.mxu0 0.0
      %781 = vmatpush1.msra.mxu0 0.0
      %782 = vmatprep.subr.mxu0 0.0
      %783 = vmatpush1.msra.mxu0 0.0
      %784 = vmatprep.subr.mxu0 0.0
      %785 = vmatpush1.msra.mxu0 0.0
      %786 = vmatprep.subr.mxu0 0.0
      %787 = vmatpush1.msra.mxu0 0.0
      %788 = vmatprep.mubr.f32.mxu0 0.0
      %789 = vmatmul.mubr.f32.gmra.mrb[0].mxu0 %v722
      %v790 = vpop.f32.mrb[0].mxu0
      %v791 = vadd.f32 0.0, %v790
      %v792 = vpop.f32.mrb[0].mxu0
      %793 = vdwg.mxu0
      %v794 = vadd.f32 %v708, %v791
      %s795 = scalar_lea.vmem %s1, 320
      %v796 = vld [vmem:[%s795] sm:$0xff]
      %v797 = vld [vmem:[%s795 + $0x8] sm:$0xff]
      %v798 = vld [vmem:[%s795 + $0x10] sm:$0xff]
      %v799 = vld [vmem:[%s795 + $0x18] sm:$0xff]
      %v800 = vld [vmem:[%s795 + $0x20] sm:$0xff]
      %v801 = vld [vmem:[%s795 + $0x28] sm:$0xff]
      %v802 = vld [vmem:[%s795 + $0x30] sm:$0xff]
      %v803 = vld [vmem:[%s795 + $0x38] sm:$0xff]
      %vm804 = vcmask 1041408
      %v805 = vrot.slane %v368, 6
      %v806 = vrot.slane %v369, 6
      %v807 = vsel %vm804, %v805, %v806
      %v808 = vsel %vm391, %v807, 0
      %810 = vmatprep.subr.mxu0 0.0
      %811 = vmatpush1.msra.mxu0 %v796
      %812 = vmatprep.subr.mxu0 0.0
      %813 = vmatpush1.msra.mxu0 %v797
      %814 = vmatprep.subr.mxu0 0.0
      %815 = vmatpush1.msra.mxu0 %v798
      %816 = vmatprep.subr.mxu0 0.0
      %817 = vmatpush1.msra.mxu0 %v799
      %818 = vmatprep.subr.mxu0 0.0
      %819 = vmatpush1.msra.mxu0 %v800
      %820 = vmatprep.subr.mxu0 0.0
      %821 = vmatpush1.msra.mxu0 %v801
      %822 = vmatprep.subr.mxu0 0.0
      %823 = vmatpush1.msra.mxu0 %v802
      %824 = vmatprep.subr.mxu0 0.0
      %825 = vmatpush1.msra.mxu0 %v803
      %826 = vmatprep.subr.mxu0 0.0
      %827 = vmatpush1.msra.mxu0 0.0
      %828 = vmatprep.subr.mxu0 0.0
      %829 = vmatpush1.msra.mxu0 0.0
      %830 = vmatprep.subr.mxu0 0.0
      %831 = vmatpush1.msra.mxu0 0.0
      %832 = vmatprep.subr.mxu0 0.0
      %833 = vmatpush1.msra.mxu0 0.0
      %834 = vmatprep.subr.mxu0 0.0
      %835 = vmatpush1.msra.mxu0 0.0
      %836 = vmatprep.subr.mxu0 0.0
      %837 = vmatpush1.msra.mxu0 0.0
      %838 = vmatprep.subr.mxu0 0.0
      %839 = vmatpush1.msra.mxu0 0.0
      %840 = vmatprep.subr.mxu0 0.0
      %841 = vmatpush1.msra.mxu0 0.0
      %842 = vmatprep.subr.mxu0 0.0
      %843 = vmatpush1.msra.mxu0 0.0
      %844 = vmatprep.subr.mxu0 0.0
      %845 = vmatpush1.msra.mxu0 0.0
      %846 = vmatprep.subr.mxu0 0.0
      %847 = vmatpush1.msra.mxu0 0.0
      %848 = vmatprep.subr.mxu0 0.0
      %849 = vmatpush1.msra.mxu0 0.0
      %850 = vmatprep.subr.mxu0 0.0
      %851 = vmatpush1.msra.mxu0 0.0
      %852 = vmatprep.subr.mxu0 0.0
      %853 = vmatpush1.msra.mxu0 0.0
      %854 = vmatprep.subr.mxu0 0.0
      %855 = vmatpush1.msra.mxu0 0.0
      %856 = vmatprep.subr.mxu0 0.0
      %857 = vmatpush1.msra.mxu0 0.0
      %858 = vmatprep.subr.mxu0 0.0
      %859 = vmatpush1.msra.mxu0 0.0
      %860 = vmatprep.subr.mxu0 0.0
      %861 = vmatpush1.msra.mxu0 0.0
      %862 = vmatprep.subr.mxu0 0.0
      %863 = vmatpush1.msra.mxu0 0.0
      %864 = vmatprep.subr.mxu0 0.0
      %865 = vmatpush1.msra.mxu0 0.0
      %866 = vmatprep.subr.mxu0 0.0
      %867 = vmatpush1.msra.mxu0 0.0
      %868 = vmatprep.subr.mxu0 0.0
      %869 = vmatpush1.msra.mxu0 0.0
      %870 = vmatprep.subr.mxu0 0.0
      %871 = vmatpush1.msra.mxu0 0.0
      %872 = vmatprep.subr.mxu0 0.0
      %873 = vmatpush1.msra.mxu0 0.0
      %874 = vmatprep.mubr.f32.mxu0 0.0
      %875 = vmatmul.mubr.f32.gmra.mrb[0].mxu0 %v808
      %v876 = vpop.f32.mrb[0].mxu0
      %v877 = vadd.f32 0.0, %v876
      %v878 = vpop.f32.mrb[0].mxu0
      %879 = vdwg.mxu0
      %v880 = vadd.f32 %v794, %v877
      %s881 = scalar_lea.vmem %s1, 384
      %v882 = vld [vmem:[%s881] sm:$0xff]
      %v883 = vld [vmem:[%s881 + $0x8] sm:$0xff]
      %v884 = vld [vmem:[%s881 + $0x10] sm:$0xff]
      %v885 = vld [vmem:[%s881 + $0x18] sm:$0xff]
      %v886 = vld [vmem:[%s881 + $0x20] sm:$0xff]
      %v887 = vld [vmem:[%s881 + $0x28] sm:$0xff]
      %v888 = vld [vmem:[%s881 + $0x30] sm:$0xff]
      %v889 = vld [vmem:[%s881 + $0x38] sm:$0xff]
      %vm890 = vcmask 1040384
      %v891 = vrot.slane %v368, 7
      %v892 = vrot.slane %v369, 7
      %v893 = vsel %vm890, %v891, %v892
      %v894 = vsel %vm391, %v893, 0
      %896 = vmatprep.subr.mxu0 0.0
      %897 = vmatpush1.msra.mxu0 %v882
      %898 = vmatprep.subr.mxu0 0.0
      %899 = vmatpush1.msra.mxu0 %v883
      %900 = vmatprep.subr.mxu0 0.0
      %901 = vmatpush1.msra.mxu0 %v884
      %902 = vmatprep.subr.mxu0 0.0
      %903 = vmatpush1.msra.mxu0 %v885
      %904 = vmatprep.subr.mxu0 0.0
      %905 = vmatpush1.msra.mxu0 %v886
      %906 = vmatprep.subr.mxu0 0.0
      %907 = vmatpush1.msra.mxu0 %v887
      %908 = vmatprep.subr.mxu0 0.0
      %909 = vmatpush1.msra.mxu0 %v888
      %910 = vmatprep.subr.mxu0 0.0
      %911 = vmatpush1.msra.mxu0 %v889
      %912 = vmatprep.subr.mxu0 0.0
      %913 = vmatpush1.msra.mxu0 0.0
      %914 = vmatprep.subr.mxu0 0.0
      %915 = vmatpush1.msra.mxu0 0.0
      %916 = vmatprep.subr.mxu0 0.0
      %917 = vmatpush1.msra.mxu0 0.0
      %918 = vmatprep.subr.mxu0 0.0
      %919 = vmatpush1.msra.mxu0 0.0
      %920 = vmatprep.subr.mxu0 0.0
      %921 = vmatpush1.msra.mxu0 0.0
      %922 = vmatprep.subr.mxu0 0.0
      %923 = vmatpush1.msra.mxu0 0.0
      %924 = vmatprep.subr.mxu0 0.0
      %925 = vmatpush1.msra.mxu0 0.0
      %926 = vmatprep.subr.mxu0 0.0
      %927 = vmatpush1.msra.mxu0 0.0
      %928 = vmatprep.subr.mxu0 0.0
      %929 = vmatpush1.msra.mxu0 0.0
      %930 = vmatprep.subr.mxu0 0.0
      %931 = vmatpush1.msra.mxu0 0.0
      %932 = vmatprep.subr.mxu0 0.0
      %933 = vmatpush1.msra.mxu0 0.0
      %934 = vmatprep.subr.mxu0 0.0
      %935 = vmatpush1.msra.mxu0 0.0
      %936 = vmatprep.subr.mxu0 0.0
      %937 = vmatpush1.msra.mxu0 0.0
      %938 = vmatprep.subr.mxu0 0.0
      %939 = vmatpush1.msra.mxu0 0.0
      %940 = vmatprep.subr.mxu0 0.0
      %941 = vmatpush1.msra.mxu0 0.0
      %942 = vmatprep.subr.mxu0 0.0
      %943 = vmatpush1.msra.mxu0 0.0
      %944 = vmatprep.subr.mxu0 0.0
      %945 = vmatpush1.msra.mxu0 0.0
      %946 = vmatprep.subr.mxu0 0.0
      %947 = vmatpush1.msra.mxu0 0.0
      %948 = vmatprep.subr.mxu0 0.0
      %949 = vmatpush1.msra.mxu0 0.0
      %950 = vmatprep.subr.mxu0 0.0
      %951 = vmatpush1.msra.mxu0 0.0
      %952 = vmatprep.subr.mxu0 0.0
      %953 = vmatpush1.msra.mxu0 0.0
      %954 = vmatprep.subr.mxu0 0.0
      %955 = vmatpush1.msra.mxu0 0.0
      %956 = vmatprep.subr.mxu0 0.0
      %957 = vmatpush1.msra.mxu0 0.0
      %958 = vmatprep.subr.mxu0 0.0
      %959 = vmatpush1.msra.mxu0 0.0
      %960 = vmatprep.mubr.f32.mxu0 0.0
      %961 = vmatmul.mubr.f32.gmra.mrb[0].mxu0 %v894
      %v962 = vpop.f32.mrb[0].mxu0
      %v963 = vadd.f32 0.0, %v962
      %v964 = vpop.f32.mrb[0].mxu0
      %965 = vdwg.mxu0
      %v966 = vadd.f32 %v880, %v963
      %s967 = scalar_lea.vmem %s1, 448
      %v968 = vld [vmem:[%s967] sm:$0xff]
      %v969 = vld [vmem:[%s967 + $0x8] sm:$0xff]
      %v970 = vld [vmem:[%s967 + $0x10] sm:$0xff]
      %v971 = vld [vmem:[%s967 + $0x18] sm:$0xff]
      %v972 = vld [vmem:[%s967 + $0x20] sm:$0xff]
      %v973 = vld [vmem:[%s967 + $0x28] sm:$0xff]
      %v974 = vld [vmem:[%s967 + $0x30] sm:$0xff]
      %v975 = vld [vmem:[%s967 + $0x38] sm:$0xff]
      %v976 = vsel %vm391, %v369, 0
      %978 = vmatprep.subr.mxu0 0.0
      %979 = vmatpush1.msra.mxu0 %v968
      %980 = vmatprep.subr.mxu0 0.0
      %981 = vmatpush1.msra.mxu0 %v969
      %982 = vmatprep.subr.mxu0 0.0
      %983 = vmatpush1.msra.mxu0 %v970
      %984 = vmatprep.subr.mxu0 0.0
      %985 = vmatpush1.msra.mxu0 %v971
      %986 = vmatprep.subr.mxu0 0.0
      %987 = vmatpush1.msra.mxu0 %v972
      %988 = vmatprep.subr.mxu0 0.0
      %989 = vmatpush1.msra.mxu0 %v973
      %990 = vmatprep.subr.mxu0 0.0
      %991 = vmatpush1.msra.mxu0 %v974
      %992 = vmatprep.subr.mxu0 0.0
      %993 = vmatpush1.msra.mxu0 %v975
      %994 = vmatprep.subr.mxu0 0.0
      %995 = vmatpush1.msra.mxu0 0.0
      %996 = vmatprep.subr.mxu0 0.0
      %997 = vmatpush1.msra.mxu0 0.0
      %998 = vmatprep.subr.mxu0 0.0
      %999 = vmatpush1.msra.mxu0 0.0
      %1000 = vmatprep.subr.mxu0 0.0
      %1001 = vmatpush1.msra.mxu0 0.0
      %1002 = vmatprep.subr.mxu0 0.0
      %1003 = vmatpush1.msra.mxu0 0.0
      %1004 = vmatprep.subr.mxu0 0.0
      %1005 = vmatpush1.msra.mxu0 0.0
      %1006 = vmatprep.subr.mxu0 0.0
      %1007 = vmatpush1.msra.mxu0 0.0
      %1008 = vmatprep.subr.mxu0 0.0
      %1009 = vmatpush1.msra.mxu0 0.0
      %1010 = vmatprep.subr.mxu0 0.0
      %1011 = vmatpush1.msra.mxu0 0.0
      %1012 = vmatprep.subr.mxu0 0.0
      %1013 = vmatpush1.msra.mxu0 0.0
      %1014 = vmatprep.subr.mxu0 0.0
      %1015 = vmatpush1.msra.mxu0 0.0
      %1016 = vmatprep.subr.mxu0 0.0
      %1017 = vmatpush1.msra.mxu0 0.0
      %1018 = vmatprep.subr.mxu0 0.0
      %1019 = vmatpush1.msra.mxu0 0.0
      %1020 = vmatprep.subr.mxu0 0.0
      %1021 = vmatpush1.msra.mxu0 0.0
      %1022 = vmatprep.subr.mxu0 0.0
      %1023 = vmatpush1.msra.mxu0 0.0
      %1024 = vmatprep.subr.mxu0 0.0
      %1025 = vmatpush1.msra.mxu0 0.0
      %1026 = vmatprep.subr.mxu0 0.0
      %1027 = vmatpush1.msra.mxu0 0.0
      %1028 = vmatprep.subr.mxu0 0.0
      %1029 = vmatpush1.msra.mxu0 0.0
      %1030 = vmatprep.subr.mxu0 0.0
      %1031 = vmatpush1.msra.mxu0 0.0
      %1032 = vmatprep.subr.mxu0 0.0
      %1033 = vmatpush1.msra.mxu0 0.0
      %1034 = vmatprep.subr.mxu0 0.0
      %1035 = vmatpush1.msra.mxu0 0.0
      %1036 = vmatprep.subr.mxu0 0.0
      %1037 = vmatpush1.msra.mxu0 0.0
      %1038 = vmatprep.subr.mxu0 0.0
      %1039 = vmatpush1.msra.mxu0 0.0
      %1040 = vmatprep.subr.mxu0 0.0
      %1041 = vmatpush1.msra.mxu0 0.0
      %1042 = vmatprep.mubr.f32.mxu0 0.0
      %1043 = vmatmul.mubr.f32.gmra.mrb[0].mxu0 %v976
      %v1044 = vpop.f32.mrb[0].mxu0
      %v1045 = vadd.f32 0.0, %v1044
      %v1046 = vpop.f32.mrb[0].mxu0
      %1047 = vdwg.mxu0
      %v1048 = vadd.f32 %v966, %v1045
      %s1049 = scalar_lea.vmem %s1, 512
      %v1050 = vld [vmem:[%s1049] sm:$0xff]
      %v1051 = vld [vmem:[%s1049 + $0x8] sm:$0xff]
      %v1052 = vld [vmem:[%s1049 + $0x10] sm:$0xff]
      %v1053 = vld [vmem:[%s1049 + $0x18] sm:$0xff]
      %v1054 = vld [vmem:[%s1049 + $0x20] sm:$0xff]
      %v1055 = vld [vmem:[%s1049 + $0x28] sm:$0xff]
      %v1056 = vld [vmem:[%s1049 + $0x30] sm:$0xff]
      %v1057 = vld [vmem:[%s1049 + $0x38] sm:$0xff]
      %v1059 = vrot.slane %v370, 2
      %v1060 = vsel %vm546, %v548, %v1059
      %v1061 = vsel %vm391, %v1060, 0
      %1063 = vmatprep.subr.mxu0 0.0
      %1064 = vmatpush1.msra.mxu0 %v1050
      %1065 = vmatprep.subr.mxu0 0.0
      %1066 = vmatpush1.msra.mxu0 %v1051
      %1067 = vmatprep.subr.mxu0 0.0
      %1068 = vmatpush1.msra.mxu0 %v1052
      %1069 = vmatprep.subr.mxu0 0.0
      %1070 = vmatpush1.msra.mxu0 %v1053
      %1071 = vmatprep.subr.mxu0 0.0
      %1072 = vmatpush1.msra.mxu0 %v1054
      %1073 = vmatprep.subr.mxu0 0.0
      %1074 = vmatpush1.msra.mxu0 %v1055
      %1075 = vmatprep.subr.mxu0 0.0
      %1076 = vmatpush1.msra.mxu0 %v1056
      %1077 = vmatprep.subr.mxu0 0.0
      %1078 = vmatpush1.msra.mxu0 %v1057
      %1079 = vmatprep.subr.mxu0 0.0
      %1080 = vmatpush1.msra.mxu0 0.0
      %1081 = vmatprep.subr.mxu0 0.0
      %1082 = vmatpush1.msra.mxu0 0.0
      %1083 = vmatprep.subr.mxu0 0.0
      %1084 = vmatpush1.msra.mxu0 0.0
      %1085 = vmatprep.subr.mxu0 0.0
      %1086 = vmatpush1.msra.mxu0 0.0
      %1087 = vmatprep.subr.mxu0 0.0
      %1088 = vmatpush1.msra.mxu0 0.0
      %1089 = vmatprep.subr.mxu0 0.0
      %1090 = vmatpush1.msra.mxu0 0.0
      %1091 = vmatprep.subr.mxu0 0.0
      %1092 = vmatpush1.msra.mxu0 0.0
      %1093 = vmatprep.subr.mxu0 0.0
      %1094 = vmatpush1.msra.mxu0 0.0
      %1095 = vmatprep.subr.mxu0 0.0
      %1096 = vmatpush1.msra.mxu0 0.0
      %1097 = vmatprep.subr.mxu0 0.0
      %1098 = vmatpush1.msra.mxu0 0.0
      %1099 = vmatprep.subr.mxu0 0.0
      %1100 = vmatpush1.msra.mxu0 0.0
      %1101 = vmatprep.subr.mxu0 0.0
      %1102 = vmatpush1.msra.mxu0 0.0
      %1103 = vmatprep.subr.mxu0 0.0
      %1104 = vmatpush1.msra.mxu0 0.0
      %1105 = vmatprep.subr.mxu0 0.0
      %1106 = vmatpush1.msra.mxu0 0.0
      %1107 = vmatprep.subr.mxu0 0.0
      %1108 = vmatpush1.msra.mxu0 0.0
      %1109 = vmatprep.subr.mxu0 0.0
      %1110 = vmatpush1.msra.mxu0 0.0
      %1111 = vmatprep.subr.mxu0 0.0
      %1112 = vmatpush1.msra.mxu0 0.0
      %1113 = vmatprep.subr.mxu0 0.0
      %1114 = vmatpush1.msra.mxu0 0.0
      %1115 = vmatprep.subr.mxu0 0.0
      %1116 = vmatpush1.msra.mxu0 0.0
      %1117 = vmatprep.subr.mxu0 0.0
      %1118 = vmatpush1.msra.mxu0 0.0
      %1119 = vmatprep.subr.mxu0 0.0
      %1120 = vmatpush1.msra.mxu0 0.0
      %1121 = vmatprep.subr.mxu0 0.0
      %1122 = vmatpush1.msra.mxu0 0.0
      %1123 = vmatprep.subr.mxu0 0.0
      %1124 = vmatpush1.msra.mxu0 0.0
      %1125 = vmatprep.subr.mxu0 0.0
      %1126 = vmatpush1.msra.mxu0 0.0
      %1127 = vmatprep.mubr.f32.mxu0 0.0
      %1128 = vmatmul.mubr.f32.gmra.mrb[0].mxu0 %v1061
      %v1129 = vpop.f32.mrb[0].mxu0
      %v1130 = vadd.f32 0.0, %v1129
      %v1131 = vpop.f32.mrb[0].mxu0
      %1132 = vdwg.mxu0
      %v1133 = vadd.f32 %v1048, %v1130
      %s1134 = scalar_lea.vmem %s1, 576
      %v1135 = vld [vmem:[%s1134] sm:$0xff]
      %v1136 = vld [vmem:[%s1134 + $0x8] sm:$0xff]
      %v1137 = vld [vmem:[%s1134 + $0x10] sm:$0xff]
      %v1138 = vld [vmem:[%s1134 + $0x18] sm:$0xff]
      %v1139 = vld [vmem:[%s1134 + $0x20] sm:$0xff]
      %v1140 = vld [vmem:[%s1134 + $0x28] sm:$0xff]
      %v1141 = vld [vmem:[%s1134 + $0x30] sm:$0xff]
      %v1142 = vld [vmem:[%s1134 + $0x38] sm:$0xff]
      %v1143 = vrot.slane %v370, 3
      %v1144 = vsel %vm632, %v634, %v1143
      %v1145 = vsel %vm391, %v1144, 0
      %1147 = vmatprep.subr.mxu0 0.0
      %1148 = vmatpush1.msra.mxu0 %v1135
      %1149 = vmatprep.subr.mxu0 0.0
      %1150 = vmatpush1.msra.mxu0 %v1136
      %1151 = vmatprep.subr.mxu0 0.0
      %1152 = vmatpush1.msra.mxu0 %v1137
      %1153 = vmatprep.subr.mxu0 0.0
      %1154 = vmatpush1.msra.mxu0 %v1138
      %1155 = vmatprep.subr.mxu0 0.0
      %1156 = vmatpush1.msra.mxu0 %v1139
      %1157 = vmatprep.subr.mxu0 0.0
      %1158 = vmatpush1.msra.mxu0 %v1140
      %1159 = vmatprep.subr.mxu0 0.0
      %1160 = vmatpush1.msra.mxu0 %v1141
      %1161 = vmatprep.subr.mxu0 0.0
      %1162 = vmatpush1.msra.mxu0 %v1142
      %1163 = vmatprep.subr.mxu0 0.0
      %1164 = vmatpush1.msra.mxu0 0.0
      %1165 = vmatprep.subr.mxu0 0.0
      %1166 = vmatpush1.msra.mxu0 0.0
      %1167 = vmatprep.subr.mxu0 0.0
      %1168 = vmatpush1.msra.mxu0 0.0
      %1169 = vmatprep.subr.mxu0 0.0
      %1170 = vmatpush1.msra.mxu0 0.0
      %1171 = vmatprep.subr.mxu0 0.0
      %1172 = vmatpush1.msra.mxu0 0.0
      %1173 = vmatprep.subr.mxu0 0.0
      %1174 = vmatpush1.msra.mxu0 0.0
      %1175 = vmatprep.subr.mxu0 0.0
      %1176 = vmatpush1.msra.mxu0 0.0
      %1177 = vmatprep.subr.mxu0 0.0
      %1178 = vmatpush1.msra.mxu0 0.0
      %1179 = vmatprep.subr.mxu0 0.0
      %1180 = vmatpush1.msra.mxu0 0.0
      %1181 = vmatprep.subr.mxu0 0.0
      %1182 = vmatpush1.msra.mxu0 0.0
      %1183 = vmatprep.subr.mxu0 0.0
      %1184 = vmatpush1.msra.mxu0 0.0
      %1185 = vmatprep.subr.mxu0 0.0
      %1186 = vmatpush1.msra.mxu0 0.0
      %1187 = vmatprep.subr.mxu0 0.0
      %1188 = vmatpush1.msra.mxu0 0.0
      %1189 = vmatprep.subr.mxu0 0.0
      %1190 = vmatpush1.msra.mxu0 0.0
      %1191 = vmatprep.subr.mxu0 0.0
      %1192 = vmatpush1.msra.mxu0 0.0
      %1193 = vmatprep.subr.mxu0 0.0
      %1194 = vmatpush1.msra.mxu0 0.0
      %1195 = vmatprep.subr.mxu0 0.0
      %1196 = vmatpush1.msra.mxu0 0.0
      %1197 = vmatprep.subr.mxu0 0.0
      %1198 = vmatpush1.msra.mxu0 0.0
      %1199 = vmatprep.subr.mxu0 0.0
      %1200 = vmatpush1.msra.mxu0 0.0
      %1201 = vmatprep.subr.mxu0 0.0
      %1202 = vmatpush1.msra.mxu0 0.0
      %1203 = vmatprep.subr.mxu0 0.0
      %1204 = vmatpush1.msra.mxu0 0.0
      %1205 = vmatprep.subr.mxu0 0.0
      %1206 = vmatpush1.msra.mxu0 0.0
      %1207 = vmatprep.subr.mxu0 0.0
      %1208 = vmatpush1.msra.mxu0 0.0
      %1209 = vmatprep.subr.mxu0 0.0
      %1210 = vmatpush1.msra.mxu0 0.0
      %1211 = vmatprep.mubr.f32.mxu0 0.0
      %1212 = vmatmul.mubr.f32.gmra.mrb[0].mxu0 %v1145
      %v1213 = vpop.f32.mrb[0].mxu0
      %v1214 = vadd.f32 0.0, %v1213
      %v1215 = vpop.f32.mrb[0].mxu0
      %1216 = vdwg.mxu0
      %v1217 = vadd.f32 %v1133, %v1214
      %s1218 = scalar_lea.vmem %s1, 640
      %v1219 = vld [vmem:[%s1218] sm:$0xff]
      %v1220 = vld [vmem:[%s1218 + $0x8] sm:$0xff]
      %v1221 = vld [vmem:[%s1218 + $0x10] sm:$0xff]
      %v1222 = vld [vmem:[%s1218 + $0x18] sm:$0xff]
      %v1223 = vld [vmem:[%s1218 + $0x20] sm:$0xff]
      %v1224 = vld [vmem:[%s1218 + $0x28] sm:$0xff]
      %v1225 = vld [vmem:[%s1218 + $0x30] sm:$0xff]
      %v1226 = vld [vmem:[%s1218 + $0x38] sm:$0xff]
      %vm1227 = vcmask 1043456
      %v1228 = vrot.slane %v369, 4
      %v1229 = vrot.slane %v370, 4
      %v1230 = vsel %vm1227, %v1228, %v1229
      %v1231 = vsel %vm391, %v1230, 0
      %1233 = vmatprep.subr.mxu0 0.0
      %1234 = vmatpush1.msra.mxu0 %v1219
      %1235 = vmatprep.subr.mxu0 0.0
      %1236 = vmatpush1.msra.mxu0 %v1220
      %1237 = vmatprep.subr.mxu0 0.0
      %1238 = vmatpush1.msra.mxu0 %v1221
      %1239 = vmatprep.subr.mxu0 0.0
      %1240 = vmatpush1.msra.mxu0 %v1222
      %1241 = vmatprep.subr.mxu0 0.0
      %1242 = vmatpush1.msra.mxu0 %v1223
      %1243 = vmatprep.subr.mxu0 0.0
      %1244 = vmatpush1.msra.mxu0 %v1224
      %1245 = vmatprep.subr.mxu0 0.0
      %1246 = vmatpush1.msra.mxu0 %v1225
      %1247 = vmatprep.subr.mxu0 0.0
      %1248 = vmatpush1.msra.mxu0 %v1226
      %1249 = vmatprep.subr.mxu0 0.0
      %1250 = vmatpush1.msra.mxu0 0.0
      %1251 = vmatprep.subr.mxu0 0.0
      %1252 = vmatpush1.msra.mxu0 0.0
      %1253 = vmatprep.subr.mxu0 0.0
      %1254 = vmatpush1.msra.mxu0 0.0
      %1255 = vmatprep.subr.mxu0 0.0
      %1256 = vmatpush1.msra.mxu0 0.0
      %1257 = vmatprep.subr.mxu0 0.0
      %1258 = vmatpush1.msra.mxu0 0.0
      %1259 = vmatprep.subr.mxu0 0.0
      %1260 = vmatpush1.msra.mxu0 0.0
      %1261 = vmatprep.subr.mxu0 0.0
      %1262 = vmatpush1.msra.mxu0 0.0
      %1263 = vmatprep.subr.mxu0 0.0
      %1264 = vmatpush1.msra.mxu0 0.0
      %1265 = vmatprep.subr.mxu0 0.0
      %1266 = vmatpush1.msra.mxu0 0.0
      %1267 = vmatprep.subr.mxu0 0.0
      %1268 = vmatpush1.msra.mxu0 0.0
      %1269 = vmatprep.subr.mxu0 0.0
      %1270 = vmatpush1.msra.mxu0 0.0
      %1271 = vmatprep.subr.mxu0 0.0
      %1272 = vmatpush1.msra.mxu0 0.0
      %1273 = vmatprep.subr.mxu0 0.0
      %1274 = vmatpush1.msra.mxu0 0.0
      %1275 = vmatprep.subr.mxu0 0.0
      %1276 = vmatpush1.msra.mxu0 0.0
      %1277 = vmatprep.subr.mxu0 0.0
      %1278 = vmatpush1.msra.mxu0 0.0
      %1279 = vmatprep.subr.mxu0 0.0
      %1280 = vmatpush1.msra.mxu0 0.0
      %1281 = vmatprep.subr.mxu0 0.0
      %1282 = vmatpush1.msra.mxu0 0.0
      %1283 = vmatprep.subr.mxu0 0.0
      %1284 = vmatpush1.msra.mxu0 0.0
      %1285 = vmatprep.subr.mxu0 0.0
      %1286 = vmatpush1.msra.mxu0 0.0
      %1287 = vmatprep.subr.mxu0 0.0
      %1288 = vmatpush1.msra.mxu0 0.0
      %1289 = vmatprep.subr.mxu0 0.0
      %1290 = vmatpush1.msra.mxu0 0.0
      %1291 = vmatprep.subr.mxu0 0.0
      %1292 = vmatpush1.msra.mxu0 0.0
      %1293 = vmatprep.subr.mxu0 0.0
      %1294 = vmatpush1.msra.mxu0 0.0
      %1295 = vmatprep.subr.mxu0 0.0
      %1296 = vmatpush1.msra.mxu0 0.0
      %1297 = vmatprep.mubr.f32.mxu0 0.0
      %1298 = vmatmul.mubr.f32.gmra.mrb[0].mxu0 %v1231
      %v1299 = vpop.f32.mrb[0].mxu0
      %v1300 = vadd.f32 0.0, %v1299
      %v1301 = vpop.f32.mrb[0].mxu0
      %1302 = vdwg.mxu0
      %v1303 = vadd.f32 %v1217, %v1300
      %s1304 = scalar_lea.vmem %s1, 704
      %v1305 = vld [vmem:[%s1304] sm:$0xff]
      %v1306 = vld [vmem:[%s1304 + $0x8] sm:$0xff]
      %v1307 = vld [vmem:[%s1304 + $0x10] sm:$0xff]
      %v1308 = vld [vmem:[%s1304 + $0x18] sm:$0xff]
      %v1309 = vld [vmem:[%s1304 + $0x20] sm:$0xff]
      %v1310 = vld [vmem:[%s1304 + $0x28] sm:$0xff]
      %v1311 = vld [vmem:[%s1304 + $0x30] sm:$0xff]
      %v1312 = vld [vmem:[%s1304 + $0x38] sm:$0xff]
      %v1313 = vrot.slane %v370, 5
      %v1314 = vsel %vm718, %v720, %v1313
      %v1315 = vsel %vm391, %v1314, 0
      %1317 = vmatprep.subr.mxu0 0.0
      %1318 = vmatpush1.msra.mxu0 %v1305
      %1319 = vmatprep.subr.mxu0 0.0
      %1320 = vmatpush1.msra.mxu0 %v1306
      %1321 = vmatprep.subr.mxu0 0.0
      %1322 = vmatpush1.msra.mxu0 %v1307
      %1323 = vmatprep.subr.mxu0 0.0
      %1324 = vmatpush1.msra.mxu0 %v1308
      %1325 = vmatprep.subr.mxu0 0.0
      %1326 = vmatpush1.msra.mxu0 %v1309
      %1327 = vmatprep.subr.mxu0 0.0
      %1328 = vmatpush1.msra.mxu0 %v1310
      %1329 = vmatprep.subr.mxu0 0.0
      %1330 = vmatpush1.msra.mxu0 %v1311
      %1331 = vmatprep.subr.mxu0 0.0
      %1332 = vmatpush1.msra.mxu0 %v1312
      %1333 = vmatprep.subr.mxu0 0.0
      %1334 = vmatpush1.msra.mxu0 0.0
      %1335 = vmatprep.subr.mxu0 0.0
      %1336 = vmatpush1.msra.mxu0 0.0
      %1337 = vmatprep.subr.mxu0 0.0
      %1338 = vmatpush1.msra.mxu0 0.0
      %1339 = vmatprep.subr.mxu0 0.0
      %1340 = vmatpush1.msra.mxu0 0.0
      %1341 = vmatprep.subr.mxu0 0.0
      %1342 = vmatpush1.msra.mxu0 0.0
      %1343 = vmatprep.subr.mxu0 0.0
      %1344 = vmatpush1.msra.mxu0 0.0
      %1345 = vmatprep.subr.mxu0 0.0
      %1346 = vmatpush1.msra.mxu0 0.0
      %1347 = vmatprep.subr.mxu0 0.0
      %1348 = vmatpush1.msra.mxu0 0.0
      %1349 = vmatprep.subr.mxu0 0.0
      %1350 = vmatpush1.msra.mxu0 0.0
      %1351 = vmatprep.subr.mxu0 0.0
      %1352 = vmatpush1.msra.mxu0 0.0
      %1353 = vmatprep.subr.mxu0 0.0
      %1354 = vmatpush1.msra.mxu0 0.0
      %1355 = vmatprep.subr.mxu0 0.0
      %1356 = vmatpush1.msra.mxu0 0.0
      %1357 = vmatprep.subr.mxu0 0.0
      %1358 = vmatpush1.msra.mxu0 0.0
      %1359 = vmatprep.subr.mxu0 0.0
      %1360 = vmatpush1.msra.mxu0 0.0
      %1361 = vmatprep.subr.mxu0 0.0
      %1362 = vmatpush1.msra.mxu0 0.0
      %1363 = vmatprep.subr.mxu0 0.0
      %1364 = vmatpush1.msra.mxu0 0.0
      %1365 = vmatprep.subr.mxu0 0.0
      %1366 = vmatpush1.msra.mxu0 0.0
      %1367 = vmatprep.subr.mxu0 0.0
      %1368 = vmatpush1.msra.mxu0 0.0
      %1369 = vmatprep.subr.mxu0 0.0
      %1370 = vmatpush1.msra.mxu0 0.0
      %1371 = vmatprep.subr.mxu0 0.0
      %1372 = vmatpush1.msra.mxu0 0.0
      %1373 = vmatprep.subr.mxu0 0.0
      %1374 = vmatpush1.msra.mxu0 0.0
      %1375 = vmatprep.subr.mxu0 0.0
      %1376 = vmatpush1.msra.mxu0 0.0
      %1377 = vmatprep.subr.mxu0 0.0
      %1378 = vmatpush1.msra.mxu0 0.0
      %1379 = vmatprep.subr.mxu0 0.0
      %1380 = vmatpush1.msra.mxu0 0.0
      %1381 = vmatprep.mubr.f32.mxu0 0.0
      %1382 = vmatmul.mubr.f32.gmra.mrb[0].mxu0 %v1315
      %v1383 = vpop.f32.mrb[0].mxu0
      %v1384 = vadd.f32 0.0, %v1383
      %v1385 = vpop.f32.mrb[0].mxu0
      %1386 = vdwg.mxu0
      %v1387 = vadd.f32 %v1303, %v1384
      %s1388 = scalar_lea.vmem %s1, 768
      %v1389 = vld [vmem:[%s1388] sm:$0xff]
      %v1390 = vld [vmem:[%s1388 + $0x8] sm:$0xff]
      %v1391 = vld [vmem:[%s1388 + $0x10] sm:$0xff]
      %v1392 = vld [vmem:[%s1388 + $0x18] sm:$0xff]
      %v1393 = vld [vmem:[%s1388 + $0x20] sm:$0xff]
      %v1394 = vld [vmem:[%s1388 + $0x28] sm:$0xff]
      %v1395 = vld [vmem:[%s1388 + $0x30] sm:$0xff]
      %v1396 = vld [vmem:[%s1388 + $0x38] sm:$0xff]
      %v1397 = vrot.slane %v370, 7
      %v1398 = vsel %vm890, %v892, %v1397
      %v1399 = vsel %vm391, %v1398, 0
      %1401 = vmatprep.subr.mxu0 0.0
      %1402 = vmatpush1.msra.mxu0 %v1389
      %1403 = vmatprep.subr.mxu0 0.0
      %1404 = vmatpush1.msra.mxu0 %v1390
      %1405 = vmatprep.subr.mxu0 0.0
      %1406 = vmatpush1.msra.mxu0 %v1391
      %1407 = vmatprep.subr.mxu0 0.0
      %1408 = vmatpush1.msra.mxu0 %v1392
      %1409 = vmatprep.subr.mxu0 0.0
      %1410 = vmatpush1.msra.mxu0 %v1393
      %1411 = vmatprep.subr.mxu0 0.0
      %1412 = vmatpush1.msra.mxu0 %v1394
      %1413 = vmatprep.subr.mxu0 0.0
      %1414 = vmatpush1.msra.mxu0 %v1395
      %1415 = vmatprep.subr.mxu0 0.0
      %1416 = vmatpush1.msra.mxu0 %v1396
      %1417 = vmatprep.subr.mxu0 0.0
      %1418 = vmatpush1.msra.mxu0 0.0
      %1419 = vmatprep.subr.mxu0 0.0
      %1420 = vmatpush1.msra.mxu0 0.0
      %1421 = vmatprep.subr.mxu0 0.0
      %1422 = vmatpush1.msra.mxu0 0.0
      %1423 = vmatprep.subr.mxu0 0.0
      %1424 = vmatpush1.msra.mxu0 0.0
      %1425 = vmatprep.subr.mxu0 0.0
      %1426 = vmatpush1.msra.mxu0 0.0
      %1427 = vmatprep.subr.mxu0 0.0
      %1428 = vmatpush1.msra.mxu0 0.0
      %1429 = vmatprep.subr.mxu0 0.0
      %1430 = vmatpush1.msra.mxu0 0.0
      %1431 = vmatprep.subr.mxu0 0.0
      %1432 = vmatpush1.msra.mxu0 0.0
      %1433 = vmatprep.subr.mxu0 0.0
      %1434 = vmatpush1.msra.mxu0 0.0
      %1435 = vmatprep.subr.mxu0 0.0
      %1436 = vmatpush1.msra.mxu0 0.0
      %1437 = vmatprep.subr.mxu0 0.0
      %1438 = vmatpush1.msra.mxu0 0.0
      %1439 = vmatprep.subr.mxu0 0.0
      %1440 = vmatpush1.msra.mxu0 0.0
      %1441 = vmatprep.subr.mxu0 0.0
      %1442 = vmatpush1.msra.mxu0 0.0
      %1443 = vmatprep.subr.mxu0 0.0
      %1444 = vmatpush1.msra.mxu0 0.0
      %1445 = vmatprep.subr.mxu0 0.0
      %1446 = vmatpush1.msra.mxu0 0.0
      %1447 = vmatprep.subr.mxu0 0.0
      %1448 = vmatpush1.msra.mxu0 0.0
      %1449 = vmatprep.subr.mxu0 0.0
      %1450 = vmatpush1.msra.mxu0 0.0
      %1451 = vmatprep.subr.mxu0 0.0
      %1452 = vmatpush1.msra.mxu0 0.0
      %1453 = vmatprep.subr.mxu0 0.0
      %1454 = vmatpush1.msra.mxu0 0.0
      %1455 = vmatprep.subr.mxu0 0.0
      %1456 = vmatpush1.msra.mxu0 0.0
      %1457 = vmatprep.subr.mxu0 0.0
      %1458 = vmatpush1.msra.mxu0 0.0
      %1459 = vmatprep.subr.mxu0 0.0
      %1460 = vmatpush1.msra.mxu0 0.0
      %1461 = vmatprep.subr.mxu0 0.0
      %1462 = vmatpush1.msra.mxu0 0.0
      %1463 = vmatprep.subr.mxu0 0.0
      %1464 = vmatpush1.msra.mxu0 0.0
      %1465 = vmatprep.mubr.f32.mxu0 0.0
      %1466 = vmatmul.mubr.f32.gmra.mrb[0].mxu0 %v1399
      %v1467 = vpop.f32.mrb[0].mxu0
      %v1468 = vadd.f32 0.0, %v1467
      %v1469 = vpop.f32.mrb[0].mxu0
      %1470 = vdwg.mxu0
      %v1471 = vadd.f32 %v1387, %v1468
      %s1472 = scalar_lea.vmem %s1, 832
      %v1473 = vld [vmem:[%s1472] sm:$0xff]
      %v1474 = vld [vmem:[%s1472 + $0x8] sm:$0xff]
      %v1475 = vld [vmem:[%s1472 + $0x10] sm:$0xff]
      %v1476 = vld [vmem:[%s1472 + $0x18] sm:$0xff]
      %v1477 = vld [vmem:[%s1472 + $0x20] sm:$0xff]
      %v1478 = vld [vmem:[%s1472 + $0x28] sm:$0xff]
      %v1479 = vld [vmem:[%s1472 + $0x30] sm:$0xff]
      %v1480 = vld [vmem:[%s1472 + $0x38] sm:$0xff]
      %v1481 = vsel %vm391, %v370, 0
      %1483 = vmatprep.subr.mxu0 0.0
      %1484 = vmatpush1.msra.mxu0 %v1473
      %1485 = vmatprep.subr.mxu0 0.0
      %1486 = vmatpush1.msra.mxu0 %v1474
      %1487 = vmatprep.subr.mxu0 0.0
      %1488 = vmatpush1.msra.mxu0 %v1475
      %1489 = vmatprep.subr.mxu0 0.0
      %1490 = vmatpush1.msra.mxu0 %v1476
      %1491 = vmatprep.subr.mxu0 0.0
      %1492 = vmatpush1.msra.mxu0 %v1477
      %1493 = vmatprep.subr.mxu0 0.0
      %1494 = vmatpush1.msra.mxu0 %v1478
      %1495 = vmatprep.subr.mxu0 0.0
      %1496 = vmatpush1.msra.mxu0 %v1479
      %1497 = vmatprep.subr.mxu0 0.0
      %1498 = vmatpush1.msra.mxu0 %v1480
      %1499 = vmatprep.subr.mxu0 0.0
      %1500 = vmatpush1.msra.mxu0 0.0
      %1501 = vmatprep.subr.mxu0 0.0
      %1502 = vmatpush1.msra.mxu0 0.0
      %1503 = vmatprep.subr.mxu0 0.0
      %1504 = vmatpush1.msra.mxu0 0.0
      %1505 = vmatprep.subr.mxu0 0.0
      %1506 = vmatpush1.msra.mxu0 0.0
      %1507 = vmatprep.subr.mxu0 0.0
      %1508 = vmatpush1.msra.mxu0 0.0
      %1509 = vmatprep.subr.mxu0 0.0
      %1510 = vmatpush1.msra.mxu0 0.0
      %1511 = vmatprep.subr.mxu0 0.0
      %1512 = vmatpush1.msra.mxu0 0.0
      %1513 = vmatprep.subr.mxu0 0.0
      %1514 = vmatpush1.msra.mxu0 0.0
      %1515 = vmatprep.subr.mxu0 0.0
      %1516 = vmatpush1.msra.mxu0 0.0
      %1517 = vmatprep.subr.mxu0 0.0
      %1518 = vmatpush1.msra.mxu0 0.0
      %1519 = vmatprep.subr.mxu0 0.0
      %1520 = vmatpush1.msra.mxu0 0.0
      %1521 = vmatprep.subr.mxu0 0.0
      %1522 = vmatpush1.msra.mxu0 0.0
      %1523 = vmatprep.subr.mxu0 0.0
      %1524 = vmatpush1.msra.mxu0 0.0
      %1525 = vmatprep.subr.mxu0 0.0
      %1526 = vmatpush1.msra.mxu0 0.0
      %1527 = vmatprep.subr.mxu0 0.0
      %1528 = vmatpush1.msra.mxu0 0.0
      %1529 = vmatprep.subr.mxu0 0.0
      %1530 = vmatpush1.msra.mxu0 0.0
      %1531 = vmatprep.subr.mxu0 0.0
      %1532 = vmatpush1.msra.mxu0 0.0
      %1533 = vmatprep.subr.mxu0 0.0
      %1534 = vmatpush1.msra.mxu0 0.0
      %1535 = vmatprep.subr.mxu0 0.0
      %1536 = vmatpush1.msra.mxu0 0.0
      %1537 = vmatprep.subr.mxu0 0.0
      %1538 = vmatpush1.msra.mxu0 0.0
      %1539 = vmatprep.subr.mxu0 0.0
      %1540 = vmatpush1.msra.mxu0 0.0
      %1541 = vmatprep.subr.mxu0 0.0
      %1542 = vmatpush1.msra.mxu0 0.0
      %1543 = vmatprep.subr.mxu0 0.0
      %1544 = vmatpush1.msra.mxu0 0.0
      %1545 = vmatprep.subr.mxu0 0.0
      %1546 = vmatpush1.msra.mxu0 0.0
      %1547 = vmatprep.mubr.f32.mxu0 0.0
      %1548 = vmatmul.mubr.f32.gmra.mrb[0].mxu0 %v1481
      %v1549 = vpop.f32.mrb[0].mxu0
      %v1550 = vadd.f32 0.0, %v1549
      %v1551 = vpop.f32.mrb[0].mxu0
      %1552 = vdwg.mxu0
      %v1553 = vadd.f32 %v1471, %v1550
      %s1554 = scalar_lea.vmem %s1, 896
      %v1555 = vld [vmem:[%s1554] sm:$0xff]
      %v1556 = vld [vmem:[%s1554 + $0x8] sm:$0xff]
      %v1557 = vld [vmem:[%s1554 + $0x10] sm:$0xff]
      %v1558 = vld [vmem:[%s1554 + $0x18] sm:$0xff]
      %v1559 = vld [vmem:[%s1554 + $0x20] sm:$0xff]
      %v1560 = vld [vmem:[%s1554 + $0x28] sm:$0xff]
      %v1561 = vld [vmem:[%s1554 + $0x30] sm:$0xff]
      %v1562 = vld [vmem:[%s1554 + $0x38] sm:$0xff]
      %v1563 = vrot.slane %v370, 1
      %v1564 = vsel %vm391, %v1563, 0
      %1566 = vmatprep.subr.mxu0 0.0
      %1567 = vmatpush1.msra.mxu0 %v1555
      %1568 = vmatprep.subr.mxu0 0.0
      %1569 = vmatpush1.msra.mxu0 %v1556
      %1570 = vmatprep.subr.mxu0 0.0
      %1571 = vmatpush1.msra.mxu0 %v1557
      %1572 = vmatprep.subr.mxu0 0.0
      %1573 = vmatpush1.msra.mxu0 %v1558
      %1574 = vmatprep.subr.mxu0 0.0
      %1575 = vmatpush1.msra.mxu0 %v1559
      %1576 = vmatprep.subr.mxu0 0.0
      %1577 = vmatpush1.msra.mxu0 %v1560
      %1578 = vmatprep.subr.mxu0 0.0
      %1579 = vmatpush1.msra.mxu0 %v1561
      %1580 = vmatprep.subr.mxu0 0.0
      %1581 = vmatpush1.msra.mxu0 %v1562
      %1582 = vmatprep.subr.mxu0 0.0
      %1583 = vmatpush1.msra.mxu0 0.0
      %1584 = vmatprep.subr.mxu0 0.0
      %1585 = vmatpush1.msra.mxu0 0.0
      %1586 = vmatprep.subr.mxu0 0.0
      %1587 = vmatpush1.msra.mxu0 0.0
      %1588 = vmatprep.subr.mxu0 0.0
      %1589 = vmatpush1.msra.mxu0 0.0
      %1590 = vmatprep.subr.mxu0 0.0
      %1591 = vmatpush1.msra.mxu0 0.0
      %1592 = vmatprep.subr.mxu0 0.0
      %1593 = vmatpush1.msra.mxu0 0.0
      %1594 = vmatprep.subr.mxu0 0.0
      %1595 = vmatpush1.msra.mxu0 0.0
      %1596 = vmatprep.subr.mxu0 0.0
      %1597 = vmatpush1.msra.mxu0 0.0
      %1598 = vmatprep.subr.mxu0 0.0
      %1599 = vmatpush1.msra.mxu0 0.0
      %1600 = vmatprep.subr.mxu0 0.0
      %1601 = vmatpush1.msra.mxu0 0.0
      %1602 = vmatprep.subr.mxu0 0.0
      %1603 = vmatpush1.msra.mxu0 0.0
      %1604 = vmatprep.subr.mxu0 0.0
      %1605 = vmatpush1.msra.mxu0 0.0
      %1606 = vmatprep.subr.mxu0 0.0
      %1607 = vmatpush1.msra.mxu0 0.0
      %1608 = vmatprep.subr.mxu0 0.0
      %1609 = vmatpush1.msra.mxu0 0.0
      %1610 = vmatprep.subr.mxu0 0.0
      %1611 = vmatpush1.msra.mxu0 0.0
      %1612 = vmatprep.subr.mxu0 0.0
      %1613 = vmatpush1.msra.mxu0 0.0
      %1614 = vmatprep.subr.mxu0 0.0
      %1615 = vmatpush1.msra.mxu0 0.0
      %1616 = vmatprep.subr.mxu0 0.0
      %1617 = vmatpush1.msra.mxu0 0.0
      %1618 = vmatprep.subr.mxu0 0.0
      %1619 = vmatpush1.msra.mxu0 0.0
      %1620 = vmatprep.subr.mxu0 0.0
      %1621 = vmatpush1.msra.mxu0 0.0
      %1622 = vmatprep.subr.mxu0 0.0
      %1623 = vmatpush1.msra.mxu0 0.0
      %1624 = vmatprep.subr.mxu0 0.0
      %1625 = vmatpush1.msra.mxu0 0.0
      %1626 = vmatprep.subr.mxu0 0.0
      %1627 = vmatpush1.msra.mxu0 0.0
      %1628 = vmatprep.subr.mxu0 0.0
      %1629 = vmatpush1.msra.mxu0 0.0
      %1630 = vmatprep.mubr.f32.mxu0 0.0
      %1631 = vmatmul.mubr.f32.gmra.mrb[0].mxu0 %v1564
      %v1632 = vpop.f32.mrb[0].mxu0
      %v1633 = vadd.f32 0.0, %v1632
      %v1634 = vpop.f32.mrb[0].mxu0
      %1635 = vdwg.mxu0
      %v1636 = vadd.f32 %v1553, %v1633
      %s1637 = scalar_lea.vmem %s1, 960
      %v1638 = vld [vmem:[%s1637] sm:$0xff]
      %v1639 = vld [vmem:[%s1637 + $0x8] sm:$0xff]
      %v1640 = vld [vmem:[%s1637 + $0x10] sm:$0xff]
      %v1641 = vld [vmem:[%s1637 + $0x18] sm:$0xff]
      %v1642 = vld [vmem:[%s1637 + $0x20] sm:$0xff]
      %v1643 = vld [vmem:[%s1637 + $0x28] sm:$0xff]
      %v1644 = vld [vmem:[%s1637 + $0x30] sm:$0xff]
      %v1645 = vld [vmem:[%s1637 + $0x38] sm:$0xff]
      %v1647 = vrot.slane %v371, 2
      %v1648 = vsel %vm546, %v1059, %v1647
      %v1649 = vsel %vm391, %v1648, 0
      %1651 = vmatprep.subr.mxu0 0.0
      %1652 = vmatpush1.msra.mxu0 %v1638
      %1653 = vmatprep.subr.mxu0 0.0
      %1654 = vmatpush1.msra.mxu0 %v1639
      %1655 = vmatprep.subr.mxu0 0.0
      %1656 = vmatpush1.msra.mxu0 %v1640
      %1657 = vmatprep.subr.mxu0 0.0
      %1658 = vmatpush1.msra.mxu0 %v1641
      %1659 = vmatprep.subr.mxu0 0.0
      %1660 = vmatpush1.msra.mxu0 %v1642
      %1661 = vmatprep.subr.mxu0 0.0
      %1662 = vmatpush1.msra.mxu0 %v1643
      %1663 = vmatprep.subr.mxu0 0.0
      %1664 = vmatpush1.msra.mxu0 %v1644
      %1665 = vmatprep.subr.mxu0 0.0
      %1666 = vmatpush1.msra.mxu0 %v1645
      %1667 = vmatprep.subr.mxu0 0.0
      %1668 = vmatpush1.msra.mxu0 0.0
      %1669 = vmatprep.subr.mxu0 0.0
      %1670 = vmatpush1.msra.mxu0 0.0
      %1671 = vmatprep.subr.mxu0 0.0
      %1672 = vmatpush1.msra.mxu0 0.0
      %1673 = vmatprep.subr.mxu0 0.0
      %1674 = vmatpush1.msra.mxu0 0.0
      %1675 = vmatprep.subr.mxu0 0.0
      %1676 = vmatpush1.msra.mxu0 0.0
      %1677 = vmatprep.subr.mxu0 0.0
      %1678 = vmatpush1.msra.mxu0 0.0
      %1679 = vmatprep.subr.mxu0 0.0
      %1680 = vmatpush1.msra.mxu0 0.0
      %1681 = vmatprep.subr.mxu0 0.0
      %1682 = vmatpush1.msra.mxu0 0.0
      %1683 = vmatprep.subr.mxu0 0.0
      %1684 = vmatpush1.msra.mxu0 0.0
      %1685 = vmatprep.subr.mxu0 0.0
      %1686 = vmatpush1.msra.mxu0 0.0
      %1687 = vmatprep.subr.mxu0 0.0
      %1688 = vmatpush1.msra.mxu0 0.0
      %1689 = vmatprep.subr.mxu0 0.0
      %1690 = vmatpush1.msra.mxu0 0.0
      %1691 = vmatprep.subr.mxu0 0.0
      %1692 = vmatpush1.msra.mxu0 0.0
      %1693 = vmatprep.subr.mxu0 0.0
      %1694 = vmatpush1.msra.mxu0 0.0
      %1695 = vmatprep.subr.mxu0 0.0
      %1696 = vmatpush1.msra.mxu0 0.0
      %1697 = vmatprep.subr.mxu0 0.0
      %1698 = vmatpush1.msra.mxu0 0.0
      %1699 = vmatprep.subr.mxu0 0.0
      %1700 = vmatpush1.msra.mxu0 0.0
      %1701 = vmatprep.subr.mxu0 0.0
      %1702 = vmatpush1.msra.mxu0 0.0
      %1703 = vmatprep.subr.mxu0 0.0
      %1704 = vmatpush1.msra.mxu0 0.0
      %1705 = vmatprep.subr.mxu0 0.0
      %1706 = vmatpush1.msra.mxu0 0.0
      %1707 = vmatprep.subr.mxu0 0.0
      %1708 = vmatpush1.msra.mxu0 0.0
      %1709 = vmatprep.subr.mxu0 0.0
      %1710 = vmatpush1.msra.mxu0 0.0
      %1711 = vmatprep.subr.mxu0 0.0
      %1712 = vmatpush1.msra.mxu0 0.0
      %1713 = vmatprep.subr.mxu0 0.0
      %1714 = vmatpush1.msra.mxu0 0.0
      %1715 = vmatprep.mubr.f32.mxu0 0.0
      %1716 = vmatmul.mubr.f32.gmra.mrb[0].mxu0 %v1649
      %v1717 = vpop.f32.mrb[0].mxu0
      %v1718 = vadd.f32 0.0, %v1717
      %v1719 = vpop.f32.mrb[0].mxu0
      %1720 = vdwg.mxu0
      %v1721 = vadd.f32 %v1636, %v1718
      %v1722 = vld [vmem:[#allocation2] sm:$0x1]
      %v1724 = vlaneseq
      %v1725 = vshrl.u32 %v1724, 7
      %v1726 = vsub.s32 0, %v1725
      %v1727 = vrot.slane %v1722, %v1726
      %v1729 = vadd.f32 %v1721, %v1727
      %vm1730 = vcmask 6144
      %1731 = vst.msk [vmem:[%s224] sm:$0x7f] %vm1730, %v1729
      %p1732 = scmp.lt.s32.totalorder %s18, 1
      %s1733 = scalar_select %p1732, %s18, 1
      %s1734 = smul.addr %s1733, 8
      %s1735 = scalar_lea.vmem %s5, %s1734
      // Predicated region
      $region41: #{patch_discriminator_forward.9} parent=39 // pred_check
        %p1736 = pneg %p146
      $region42: #{patch_discriminator_forward.9} parent=39 // pred_check_branch
        %1738 = sbr.rel (%p1736) target = $region44
      $region43: #{patch_discriminator_forward.9} parent=39 // pred_region
        _
      $region44: #{patch_discriminator_forward.9} parent=39 // pred_fallthru
        _
    $region40: #{patch_discriminator_forward.9} parent=5 // pred_fallthru
      _
    %p1739 = scmp.le.s32.totalorder 2, %s13
    // Predicated region
    $region45: #{patch_discriminator_forward.9} parent=5 // pred_check
      %p1740 = pneg %p1739
    $region46: #{patch_discriminator_forward.9} parent=5 // pred_check_branch
      %1742 = sbr.rel (%p1740) target = $region48
    $region47: #{patch_discriminator_forward.9} parent=5 // pred_region
      %s1743 = ssub.s32 %s13, 2
      // Predicated region
      $region49: #{patch_discriminator_forward.9} parent=47 // pred_check
        %p1744 = pneg %p152
      $region50: #{patch_discriminator_forward.9} parent=47 // pred_check_branch
        %1746 = sbr.rel (%p1744) target = $region52
      $region51: #{patch_discriminator_forward.9} parent=47 // pred_region
        %p1747 = scmp.lt.s32.totalorder %s19, 1
        %s1748 = scalar_select %p1747, %s19, 1
        %s1749 = smul.addr %s1748, 8
        %s1750 = scalar_lea.vmem %s5, %s1749
      $region52: #{patch_discriminator_forward.9} parent=47 // pred_fallthru
        _
    $region48: #{patch_discriminator_forward.9} parent=5 // pred_fallthru
      _
  $region6: #{patch_discriminator_forward.9} parent=0 // loop_footer
    %s17 = sadd.s32 1, %s13
  $region7: #{patch_discriminator_forward.9} parent=0 // loop_footer_branch
    %12 = sbr.rel target = $region3
  $region8: #{patch_discriminator_forward.9} parent=0 // loop_exit
    _

</llo_original>
